<compile_context>
chip_gen: v6e
topology: v6e:2x2x1
jax: 0.10.0
libtpu: 0.0.40
codegen_flags: <defaults>
</compile_context>

<pallas_src>
import numpy as np

import jax
import jax.numpy as jnp
from jax.experimental import pallas as pl
from jax.experimental.pallas import tpu as pltpu


# ----------------------------------------------------------------------------
# In-kernel helpers
# ----------------------------------------------------------------------------
def _sigmoid(x):
    # Exact sigmoid (exp on the EUP, true divide); approx reciprocal removed
    # per the correctness review.
    return 1.0 / (1.0 + jnp.exp(-x))


# ----------------------------------------------------------------------------
# Fused LeNet kernel: one grid step = TB images.
#
# Layouts (per step, TB = images/step):
#   conv1 act  a1 : rows = b*24 + oh            cols = co*24 + ow   (144)
#   conv2 act  a2 : rows = b*16 + s (s=2*oh OK) cols = co*8  + ow   (128)
#   fc acts       : rows = b*8  + j (j=0 OK)    cols = feature
# Odd/garbage rows are a by-product of folding the 2x2-pool stride-2
# selection into the next layer's weights; they are finite and discarded.
# ----------------------------------------------------------------------------
def _lenet_kernel(x_ref, t1_ref, b1_ref, t2_ref, b2_ref, w3_ref, b3_ref,
                  w4_ref, b4_ref, w5_ref, b5_ref, o_ref):
    f32 = jnp.float32
    tb = x_ref.shape[0]
    x = x_ref[...]                                             # (TB, 28, 28)

    # ---- conv1 (1->6, 5x5) : one batched matmul --------------------------
    # lhs1[b*24+oh, kh*28+r] = x[b, oh+kh, r]
    lhs1 = jnp.concatenate([x[:, kh:kh + 24, :] for kh in range(5)], axis=2)
    lhs1 = lhs1.reshape(tb * 24, 5 * 28)                       # (TB*24, 140)
    a1 = jnp.dot(lhs1, t1_ref[...], preferred_element_type=f32) + b1_ref[...]
    s1 = _sigmoid(a1).reshape(tb, 24, 144)                     # (TB, 24, 144)

    # ---- pool1: 2x2 max, VPU only (stride-2 pick folded into conv2 wts) --
    rm1 = jnp.maximum(s1[:, 0:23, :], s1[:, 1:24, :])          # (TB, 23, 144)
    rm1 = jnp.concatenate([rm1, s1[:, 23:24, :]], axis=1)      # pad -> 24 rows
    cm1 = jnp.maximum(rm1[:, :, 0:143], rm1[:, :, 1:144])      # (TB, 24, 143)

    # ---- conv2 (6->16, 5x5), all kh & input channels in ONE matmul -------
    # lhs2[b*16+s, kh*143+c] = cm1[b, s+2*kh, c]; valid output rows: s = 2*oh
    lhs2 = jnp.concatenate([cm1[:, 2 * kh:2 * kh + 16, :] for kh in range(5)],
                           axis=2)
    lhs2 = lhs2.reshape(tb * 16, 5 * 143)                      # (TB*16, 715)
    a2 = jnp.dot(lhs2, t2_ref[...], preferred_element_type=f32) + b2_ref[...]
    s2 = _sigmoid(a2).reshape(tb, 16, 128)                     # (TB, 16, 128)

    # ---- pool2: 2x2 max, VPU only (stride-2 pick folded into fc1 wts) ----
    rm2 = jnp.maximum(s2[:, 0:14, :], s2[:, 2:16, :])          # (TB, 14, 128)
    cm2 = jnp.maximum(rm2[:, :, 0:127], rm2[:, :, 1:128])      # (TB, 14, 127)
    cm2 = jnp.concatenate([cm2, cm2[:, 8:14, :]], axis=1)      # pad -> 20 rows

    # ---- fc1 (256 -> 120): one matmul; true result lives in row j=0 ------
    # lhs3[b*8+j, g*127+c] = cm2[b, 4*g+j, c]   (j=0 is the real flatten)
    lhs3 = jnp.concatenate([cm2[:, 4 * g:4 * g + 8, :] for g in range(4)],
                           axis=2)
    lhs3 = lhs3.reshape(tb * 8, 4 * 127)                       # (TB*8, 508)
    h1 = _sigmoid(jnp.dot(lhs3, w3_ref[...], preferred_element_type=f32)
                  + b3_ref[...])                               # (TB*8, 120)

    # ---- fc2 (120 -> 84) + sigmoid, fc3 (84 -> 10, zero-padded to 128) ---
    h2 = _sigmoid(jnp.dot(h1, w4_ref[...], preferred_element_type=f32)
                  + b4_ref[...])                               # (TB*8, 84)
    o_ref[...] = (jnp.dot(h2, w5_ref[...], preferred_element_type=f32)
                  + b5_ref[...])                               # (TB*8, 128)


# ----------------------------------------------------------------------------
# Parameters: init in PyTorch-native shapes, re-layout ONCE for the kernel.
# ----------------------------------------------------------------------------
def init_lenet_params(key):
    ks = jax.random.split(key, 10)
    s = 0.1
    return {
        "w1": jax.random.normal(ks[0], (6, 1, 5, 5), jnp.float32) * s,
        "b1": jax.random.normal(ks[1], (6,), jnp.float32) * s,
        "w2": jax.random.normal(ks[2], (16, 6, 5, 5), jnp.float32) * s,
        "b2": jax.random.normal(ks[3], (16,), jnp.float32) * s,
        "w3": jax.random.normal(ks[4], (120, 256), jnp.float32) * s,
        "b3": jax.random.normal(ks[5], (120,), jnp.float32) * s,
        "w4": jax.random.normal(ks[6], (84, 120), jnp.float32) * s,
        "b4": jax.random.normal(ks[7], (84,), jnp.float32) * s,
        "w5": jax.random.normal(ks[8], (10, 84), jnp.float32) * s,
        "b5": jax.random.normal(ks[9], (10,), jnp.float32) * s,
    }


def prepare_params(p):
    """One-time host-side re-layout of PyTorch-shaped params.

    The banded conv matrices also absorb the stride-2 selection of the
    preceding max-pool (zero-interleaved rows), so the kernel only ever does
    shifted maxima + dense matmuls.
    """
    w1 = np.asarray(p["w1"]); b1 = np.asarray(p["b1"])
    w2 = np.asarray(p["w2"]); b2 = np.asarray(p["b2"])
    w3 = np.asarray(p["w3"]); b3 = np.asarray(p["b3"])
    w4 = np.asarray(p["w4"]); b4 = np.asarray(p["b4"])
    w5 = np.asarray(p["w5"]); b5 = np.asarray(p["b5"])

    # conv1:  t1[kh*28 + r, co*24 + ow] = w1[co, 0, kh, r - ow]
    t1 = np.zeros((5, 28, 6, 24), np.float32)
    for co in range(6):
        for kh in range(5):
            for kw in range(5):
                for ow in range(24):
                    t1[kh, ow + kw, co, ow] = w1[co, 0, kh, kw]
    t1 = t1.reshape(5 * 28, 6 * 24)                            # (140, 144)

    # conv2 (pool1 selection folded in, column of cm1 = ci*24 + 2*pooled_col):
    #   t2[kh*143 + ci*24 + 2*(ow+kw), co*8 + ow] = w2[co, ci, kh, kw]
    t2 = np.zeros((5, 143, 16, 8), np.float32)
    for co in range(16):
        for ci in range(6):
            for kh in range(5):
                for kw in range(5):
                    for ow in range(8):
                        t2[kh, ci * 24 + 2 * (ow + kw), co, ow] = \
                            w2[co, ci, kh, kw]
    t2 = t2.reshape(5 * 143, 16 * 8)                           # (715, 128)

    # fc1 (pool2 selection + PyTorch (c,h,w) flatten folded in):
    #   w3c[g*127 + co*8 + 2*w, m] = w3[m, co*16 + g*4 + w]
    w3c = np.zeros((4, 127, 120), np.float32)
    for m in range(120):
        for co in range(16):
            for g in range(4):
                for w in range(4):
                    w3c[g, co * 8 + 2 * w, m] = w3[m, co * 16 + g * 4 + w]
    w3c = w3c.reshape(4 * 127, 120)                            # (508, 120)

    # fc3 zero-padded to 128 output lanes for a lane-dense store.
    w5p = np.zeros((84, 128), np.float32); w5p[:, :10] = w5.T
    b5p = np.zeros((1, 128), np.float32);  b5p[0, :10] = b5

    return {
        "t1": jnp.asarray(t1),
        "b1": jnp.asarray(np.repeat(b1, 24).reshape(1, 144)),
        "t2": jnp.asarray(t2),
        "b2": jnp.asarray(np.repeat(b2, 8).reshape(1, 128)),
        "w3": jnp.asarray(w3c),
        "b3": jnp.asarray(b3.reshape(1, 120)),
        "w4": jnp.asarray(np.ascontiguousarray(w4.T)),         # (120, 84)
        "b4": jnp.asarray(b4.reshape(1, 84)),
        "w5": jnp.asarray(w5p),                                # (84, 128)
        "b5": jnp.asarray(b5p),
    }


# ----------------------------------------------------------------------------
# Forward wrapper: one pallas_call, TB images per grid step.
# ----------------------------------------------------------------------------
def lenet_forward(kparams, img, tile_b=16):
    """img: (B, 1, 28, 28) float32 -> logits (B, 10) float32."""
    assert tile_b % 8 == 0
    B = img.shape[0]
    x = img.reshape(B, 28, 28).astype(jnp.float32)
    bp = ((B + tile_b - 1) // tile_b) * tile_b
    if bp != B:
        x = jnp.concatenate([x, jnp.zeros((bp - B, 28, 28), jnp.float32)], 0)
    n_steps = bp // tile_b

    out = pl.pallas_call(
        _lenet_kernel,
        out_shape=jax.ShapeDtypeStruct((bp * 8, 128), jnp.float32),
        grid=(n_steps,),
        in_specs=[
            pl.BlockSpec((tile_b, 28, 28), lambda b: (b, 0, 0)),   # images
            pl.BlockSpec((140, 144), lambda b: (0, 0)),            # conv1 W
            pl.BlockSpec((1, 144), lambda b: (0, 0)),              # conv1 b
            pl.BlockSpec((715, 128), lambda b: (0, 0)),            # conv2 W
            pl.BlockSpec((1, 128), lambda b: (0, 0)),              # conv2 b
            pl.BlockSpec((508, 120), lambda b: (0, 0)),            # fc1 W
            pl.BlockSpec((1, 120), lambda b: (0, 0)),              # fc1 b
            pl.BlockSpec((120, 84), lambda b: (0, 0)),             # fc2 W
            pl.BlockSpec((1, 84), lambda b: (0, 0)),               # fc2 b
            pl.BlockSpec((84, 128), lambda b: (0, 0)),             # fc3 W(pad)
            pl.BlockSpec((1, 128), lambda b: (0, 0)),              # fc3 b(pad)
        ],
        out_specs=pl.BlockSpec((tile_b * 8, 128), lambda b: (b, 0)),
        compiler_params=pltpu.CompilerParams(
            dimension_semantics=("parallel",)),
    )(x, kparams["t1"], kparams["b1"], kparams["t2"], kparams["b2"],
      kparams["w3"], kparams["b3"], kparams["w4"], kparams["b4"],
      kparams["w5"], kparams["b5"])

    # Row j=0 of each image's 8-row slab holds the real logits; lanes 10..127
    # are the zero padding of fc3.  Both slices are free XLA-side ops.
    logits = out.reshape(bp, 8, 128)[:, 0, :10]
    return logits[:B]


# ----------------------------------------------------------------------------
# Pure-JAX reference (PyTorch-equivalent semantics) for a correctness check.
# ----------------------------------------------------------------------------
def lenet_reference(p, img):
    hi = jax.lax.Precision.HIGHEST
    dn = ("NCHW", "OIHW", "NCHW")
    y = jax.lax.conv_general_dilated(img.astype(jnp.float32), p["w1"], (1, 1),
                                     "VALID", dimension_numbers=dn,
                                     precision=hi)
    y = jax.nn.sigmoid(y + p["b1"].reshape(1, 6, 1, 1))
    y = jax.lax.reduce_window(y, -jnp.inf, jax.lax.max, (1, 1, 2, 2),
                              (1, 1, 2, 2), "VALID")
    y = jax.lax.conv_general_dilated(y, p["w2"], (1, 1), "VALID",
                                     dimension_numbers=dn, precision=hi)
    y = jax.nn.sigmoid(y + p["b2"].reshape(1, 16, 1, 1))
    y = jax.lax.reduce_window(y, -jnp.inf, jax.lax.max, (1, 1, 2, 2),
                              (1, 1, 2, 2), "VALID")
    f = y.reshape(y.shape[0], -1)                                  # (B, 256)
    h = jax.nn.sigmoid(jnp.dot(f, p["w3"].T, precision=hi) + p["b3"])
    h = jax.nn.sigmoid(jnp.dot(h, p["w4"].T, precision=hi) + p["b4"])
    return jnp.dot(h, p["w5"].T, precision=hi) + p["b5"]


if __name__ == "__main__":
    key = jax.random.PRNGKey(0)
    k_param, k_input = jax.random.split(key)

    params = init_lenet_params(k_param)
    kparams = prepare_params(params)      # one-time weight re-layout

    # LeNet expects 28x28 inputs (flatten = 16*4*4 = 256).
    # B=32 with tile_b=16 -> 2 parallel grid steps (feeds both v7x TCs).
    B = 32
    x = jax.random.normal(k_input, (B, 1, 28, 28), jnp.float32)

    fwd = jax.jit(lenet_forward)
    logits = fwd(kparams, x)
    jax.block_until_ready(logits)

    assert logits.shape == (B, 10)
    assert logits.dtype == jnp.float32
    assert bool(jnp.all(jnp.isfinite(logits)))

    ref = lenet_reference(params, x)
    err = float(jnp.max(jnp.abs(logits - ref)))
    assert err < 5e-3, f"kernel/reference mismatch: max abs err = {err}"

    print("KERNEL_OK")
</pallas_src>

<mosaic_0001>
module attributes {stable_mosaic.version = 11 : i64} {
  func.func @_lenet_kernel(%arg0: i32, %arg1: memref<16x28x28xf32, #tpu.memory_space<vmem>>, %arg2: memref<140x144xf32, #tpu.memory_space<vmem>>, %arg3: memref<1x144xf32, #tpu.memory_space<vmem>>, %arg4: memref<715x128xf32, #tpu.memory_space<vmem>>, %arg5: memref<1x128xf32, #tpu.memory_space<vmem>>, %arg6: memref<508x120xf32, #tpu.memory_space<vmem>>, %arg7: memref<1x120xf32, #tpu.memory_space<vmem>>, %arg8: memref<120x84xf32, #tpu.memory_space<vmem>>, %arg9: memref<1x84xf32, #tpu.memory_space<vmem>>, %arg10: memref<84x128xf32, #tpu.memory_space<vmem>>, %arg11: memref<1x128xf32, #tpu.memory_space<vmem>>, %arg12: memref<128x128xf32, #tpu.memory_space<vmem>>) attributes {dimension_semantics = [#tpu.dimension_semantics<parallel>], iteration_bounds = array<i64: 2>, scalar_prefetch = 0 : i64, scratch_operands = 0 : i64, tpu.core_type = #tpu.core_type<tc>, window_params = [{transform_indices = @transform_0, window_bounds = array<i64: 16, 28, 28>}, {pipeline_mode = #tpu.pipeline_mode<synchronous>, transform_indices = @transform_1, window_bounds = array<i64: 140, 144>}, {pipeline_mode = #tpu.pipeline_mode<synchronous>, transform_indices = @transform_2, window_bounds = array<i64: 1, 144>}, {pipeline_mode = #tpu.pipeline_mode<synchronous>, transform_indices = @transform_3, window_bounds = array<i64: 715, 128>}, {pipeline_mode = #tpu.pipeline_mode<synchronous>, transform_indices = @transform_4, window_bounds = array<i64: 1, 128>}, {pipeline_mode = #tpu.pipeline_mode<synchronous>, transform_indices = @transform_5, window_bounds = array<i64: 508, 120>}, {pipeline_mode = #tpu.pipeline_mode<synchronous>, transform_indices = @transform_6, window_bounds = array<i64: 1, 120>}, {pipeline_mode = #tpu.pipeline_mode<synchronous>, transform_indices = @transform_7, window_bounds = array<i64: 120, 84>}, {pipeline_mode = #tpu.pipeline_mode<synchronous>, transform_indices = @transform_8, window_bounds = array<i64: 1, 84>}, {pipeline_mode = #tpu.pipeline_mode<synchronous>, transform_indices = @transform_9, window_bounds = array<i64: 84, 128>}, {pipeline_mode = #tpu.pipeline_mode<synchronous>, transform_indices = @transform_10, window_bounds = array<i64: 1, 128>}, {transform_indices = @transform_11, window_bounds = array<i64: 128, 128>}]} {
    %c0 = arith.constant 0 : index
    %c0_0 = arith.constant 0 : index
    %c0_1 = arith.constant 0 : index
    %0 = vector.load %arg1[%c0, %c0_0, %c0_1] : memref<16x28x28xf32, #tpu.memory_space<vmem>>, vector<16x28x28xf32>
    %1 = vector.extract_strided_slice %0 {offsets = [0, 0, 0], sizes = [16, 24, 28], strides = [1, 1, 1]} : vector<16x28x28xf32> to vector<16x24x28xf32>
    %2 = vector.extract_strided_slice %0 {offsets = [0, 1, 0], sizes = [16, 24, 28], strides = [1, 1, 1]} : vector<16x28x28xf32> to vector<16x24x28xf32>
    %3 = vector.extract_strided_slice %0 {offsets = [0, 2, 0], sizes = [16, 24, 28], strides = [1, 1, 1]} : vector<16x28x28xf32> to vector<16x24x28xf32>
    %4 = vector.extract_strided_slice %0 {offsets = [0, 3, 0], sizes = [16, 24, 28], strides = [1, 1, 1]} : vector<16x28x28xf32> to vector<16x24x28xf32>
    %5 = vector.extract_strided_slice %0 {offsets = [0, 4, 0], sizes = [16, 24, 28], strides = [1, 1, 1]} : vector<16x28x28xf32> to vector<16x24x28xf32>
    %6 = tpu.concatenate %1, %2, %3, %4, %5 in 2 : vector<16x24x28xf32>, vector<16x24x28xf32>, vector<16x24x28xf32>, vector<16x24x28xf32>, vector<16x24x28xf32> -> vector<16x24x140xf32>
    %7 = vector.shape_cast %6 : vector<16x24x140xf32> to vector<384x140xf32>
    %c0_2 = arith.constant 0 : index
    %c0_3 = arith.constant 0 : index
    %8 = vector.load %arg2[%c0_2, %c0_3] : memref<140x144xf32, #tpu.memory_space<vmem>>, vector<140x144xf32>
    %cst = arith.constant dense<0.000000e+00> : vector<384x144xf32>
    %9 = tpu.matmul %7, %8, %cst {dimension_numbers = #tpu.dot_dimension_numbers<[1], [0], [0], [1], [0, 0, 1, 1], [], []>} : vector<384x140xf32>, vector<140x144xf32>, vector<384x144xf32> -> vector<384x144xf32>
    %c0_4 = arith.constant 0 : index
    %c0_5 = arith.constant 0 : index
    %10 = vector.load %arg3[%c0_4, %c0_5] : memref<1x144xf32, #tpu.memory_space<vmem>>, vector<1x144xf32>
    %11 = vector.broadcast %10 : vector<1x144xf32> to vector<384x144xf32>
    %12 = arith.addf %9, %11 : vector<384x144xf32>
    %cst_6 = arith.constant 0.000000e+00 : f32
    %13 = vector.broadcast %cst_6 : f32 to vector<384x144xf32>
    %14 = arith.subf %13, %12 : vector<384x144xf32>
    %15 = math.exp %14 : vector<384x144xf32>
    %cst_7 = arith.constant 1.000000e+00 : f32
    %16 = vector.broadcast %cst_7 : f32 to vector<384x144xf32>
    %17 = arith.addf %16, %15 : vector<384x144xf32>
    %cst_8 = arith.constant 1.000000e+00 : f32
    %18 = vector.broadcast %cst_8 : f32 to vector<384x144xf32>
    %19 = arith.divf %18, %17 : vector<384x144xf32>
    %20 = vector.shape_cast %19 : vector<384x144xf32> to vector<16x24x144xf32>
    %21 = vector.extract_strided_slice %20 {offsets = [0, 0, 0], sizes = [16, 23, 144], strides = [1, 1, 1]} : vector<16x24x144xf32> to vector<16x23x144xf32>
    %22 = vector.extract_strided_slice %20 {offsets = [0, 1, 0], sizes = [16, 23, 144], strides = [1, 1, 1]} : vector<16x24x144xf32> to vector<16x23x144xf32>
    %23 = arith.maximumf %21, %22 : vector<16x23x144xf32>
    %24 = vector.extract_strided_slice %20 {offsets = [0, 23, 0], sizes = [16, 1, 144], strides = [1, 1, 1]} : vector<16x24x144xf32> to vector<16x1x144xf32>
    %25 = tpu.concatenate %23, %24 in 1 : vector<16x23x144xf32>, vector<16x1x144xf32> -> vector<16x24x144xf32>
    %26 = vector.extract_strided_slice %25 {offsets = [0, 0, 0], sizes = [16, 24, 143], strides = [1, 1, 1]} : vector<16x24x144xf32> to vector<16x24x143xf32>
    %27 = vector.extract_strided_slice %25 {offsets = [0, 0, 1], sizes = [16, 24, 143], strides = [1, 1, 1]} : vector<16x24x144xf32> to vector<16x24x143xf32>
    %28 = arith.maximumf %26, %27 : vector<16x24x143xf32>
    %29 = vector.extract_strided_slice %28 {offsets = [0, 0, 0], sizes = [16, 16, 143], strides = [1, 1, 1]} : vector<16x24x143xf32> to vector<16x16x143xf32>
    %30 = vector.extract_strided_slice %28 {offsets = [0, 2, 0], sizes = [16, 16, 143], strides = [1, 1, 1]} : vector<16x24x143xf32> to vector<16x16x143xf32>
    %31 = vector.extract_strided_slice %28 {offsets = [0, 4, 0], sizes = [16, 16, 143], strides = [1, 1, 1]} : vector<16x24x143xf32> to vector<16x16x143xf32>
    %32 = vector.extract_strided_slice %28 {offsets = [0, 6, 0], sizes = [16, 16, 143], strides = [1, 1, 1]} : vector<16x24x143xf32> to vector<16x16x143xf32>
    %33 = vector.extract_strided_slice %28 {offsets = [0, 8, 0], sizes = [16, 16, 143], strides = [1, 1, 1]} : vector<16x24x143xf32> to vector<16x16x143xf32>
    %34 = tpu.concatenate %29, %30, %31, %32, %33 in 2 : vector<16x16x143xf32>, vector<16x16x143xf32>, vector<16x16x143xf32>, vector<16x16x143xf32>, vector<16x16x143xf32> -> vector<16x16x715xf32>
    %35 = vector.shape_cast %34 : vector<16x16x715xf32> to vector<256x715xf32>
    %c0_9 = arith.constant 0 : index
    %c0_10 = arith.constant 0 : index
    %36 = vector.load %arg4[%c0_9, %c0_10] : memref<715x128xf32, #tpu.memory_space<vmem>>, vector<715x128xf32>
    %cst_11 = arith.constant dense<0.000000e+00> : vector<256x128xf32>
    %37 = tpu.matmul %35, %36, %cst_11 {dimension_numbers = #tpu.dot_dimension_numbers<[1], [0], [0], [1], [0, 0, 1, 1], [], []>} : vector<256x715xf32>, vector<715x128xf32>, vector<256x128xf32> -> vector<256x128xf32>
    %c0_12 = arith.constant 0 : index
    %c0_13 = arith.constant 0 : index
    %38 = vector.load %arg5[%c0_12, %c0_13] : memref<1x128xf32, #tpu.memory_space<vmem>>, vector<1x128xf32>
    %39 = vector.broadcast %38 : vector<1x128xf32> to vector<256x128xf32>
    %40 = arith.addf %37, %39 : vector<256x128xf32>
    %cst_14 = arith.constant 0.000000e+00 : f32
    %41 = vector.broadcast %cst_14 : f32 to vector<256x128xf32>
    %42 = arith.subf %41, %40 : vector<256x128xf32>
    %43 = math.exp %42 : vector<256x128xf32>
    %cst_15 = arith.constant 1.000000e+00 : f32
    %44 = vector.broadcast %cst_15 : f32 to vector<256x128xf32>
    %45 = arith.addf %44, %43 : vector<256x128xf32>
    %cst_16 = arith.constant 1.000000e+00 : f32
    %46 = vector.broadcast %cst_16 : f32 to vector<256x128xf32>
    %47 = arith.divf %46, %45 : vector<256x128xf32>
    %48 = vector.shape_cast %47 : vector<256x128xf32> to vector<16x16x128xf32>
    %49 = vector.extract_strided_slice %48 {offsets = [0, 0, 0], sizes = [16, 14, 128], strides = [1, 1, 1]} : vector<16x16x128xf32> to vector<16x14x128xf32>
    %50 = vector.extract_strided_slice %48 {offsets = [0, 2, 0], sizes = [16, 14, 128], strides = [1, 1, 1]} : vector<16x16x128xf32> to vector<16x14x128xf32>
    %51 = arith.maximumf %49, %50 : vector<16x14x128xf32>
    %52 = vector.extract_strided_slice %51 {offsets = [0, 0, 0], sizes = [16, 14, 127], strides = [1, 1, 1]} : vector<16x14x128xf32> to vector<16x14x127xf32>
    %53 = vector.extract_strided_slice %51 {offsets = [0, 0, 1], sizes = [16, 14, 127], strides = [1, 1, 1]} : vector<16x14x128xf32> to vector<16x14x127xf32>
    %54 = arith.maximumf %52, %53 : vector<16x14x127xf32>
    %55 = vector.extract_strided_slice %54 {offsets = [0, 8, 0], sizes = [16, 6, 127], strides = [1, 1, 1]} : vector<16x14x127xf32> to vector<16x6x127xf32>
    %56 = tpu.concatenate %54, %55 in 1 : vector<16x14x127xf32>, vector<16x6x127xf32> -> vector<16x20x127xf32>
    %57 = vector.extract_strided_slice %56 {offsets = [0, 0, 0], sizes = [16, 8, 127], strides = [1, 1, 1]} : vector<16x20x127xf32> to vector<16x8x127xf32>
    %58 = vector.extract_strided_slice %56 {offsets = [0, 4, 0], sizes = [16, 8, 127], strides = [1, 1, 1]} : vector<16x20x127xf32> to vector<16x8x127xf32>
    %59 = vector.extract_strided_slice %56 {offsets = [0, 8, 0], sizes = [16, 8, 127], strides = [1, 1, 1]} : vector<16x20x127xf32> to vector<16x8x127xf32>
    %60 = vector.extract_strided_slice %56 {offsets = [0, 12, 0], sizes = [16, 8, 127], strides = [1, 1, 1]} : vector<16x20x127xf32> to vector<16x8x127xf32>
    %61 = tpu.concatenate %57, %58, %59, %60 in 2 : vector<16x8x127xf32>, vector<16x8x127xf32>, vector<16x8x127xf32>, vector<16x8x127xf32> -> vector<16x8x508xf32>
    %62 = vector.shape_cast %61 : vector<16x8x508xf32> to vector<128x508xf32>
    %c0_17 = arith.constant 0 : index
    %c0_18 = arith.constant 0 : index
    %63 = vector.load %arg6[%c0_17, %c0_18] : memref<508x120xf32, #tpu.memory_space<vmem>>, vector<508x120xf32>
    %cst_19 = arith.constant dense<0.000000e+00> : vector<128x120xf32>
    %64 = tpu.matmul %62, %63, %cst_19 {dimension_numbers = #tpu.dot_dimension_numbers<[1], [0], [0], [1], [0, 0, 1, 1], [], []>} : vector<128x508xf32>, vector<508x120xf32>, vector<128x120xf32> -> vector<128x120xf32>
    %c0_20 = arith.constant 0 : index
    %c0_21 = arith.constant 0 : index
    %65 = vector.load %arg7[%c0_20, %c0_21] : memref<1x120xf32, #tpu.memory_space<vmem>>, vector<1x120xf32>
    %66 = vector.broadcast %65 : vector<1x120xf32> to vector<128x120xf32>
    %67 = arith.addf %64, %66 : vector<128x120xf32>
    %cst_22 = arith.constant 0.000000e+00 : f32
    %68 = vector.broadcast %cst_22 : f32 to vector<128x120xf32>
    %69 = arith.subf %68, %67 : vector<128x120xf32>
    %70 = math.exp %69 : vector<128x120xf32>
    %cst_23 = arith.constant 1.000000e+00 : f32
    %71 = vector.broadcast %cst_23 : f32 to vector<128x120xf32>
    %72 = arith.addf %71, %70 : vector<128x120xf32>
    %cst_24 = arith.constant 1.000000e+00 : f32
    %73 = vector.broadcast %cst_24 : f32 to vector<128x120xf32>
    %74 = arith.divf %73, %72 : vector<128x120xf32>
    %c0_25 = arith.constant 0 : index
    %c0_26 = arith.constant 0 : index
    %75 = vector.load %arg8[%c0_25, %c0_26] : memref<120x84xf32, #tpu.memory_space<vmem>>, vector<120x84xf32>
    %cst_27 = arith.constant dense<0.000000e+00> : vector<128x84xf32>
    %76 = tpu.matmul %74, %75, %cst_27 {dimension_numbers = #tpu.dot_dimension_numbers<[1], [0], [0], [1], [0, 0, 1, 1], [], []>} : vector<128x120xf32>, vector<120x84xf32>, vector<128x84xf32> -> vector<128x84xf32>
    %c0_28 = arith.constant 0 : index
    %c0_29 = arith.constant 0 : index
    %77 = vector.load %arg9[%c0_28, %c0_29] : memref<1x84xf32, #tpu.memory_space<vmem>>, vector<1x84xf32>
    %78 = vector.broadcast %77 : vector<1x84xf32> to vector<128x84xf32>
    %79 = arith.addf %76, %78 : vector<128x84xf32>
    %cst_30 = arith.constant 0.000000e+00 : f32
    %80 = vector.broadcast %cst_30 : f32 to vector<128x84xf32>
    %81 = arith.subf %80, %79 : vector<128x84xf32>
    %82 = math.exp %81 : vector<128x84xf32>
    %cst_31 = arith.constant 1.000000e+00 : f32
    %83 = vector.broadcast %cst_31 : f32 to vector<128x84xf32>
    %84 = arith.addf %83, %82 : vector<128x84xf32>
    %cst_32 = arith.constant 1.000000e+00 : f32
    %85 = vector.broadcast %cst_32 : f32 to vector<128x84xf32>
    %86 = arith.divf %85, %84 : vector<128x84xf32>
    %c0_33 = arith.constant 0 : index
    %c0_34 = arith.constant 0 : index
    %87 = vector.load %arg10[%c0_33, %c0_34] : memref<84x128xf32, #tpu.memory_space<vmem>>, vector<84x128xf32>
    %cst_35 = arith.constant dense<0.000000e+00> : vector<128x128xf32>
    %88 = tpu.matmul %86, %87, %cst_35 {dimension_numbers = #tpu.dot_dimension_numbers<[1], [0], [0], [1], [0, 0, 1, 1], [], []>} : vector<128x84xf32>, vector<84x128xf32>, vector<128x128xf32> -> vector<128x128xf32>
    %c0_36 = arith.constant 0 : index
    %c0_37 = arith.constant 0 : index
    %89 = vector.load %arg11[%c0_36, %c0_37] : memref<1x128xf32, #tpu.memory_space<vmem>>, vector<1x128xf32>
    %90 = vector.broadcast %89 : vector<1x128xf32> to vector<128x128xf32>
    %91 = arith.addf %88, %90 : vector<128x128xf32>
    %c0_38 = arith.constant 0 : index
    %c0_39 = arith.constant 0 : index
    %92 = vector.load %arg12[%c0_38, %c0_39] : memref<128x128xf32, #tpu.memory_space<vmem>>, vector<128x128xf32>
    tpu.vector_store %arg12[%c0_38, %c0_39], %91 {strides = array<i32>} : memref<128x128xf32, #tpu.memory_space<vmem>>, vector<128x128xf32>,
    return
  }
  func.func @transform_0(%arg0: i32) -> (i32, i32, i32) {
    %c0_i32 = arith.constant 0 : i32
    %c0_i32_0 = arith.constant 0 : i32
    %c0_i32_1 = arith.constant 0 : i32
    return %arg0, %c0_i32, %c0_i32_0 : i32, i32, i32
  }
  func.func @transform_1(%arg0: i32) -> (i32, i32) {
    %c0_i32 = arith.constant 0 : i32
    %c0_i32_0 = arith.constant 0 : i32
    %c0_i32_1 = arith.constant 0 : i32
    return %c0_i32, %c0_i32_0 : i32, i32
  }
  func.func @transform_2(%arg0: i32) -> (i32, i32) {
    %c0_i32 = arith.constant 0 : i32
    %c0_i32_0 = arith.constant 0 : i32
    %c0_i32_1 = arith.constant 0 : i32
    return %c0_i32, %c0_i32_0 : i32, i32
  }
  func.func @transform_3(%arg0: i32) -> (i32, i32) {
    %c0_i32 = arith.constant 0 : i32
    %c0_i32_0 = arith.constant 0 : i32
    %c0_i32_1 = arith.constant 0 : i32
    return %c0_i32, %c0_i32_0 : i32, i32
  }
  func.func @transform_4(%arg0: i32) -> (i32, i32) {
    %c0_i32 = arith.constant 0 : i32
    %c0_i32_0 = arith.constant 0 : i32
    %c0_i32_1 = arith.constant 0 : i32
    return %c0_i32, %c0_i32_0 : i32, i32
  }
  func.func @transform_5(%arg0: i32) -> (i32, i32) {
    %c0_i32 = arith.constant 0 : i32
    %c0_i32_0 = arith.constant 0 : i32
    %c0_i32_1 = arith.constant 0 : i32
    return %c0_i32, %c0_i32_0 : i32, i32
  }
  func.func @transform_6(%arg0: i32) -> (i32, i32) {
    %c0_i32 = arith.constant 0 : i32
    %c0_i32_0 = arith.constant 0 : i32
    %c0_i32_1 = arith.constant 0 : i32
    return %c0_i32, %c0_i32_0 : i32, i32
  }
  func.func @transform_7(%arg0: i32) -> (i32, i32) {
    %c0_i32 = arith.constant 0 : i32
    %c0_i32_0 = arith.constant 0 : i32
    %c0_i32_1 = arith.constant 0 : i32
    return %c0_i32, %c0_i32_0 : i32, i32
  }
  func.func @transform_8(%arg0: i32) -> (i32, i32) {
    %c0_i32 = arith.constant 0 : i32
    %c0_i32_0 = arith.constant 0 : i32
    %c0_i32_1 = arith.constant 0 : i32
    return %c0_i32, %c0_i32_0 : i32, i32
  }
  func.func @transform_9(%arg0: i32) -> (i32, i32) {
    %c0_i32 = arith.constant 0 : i32
    %c0_i32_0 = arith.constant 0 : i32
    %c0_i32_1 = arith.constant 0 : i32
    return %c0_i32, %c0_i32_0 : i32, i32
  }
  func.func @transform_10(%arg0: i32) -> (i32, i32) {
    %c0_i32 = arith.constant 0 : i32
    %c0_i32_0 = arith.constant 0 : i32
    %c0_i32_1 = arith.constant 0 : i32
    return %c0_i32, %c0_i32_0 : i32, i32
  }
  func.func @transform_11(%arg0: i32) -> (i32, i32) {
    %c0_i32 = arith.constant 0 : i32
    %c0_i32_0 = arith.constant 0 : i32
    return %arg0, %c0_i32 : i32, i32
  }
}

</mosaic_0001>

<llo_original>
// kernel: lenet_forward.1
$region0: #{lenet_forward.1}
  #allocation0 [shape = 'u32[]', space=smem, size = 0x4, offset = 0x4, fixed_abs, tag = 'smem constant byte address 0x4 - core index']
  #allocation1 [shape = 'u32[144,128]{1,0:T(1,128)}', space=vmem, size = 0x12000, scoped, tag = 'internal scratch']
  %s0 = inlined_call_operand.vmem [shape: f32[32,28,28], index: 0, kind: input, shape index: {}]
  %s1 = inlined_call_operand.vmem [shape: f32[140,144], index: 1, kind: input, shape index: {}]
  %s2 = inlined_call_operand.vmem [shape: f32[1,144], index: 2, kind: input, shape index: {}]
  %s3 = inlined_call_operand.vmem [shape: f32[715,128], index: 3, kind: input, shape index: {}]
  %s4 = inlined_call_operand.vmem [shape: f32[1,128], index: 4, kind: input, shape index: {}]
  %s5 = inlined_call_operand.vmem [shape: f32[508,120], index: 5, kind: input, shape index: {}]
  %s6 = inlined_call_operand.vmem [shape: f32[1,120], index: 6, kind: input, shape index: {}]
  %s7 = inlined_call_operand.vmem [shape: f32[120,84], index: 7, kind: input, shape index: {}]
  %s8 = inlined_call_operand.vmem [shape: f32[1,84], index: 8, kind: input, shape index: {}]
  %s9 = inlined_call_operand.vmem [shape: f32[84,128], index: 9, kind: input, shape index: {}]
  %s10 = inlined_call_operand.vmem [shape: f32[1,128], index: 10, kind: input, shape index: {}]
  %s11 = inlined_call_operand.vmem [shape: f32[256,128], index: 11, kind: output, shape index: {}]
  %s12 = sld [smem:[#allocation0]]
  $region77: #{lenet_forward.1} parent=0
    _
  %s14 = ssub.s32 1, %s12
  %s15 = scalar_select 0, %s14, %s12
  loop: start=0, step=1, limit=4
  $region2: #{lenet_forward.1} parent=0 // loop_pre_header
    _
  $region3: #{lenet_forward.1} parent=0 // loop_header
    %s17 = sphi 0, %s21
    %p18 = scmp.ge.s32.totalorder %s17, 4
    %s27 = sphi 0, %s29
    %s30 = sphi 0, %s27
    %s31 = sphi 0, %s30
    %s47 = sphi 0, %s31
    %s51 = sphi 0, %s51
    %s53 = sphi 0, %s51
    %s54 = sphi 0, %s53
    %s68 = sphi 0, %s54
    %s72 = sphi 0, %s72
    %s74 = sphi 0, %s72
    %s75 = sphi 0, %s74
    %s89 = sphi 0, %s75
    %s93 = sphi 0, %s93
    %s95 = sphi 0, %s93
    %s96 = sphi 0, %s95
    %s110 = sphi 0, %s96
    %s114 = sphi 0, %s114
    %s116 = sphi 0, %s114
    %s117 = sphi 0, %s116
    %s131 = sphi 0, %s117
    %s135 = sphi 0, %s135
    %s137 = sphi 0, %s135
    %s138 = sphi 0, %s137
    %s152 = sphi 0, %s138
    %s156 = sphi 0, %s156
    %s158 = sphi 0, %s156
    %s159 = sphi 0, %s158
    %s173 = sphi 0, %s159
    %s177 = sphi 0, %s177
    %s179 = sphi 0, %s177
    %s180 = sphi 0, %s179
    %s194 = sphi 0, %s180
    %s198 = sphi 0, %s198
    %s200 = sphi 0, %s198
    %s201 = sphi 0, %s200
    %s215 = sphi 0, %s201
    %s219 = sphi 0, %s219
    %s221 = sphi 0, %s219
    %s222 = sphi 0, %s221
    %s236 = sphi 0, %s222
    %s240 = sphi 0, %s240
    %s242 = sphi 0, %s240
    %s243 = sphi 0, %s242
    %s257 = sphi 0, %s243
    %s263 = sphi 0, %s265
    %s266 = sphi 0, %s263
    %s267 = sphi 0, %s266
    %s283 = sphi 0, %s267
  $region4: #{lenet_forward.1} parent=0 // loop_header_branch
    %20 = sbr.rel (%p18) target = $region8
  $region5: #{lenet_forward.1} parent=0 // loop_body
    %s22 = ssub.s32 %s17, 1
    %s23 = ssub.s32 %s17, 2
    %s24 = sadd.s32 %s17, 1
    %s25 = ssub.s32 %s17, %s24
    %p26 = scmp.eq.s32.totalorder %s25, 0
    %s28 = sadd.s32 %s27, 1
    %s29 = scalar_select %p26, %s27, %s28
    %p32 = pneg %p26
    %p33 = scmp.eq.s32.totalorder %s17, 1
    %p34 = por %p32, %p33
    %p35 = scmp.ne.s32.totalorder %s27, %s30
    %p36 = scmp.eq.s32.totalorder %s17, 0
    %p37 = por %p35, %p36
    %p38 = scmp.ne.s32.totalorder %s27, %s30
    %p39 = scmp.eq.s32.totalorder %s22, 1
    %p40 = por %p38, %p39
    %p41 = scmp.ne.s32.totalorder %s30, %s31
    %p42 = scmp.eq.s32.totalorder %s22, 0
    %p43 = por %p41, %p42
    %p44 = scmp.ne.s32.totalorder %s30, %s31
    %p45 = scmp.eq.s32.totalorder %s23, 1
    %p46 = por %p44, %p45
    %p48 = scmp.ne.s32.totalorder %s31, %s47
    %p49 = scmp.eq.s32.totalorder %s23, 0
    %p50 = por %p48, %p49
    %s52 = sadd.s32 %s51, 1
    %p55 = scmp.eq.s32.totalorder %s17, 1
    %p56 = scmp.ne.s32.totalorder %s51, %s53
    %p57 = scmp.eq.s32.totalorder %s17, 0
    %p58 = por %p56, %p57
    %p59 = scmp.ne.s32.totalorder %s51, %s53
    %p60 = scmp.eq.s32.totalorder %s22, 1
    %p61 = por %p59, %p60
    %p62 = scmp.ne.s32.totalorder %s53, %s54
    %p63 = scmp.eq.s32.totalorder %s22, 0
    %p64 = por %p62, %p63
    %p65 = scmp.ne.s32.totalorder %s53, %s54
    %p66 = scmp.eq.s32.totalorder %s23, 1
    %p67 = por %p65, %p66
    %p69 = scmp.ne.s32.totalorder %s54, %s68
    %p70 = scmp.eq.s32.totalorder %s23, 0
    %p71 = por %p69, %p70
    %s73 = sadd.s32 %s72, 1
    %p76 = scmp.eq.s32.totalorder %s17, 1
    %p77 = scmp.ne.s32.totalorder %s72, %s74
    %p78 = scmp.eq.s32.totalorder %s17, 0
    %p79 = por %p77, %p78
    %p80 = scmp.ne.s32.totalorder %s72, %s74
    %p81 = scmp.eq.s32.totalorder %s22, 1
    %p82 = por %p80, %p81
    %p83 = scmp.ne.s32.totalorder %s74, %s75
    %p84 = scmp.eq.s32.totalorder %s22, 0
    %p85 = por %p83, %p84
    %p86 = scmp.ne.s32.totalorder %s74, %s75
    %p87 = scmp.eq.s32.totalorder %s23, 1
    %p88 = por %p86, %p87
    %p90 = scmp.ne.s32.totalorder %s75, %s89
    %p91 = scmp.eq.s32.totalorder %s23, 0
    %p92 = por %p90, %p91
    %s94 = sadd.s32 %s93, 1
    %p97 = scmp.eq.s32.totalorder %s17, 1
    %p98 = scmp.ne.s32.totalorder %s93, %s95
    %p99 = scmp.eq.s32.totalorder %s17, 0
    %p100 = por %p98, %p99
    %p101 = scmp.ne.s32.totalorder %s93, %s95
    %p102 = scmp.eq.s32.totalorder %s22, 1
    %p103 = por %p101, %p102
    %p104 = scmp.ne.s32.totalorder %s95, %s96
    %p105 = scmp.eq.s32.totalorder %s22, 0
    %p106 = por %p104, %p105
    %p107 = scmp.ne.s32.totalorder %s95, %s96
    %p108 = scmp.eq.s32.totalorder %s23, 1
    %p109 = por %p107, %p108
    %p111 = scmp.ne.s32.totalorder %s96, %s110
    %p112 = scmp.eq.s32.totalorder %s23, 0
    %p113 = por %p111, %p112
    %s115 = sadd.s32 %s114, 1
    %p118 = scmp.eq.s32.totalorder %s17, 1
    %p119 = scmp.ne.s32.totalorder %s114, %s116
    %p120 = scmp.eq.s32.totalorder %s17, 0
    %p121 = por %p119, %p120
    %p122 = scmp.ne.s32.totalorder %s114, %s116
    %p123 = scmp.eq.s32.totalorder %s22, 1
    %p124 = por %p122, %p123
    %p125 = scmp.ne.s32.totalorder %s116, %s117
    %p126 = scmp.eq.s32.totalorder %s22, 0
    %p127 = por %p125, %p126
    %p128 = scmp.ne.s32.totalorder %s116, %s117
    %p129 = scmp.eq.s32.totalorder %s23, 1
    %p130 = por %p128, %p129
    %p132 = scmp.ne.s32.totalorder %s117, %s131
    %p133 = scmp.eq.s32.totalorder %s23, 0
    %p134 = por %p132, %p133
    %s136 = sadd.s32 %s135, 1
    %p139 = scmp.eq.s32.totalorder %s17, 1
    %p140 = scmp.ne.s32.totalorder %s135, %s137
    %p141 = scmp.eq.s32.totalorder %s17, 0
    %p142 = por %p140, %p141
    %p143 = scmp.ne.s32.totalorder %s135, %s137
    %p144 = scmp.eq.s32.totalorder %s22, 1
    %p145 = por %p143, %p144
    %p146 = scmp.ne.s32.totalorder %s137, %s138
    %p147 = scmp.eq.s32.totalorder %s22, 0
    %p148 = por %p146, %p147
    %p149 = scmp.ne.s32.totalorder %s137, %s138
    %p150 = scmp.eq.s32.totalorder %s23, 1
    %p151 = por %p149, %p150
    %p153 = scmp.ne.s32.totalorder %s138, %s152
    %p154 = scmp.eq.s32.totalorder %s23, 0
    %p155 = por %p153, %p154
    %s157 = sadd.s32 %s156, 1
    %p160 = scmp.eq.s32.totalorder %s17, 1
    %p161 = scmp.ne.s32.totalorder %s156, %s158
    %p162 = scmp.eq.s32.totalorder %s17, 0
    %p163 = por %p161, %p162
    %p164 = scmp.ne.s32.totalorder %s156, %s158
    %p165 = scmp.eq.s32.totalorder %s22, 1
    %p166 = por %p164, %p165
    %p167 = scmp.ne.s32.totalorder %s158, %s159
    %p168 = scmp.eq.s32.totalorder %s22, 0
    %p169 = por %p167, %p168
    %p170 = scmp.ne.s32.totalorder %s158, %s159
    %p171 = scmp.eq.s32.totalorder %s23, 1
    %p172 = por %p170, %p171
    %p174 = scmp.ne.s32.totalorder %s159, %s173
    %p175 = scmp.eq.s32.totalorder %s23, 0
    %p176 = por %p174, %p175
    %s178 = sadd.s32 %s177, 1
    %p181 = scmp.eq.s32.totalorder %s17, 1
    %p182 = scmp.ne.s32.totalorder %s177, %s179
    %p183 = scmp.eq.s32.totalorder %s17, 0
    %p184 = por %p182, %p183
    %p185 = scmp.ne.s32.totalorder %s177, %s179
    %p186 = scmp.eq.s32.totalorder %s22, 1
    %p187 = por %p185, %p186
    %p188 = scmp.ne.s32.totalorder %s179, %s180
    %p189 = scmp.eq.s32.totalorder %s22, 0
    %p190 = por %p188, %p189
    %p191 = scmp.ne.s32.totalorder %s179, %s180
    %p192 = scmp.eq.s32.totalorder %s23, 1
    %p193 = por %p191, %p192
    %p195 = scmp.ne.s32.totalorder %s180, %s194
    %p196 = scmp.eq.s32.totalorder %s23, 0
    %p197 = por %p195, %p196
    %s199 = sadd.s32 %s198, 1
    %p202 = scmp.eq.s32.totalorder %s17, 1
    %p203 = scmp.ne.s32.totalorder %s198, %s200
    %p204 = scmp.eq.s32.totalorder %s17, 0
    %p205 = por %p203, %p204
    %p206 = scmp.ne.s32.totalorder %s198, %s200
    %p207 = scmp.eq.s32.totalorder %s22, 1
    %p208 = por %p206, %p207
    %p209 = scmp.ne.s32.totalorder %s200, %s201
    %p210 = scmp.eq.s32.totalorder %s22, 0
    %p211 = por %p209, %p210
    %p212 = scmp.ne.s32.totalorder %s200, %s201
    %p213 = scmp.eq.s32.totalorder %s23, 1
    %p214 = por %p212, %p213
    %p216 = scmp.ne.s32.totalorder %s201, %s215
    %p217 = scmp.eq.s32.totalorder %s23, 0
    %p218 = por %p216, %p217
    %s220 = sadd.s32 %s219, 1
    %p223 = scmp.eq.s32.totalorder %s17, 1
    %p224 = scmp.ne.s32.totalorder %s219, %s221
    %p225 = scmp.eq.s32.totalorder %s17, 0
    %p226 = por %p224, %p225
    %p227 = scmp.ne.s32.totalorder %s219, %s221
    %p228 = scmp.eq.s32.totalorder %s22, 1
    %p229 = por %p227, %p228
    %p230 = scmp.ne.s32.totalorder %s221, %s222
    %p231 = scmp.eq.s32.totalorder %s22, 0
    %p232 = por %p230, %p231
    %p233 = scmp.ne.s32.totalorder %s221, %s222
    %p234 = scmp.eq.s32.totalorder %s23, 1
    %p235 = por %p233, %p234
    %p237 = scmp.ne.s32.totalorder %s222, %s236
    %p238 = scmp.eq.s32.totalorder %s23, 0
    %p239 = por %p237, %p238
    %s241 = sadd.s32 %s240, 1
    %p244 = scmp.eq.s32.totalorder %s17, 1
    %p245 = scmp.ne.s32.totalorder %s240, %s242
    %p246 = scmp.eq.s32.totalorder %s17, 0
    %p247 = por %p245, %p246
    %p248 = scmp.ne.s32.totalorder %s240, %s242
    %p249 = scmp.eq.s32.totalorder %s22, 1
    %p250 = por %p248, %p249
    %p251 = scmp.ne.s32.totalorder %s242, %s243
    %p252 = scmp.eq.s32.totalorder %s22, 0
    %p253 = por %p251, %p252
    %p254 = scmp.ne.s32.totalorder %s242, %s243
    %p255 = scmp.eq.s32.totalorder %s23, 1
    %p256 = por %p254, %p255
    %p258 = scmp.ne.s32.totalorder %s243, %s257
    %p259 = scmp.eq.s32.totalorder %s23, 0
    %p260 = por %p258, %p259
    %s261 = ssub.s32 %s17, %s24
    %p262 = scmp.eq.s32.totalorder %s261, 0
    %s264 = sadd.s32 %s263, 1
    %s265 = scalar_select %p262, %s263, %s264
    %p268 = pneg %p262
    %p269 = scmp.eq.s32.totalorder %s17, 1
    %p270 = por %p268, %p269
    %p271 = scmp.ne.s32.totalorder %s263, %s266
    %p272 = scmp.eq.s32.totalorder %s17, 0
    %p273 = por %p271, %p272
    %p274 = scmp.ne.s32.totalorder %s263, %s266
    %p275 = scmp.eq.s32.totalorder %s22, 1
    %p276 = por %p274, %p275
    %p277 = scmp.ne.s32.totalorder %s266, %s267
    %p278 = scmp.eq.s32.totalorder %s22, 0
    %p279 = por %p277, %p278
    %p280 = scmp.ne.s32.totalorder %s266, %s267
    %p281 = scmp.eq.s32.totalorder %s23, 1
    %p282 = por %p280, %p281
    %p284 = scmp.ne.s32.totalorder %s267, %s283
    %p285 = scmp.eq.s32.totalorder %s23, 0
    %p286 = por %p284, %p285
    %p287 = scmp.le.s32.totalorder 1, %s17
    %p288 = scmp.lt.s32.totalorder %s17, 3
    %p289 = pnand %p287, %p288
    %p290 = pneg %p289
    // Predicated region
    $region9: #{lenet_forward.1} parent=5 // pred_check
      _
    $region10: #{lenet_forward.1} parent=5 // pred_check_branch
      %292 = sbr.rel (%p289) target = $region12
    $region11: #{lenet_forward.1} parent=5 // pred_region
      %s293 = ssub.s32 %s17, 1
      // Predicated region
      $region13: #{lenet_forward.1} parent=11 // pred_check
        %p294 = pneg %p64
      $region14: #{lenet_forward.1} parent=11 // pred_check_branch
        %296 = sbr.rel (%p294) target = $region16
      $region15: #{lenet_forward.1} parent=11 // pred_region
        _
      $region16: #{lenet_forward.1} parent=11 // pred_fallthru
        _
      // Predicated region
      $region17: #{lenet_forward.1} parent=11 // pred_check
        %p297 = pneg %p85
      $region18: #{lenet_forward.1} parent=11 // pred_check_branch
        %299 = sbr.rel (%p297) target = $region20
      $region19: #{lenet_forward.1} parent=11 // pred_region
        _
      $region20: #{lenet_forward.1} parent=11 // pred_fallthru
        _
      // Predicated region
      $region21: #{lenet_forward.1} parent=11 // pred_check
        %p300 = pneg %p106
      $region22: #{lenet_forward.1} parent=11 // pred_check_branch
        %302 = sbr.rel (%p300) target = $region24
      $region23: #{lenet_forward.1} parent=11 // pred_region
        _
      $region24: #{lenet_forward.1} parent=11 // pred_fallthru
        _
      // Predicated region
      $region25: #{lenet_forward.1} parent=11 // pred_check
        %p303 = pneg %p127
      $region26: #{lenet_forward.1} parent=11 // pred_check_branch
        %305 = sbr.rel (%p303) target = $region28
      $region27: #{lenet_forward.1} parent=11 // pred_region
        _
      $region28: #{lenet_forward.1} parent=11 // pred_fallthru
        _
      // Predicated region
      $region29: #{lenet_forward.1} parent=11 // pred_check
        %p306 = pneg %p148
      $region30: #{lenet_forward.1} parent=11 // pred_check_branch
        %308 = sbr.rel (%p306) target = $region32
      $region31: #{lenet_forward.1} parent=11 // pred_region
        _
      $region32: #{lenet_forward.1} parent=11 // pred_fallthru
        _
      // Predicated region
      $region33: #{lenet_forward.1} parent=11 // pred_check
        %p309 = pneg %p169
      $region34: #{lenet_forward.1} parent=11 // pred_check_branch
        %311 = sbr.rel (%p309) target = $region36
      $region35: #{lenet_forward.1} parent=11 // pred_region
        _
      $region36: #{lenet_forward.1} parent=11 // pred_fallthru
        _
      // Predicated region
      $region37: #{lenet_forward.1} parent=11 // pred_check
        %p312 = pneg %p190
      $region38: #{lenet_forward.1} parent=11 // pred_check_branch
        %314 = sbr.rel (%p312) target = $region40
      $region39: #{lenet_forward.1} parent=11 // pred_region
        _
      $region40: #{lenet_forward.1} parent=11 // pred_fallthru
        _
      // Predicated region
      $region41: #{lenet_forward.1} parent=11 // pred_check
        %p315 = pneg %p211
      $region42: #{lenet_forward.1} parent=11 // pred_check_branch
        %317 = sbr.rel (%p315) target = $region44
      $region43: #{lenet_forward.1} parent=11 // pred_region
        _
      $region44: #{lenet_forward.1} parent=11 // pred_fallthru
        _
      // Predicated region
      $region45: #{lenet_forward.1} parent=11 // pred_check
        %p318 = pneg %p232
      $region46: #{lenet_forward.1} parent=11 // pred_check_branch
        %320 = sbr.rel (%p318) target = $region48
      $region47: #{lenet_forward.1} parent=11 // pred_region
        _
      $region48: #{lenet_forward.1} parent=11 // pred_fallthru
        _
      // Predicated region
      $region49: #{lenet_forward.1} parent=11 // pred_check
        %p321 = pneg %p253
      $region50: #{lenet_forward.1} parent=11 // pred_check_branch
        %323 = sbr.rel (%p321) target = $region52
      $region51: #{lenet_forward.1} parent=11 // pred_region
        _
      $region52: #{lenet_forward.1} parent=11 // pred_fallthru
        _
    $region12: #{lenet_forward.1} parent=5 // pred_fallthru
      _
    %p324 = scmp.lt.s32.totalorder %s17, 2
    // Predicated region
    $region53: #{lenet_forward.1} parent=5 // pred_check
      %p325 = pneg %p324
    $region54: #{lenet_forward.1} parent=5 // pred_check_branch
      %327 = sbr.rel (%p325) target = $region56
    $region55: #{lenet_forward.1} parent=5 // pred_region
      // Predicated region
      $region57: #{lenet_forward.1} parent=55 // pred_check
        %p328 = pneg %p37
      $region58: #{lenet_forward.1} parent=55 // pred_check_branch
        %330 = sbr.rel (%p328) target = $region60
      $region59: #{lenet_forward.1} parent=55 // pred_region
        %s331 = smul.u32 16, %s17
        %p332 = scmp.lt.s32.totalorder %s331, 31
        %s333 = scalar_select %p332, %s331, 31
        %s334 = smul.addr %s333, 4
        %s335 = smul.addr %s334, 8
        %s336 = scalar_lea.vmem %s0, %s335
        %s337 = smul.u32 16, %s17
      $region60: #{lenet_forward.1} parent=55 // pred_fallthru
        _
    $region56: #{lenet_forward.1} parent=5 // pred_fallthru
      _
    %p338 = scmp.le.s32.totalorder 1, %s17
    %p339 = scmp.lt.s32.totalorder %s17, 3
    %p340 = pnand %p338, %p339
    %p341 = pneg %p340
    // Predicated region
    $region61: #{lenet_forward.1} parent=5 // pred_check
      _
    $region62: #{lenet_forward.1} parent=5 // pred_check_branch
      %343 = sbr.rel (%p340) target = $region64
    $region63: #{lenet_forward.1} parent=5 // pred_region
      %s344 = ssub.s32 %s17, 1
      %s345 = smul.u32 16, %s22
      %p346 = scmp.lt.s32.totalorder %s345, 31
      %s347 = scalar_select %p346, %s345, 31
      %s348 = smul.addr %s347, 4
      %s349 = smul.addr %s348, 8
      %s350 = scalar_lea.vmem %s0, %s349
      %p351 = pneg %p43
      %p352 = pneg %p40
      %p353 = pneg %p64
      %p354 = pneg %p61
      %p355 = pneg %p85
      %p356 = pneg %p82
      %p357 = pneg %p106
      %p358 = pneg %p103
      %p359 = pneg %p127
      %p360 = pneg %p124
      %p361 = pneg %p148
      %p362 = pneg %p145
      %p363 = pneg %p169
      %p364 = pneg %p166
      %p365 = pneg %p190
      %p366 = pneg %p187
      %p367 = pneg %p211
      %p368 = pneg %p208
      %p369 = pneg %p232
      %p370 = pneg %p229
      %p371 = pneg %p253
      %p372 = pneg %p250
      %p373 = pneg %p279
      %p374 = pneg %p276
      %s375 = smul.u32 16, %s22
      %p376 = scmp.lt.s32.totalorder %s375, 31
      %s377 = scalar_select %p376, %s375, 31
      %s378 = smul.addr %s377, 8
      %s379 = scalar_lea.vmem %s11, %s378
      %s380 = smul.u32 16, %s22
      %p381 = scmp.lt.s32.totalorder %s380, 31
      %s382 = scalar_select %p381, %s380, 31
      %s383 = smul.addr %s382, 4
      %s384 = smul.addr %s383, 8
      %s385 = scalar_lea.vmem %s0, %s384
      %s386 = smul.u32 16, %s22
      %s387 = smul.u32 16, %s22
      %p388 = scmp.lt.s32.totalorder %s387, 31
      %s389 = scalar_select %p388, %s387, 31
      %s390 = smul.addr %s389, 8
      %s391 = scalar_lea.vmem %s11, %s390
      %s392 = smul.u32 16, %s22
      %v393 = vld [vmem:[%s385] sm:$0xff]
      %v394 = vld [vmem:[%s385 + $0x8] sm:$0xff]
      %v395 = vld [vmem:[%s385 + $0x10] sm:$0xff]
      %v396 = vld [vmem:[%s385 + $0x18] sm:$0xf]
      %v397 = vld [vmem:[%s385 + $0x20] sm:$0xff]
      %v398 = vld [vmem:[%s385 + $0x28] sm:$0xff]
      %v399 = vld [vmem:[%s385 + $0x30] sm:$0xff]
      %v400 = vld [vmem:[%s385 + $0x38] sm:$0xf]
      %v401 = vld [vmem:[%s385 + $0x40] sm:$0xff]
      %v402 = vld [vmem:[%s385 + $0x48] sm:$0xff]
      %v403 = vld [vmem:[%s385 + $0x50] sm:$0xff]
      %v404 = vld [vmem:[%s385 + $0x58] sm:$0xf]
      %v405 = vld [vmem:[%s385 + $0x60] sm:$0xff]
      %v406 = vld [vmem:[%s385 + $0x68] sm:$0xff]
      %v407 = vld [vmem:[%s385 + $0x70] sm:$0xff]
      %v408 = vld [vmem:[%s385 + $0x78] sm:$0xf]
      %v409 = vld [vmem:[%s385 + $0x80] sm:$0xff]
      %v410 = vld [vmem:[%s385 + $0x88] sm:$0xff]
      %v411 = vld [vmem:[%s385 + $0x90] sm:$0xff]
      %v412 = vld [vmem:[%s385 + $0x98] sm:$0xf]
      %v413 = vld [vmem:[%s385 + $0xa0] sm:$0xff]
      %v414 = vld [vmem:[%s385 + $0xa8] sm:$0xff]
      %v415 = vld [vmem:[%s385 + $0xb0] sm:$0xff]
      %v416 = vld [vmem:[%s385 + $0xb8] sm:$0xf]
      %v417 = vld [vmem:[%s385 + $0xc0] sm:$0xff]
      %v418 = vld [vmem:[%s385 + $0xc8] sm:$0xff]
      %v419 = vld [vmem:[%s385 + $0xd0] sm:$0xff]
      %v420 = vld [vmem:[%s385 + $0xd8] sm:$0xf]
      %v421 = vld [vmem:[%s385 + $0xe0] sm:$0xff]
      %v422 = vld [vmem:[%s385 + $0xe8] sm:$0xff]
      %v423 = vld [vmem:[%s385 + $0xf0] sm:$0xff]
      %v424 = vld [vmem:[%s385 + $0xf8] sm:$0xf]
      %v425 = vld [vmem:[%s385 + $0x100] sm:$0xff]
      %v426 = vld [vmem:[%s385 + $0x108] sm:$0xff]
      %v427 = vld [vmem:[%s385 + $0x110] sm:$0xff]
      %v428 = vld [vmem:[%s385 + $0x118] sm:$0xf]
      %v429 = vld [vmem:[%s385 + $0x120] sm:$0xff]
      %v430 = vld [vmem:[%s385 + $0x128] sm:$0xff]
      %v431 = vld [vmem:[%s385 + $0x130] sm:$0xff]
      %v432 = vld [vmem:[%s385 + $0x138] sm:$0xf]
      %v433 = vld [vmem:[%s385 + $0x140] sm:$0xff]
      %v434 = vld [vmem:[%s385 + $0x148] sm:$0xff]
      %v435 = vld [vmem:[%s385 + $0x150] sm:$0xff]
      %v436 = vld [vmem:[%s385 + $0x158] sm:$0xf]
      %v437 = vld [vmem:[%s385 + $0x160] sm:$0xff]
      %v438 = vld [vmem:[%s385 + $0x168] sm:$0xff]
      %v439 = vld [vmem:[%s385 + $0x170] sm:$0xff]
      %v440 = vld [vmem:[%s385 + $0x178] sm:$0xf]
      %v441 = vld [vmem:[%s385 + $0x180] sm:$0xff]
      %v442 = vld [vmem:[%s385 + $0x188] sm:$0xff]
      %v443 = vld [vmem:[%s385 + $0x190] sm:$0xff]
      %v444 = vld [vmem:[%s385 + $0x198] sm:$0xf]
      %v445 = vld [vmem:[%s385 + $0x1a0] sm:$0xff]
      %v446 = vld [vmem:[%s385 + $0x1a8] sm:$0xff]
      %v447 = vld [vmem:[%s385 + $0x1b0] sm:$0xff]
      %v448 = vld [vmem:[%s385 + $0x1b8] sm:$0xf]
      %v449 = vld [vmem:[%s385 + $0x1c0] sm:$0xff]
      %v450 = vld [vmem:[%s385 + $0x1c8] sm:$0xff]
      %v451 = vld [vmem:[%s385 + $0x1d0] sm:$0xff]
      %v452 = vld [vmem:[%s385 + $0x1d8] sm:$0xf]
      %v453 = vld [vmem:[%s385 + $0x1e0] sm:$0xff]
      %v454 = vld [vmem:[%s385 + $0x1e8] sm:$0xff]
      %v455 = vld [vmem:[%s385 + $0x1f0] sm:$0xff]
      %v456 = vld [vmem:[%s385 + $0x1f8] sm:$0xf]
      %vm521 = vcmask 1046528
      %v522 = vrot.slane %v393, 1
      %v523 = vrot.slane %v394, 1
      %v524 = vsel %vm521, %v522, %v523
      %v525 = vrot.slane %v395, 1
      %v526 = vsel %vm521, %v523, %v525
      %v527 = vrot.slane %v396, 1
      %v528 = vsel %vm521, %v525, %v527
      %v529 = vrot.slane %v397, 1
      %v530 = vrot.slane %v398, 1
      %v531 = vsel %vm521, %v529, %v530
      %v532 = vrot.slane %v399, 1
      %v533 = vsel %vm521, %v530, %v532
      %v534 = vrot.slane %v400, 1
      %v535 = vsel %vm521, %v532, %v534
      %v536 = vrot.slane %v401, 1
      %v537 = vrot.slane %v402, 1
      %v538 = vsel %vm521, %v536, %v537
      %v539 = vrot.slane %v403, 1
      %v540 = vsel %vm521, %v537, %v539
      %v541 = vrot.slane %v404, 1
      %v542 = vsel %vm521, %v539, %v541
      %v543 = vrot.slane %v405, 1
      %v544 = vrot.slane %v406, 1
      %v545 = vsel %vm521, %v543, %v544
      %v546 = vrot.slane %v407, 1
      %v547 = vsel %vm521, %v544, %v546
      %v548 = vrot.slane %v408, 1
      %v549 = vsel %vm521, %v546, %v548
      %v550 = vrot.slane %v409, 1
      %v551 = vrot.slane %v410, 1
      %v552 = vsel %vm521, %v550, %v551
      %v553 = vrot.slane %v411, 1
      %v554 = vsel %vm521, %v551, %v553
      %v555 = vrot.slane %v412, 1
      %v556 = vsel %vm521, %v553, %v555
      %v557 = vrot.slane %v413, 1
      %v558 = vrot.slane %v414, 1
      %v559 = vsel %vm521, %v557, %v558
      %v560 = vrot.slane %v415, 1
      %v561 = vsel %vm521, %v558, %v560
      %v562 = vrot.slane %v416, 1
      %v563 = vsel %vm521, %v560, %v562
      %v564 = vrot.slane %v417, 1
      %v565 = vrot.slane %v418, 1
      %v566 = vsel %vm521, %v564, %v565
      %v567 = vrot.slane %v419, 1
      %v568 = vsel %vm521, %v565, %v567
      %v569 = vrot.slane %v420, 1
      %v570 = vsel %vm521, %v567, %v569
      %v571 = vrot.slane %v421, 1
      %v572 = vrot.slane %v422, 1
      %v573 = vsel %vm521, %v571, %v572
      %v574 = vrot.slane %v423, 1
      %v575 = vsel %vm521, %v572, %v574
      %v576 = vrot.slane %v424, 1
      %v577 = vsel %vm521, %v574, %v576
      %v578 = vrot.slane %v425, 1
      %v579 = vrot.slane %v426, 1
      %v580 = vsel %vm521, %v578, %v579
      %v581 = vrot.slane %v427, 1
      %v582 = vsel %vm521, %v579, %v581
      %v583 = vrot.slane %v428, 1
      %v584 = vsel %vm521, %v581, %v583
      %v585 = vrot.slane %v429, 1
      %v586 = vrot.slane %v430, 1
      %v587 = vsel %vm521, %v585, %v586
      %v588 = vrot.slane %v431, 1
      %v589 = vsel %vm521, %v586, %v588
      %v590 = vrot.slane %v432, 1
      %v591 = vsel %vm521, %v588, %v590
      %v592 = vrot.slane %v433, 1
      %v593 = vrot.slane %v434, 1
      %v594 = vsel %vm521, %v592, %v593
      %v595 = vrot.slane %v435, 1
      %v596 = vsel %vm521, %v593, %v595
      %v597 = vrot.slane %v436, 1
      %v598 = vsel %vm521, %v595, %v597
      %v599 = vrot.slane %v437, 1
      %v600 = vrot.slane %v438, 1
      %v601 = vsel %vm521, %v599, %v600
      %v602 = vrot.slane %v439, 1
      %v603 = vsel %vm521, %v600, %v602
      %v604 = vrot.slane %v440, 1
      %v605 = vsel %vm521, %v602, %v604
      %v606 = vrot.slane %v441, 1
      %v607 = vrot.slane %v442, 1
      %v608 = vsel %vm521, %v606, %v607
      %v609 = vrot.slane %v443, 1
      %v610 = vsel %vm521, %v607, %v609
      %v611 = vrot.slane %v444, 1
      %v612 = vsel %vm521, %v609, %v611
      %v613 = vrot.slane %v445, 1
      %v614 = vrot.slane %v446, 1
      %v615 = vsel %vm521, %v613, %v614
      %v616 = vrot.slane %v447, 1
      %v617 = vsel %vm521, %v614, %v616
      %v618 = vrot.slane %v448, 1
      %v619 = vsel %vm521, %v616, %v618
      %v620 = vrot.slane %v449, 1
      %v621 = vrot.slane %v450, 1
      %v622 = vsel %vm521, %v620, %v621
      %v623 = vrot.slane %v451, 1
      %v624 = vsel %vm521, %v621, %v623
      %v625 = vrot.slane %v452, 1
      %v626 = vsel %vm521, %v623, %v625
      %v627 = vrot.slane %v453, 1
      %v628 = vrot.slane %v454, 1
      %v629 = vsel %vm521, %v627, %v628
      %v630 = vrot.slane %v455, 1
      %v631 = vsel %vm521, %v628, %v630
      %v632 = vrot.slane %v456, 1
      %v633 = vsel %vm521, %v630, %v632
      %634 = vrot.lane.b32.xlu0 %v524, 28
      %v635 = vpop.permute.xlu0 %634
      %636 = vrot.lane.b32.xlu0 %v526, 28
      %v637 = vpop.permute.xlu0 %636
      %638 = vrot.lane.b32.xlu0 %v528, 28
      %v639 = vpop.permute.xlu0 %638
      %640 = vrot.lane.b32.xlu0 %v531, 28
      %v641 = vpop.permute.xlu0 %640
      %642 = vrot.lane.b32.xlu0 %v533, 28
      %v643 = vpop.permute.xlu0 %642
      %644 = vrot.lane.b32.xlu0 %v535, 28
      %v645 = vpop.permute.xlu0 %644
      %646 = vrot.lane.b32.xlu0 %v538, 28
      %v647 = vpop.permute.xlu0 %646
      %648 = vrot.lane.b32.xlu0 %v540, 28
      %v649 = vpop.permute.xlu0 %648
      %650 = vrot.lane.b32.xlu0 %v542, 28
      %v651 = vpop.permute.xlu0 %650
      %652 = vrot.lane.b32.xlu0 %v545, 28
      %v653 = vpop.permute.xlu0 %652
      %654 = vrot.lane.b32.xlu0 %v547, 28
      %v655 = vpop.permute.xlu0 %654
      %656 = vrot.lane.b32.xlu0 %v549, 28
      %v657 = vpop.permute.xlu0 %656
      %658 = vrot.lane.b32.xlu0 %v552, 28
      %v659 = vpop.permute.xlu0 %658
      %660 = vrot.lane.b32.xlu0 %v554, 28
      %v661 = vpop.permute.xlu0 %660
      %662 = vrot.lane.b32.xlu0 %v556, 28
      %v663 = vpop.permute.xlu0 %662
      %664 = vrot.lane.b32.xlu0 %v559, 28
      %v665 = vpop.permute.xlu0 %664
      %666 = vrot.lane.b32.xlu0 %v561, 28
      %v667 = vpop.permute.xlu0 %666
      %668 = vrot.lane.b32.xlu0 %v563, 28
      %v669 = vpop.permute.xlu0 %668
      %670 = vrot.lane.b32.xlu0 %v566, 28
      %v671 = vpop.permute.xlu0 %670
      %672 = vrot.lane.b32.xlu0 %v568, 28
      %v673 = vpop.permute.xlu0 %672
      %674 = vrot.lane.b32.xlu0 %v570, 28
      %v675 = vpop.permute.xlu0 %674
      %676 = vrot.lane.b32.xlu0 %v573, 28
      %v677 = vpop.permute.xlu0 %676
      %678 = vrot.lane.b32.xlu0 %v575, 28
      %v679 = vpop.permute.xlu0 %678
      %680 = vrot.lane.b32.xlu0 %v577, 28
      %v681 = vpop.permute.xlu0 %680
      %682 = vrot.lane.b32.xlu0 %v580, 28
      %v683 = vpop.permute.xlu0 %682
      %684 = vrot.lane.b32.xlu0 %v582, 28
      %v685 = vpop.permute.xlu0 %684
      %686 = vrot.lane.b32.xlu0 %v584, 28
      %v687 = vpop.permute.xlu0 %686
      %688 = vrot.lane.b32.xlu0 %v587, 28
      %v689 = vpop.permute.xlu0 %688
      %690 = vrot.lane.b32.xlu0 %v589, 28
      %v691 = vpop.permute.xlu0 %690
      %692 = vrot.lane.b32.xlu0 %v591, 28
      %v693 = vpop.permute.xlu0 %692
      %694 = vrot.lane.b32.xlu0 %v594, 28
      %v695 = vpop.permute.xlu0 %694
      %696 = vrot.lane.b32.xlu0 %v596, 28
      %v697 = vpop.permute.xlu0 %696
      %698 = vrot.lane.b32.xlu0 %v598, 28
      %v699 = vpop.permute.xlu0 %698
      %700 = vrot.lane.b32.xlu0 %v601, 28
      %v701 = vpop.permute.xlu0 %700
      %702 = vrot.lane.b32.xlu0 %v603, 28
      %v703 = vpop.permute.xlu0 %702
      %704 = vrot.lane.b32.xlu0 %v605, 28
      %v705 = vpop.permute.xlu0 %704
      %706 = vrot.lane.b32.xlu0 %v608, 28
      %v707 = vpop.permute.xlu0 %706
      %708 = vrot.lane.b32.xlu0 %v610, 28
      %v709 = vpop.permute.xlu0 %708
      %710 = vrot.lane.b32.xlu0 %v612, 28
      %v711 = vpop.permute.xlu0 %710
      %712 = vrot.lane.b32.xlu0 %v615, 28
      %v713 = vpop.permute.xlu0 %712
      %714 = vrot.lane.b32.xlu0 %v617, 28
      %v715 = vpop.permute.xlu0 %714
      %716 = vrot.lane.b32.xlu0 %v619, 28
      %v717 = vpop.permute.xlu0 %716
      %718 = vrot.lane.b32.xlu0 %v622, 28
      %v719 = vpop.permute.xlu0 %718
      %720 = vrot.lane.b32.xlu0 %v624, 28
      %v721 = vpop.permute.xlu0 %720
      %722 = vrot.lane.b32.xlu0 %v626, 28
      %v723 = vpop.permute.xlu0 %722
      %724 = vrot.lane.b32.xlu0 %v629, 28
      %v725 = vpop.permute.xlu0 %724
      %726 = vrot.lane.b32.xlu0 %v631, 28
      %v727 = vpop.permute.xlu0 %726
      %728 = vrot.lane.b32.xlu0 %v633, 28
      %v729 = vpop.permute.xlu0 %728
      %vm778 = vcmask 1045504
      %v779 = vrot.slane %v393, 2
      %v780 = vrot.slane %v394, 2
      %v781 = vsel %vm778, %v779, %v780
      %v782 = vrot.slane %v395, 2
      %v783 = vsel %vm778, %v780, %v782
      %v784 = vrot.slane %v396, 2
      %v785 = vsel %vm778, %v782, %v784
      %v786 = vrot.slane %v397, 2
      %v787 = vrot.slane %v398, 2
      %v788 = vsel %vm778, %v786, %v787
      %v789 = vrot.slane %v399, 2
      %v790 = vsel %vm778, %v787, %v789
      %v791 = vrot.slane %v400, 2
      %v792 = vsel %vm778, %v789, %v791
      %v793 = vrot.slane %v401, 2
      %v794 = vrot.slane %v402, 2
      %v795 = vsel %vm778, %v793, %v794
      %v796 = vrot.slane %v403, 2
      %v797 = vsel %vm778, %v794, %v796
      %v798 = vrot.slane %v404, 2
      %v799 = vsel %vm778, %v796, %v798
      %v800 = vrot.slane %v405, 2
      %v801 = vrot.slane %v406, 2
      %v802 = vsel %vm778, %v800, %v801
      %v803 = vrot.slane %v407, 2
      %v804 = vsel %vm778, %v801, %v803
      %v805 = vrot.slane %v408, 2
      %v806 = vsel %vm778, %v803, %v805
      %v807 = vrot.slane %v409, 2
      %v808 = vrot.slane %v410, 2
      %v809 = vsel %vm778, %v807, %v808
      %v810 = vrot.slane %v411, 2
      %v811 = vsel %vm778, %v808, %v810
      %v812 = vrot.slane %v412, 2
      %v813 = vsel %vm778, %v810, %v812
      %v814 = vrot.slane %v413, 2
      %v815 = vrot.slane %v414, 2
      %v816 = vsel %vm778, %v814, %v815
      %v817 = vrot.slane %v415, 2
      %v818 = vsel %vm778, %v815, %v817
      %v819 = vrot.slane %v416, 2
      %v820 = vsel %vm778, %v817, %v819
      %v821 = vrot.slane %v417, 2
      %v822 = vrot.slane %v418, 2
      %v823 = vsel %vm778, %v821, %v822
      %v824 = vrot.slane %v419, 2
      %v825 = vsel %vm778, %v822, %v824
      %v826 = vrot.slane %v420, 2
      %v827 = vsel %vm778, %v824, %v826
      %v828 = vrot.slane %v421, 2
      %v829 = vrot.slane %v422, 2
      %v830 = vsel %vm778, %v828, %v829
      %v831 = vrot.slane %v423, 2
      %v832 = vsel %vm778, %v829, %v831
      %v833 = vrot.slane %v424, 2
      %v834 = vsel %vm778, %v831, %v833
      %v835 = vrot.slane %v425, 2
      %v836 = vrot.slane %v426, 2
      %v837 = vsel %vm778, %v835, %v836
      %v838 = vrot.slane %v427, 2
      %v839 = vsel %vm778, %v836, %v838
      %v840 = vrot.slane %v428, 2
      %v841 = vsel %vm778, %v838, %v840
      %v842 = vrot.slane %v429, 2
      %v843 = vrot.slane %v430, 2
      %v844 = vsel %vm778, %v842, %v843
      %v845 = vrot.slane %v431, 2
      %v846 = vsel %vm778, %v843, %v845
      %v847 = vrot.slane %v432, 2
      %v848 = vsel %vm778, %v845, %v847
      %v849 = vrot.slane %v433, 2
      %v850 = vrot.slane %v434, 2
      %v851 = vsel %vm778, %v849, %v850
      %v852 = vrot.slane %v435, 2
      %v853 = vsel %vm778, %v850, %v852
      %v854 = vrot.slane %v436, 2
      %v855 = vsel %vm778, %v852, %v854
      %v856 = vrot.slane %v437, 2
      %v857 = vrot.slane %v438, 2
      %v858 = vsel %vm778, %v856, %v857
      %v859 = vrot.slane %v439, 2
      %v860 = vsel %vm778, %v857, %v859
      %v861 = vrot.slane %v440, 2
      %v862 = vsel %vm778, %v859, %v861
      %v863 = vrot.slane %v441, 2
      %v864 = vrot.slane %v442, 2
      %v865 = vsel %vm778, %v863, %v864
      %v866 = vrot.slane %v443, 2
      %v867 = vsel %vm778, %v864, %v866
      %v868 = vrot.slane %v444, 2
      %v869 = vsel %vm778, %v866, %v868
      %v870 = vrot.slane %v445, 2
      %v871 = vrot.slane %v446, 2
      %v872 = vsel %vm778, %v870, %v871
      %v873 = vrot.slane %v447, 2
      %v874 = vsel %vm778, %v871, %v873
      %v875 = vrot.slane %v448, 2
      %v876 = vsel %vm778, %v873, %v875
      %v877 = vrot.slane %v449, 2
      %v878 = vrot.slane %v450, 2
      %v879 = vsel %vm778, %v877, %v878
      %v880 = vrot.slane %v451, 2
      %v881 = vsel %vm778, %v878, %v880
      %v882 = vrot.slane %v452, 2
      %v883 = vsel %vm778, %v880, %v882
      %v884 = vrot.slane %v453, 2
      %v885 = vrot.slane %v454, 2
      %v886 = vsel %vm778, %v884, %v885
      %v887 = vrot.slane %v455, 2
      %v888 = vsel %vm778, %v885, %v887
      %v889 = vrot.slane %v456, 2
      %v890 = vsel %vm778, %v887, %v889
      %891 = vrot.lane.b32.xlu0 %v781, 56
      %v892 = vpop.permute.xlu0 %891
      %893 = vrot.lane.b32.xlu0 %v783, 56
      %v894 = vpop.permute.xlu0 %893
      %895 = vrot.lane.b32.xlu0 %v785, 56
      %v896 = vpop.permute.xlu0 %895
      %897 = vrot.lane.b32.xlu0 %v788, 56
      %v898 = vpop.permute.xlu0 %897
      %899 = vrot.lane.b32.xlu0 %v790, 56
      %v900 = vpop.permute.xlu0 %899
      %901 = vrot.lane.b32.xlu0 %v792, 56
      %v902 = vpop.permute.xlu0 %901
      %903 = vrot.lane.b32.xlu0 %v795, 56
      %v904 = vpop.permute.xlu0 %903
      %905 = vrot.lane.b32.xlu0 %v797, 56
      %v906 = vpop.permute.xlu0 %905
      %907 = vrot.lane.b32.xlu0 %v799, 56
      %v908 = vpop.permute.xlu0 %907
      %909 = vrot.lane.b32.xlu0 %v802, 56
      %v910 = vpop.permute.xlu0 %909
      %911 = vrot.lane.b32.xlu0 %v804, 56
      %v912 = vpop.permute.xlu0 %911
      %913 = vrot.lane.b32.xlu0 %v806, 56
      %v914 = vpop.permute.xlu0 %913
      %915 = vrot.lane.b32.xlu0 %v809, 56
      %v916 = vpop.permute.xlu0 %915
      %917 = vrot.lane.b32.xlu0 %v811, 56
      %v918 = vpop.permute.xlu0 %917
      %919 = vrot.lane.b32.xlu0 %v813, 56
      %v920 = vpop.permute.xlu0 %919
      %921 = vrot.lane.b32.xlu0 %v816, 56
      %v922 = vpop.permute.xlu0 %921
      %923 = vrot.lane.b32.xlu0 %v818, 56
      %v924 = vpop.permute.xlu0 %923
      %925 = vrot.lane.b32.xlu0 %v820, 56
      %v926 = vpop.permute.xlu0 %925
      %927 = vrot.lane.b32.xlu0 %v823, 56
      %v928 = vpop.permute.xlu0 %927
      %929 = vrot.lane.b32.xlu0 %v825, 56
      %v930 = vpop.permute.xlu0 %929
      %931 = vrot.lane.b32.xlu0 %v827, 56
      %v932 = vpop.permute.xlu0 %931
      %933 = vrot.lane.b32.xlu0 %v830, 56
      %v934 = vpop.permute.xlu0 %933
      %935 = vrot.lane.b32.xlu0 %v832, 56
      %v936 = vpop.permute.xlu0 %935
      %937 = vrot.lane.b32.xlu0 %v834, 56
      %v938 = vpop.permute.xlu0 %937
      %939 = vrot.lane.b32.xlu0 %v837, 56
      %v940 = vpop.permute.xlu0 %939
      %941 = vrot.lane.b32.xlu0 %v839, 56
      %v942 = vpop.permute.xlu0 %941
      %943 = vrot.lane.b32.xlu0 %v841, 56
      %v944 = vpop.permute.xlu0 %943
      %945 = vrot.lane.b32.xlu0 %v844, 56
      %v946 = vpop.permute.xlu0 %945
      %947 = vrot.lane.b32.xlu0 %v846, 56
      %v948 = vpop.permute.xlu0 %947
      %949 = vrot.lane.b32.xlu0 %v848, 56
      %v950 = vpop.permute.xlu0 %949
      %951 = vrot.lane.b32.xlu0 %v851, 56
      %v952 = vpop.permute.xlu0 %951
      %953 = vrot.lane.b32.xlu0 %v853, 56
      %v954 = vpop.permute.xlu0 %953
      %955 = vrot.lane.b32.xlu0 %v855, 56
      %v956 = vpop.permute.xlu0 %955
      %957 = vrot.lane.b32.xlu0 %v858, 56
      %v958 = vpop.permute.xlu0 %957
      %959 = vrot.lane.b32.xlu0 %v860, 56
      %v960 = vpop.permute.xlu0 %959
      %961 = vrot.lane.b32.xlu0 %v862, 56
      %v962 = vpop.permute.xlu0 %961
      %963 = vrot.lane.b32.xlu0 %v865, 56
      %v964 = vpop.permute.xlu0 %963
      %965 = vrot.lane.b32.xlu0 %v867, 56
      %v966 = vpop.permute.xlu0 %965
      %967 = vrot.lane.b32.xlu0 %v869, 56
      %v968 = vpop.permute.xlu0 %967
      %969 = vrot.lane.b32.xlu0 %v872, 56
      %v970 = vpop.permute.xlu0 %969
      %971 = vrot.lane.b32.xlu0 %v874, 56
      %v972 = vpop.permute.xlu0 %971
      %973 = vrot.lane.b32.xlu0 %v876, 56
      %v974 = vpop.permute.xlu0 %973
      %975 = vrot.lane.b32.xlu0 %v879, 56
      %v976 = vpop.permute.xlu0 %975
      %977 = vrot.lane.b32.xlu0 %v881, 56
      %v978 = vpop.permute.xlu0 %977
      %979 = vrot.lane.b32.xlu0 %v883, 56
      %v980 = vpop.permute.xlu0 %979
      %981 = vrot.lane.b32.xlu0 %v886, 56
      %v982 = vpop.permute.xlu0 %981
      %983 = vrot.lane.b32.xlu0 %v888, 56
      %v984 = vpop.permute.xlu0 %983
      %985 = vrot.lane.b32.xlu0 %v890, 56
      %v986 = vpop.permute.xlu0 %985
      %vm1035 = vcmask 1044480
      %v1036 = vrot.slane %v393, 3
      %v1037 = vrot.slane %v394, 3
      %v1038 = vsel %vm1035, %v1036, %v1037
      %v1039 = vrot.slane %v395, 3
      %v1040 = vsel %vm1035, %v1037, %v1039
      %v1041 = vrot.slane %v396, 3
      %v1042 = vsel %vm1035, %v1039, %v1041
      %v1043 = vrot.slane %v397, 3
      %v1044 = vrot.slane %v398, 3
      %v1045 = vsel %vm1035, %v1043, %v1044
      %v1046 = vrot.slane %v399, 3
      %v1047 = vsel %vm1035, %v1044, %v1046
      %v1048 = vrot.slane %v400, 3
      %v1049 = vsel %vm1035, %v1046, %v1048
      %v1050 = vrot.slane %v401, 3
      %v1051 = vrot.slane %v402, 3
      %v1052 = vsel %vm1035, %v1050, %v1051
      %v1053 = vrot.slane %v403, 3
      %v1054 = vsel %vm1035, %v1051, %v1053
      %v1055 = vrot.slane %v404, 3
      %v1056 = vsel %vm1035, %v1053, %v1055
      %v1057 = vrot.slane %v405, 3
      %v1058 = vrot.slane %v406, 3
      %v1059 = vsel %vm1035, %v1057, %v1058
      %v1060 = vrot.slane %v407, 3
      %v1061 = vsel %vm1035, %v1058, %v1060
      %v1062 = vrot.slane %v408, 3
      %v1063 = vsel %vm1035, %v1060, %v1062
      %v1064 = vrot.slane %v409, 3
      %v1065 = vrot.slane %v410, 3
      %v1066 = vsel %vm1035, %v1064, %v1065
      %v1067 = vrot.slane %v411, 3
      %v1068 = vsel %vm1035, %v1065, %v1067
      %v1069 = vrot.slane %v412, 3
      %v1070 = vsel %vm1035, %v1067, %v1069
      %v1071 = vrot.slane %v413, 3
      %v1072 = vrot.slane %v414, 3
      %v1073 = vsel %vm1035, %v1071, %v1072
      %v1074 = vrot.slane %v415, 3
      %v1075 = vsel %vm1035, %v1072, %v1074
      %v1076 = vrot.slane %v416, 3
      %v1077 = vsel %vm1035, %v1074, %v1076
      %v1078 = vrot.slane %v417, 3
      %v1079 = vrot.slane %v418, 3
      %v1080 = vsel %vm1035, %v1078, %v1079
      %v1081 = vrot.slane %v419, 3
      %v1082 = vsel %vm1035, %v1079, %v1081
      %v1083 = vrot.slane %v420, 3
      %v1084 = vsel %vm1035, %v1081, %v1083
      %v1085 = vrot.slane %v421, 3
      %v1086 = vrot.slane %v422, 3
      %v1087 = vsel %vm1035, %v1085, %v1086
      %v1088 = vrot.slane %v423, 3
      %v1089 = vsel %vm1035, %v1086, %v1088
      %v1090 = vrot.slane %v424, 3
      %v1091 = vsel %vm1035, %v1088, %v1090
      %v1092 = vrot.slane %v425, 3
      %v1093 = vrot.slane %v426, 3
      %v1094 = vsel %vm1035, %v1092, %v1093
      %v1095 = vrot.slane %v427, 3
      %v1096 = vsel %vm1035, %v1093, %v1095
      %v1097 = vrot.slane %v428, 3
      %v1098 = vsel %vm1035, %v1095, %v1097
      %v1099 = vrot.slane %v429, 3
      %v1100 = vrot.slane %v430, 3
      %v1101 = vsel %vm1035, %v1099, %v1100
      %v1102 = vrot.slane %v431, 3
      %v1103 = vsel %vm1035, %v1100, %v1102
      %v1104 = vrot.slane %v432, 3
      %v1105 = vsel %vm1035, %v1102, %v1104
      %v1106 = vrot.slane %v433, 3
      %v1107 = vrot.slane %v434, 3
      %v1108 = vsel %vm1035, %v1106, %v1107
      %v1109 = vrot.slane %v435, 3
      %v1110 = vsel %vm1035, %v1107, %v1109
      %v1111 = vrot.slane %v436, 3
      %v1112 = vsel %vm1035, %v1109, %v1111
      %v1113 = vrot.slane %v437, 3
      %v1114 = vrot.slane %v438, 3
      %v1115 = vsel %vm1035, %v1113, %v1114
      %v1116 = vrot.slane %v439, 3
      %v1117 = vsel %vm1035, %v1114, %v1116
      %v1118 = vrot.slane %v440, 3
      %v1119 = vsel %vm1035, %v1116, %v1118
      %v1120 = vrot.slane %v441, 3
      %v1121 = vrot.slane %v442, 3
      %v1122 = vsel %vm1035, %v1120, %v1121
      %v1123 = vrot.slane %v443, 3
      %v1124 = vsel %vm1035, %v1121, %v1123
      %v1125 = vrot.slane %v444, 3
      %v1126 = vsel %vm1035, %v1123, %v1125
      %v1127 = vrot.slane %v445, 3
      %v1128 = vrot.slane %v446, 3
      %v1129 = vsel %vm1035, %v1127, %v1128
      %v1130 = vrot.slane %v447, 3
      %v1131 = vsel %vm1035, %v1128, %v1130
      %v1132 = vrot.slane %v448, 3
      %v1133 = vsel %vm1035, %v1130, %v1132
      %v1134 = vrot.slane %v449, 3
      %v1135 = vrot.slane %v450, 3
      %v1136 = vsel %vm1035, %v1134, %v1135
      %v1137 = vrot.slane %v451, 3
      %v1138 = vsel %vm1035, %v1135, %v1137
      %v1139 = vrot.slane %v452, 3
      %v1140 = vsel %vm1035, %v1137, %v1139
      %v1141 = vrot.slane %v453, 3
      %v1142 = vrot.slane %v454, 3
      %v1143 = vsel %vm1035, %v1141, %v1142
      %v1144 = vrot.slane %v455, 3
      %v1145 = vsel %vm1035, %v1142, %v1144
      %v1146 = vrot.slane %v456, 3
      %v1147 = vsel %vm1035, %v1144, %v1146
      %1148 = vrot.lane.b32.xlu0 %v1038, 84
      %v1149 = vpop.permute.xlu0 %1148
      %1150 = vrot.lane.b32.xlu0 %v1040, 84
      %v1151 = vpop.permute.xlu0 %1150
      %1152 = vrot.lane.b32.xlu0 %v1042, 84
      %v1153 = vpop.permute.xlu0 %1152
      %1154 = vrot.lane.b32.xlu0 %v1045, 84
      %v1155 = vpop.permute.xlu0 %1154
      %1156 = vrot.lane.b32.xlu0 %v1047, 84
      %v1157 = vpop.permute.xlu0 %1156
      %1158 = vrot.lane.b32.xlu0 %v1049, 84
      %v1159 = vpop.permute.xlu0 %1158
      %1160 = vrot.lane.b32.xlu0 %v1052, 84
      %v1161 = vpop.permute.xlu0 %1160
      %1162 = vrot.lane.b32.xlu0 %v1054, 84
      %v1163 = vpop.permute.xlu0 %1162
      %1164 = vrot.lane.b32.xlu0 %v1056, 84
      %v1165 = vpop.permute.xlu0 %1164
      %1166 = vrot.lane.b32.xlu0 %v1059, 84
      %v1167 = vpop.permute.xlu0 %1166
      %1168 = vrot.lane.b32.xlu0 %v1061, 84
      %v1169 = vpop.permute.xlu0 %1168
      %1170 = vrot.lane.b32.xlu0 %v1063, 84
      %v1171 = vpop.permute.xlu0 %1170
      %1172 = vrot.lane.b32.xlu0 %v1066, 84
      %v1173 = vpop.permute.xlu0 %1172
      %1174 = vrot.lane.b32.xlu0 %v1068, 84
      %v1175 = vpop.permute.xlu0 %1174
      %1176 = vrot.lane.b32.xlu0 %v1070, 84
      %v1177 = vpop.permute.xlu0 %1176
      %1178 = vrot.lane.b32.xlu0 %v1073, 84
      %v1179 = vpop.permute.xlu0 %1178
      %1180 = vrot.lane.b32.xlu0 %v1075, 84
      %v1181 = vpop.permute.xlu0 %1180
      %1182 = vrot.lane.b32.xlu0 %v1077, 84
      %v1183 = vpop.permute.xlu0 %1182
      %1184 = vrot.lane.b32.xlu0 %v1080, 84
      %v1185 = vpop.permute.xlu0 %1184
      %1186 = vrot.lane.b32.xlu0 %v1082, 84
      %v1187 = vpop.permute.xlu0 %1186
      %1188 = vrot.lane.b32.xlu0 %v1084, 84
      %v1189 = vpop.permute.xlu0 %1188
      %1190 = vrot.lane.b32.xlu0 %v1087, 84
      %v1191 = vpop.permute.xlu0 %1190
      %1192 = vrot.lane.b32.xlu0 %v1089, 84
      %v1193 = vpop.permute.xlu0 %1192
      %1194 = vrot.lane.b32.xlu0 %v1091, 84
      %v1195 = vpop.permute.xlu0 %1194
      %1196 = vrot.lane.b32.xlu0 %v1094, 84
      %v1197 = vpop.permute.xlu0 %1196
      %1198 = vrot.lane.b32.xlu0 %v1096, 84
      %v1199 = vpop.permute.xlu0 %1198
      %1200 = vrot.lane.b32.xlu0 %v1098, 84
      %v1201 = vpop.permute.xlu0 %1200
      %1202 = vrot.lane.b32.xlu0 %v1101, 84
      %v1203 = vpop.permute.xlu0 %1202
      %1204 = vrot.lane.b32.xlu0 %v1103, 84
      %v1205 = vpop.permute.xlu0 %1204
      %1206 = vrot.lane.b32.xlu0 %v1105, 84
      %v1207 = vpop.permute.xlu0 %1206
      %1208 = vrot.lane.b32.xlu0 %v1108, 84
      %v1209 = vpop.permute.xlu0 %1208
      %1210 = vrot.lane.b32.xlu0 %v1110, 84
      %v1211 = vpop.permute.xlu0 %1210
      %1212 = vrot.lane.b32.xlu0 %v1112, 84
      %v1213 = vpop.permute.xlu0 %1212
      %1214 = vrot.lane.b32.xlu0 %v1115, 84
      %v1215 = vpop.permute.xlu0 %1214
      %1216 = vrot.lane.b32.xlu0 %v1117, 84
      %v1217 = vpop.permute.xlu0 %1216
      %1218 = vrot.lane.b32.xlu0 %v1119, 84
      %v1219 = vpop.permute.xlu0 %1218
      %1220 = vrot.lane.b32.xlu0 %v1122, 84
      %v1221 = vpop.permute.xlu0 %1220
      %1222 = vrot.lane.b32.xlu0 %v1124, 84
      %v1223 = vpop.permute.xlu0 %1222
      %1224 = vrot.lane.b32.xlu0 %v1126, 84
      %v1225 = vpop.permute.xlu0 %1224
      %1226 = vrot.lane.b32.xlu0 %v1129, 84
      %v1227 = vpop.permute.xlu0 %1226
      %1228 = vrot.lane.b32.xlu0 %v1131, 84
      %v1229 = vpop.permute.xlu0 %1228
      %1230 = vrot.lane.b32.xlu0 %v1133, 84
      %v1231 = vpop.permute.xlu0 %1230
      %1232 = vrot.lane.b32.xlu0 %v1136, 84
      %v1233 = vpop.permute.xlu0 %1232
      %1234 = vrot.lane.b32.xlu0 %v1138, 84
      %v1235 = vpop.permute.xlu0 %1234
      %1236 = vrot.lane.b32.xlu0 %v1140, 84
      %v1237 = vpop.permute.xlu0 %1236
      %1238 = vrot.lane.b32.xlu0 %v1143, 84
      %v1239 = vpop.permute.xlu0 %1238
      %1240 = vrot.lane.b32.xlu0 %v1145, 84
      %v1241 = vpop.permute.xlu0 %1240
      %1242 = vrot.lane.b32.xlu0 %v1147, 84
      %v1243 = vpop.permute.xlu0 %1242
      %vm1292 = vcmask 1043456
      %v1293 = vrot.slane %v393, 4
      %v1294 = vrot.slane %v394, 4
      %v1295 = vsel %vm1292, %v1293, %v1294
      %v1296 = vrot.slane %v395, 4
      %v1297 = vsel %vm1292, %v1294, %v1296
      %v1298 = vrot.slane %v396, 4
      %v1299 = vsel %vm1292, %v1296, %v1298
      %v1300 = vrot.slane %v397, 4
      %v1301 = vrot.slane %v398, 4
      %v1302 = vsel %vm1292, %v1300, %v1301
      %v1303 = vrot.slane %v399, 4
      %v1304 = vsel %vm1292, %v1301, %v1303
      %v1305 = vrot.slane %v400, 4
      %v1306 = vsel %vm1292, %v1303, %v1305
      %v1307 = vrot.slane %v401, 4
      %v1308 = vrot.slane %v402, 4
      %v1309 = vsel %vm1292, %v1307, %v1308
      %v1310 = vrot.slane %v403, 4
      %v1311 = vsel %vm1292, %v1308, %v1310
      %v1312 = vrot.slane %v404, 4
      %v1313 = vsel %vm1292, %v1310, %v1312
      %v1314 = vrot.slane %v405, 4
      %v1315 = vrot.slane %v406, 4
      %v1316 = vsel %vm1292, %v1314, %v1315
      %v1317 = vrot.slane %v407, 4
      %v1318 = vsel %vm1292, %v1315, %v1317
      %v1319 = vrot.slane %v408, 4
      %v1320 = vsel %vm1292, %v1317, %v1319
      %v1321 = vrot.slane %v409, 4
      %v1322 = vrot.slane %v410, 4
      %v1323 = vsel %vm1292, %v1321, %v1322
      %v1324 = vrot.slane %v411, 4
      %v1325 = vsel %vm1292, %v1322, %v1324
      %v1326 = vrot.slane %v412, 4
      %v1327 = vsel %vm1292, %v1324, %v1326
      %v1328 = vrot.slane %v413, 4
      %v1329 = vrot.slane %v414, 4
      %v1330 = vsel %vm1292, %v1328, %v1329
      %v1331 = vrot.slane %v415, 4
      %v1332 = vsel %vm1292, %v1329, %v1331
      %v1333 = vrot.slane %v416, 4
      %v1334 = vsel %vm1292, %v1331, %v1333
      %v1335 = vrot.slane %v417, 4
      %v1336 = vrot.slane %v418, 4
      %v1337 = vsel %vm1292, %v1335, %v1336
      %v1338 = vrot.slane %v419, 4
      %v1339 = vsel %vm1292, %v1336, %v1338
      %v1340 = vrot.slane %v420, 4
      %v1341 = vsel %vm1292, %v1338, %v1340
      %v1342 = vrot.slane %v421, 4
      %v1343 = vrot.slane %v422, 4
      %v1344 = vsel %vm1292, %v1342, %v1343
      %v1345 = vrot.slane %v423, 4
      %v1346 = vsel %vm1292, %v1343, %v1345
      %v1347 = vrot.slane %v424, 4
      %v1348 = vsel %vm1292, %v1345, %v1347
      %v1349 = vrot.slane %v425, 4
      %v1350 = vrot.slane %v426, 4
      %v1351 = vsel %vm1292, %v1349, %v1350
      %v1352 = vrot.slane %v427, 4
      %v1353 = vsel %vm1292, %v1350, %v1352
      %v1354 = vrot.slane %v428, 4
      %v1355 = vsel %vm1292, %v1352, %v1354
      %v1356 = vrot.slane %v429, 4
      %v1357 = vrot.slane %v430, 4
      %v1358 = vsel %vm1292, %v1356, %v1357
      %v1359 = vrot.slane %v431, 4
      %v1360 = vsel %vm1292, %v1357, %v1359
      %v1361 = vrot.slane %v432, 4
      %v1362 = vsel %vm1292, %v1359, %v1361
      %v1363 = vrot.slane %v433, 4
      %v1364 = vrot.slane %v434, 4
      %v1365 = vsel %vm1292, %v1363, %v1364
      %v1366 = vrot.slane %v435, 4
      %v1367 = vsel %vm1292, %v1364, %v1366
      %v1368 = vrot.slane %v436, 4
      %v1369 = vsel %vm1292, %v1366, %v1368
      %v1370 = vrot.slane %v437, 4
      %v1371 = vrot.slane %v438, 4
      %v1372 = vsel %vm1292, %v1370, %v1371
      %v1373 = vrot.slane %v439, 4
      %v1374 = vsel %vm1292, %v1371, %v1373
      %v1375 = vrot.slane %v440, 4
      %v1376 = vsel %vm1292, %v1373, %v1375
      %v1377 = vrot.slane %v441, 4
      %v1378 = vrot.slane %v442, 4
      %v1379 = vsel %vm1292, %v1377, %v1378
      %v1380 = vrot.slane %v443, 4
      %v1381 = vsel %vm1292, %v1378, %v1380
      %v1382 = vrot.slane %v444, 4
      %v1383 = vsel %vm1292, %v1380, %v1382
      %v1384 = vrot.slane %v445, 4
      %v1385 = vrot.slane %v446, 4
      %v1386 = vsel %vm1292, %v1384, %v1385
      %v1387 = vrot.slane %v447, 4
      %v1388 = vsel %vm1292, %v1385, %v1387
      %v1389 = vrot.slane %v448, 4
      %v1390 = vsel %vm1292, %v1387, %v1389
      %v1391 = vrot.slane %v449, 4
      %v1392 = vrot.slane %v450, 4
      %v1393 = vsel %vm1292, %v1391, %v1392
      %v1394 = vrot.slane %v451, 4
      %v1395 = vsel %vm1292, %v1392, %v1394
      %v1396 = vrot.slane %v452, 4
      %v1397 = vsel %vm1292, %v1394, %v1396
      %v1398 = vrot.slane %v453, 4
      %v1399 = vrot.slane %v454, 4
      %v1400 = vsel %vm1292, %v1398, %v1399
      %v1401 = vrot.slane %v455, 4
      %v1402 = vsel %vm1292, %v1399, %v1401
      %v1403 = vrot.slane %v456, 4
      %v1404 = vsel %vm1292, %v1401, %v1403
      %1405 = vrot.lane.b32.xlu0 %v1295, 112
      %v1406 = vpop.permute.xlu0 %1405
      %1407 = vrot.lane.b32.xlu0 %v1297, 112
      %v1408 = vpop.permute.xlu0 %1407
      %1409 = vrot.lane.b32.xlu0 %v1299, 112
      %v1410 = vpop.permute.xlu0 %1409
      %1411 = vrot.lane.b32.xlu0 %v1302, 112
      %v1412 = vpop.permute.xlu0 %1411
      %1413 = vrot.lane.b32.xlu0 %v1304, 112
      %v1414 = vpop.permute.xlu0 %1413
      %1415 = vrot.lane.b32.xlu0 %v1306, 112
      %v1416 = vpop.permute.xlu0 %1415
      %1417 = vrot.lane.b32.xlu0 %v1309, 112
      %v1418 = vpop.permute.xlu0 %1417
      %1419 = vrot.lane.b32.xlu0 %v1311, 112
      %v1420 = vpop.permute.xlu0 %1419
      %1421 = vrot.lane.b32.xlu0 %v1313, 112
      %v1422 = vpop.permute.xlu0 %1421
      %1423 = vrot.lane.b32.xlu0 %v1316, 112
      %v1424 = vpop.permute.xlu0 %1423
      %1425 = vrot.lane.b32.xlu0 %v1318, 112
      %v1426 = vpop.permute.xlu0 %1425
      %1427 = vrot.lane.b32.xlu0 %v1320, 112
      %v1428 = vpop.permute.xlu0 %1427
      %1429 = vrot.lane.b32.xlu0 %v1323, 112
      %v1430 = vpop.permute.xlu0 %1429
      %1431 = vrot.lane.b32.xlu0 %v1325, 112
      %v1432 = vpop.permute.xlu0 %1431
      %1433 = vrot.lane.b32.xlu0 %v1327, 112
      %v1434 = vpop.permute.xlu0 %1433
      %1435 = vrot.lane.b32.xlu0 %v1330, 112
      %v1436 = vpop.permute.xlu0 %1435
      %1437 = vrot.lane.b32.xlu0 %v1332, 112
      %v1438 = vpop.permute.xlu0 %1437
      %1439 = vrot.lane.b32.xlu0 %v1334, 112
      %v1440 = vpop.permute.xlu0 %1439
      %1441 = vrot.lane.b32.xlu0 %v1337, 112
      %v1442 = vpop.permute.xlu0 %1441
      %1443 = vrot.lane.b32.xlu0 %v1339, 112
      %v1444 = vpop.permute.xlu0 %1443
      %1445 = vrot.lane.b32.xlu0 %v1341, 112
      %v1446 = vpop.permute.xlu0 %1445
      %1447 = vrot.lane.b32.xlu0 %v1344, 112
      %v1448 = vpop.permute.xlu0 %1447
      %1449 = vrot.lane.b32.xlu0 %v1346, 112
      %v1450 = vpop.permute.xlu0 %1449
      %1451 = vrot.lane.b32.xlu0 %v1348, 112
      %v1452 = vpop.permute.xlu0 %1451
      %1453 = vrot.lane.b32.xlu0 %v1351, 112
      %v1454 = vpop.permute.xlu0 %1453
      %1455 = vrot.lane.b32.xlu0 %v1353, 112
      %v1456 = vpop.permute.xlu0 %1455
      %1457 = vrot.lane.b32.xlu0 %v1355, 112
      %v1458 = vpop.permute.xlu0 %1457
      %1459 = vrot.lane.b32.xlu0 %v1358, 112
      %v1460 = vpop.permute.xlu0 %1459
      %1461 = vrot.lane.b32.xlu0 %v1360, 112
      %v1462 = vpop.permute.xlu0 %1461
      %1463 = vrot.lane.b32.xlu0 %v1362, 112
      %v1464 = vpop.permute.xlu0 %1463
      %1465 = vrot.lane.b32.xlu0 %v1365, 112
      %v1466 = vpop.permute.xlu0 %1465
      %1467 = vrot.lane.b32.xlu0 %v1367, 112
      %v1468 = vpop.permute.xlu0 %1467
      %1469 = vrot.lane.b32.xlu0 %v1369, 112
      %v1470 = vpop.permute.xlu0 %1469
      %1471 = vrot.lane.b32.xlu0 %v1372, 112
      %v1472 = vpop.permute.xlu0 %1471
      %1473 = vrot.lane.b32.xlu0 %v1374, 112
      %v1474 = vpop.permute.xlu0 %1473
      %1475 = vrot.lane.b32.xlu0 %v1376, 112
      %v1476 = vpop.permute.xlu0 %1475
      %1477 = vrot.lane.b32.xlu0 %v1379, 112
      %v1478 = vpop.permute.xlu0 %1477
      %1479 = vrot.lane.b32.xlu0 %v1381, 112
      %v1480 = vpop.permute.xlu0 %1479
      %1481 = vrot.lane.b32.xlu0 %v1383, 112
      %v1482 = vpop.permute.xlu0 %1481
      %1483 = vrot.lane.b32.xlu0 %v1386, 112
      %v1484 = vpop.permute.xlu0 %1483
      %1485 = vrot.lane.b32.xlu0 %v1388, 112
      %v1486 = vpop.permute.xlu0 %1485
      %1487 = vrot.lane.b32.xlu0 %v1390, 112
      %v1488 = vpop.permute.xlu0 %1487
      %1489 = vrot.lane.b32.xlu0 %v1393, 112
      %v1490 = vpop.permute.xlu0 %1489
      %1491 = vrot.lane.b32.xlu0 %v1395, 112
      %v1492 = vpop.permute.xlu0 %1491
      %1493 = vrot.lane.b32.xlu0 %v1397, 112
      %v1494 = vpop.permute.xlu0 %1493
      %1495 = vrot.lane.b32.xlu0 %v1400, 112
      %v1496 = vpop.permute.xlu0 %1495
      %1497 = vrot.lane.b32.xlu0 %v1402, 112
      %v1498 = vpop.permute.xlu0 %1497
      %1499 = vrot.lane.b32.xlu0 %v1404, 112
      %v1500 = vpop.permute.xlu0 %1499
      %vm1549 = vcmask 228352
      %v1550 = vsel %vm1549, %v393, %v635
      %v1551 = vsel %vm1549, %v394, %v637
      %v1552 = vsel %vm1549, %v395, %v639
      %v1553 = vsel %vm1549, %v397, %v641
      %v1554 = vsel %vm1549, %v398, %v643
      %v1555 = vsel %vm1549, %v399, %v645
      %v1556 = vsel %vm1549, %v401, %v647
      %v1557 = vsel %vm1549, %v402, %v649
      %v1558 = vsel %vm1549, %v403, %v651
      %v1559 = vsel %vm1549, %v405, %v653
      %v1560 = vsel %vm1549, %v406, %v655
      %v1561 = vsel %vm1549, %v407, %v657
      %v1562 = vsel %vm1549, %v409, %v659
      %v1563 = vsel %vm1549, %v410, %v661
      %v1564 = vsel %vm1549, %v411, %v663
      %v1565 = vsel %vm1549, %v413, %v665
      %v1566 = vsel %vm1549, %v414, %v667
      %v1567 = vsel %vm1549, %v415, %v669
      %v1568 = vsel %vm1549, %v417, %v671
      %v1569 = vsel %vm1549, %v418, %v673
      %v1570 = vsel %vm1549, %v419, %v675
      %v1571 = vsel %vm1549, %v421, %v677
      %v1572 = vsel %vm1549, %v422, %v679
      %v1573 = vsel %vm1549, %v423, %v681
      %v1574 = vsel %vm1549, %v425, %v683
      %v1575 = vsel %vm1549, %v426, %v685
      %v1576 = vsel %vm1549, %v427, %v687
      %v1577 = vsel %vm1549, %v429, %v689
      %v1578 = vsel %vm1549, %v430, %v691
      %v1579 = vsel %vm1549, %v431, %v693
      %v1580 = vsel %vm1549, %v433, %v695
      %v1581 = vsel %vm1549, %v434, %v697
      %v1582 = vsel %vm1549, %v435, %v699
      %v1583 = vsel %vm1549, %v437, %v701
      %v1584 = vsel %vm1549, %v438, %v703
      %v1585 = vsel %vm1549, %v439, %v705
      %v1586 = vsel %vm1549, %v441, %v707
      %v1587 = vsel %vm1549, %v442, %v709
      %v1588 = vsel %vm1549, %v443, %v711
      %v1589 = vsel %vm1549, %v445, %v713
      %v1590 = vsel %vm1549, %v446, %v715
      %v1591 = vsel %vm1549, %v447, %v717
      %v1592 = vsel %vm1549, %v449, %v719
      %v1593 = vsel %vm1549, %v450, %v721
      %v1594 = vsel %vm1549, %v451, %v723
      %v1595 = vsel %vm1549, %v453, %v725
      %v1596 = vsel %vm1549, %v454, %v727
      %v1597 = vsel %vm1549, %v455, %v729
      %vm1598 = vcmask 457728
      %v1599 = vsel %vm1598, %v1550, %v892
      %v1600 = vsel %vm1598, %v1551, %v894
      %v1601 = vsel %vm1598, %v1552, %v896
      %v1602 = vsel %vm1598, %v1553, %v898
      %v1603 = vsel %vm1598, %v1554, %v900
      %v1604 = vsel %vm1598, %v1555, %v902
      %v1605 = vsel %vm1598, %v1556, %v904
      %v1606 = vsel %vm1598, %v1557, %v906
      %v1607 = vsel %vm1598, %v1558, %v908
      %v1608 = vsel %vm1598, %v1559, %v910
      %v1609 = vsel %vm1598, %v1560, %v912
      %v1610 = vsel %vm1598, %v1561, %v914
      %v1611 = vsel %vm1598, %v1562, %v916
      %v1612 = vsel %vm1598, %v1563, %v918
      %v1613 = vsel %vm1598, %v1564, %v920
      %v1614 = vsel %vm1598, %v1565, %v922
      %v1615 = vsel %vm1598, %v1566, %v924
      %v1616 = vsel %vm1598, %v1567, %v926
      %v1617 = vsel %vm1598, %v1568, %v928
      %v1618 = vsel %vm1598, %v1569, %v930
      %v1619 = vsel %vm1598, %v1570, %v932
      %v1620 = vsel %vm1598, %v1571, %v934
      %v1621 = vsel %vm1598, %v1572, %v936
      %v1622 = vsel %vm1598, %v1573, %v938
      %v1623 = vsel %vm1598, %v1574, %v940
      %v1624 = vsel %vm1598, %v1575, %v942
      %v1625 = vsel %vm1598, %v1576, %v944
      %v1626 = vsel %vm1598, %v1577, %v946
      %v1627 = vsel %vm1598, %v1578, %v948
      %v1628 = vsel %vm1598, %v1579, %v950
      %v1629 = vsel %vm1598, %v1580, %v952
      %v1630 = vsel %vm1598, %v1581, %v954
      %v1631 = vsel %vm1598, %v1582, %v956
      %v1632 = vsel %vm1598, %v1583, %v958
      %v1633 = vsel %vm1598, %v1584, %v960
      %v1634 = vsel %vm1598, %v1585, %v962
      %v1635 = vsel %vm1598, %v1586, %v964
      %v1636 = vsel %vm1598, %v1587, %v966
      %v1637 = vsel %vm1598, %v1588, %v968
      %v1638 = vsel %vm1598, %v1589, %v970
      %v1639 = vsel %vm1598, %v1590, %v972
      %v1640 = vsel %vm1598, %v1591, %v974
      %v1641 = vsel %vm1598, %v1592, %v976
      %v1642 = vsel %vm1598, %v1593, %v978
      %v1643 = vsel %vm1598, %v1594, %v980
      %v1644 = vsel %vm1598, %v1595, %v982
      %v1645 = vsel %vm1598, %v1596, %v984
      %v1646 = vsel %vm1598, %v1597, %v986
      %vm1647 = vcmask 687104
      %v1648 = vsel %vm1647, %v1599, %v1149
      %v1649 = vsel %vm1647, %v1600, %v1151
      %v1650 = vsel %vm1647, %v1601, %v1153
      %v1651 = vsel %vm1647, %v1602, %v1155
      %v1652 = vsel %vm1647, %v1603, %v1157
      %v1653 = vsel %vm1647, %v1604, %v1159
      %v1654 = vsel %vm1647, %v1605, %v1161
      %v1655 = vsel %vm1647, %v1606, %v1163
      %v1656 = vsel %vm1647, %v1607, %v1165
      %v1657 = vsel %vm1647, %v1608, %v1167
      %v1658 = vsel %vm1647, %v1609, %v1169
      %v1659 = vsel %vm1647, %v1610, %v1171
      %v1660 = vsel %vm1647, %v1611, %v1173
      %v1661 = vsel %vm1647, %v1612, %v1175
      %v1662 = vsel %vm1647, %v1613, %v1177
      %v1663 = vsel %vm1647, %v1614, %v1179
      %v1664 = vsel %vm1647, %v1615, %v1181
      %v1665 = vsel %vm1647, %v1616, %v1183
      %v1666 = vsel %vm1647, %v1617, %v1185
      %v1667 = vsel %vm1647, %v1618, %v1187
      %v1668 = vsel %vm1647, %v1619, %v1189
      %v1669 = vsel %vm1647, %v1620, %v1191
      %v1670 = vsel %vm1647, %v1621, %v1193
      %v1671 = vsel %vm1647, %v1622, %v1195
      %v1672 = vsel %vm1647, %v1623, %v1197
      %v1673 = vsel %vm1647, %v1624, %v1199
      %v1674 = vsel %vm1647, %v1625, %v1201
      %v1675 = vsel %vm1647, %v1626, %v1203
      %v1676 = vsel %vm1647, %v1627, %v1205
      %v1677 = vsel %vm1647, %v1628, %v1207
      %v1678 = vsel %vm1647, %v1629, %v1209
      %v1679 = vsel %vm1647, %v1630, %v1211
      %v1680 = vsel %vm1647, %v1631, %v1213
      %v1681 = vsel %vm1647, %v1632, %v1215
      %v1682 = vsel %vm1647, %v1633, %v1217
      %v1683 = vsel %vm1647, %v1634, %v1219
      %v1684 = vsel %vm1647, %v1635, %v1221
      %v1685 = vsel %vm1647, %v1636, %v1223
      %v1686 = vsel %vm1647, %v1637, %v1225
      %v1687 = vsel %vm1647, %v1638, %v1227
      %v1688 = vsel %vm1647, %v1639, %v1229
      %v1689 = vsel %vm1647, %v1640, %v1231
      %v1690 = vsel %vm1647, %v1641, %v1233
      %v1691 = vsel %vm1647, %v1642, %v1235
      %v1692 = vsel %vm1647, %v1643, %v1237
      %v1693 = vsel %vm1647, %v1644, %v1239
      %v1694 = vsel %vm1647, %v1645, %v1241
      %v1695 = vsel %vm1647, %v1646, %v1243
      %vm1696 = vcmask 916480
      %v1697 = vsel %vm1696, %v1648, %v1406
      %v1698 = vsel %vm1696, %v1649, %v1408
      %v1699 = vsel %vm1696, %v1650, %v1410
      %v1700 = vsel %vm1696, %v1651, %v1412
      %v1701 = vsel %vm1696, %v1652, %v1414
      %v1702 = vsel %vm1696, %v1653, %v1416
      %v1703 = vsel %vm1696, %v1654, %v1418
      %v1704 = vsel %vm1696, %v1655, %v1420
      %v1705 = vsel %vm1696, %v1656, %v1422
      %v1706 = vsel %vm1696, %v1657, %v1424
      %v1707 = vsel %vm1696, %v1658, %v1426
      %v1708 = vsel %vm1696, %v1659, %v1428
      %v1709 = vsel %vm1696, %v1660, %v1430
      %v1710 = vsel %vm1696, %v1661, %v1432
      %v1711 = vsel %vm1696, %v1662, %v1434
      %v1712 = vsel %vm1696, %v1663, %v1436
      %v1713 = vsel %vm1696, %v1664, %v1438
      %v1714 = vsel %vm1696, %v1665, %v1440
      %v1715 = vsel %vm1696, %v1666, %v1442
      %v1716 = vsel %vm1696, %v1667, %v1444
      %v1717 = vsel %vm1696, %v1668, %v1446
      %v1718 = vsel %vm1696, %v1669, %v1448
      %v1719 = vsel %vm1696, %v1670, %v1450
      %v1720 = vsel %vm1696, %v1671, %v1452
      %v1721 = vsel %vm1696, %v1672, %v1454
      %v1722 = vsel %vm1696, %v1673, %v1456
      %v1723 = vsel %vm1696, %v1674, %v1458
      %v1724 = vsel %vm1696, %v1675, %v1460
      %v1725 = vsel %vm1696, %v1676, %v1462
      %v1726 = vsel %vm1696, %v1677, %v1464
      %v1727 = vsel %vm1696, %v1678, %v1466
      %v1728 = vsel %vm1696, %v1679, %v1468
      %v1729 = vsel %vm1696, %v1680, %v1470
      %v1730 = vsel %vm1696, %v1681, %v1472
      %v1731 = vsel %vm1696, %v1682, %v1474
      %v1732 = vsel %vm1696, %v1683, %v1476
      %v1733 = vsel %vm1696, %v1684, %v1478
      %v1734 = vsel %vm1696, %v1685, %v1480
      %v1735 = vsel %vm1696, %v1686, %v1482
      %v1736 = vsel %vm1696, %v1687, %v1484
      %v1737 = vsel %vm1696, %v1688, %v1486
      %v1738 = vsel %vm1696, %v1689, %v1488
      %v1739 = vsel %vm1696, %v1690, %v1490
      %v1740 = vsel %vm1696, %v1691, %v1492
      %v1741 = vsel %vm1696, %v1692, %v1494
      %v1742 = vsel %vm1696, %v1693, %v1496
      %v1743 = vsel %vm1696, %v1694, %v1498
      %v1744 = vsel %vm1696, %v1695, %v1500
      %v1745 = vld [vmem:[%s1] sm:$0xff]
      %v1746 = vld [vmem:[%s1 + $0x8] sm:$0xff]
      %v1747 = vld [vmem:[%s1 + $0x10] sm:$0xff]
      %v1748 = vld [vmem:[%s1 + $0x18] sm:$0xff]
      %v1749 = vld [vmem:[%s1 + $0x20] sm:$0xff]
      %v1750 = vld [vmem:[%s1 + $0x28] sm:$0xff]
      %v1751 = vld [vmem:[%s1 + $0x30] sm:$0xff]
      %v1752 = vld [vmem:[%s1 + $0x38] sm:$0xff]
      %v1753 = vld [vmem:[%s1 + $0x40] sm:$0xff]
      %v1754 = vld [vmem:[%s1 + $0x48] sm:$0xff]
      %v1755 = vld [vmem:[%s1 + $0x50] sm:$0xff]
      %v1756 = vld [vmem:[%s1 + $0x58] sm:$0xff]
      %v1757 = vld [vmem:[%s1 + $0x60] sm:$0xff]
      %v1758 = vld [vmem:[%s1 + $0x68] sm:$0xff]
      %v1759 = vld [vmem:[%s1 + $0x70] sm:$0xff]
      %v1760 = vld [vmem:[%s1 + $0x78] sm:$0xff]
      %v1761 = vld [vmem:[%s1 + $0x80] sm:$0xff]
      %v1762 = vld [vmem:[%s1 + $0x88] sm:$0xff]
      %v1763 = vld [vmem:[%s1 + $0x90] sm:$0xff]
      %v1764 = vld [vmem:[%s1 + $0x98] sm:$0xff]
      %v1765 = vld [vmem:[%s1 + $0xa0] sm:$0xff]
      %v1766 = vld [vmem:[%s1 + $0xa8] sm:$0xff]
      %v1767 = vld [vmem:[%s1 + $0xb0] sm:$0xff]
      %v1768 = vld [vmem:[%s1 + $0xb8] sm:$0xff]
      %v1769 = vld [vmem:[%s1 + $0xc0] sm:$0xff]
      %v1770 = vld [vmem:[%s1 + $0xc8] sm:$0xff]
      %v1771 = vld [vmem:[%s1 + $0xd0] sm:$0xff]
      %v1772 = vld [vmem:[%s1 + $0xd8] sm:$0xff]
      %v1773 = vld [vmem:[%s1 + $0xe0] sm:$0xff]
      %v1774 = vld [vmem:[%s1 + $0xe8] sm:$0xff]
      %v1775 = vld [vmem:[%s1 + $0xf0] sm:$0xff]
      %v1776 = vld [vmem:[%s1 + $0xf8] sm:$0xff]
      %v1777 = vld [vmem:[%s1 + $0x100] sm:$0xff]
      %v1778 = vld [vmem:[%s1 + $0x108] sm:$0xff]
      %v1779 = vld [vmem:[%s1 + $0x110] sm:$0xf]
      %v1780 = vld [vmem:[%s1 + $0x118] sm:$0xf]
      %v1781 = vld [vmem:[%s2] sm:$0x3]
      %v1783 = vlaneseq
      %v1784 = vshrl.u32 %v1783, 7
      %v1785 = vsub.s32 0, %v1784
      %v1786 = vrot.slane %v1781, %v1785
      %v1787 = vlaneseq
      %v1788 = vshrl.u32 %v1787, 7
      %v1789 = vsub.s32 1, %v1788
      %v1790 = vrot.slane %v1781, %v1789
      %vm1793 = vcmask 97280
      %v1794 = vsel %vm1793, %v1406, 0
      %v1796 = vsel %vm1793, %v1408, 0
      %v1798 = vsel %vm1793, %v1410, 0
      %v1800 = vsel %vm1793, %v1412, 0
      %v1802 = vsel %vm1793, %v1414, 0
      %v1804 = vsel %vm1793, %v1416, 0
      %v1806 = vsel %vm1793, %v1418, 0
      %v1808 = vsel %vm1793, %v1420, 0
      %v1810 = vsel %vm1793, %v1422, 0
      %v1812 = vsel %vm1793, %v1424, 0
      %v1814 = vsel %vm1793, %v1426, 0
      %v1816 = vsel %vm1793, %v1428, 0
      %v1818 = vsel %vm1793, %v1430, 0
      %v1820 = vsel %vm1793, %v1432, 0
      %v1822 = vsel %vm1793, %v1434, 0
      %v1824 = vsel %vm1793, %v1436, 0
      %v1826 = vsel %vm1793, %v1438, 0
      %v1828 = vsel %vm1793, %v1440, 0
      %v1830 = vsel %vm1793, %v1442, 0
      %v1832 = vsel %vm1793, %v1444, 0
      %v1834 = vsel %vm1793, %v1446, 0
      %v1836 = vsel %vm1793, %v1448, 0
      %v1838 = vsel %vm1793, %v1450, 0
      %v1840 = vsel %vm1793, %v1452, 0
      %v1842 = vsel %vm1793, %v1454, 0
      %v1844 = vsel %vm1793, %v1456, 0
      %v1846 = vsel %vm1793, %v1458, 0
      %v1848 = vsel %vm1793, %v1460, 0
      %v1850 = vsel %vm1793, %v1462, 0
      %v1852 = vsel %vm1793, %v1464, 0
      %v1854 = vsel %vm1793, %v1466, 0
      %v1856 = vsel %vm1793, %v1468, 0
      %v1858 = vsel %vm1793, %v1470, 0
      %v1860 = vsel %vm1793, %v1472, 0
      %v1862 = vsel %vm1793, %v1474, 0
      %v1864 = vsel %vm1793, %v1476, 0
      %v1866 = vsel %vm1793, %v1478, 0
      %v1868 = vsel %vm1793, %v1480, 0
      %v1870 = vsel %vm1793, %v1482, 0
      %v1872 = vsel %vm1793, %v1484, 0
      %v1874 = vsel %vm1793, %v1486, 0
      %v1876 = vsel %vm1793, %v1488, 0
      %v1878 = vsel %vm1793, %v1490, 0
      %v1880 = vsel %vm1793, %v1492, 0
      %v1882 = vsel %vm1793, %v1494, 0
      %v1884 = vsel %vm1793, %v1496, 0
      %v1886 = vsel %vm1793, %v1498, 0
      %v1888 = vsel %vm1793, %v1500, 0
      %v1891 = vsel %vm1292, %v1779, 0
      %v1894 = vsel %vm1292, %v1780, 0
      %1896 = vmatprep.subr.mxu0 %v1776
      %1897 = vmatpush1.msra.mxu0 %v1775
      %1898 = vmatprep.subr.mxu0 %v1774
      %1899 = vmatpush1.msra.mxu0 %v1773
      %1900 = vmatprep.subr.mxu0 %v1772
      %1901 = vmatpush1.msra.mxu0 %v1771
      %1902 = vmatprep.subr.mxu0 %v1770
      %1903 = vmatpush1.msra.mxu0 %v1769
      %1904 = vmatprep.subr.mxu0 %v1768
      %1905 = vmatpush1.msra.mxu0 %v1767
      %1906 = vmatprep.subr.mxu0 %v1766
      %1907 = vmatpush1.msra.mxu0 %v1765
      %1908 = vmatprep.subr.mxu0 %v1764
      %1909 = vmatpush1.msra.mxu0 %v1763
      %1910 = vmatprep.subr.mxu0 %v1762
      %1911 = vmatpush1.msra.mxu0 %v1761
      %1912 = vmatprep.subr.mxu0 %v1760
      %1913 = vmatpush1.msra.mxu0 %v1759
      %1914 = vmatprep.subr.mxu0 %v1758
      %1915 = vmatpush1.msra.mxu0 %v1757
      %1916 = vmatprep.subr.mxu0 %v1756
      %1917 = vmatpush1.msra.mxu0 %v1755
      %1918 = vmatprep.subr.mxu0 %v1754
      %1919 = vmatpush1.msra.mxu0 %v1753
      %1920 = vmatprep.subr.mxu0 %v1752
      %1921 = vmatpush1.msra.mxu0 %v1751
      %1922 = vmatprep.subr.mxu0 %v1750
      %1923 = vmatpush1.msra.mxu0 %v1749
      %1924 = vmatprep.subr.mxu0 %v1748
      %1925 = vmatpush1.msra.mxu0 %v1747
      %1926 = vmatprep.subr.mxu0 %v1746
      %1927 = vmatpush1.msra.mxu0 %v1745
      %1928 = vmatprep.subr.mxu0 0.0
      %1929 = vmatpush2.msra.mxu0 0.0
      %1930 = vmatprep.subr.mxu0 0.0
      %1931 = vmatpush2.msra.mxu0 0.0
      %1932 = vmatprep.subr.mxu0 0.0
      %1933 = vmatpush2.msra.mxu0 0.0
      %1934 = vmatprep.subr.mxu0 0.0
      %1935 = vmatpush2.msra.mxu0 0.0
      %1936 = vmatprep.subr.mxu0 0.0
      %1937 = vmatpush2.msra.mxu0 0.0
      %1938 = vmatprep.subr.mxu0 0.0
      %1939 = vmatpush2.msra.mxu0 0.0
      %1940 = vmatprep.subr.mxu0 0.0
      %1941 = vmatpush2.msra.mxu0 0.0
      %1942 = vmatprep.subr.mxu0 0.0
      %1943 = vmatpush2.msra.mxu0 0.0
      %1944 = vmatprep.subr.mxu0 0.0
      %1945 = vmatpush2.msra.mxu0 0.0
      %1946 = vmatprep.subr.mxu0 0.0
      %1947 = vmatpush2.msra.mxu0 0.0
      %1948 = vmatprep.subr.mxu0 0.0
      %1949 = vmatpush2.msra.mxu0 0.0
      %1950 = vmatprep.subr.mxu0 0.0
      %1951 = vmatpush2.msra.mxu0 0.0
      %1952 = vmatprep.subr.mxu0 0.0
      %1953 = vmatpush2.msra.mxu0 0.0
      %1954 = vmatprep.subr.mxu0 0.0
      %1955 = vmatpush2.msra.mxu0 0.0
      %1956 = vmatprep.subr.mxu0 %v1894
      %1957 = vmatpush2.msra.mxu0 %v1891
      %1958 = vmatprep.subr.mxu0 %v1778
      %1959 = vmatpush2.msra.mxu0 %v1777
      %1960 = vmatprep.mubr.f32.mxu0 %v1794
      %1961 = vmatmul.mubr.f32.gmra.mxu0 %v1697
      %v1962 = vpop.f32.mrf.mxu0
      %v1963 = vadd.f32 %v1786, %v1962
      %v1964 = vpop.f32.mrf.mxu0
      %v1965 = vadd.f32 %v1790, %v1964
      %1966 = vmatprep.mubr.f32.mxu0 %v1796
      %1967 = vmatmul.mubr.f32.gmra.mxu0 %v1698
      %v1968 = vpop.f32.mrf.mxu0
      %v1969 = vadd.f32 %v1786, %v1968
      %v1970 = vpop.f32.mrf.mxu0
      %v1971 = vadd.f32 %v1790, %v1970
      %1972 = vmatprep.mubr.f32.mxu0 %v1798
      %1973 = vmatmul.mubr.f32.gmra.mxu0 %v1699
      %v1974 = vpop.f32.mrf.mxu0
      %v1975 = vadd.f32 %v1786, %v1974
      %v1976 = vpop.f32.mrf.mxu0
      %v1977 = vadd.f32 %v1790, %v1976
      %1978 = vmatprep.mubr.f32.mxu0 %v1800
      %1979 = vmatmul.mubr.f32.gmra.mxu0 %v1700
      %v1980 = vpop.f32.mrf.mxu0
      %v1981 = vadd.f32 %v1786, %v1980
      %v1982 = vpop.f32.mrf.mxu0
      %v1983 = vadd.f32 %v1790, %v1982
      %1984 = vmatprep.mubr.f32.mxu0 %v1802
      %1985 = vmatmul.mubr.f32.gmra.mxu0 %v1701
      %v1986 = vpop.f32.mrf.mxu0
      %v1987 = vadd.f32 %v1786, %v1986
      %v1988 = vpop.f32.mrf.mxu0
      %v1989 = vadd.f32 %v1790, %v1988
      %1990 = vmatprep.mubr.f32.mxu0 %v1804
      %1991 = vmatmul.mubr.f32.gmra.mxu0 %v1702
      %v1992 = vpop.f32.mrf.mxu0
      %v1993 = vadd.f32 %v1786, %v1992
      %v1994 = vpop.f32.mrf.mxu0
      %v1995 = vadd.f32 %v1790, %v1994
      %1996 = vmatprep.mubr.f32.mxu0 %v1806
      %1997 = vmatmul.mubr.f32.gmra.mxu0 %v1703
      %v1998 = vpop.f32.mrf.mxu0
      %v1999 = vadd.f32 %v1786, %v1998
      %v2000 = vpop.f32.mrf.mxu0
      %v2001 = vadd.f32 %v1790, %v2000
      %2002 = vmatprep.mubr.f32.mxu0 %v1808
      %2003 = vmatmul.mubr.f32.gmra.mxu0 %v1704
      %v2004 = vpop.f32.mrf.mxu0
      %v2005 = vadd.f32 %v1786, %v2004
      %v2006 = vpop.f32.mrf.mxu0
      %v2007 = vadd.f32 %v1790, %v2006
      %2008 = vmatprep.mubr.f32.mxu0 %v1810
      %2009 = vmatmul.mubr.f32.gmra.mxu0 %v1705
      %v2010 = vpop.f32.mrf.mxu0
      %v2011 = vadd.f32 %v1786, %v2010
      %v2012 = vpop.f32.mrf.mxu0
      %v2013 = vadd.f32 %v1790, %v2012
      %2014 = vmatprep.mubr.f32.mxu0 %v1812
      %2015 = vmatmul.mubr.f32.gmra.mxu0 %v1706
      %v2016 = vpop.f32.mrf.mxu0
      %v2017 = vadd.f32 %v1786, %v2016
      %v2018 = vpop.f32.mrf.mxu0
      %v2019 = vadd.f32 %v1790, %v2018
      %2020 = vmatprep.mubr.f32.mxu0 %v1814
      %2021 = vmatmul.mubr.f32.gmra.mxu0 %v1707
      %v2022 = vpop.f32.mrf.mxu0
      %v2023 = vadd.f32 %v1786, %v2022
      %v2024 = vpop.f32.mrf.mxu0
      %v2025 = vadd.f32 %v1790, %v2024
      %2026 = vmatprep.mubr.f32.mxu0 %v1816
      %2027 = vmatmul.mubr.f32.gmra.mxu0 %v1708
      %v2028 = vpop.f32.mrf.mxu0
      %v2029 = vadd.f32 %v1786, %v2028
      %v2030 = vpop.f32.mrf.mxu0
      %v2031 = vadd.f32 %v1790, %v2030
      %2032 = vmatprep.mubr.f32.mxu0 %v1818
      %2033 = vmatmul.mubr.f32.gmra.mxu0 %v1709
      %v2034 = vpop.f32.mrf.mxu0
      %v2035 = vadd.f32 %v1786, %v2034
      %v2036 = vpop.f32.mrf.mxu0
      %v2037 = vadd.f32 %v1790, %v2036
      %2038 = vmatprep.mubr.f32.mxu0 %v1820
      %2039 = vmatmul.mubr.f32.gmra.mxu0 %v1710
      %v2040 = vpop.f32.mrf.mxu0
      %v2041 = vadd.f32 %v1786, %v2040
      %v2042 = vpop.f32.mrf.mxu0
      %v2043 = vadd.f32 %v1790, %v2042
      %2044 = vmatprep.mubr.f32.mxu0 %v1822
      %2045 = vmatmul.mubr.f32.gmra.mxu0 %v1711
      %v2046 = vpop.f32.mrf.mxu0
      %v2047 = vadd.f32 %v1786, %v2046
      %v2048 = vpop.f32.mrf.mxu0
      %v2049 = vadd.f32 %v1790, %v2048
      %2050 = vmatprep.mubr.f32.mxu0 %v1824
      %2051 = vmatmul.mubr.f32.gmra.mxu0 %v1712
      %v2052 = vpop.f32.mrf.mxu0
      %v2053 = vadd.f32 %v1786, %v2052
      %v2054 = vpop.f32.mrf.mxu0
      %v2055 = vadd.f32 %v1790, %v2054
      %2056 = vmatprep.mubr.f32.mxu0 %v1826
      %2057 = vmatmul.mubr.f32.gmra.mxu0 %v1713
      %v2058 = vpop.f32.mrf.mxu0
      %v2059 = vadd.f32 %v1786, %v2058
      %v2060 = vpop.f32.mrf.mxu0
      %v2061 = vadd.f32 %v1790, %v2060
      %2062 = vmatprep.mubr.f32.mxu0 %v1828
      %2063 = vmatmul.mubr.f32.gmra.mxu0 %v1714
      %v2064 = vpop.f32.mrf.mxu0
      %v2065 = vadd.f32 %v1786, %v2064
      %v2066 = vpop.f32.mrf.mxu0
      %v2067 = vadd.f32 %v1790, %v2066
      %2068 = vmatprep.mubr.f32.mxu0 %v1830
      %2069 = vmatmul.mubr.f32.gmra.mxu0 %v1715
      %v2070 = vpop.f32.mrf.mxu0
      %v2071 = vadd.f32 %v1786, %v2070
      %v2072 = vpop.f32.mrf.mxu0
      %v2073 = vadd.f32 %v1790, %v2072
      %2074 = vmatprep.mubr.f32.mxu0 %v1832
      %2075 = vmatmul.mubr.f32.gmra.mxu0 %v1716
      %v2076 = vpop.f32.mrf.mxu0
      %v2077 = vadd.f32 %v1786, %v2076
      %v2078 = vpop.f32.mrf.mxu0
      %v2079 = vadd.f32 %v1790, %v2078
      %2080 = vmatprep.mubr.f32.mxu0 %v1834
      %2081 = vmatmul.mubr.f32.gmra.mxu0 %v1717
      %v2082 = vpop.f32.mrf.mxu0
      %v2083 = vadd.f32 %v1786, %v2082
      %v2084 = vpop.f32.mrf.mxu0
      %v2085 = vadd.f32 %v1790, %v2084
      %2086 = vmatprep.mubr.f32.mxu0 %v1836
      %2087 = vmatmul.mubr.f32.gmra.mxu0 %v1718
      %v2088 = vpop.f32.mrf.mxu0
      %v2089 = vadd.f32 %v1786, %v2088
      %v2090 = vpop.f32.mrf.mxu0
      %v2091 = vadd.f32 %v1790, %v2090
      %2092 = vmatprep.mubr.f32.mxu0 %v1838
      %2093 = vmatmul.mubr.f32.gmra.mxu0 %v1719
      %v2094 = vpop.f32.mrf.mxu0
      %v2095 = vadd.f32 %v1786, %v2094
      %v2096 = vpop.f32.mrf.mxu0
      %v2097 = vadd.f32 %v1790, %v2096
      %2098 = vmatprep.mubr.f32.mxu0 %v1840
      %2099 = vmatmul.mubr.f32.gmra.mxu0 %v1720
      %v2100 = vpop.f32.mrf.mxu0
      %v2101 = vadd.f32 %v1786, %v2100
      %v2102 = vpop.f32.mrf.mxu0
      %v2103 = vadd.f32 %v1790, %v2102
      %2104 = vmatprep.mubr.f32.mxu0 %v1842
      %2105 = vmatmul.mubr.f32.gmra.mxu0 %v1721
      %v2106 = vpop.f32.mrf.mxu0
      %v2107 = vadd.f32 %v1786, %v2106
      %v2108 = vpop.f32.mrf.mxu0
      %v2109 = vadd.f32 %v1790, %v2108
      %2110 = vmatprep.mubr.f32.mxu0 %v1844
      %2111 = vmatmul.mubr.f32.gmra.mxu0 %v1722
      %v2112 = vpop.f32.mrf.mxu0
      %v2113 = vadd.f32 %v1786, %v2112
      %v2114 = vpop.f32.mrf.mxu0
      %v2115 = vadd.f32 %v1790, %v2114
      %2116 = vmatprep.mubr.f32.mxu0 %v1846
      %2117 = vmatmul.mubr.f32.gmra.mxu0 %v1723
      %v2118 = vpop.f32.mrf.mxu0
      %v2119 = vadd.f32 %v1786, %v2118
      %v2120 = vpop.f32.mrf.mxu0
      %v2121 = vadd.f32 %v1790, %v2120
      %2122 = vmatprep.mubr.f32.mxu0 %v1848
      %2123 = vmatmul.mubr.f32.gmra.mxu0 %v1724
      %v2124 = vpop.f32.mrf.mxu0
      %v2125 = vadd.f32 %v1786, %v2124
      %v2126 = vpop.f32.mrf.mxu0
      %v2127 = vadd.f32 %v1790, %v2126
      %2128 = vmatprep.mubr.f32.mxu0 %v1850
      %2129 = vmatmul.mubr.f32.gmra.mxu0 %v1725
      %v2130 = vpop.f32.mrf.mxu0
      %v2131 = vadd.f32 %v1786, %v2130
      %v2132 = vpop.f32.mrf.mxu0
      %v2133 = vadd.f32 %v1790, %v2132
      %2134 = vmatprep.mubr.f32.mxu0 %v1852
      %2135 = vmatmul.mubr.f32.gmra.mxu0 %v1726
      %v2136 = vpop.f32.mrf.mxu0
      %v2137 = vadd.f32 %v1786, %v2136
      %v2138 = vpop.f32.mrf.mxu0
      %v2139 = vadd.f32 %v1790, %v2138
      %2140 = vmatprep.mubr.f32.mxu0 %v1854
      %2141 = vmatmul.mubr.f32.gmra.mxu0 %v1727
      %v2142 = vpop.f32.mrf.mxu0
      %v2143 = vadd.f32 %v1786, %v2142
      %v2144 = vpop.f32.mrf.mxu0
      %v2145 = vadd.f32 %v1790, %v2144
      %2146 = vmatprep.mubr.f32.mxu0 %v1856
      %2147 = vmatmul.mubr.f32.gmra.mxu0 %v1728
      %v2148 = vpop.f32.mrf.mxu0
      %v2149 = vadd.f32 %v1786, %v2148
      %v2150 = vpop.f32.mrf.mxu0
      %v2151 = vadd.f32 %v1790, %v2150
      %2152 = vmatprep.mubr.f32.mxu0 %v1858
      %2153 = vmatmul.mubr.f32.gmra.mxu0 %v1729
      %v2154 = vpop.f32.mrf.mxu0
      %v2155 = vadd.f32 %v1786, %v2154
      %v2156 = vpop.f32.mrf.mxu0
      %v2157 = vadd.f32 %v1790, %v2156
      %2158 = vmatprep.mubr.f32.mxu0 %v1860
      %2159 = vmatmul.mubr.f32.gmra.mxu0 %v1730
      %v2160 = vpop.f32.mrf.mxu0
      %v2161 = vadd.f32 %v1786, %v2160
      %v2162 = vpop.f32.mrf.mxu0
      %v2163 = vadd.f32 %v1790, %v2162
      %2164 = vmatprep.mubr.f32.mxu0 %v1862
      %2165 = vmatmul.mubr.f32.gmra.mxu0 %v1731
      %v2166 = vpop.f32.mrf.mxu0
      %v2167 = vadd.f32 %v1786, %v2166
      %v2168 = vpop.f32.mrf.mxu0
      %v2169 = vadd.f32 %v1790, %v2168
      %2170 = vmatprep.mubr.f32.mxu0 %v1864
      %2171 = vmatmul.mubr.f32.gmra.mxu0 %v1732
      %v2172 = vpop.f32.mrf.mxu0
      %v2173 = vadd.f32 %v1786, %v2172
      %v2174 = vpop.f32.mrf.mxu0
      %v2175 = vadd.f32 %v1790, %v2174
      %2176 = vmatprep.mubr.f32.mxu0 %v1866
      %2177 = vmatmul.mubr.f32.gmra.mxu0 %v1733
      %v2178 = vpop.f32.mrf.mxu0
      %v2179 = vadd.f32 %v1786, %v2178
      %v2180 = vpop.f32.mrf.mxu0
      %v2181 = vadd.f32 %v1790, %v2180
      %2182 = vmatprep.mubr.f32.mxu0 %v1868
      %2183 = vmatmul.mubr.f32.gmra.mxu0 %v1734
      %v2184 = vpop.f32.mrf.mxu0
      %v2185 = vadd.f32 %v1786, %v2184
      %v2186 = vpop.f32.mrf.mxu0
      %v2187 = vadd.f32 %v1790, %v2186
      %2188 = vmatprep.mubr.f32.mxu0 %v1870
      %2189 = vmatmul.mubr.f32.gmra.mxu0 %v1735
      %v2190 = vpop.f32.mrf.mxu0
      %v2191 = vadd.f32 %v1786, %v2190
      %v2192 = vpop.f32.mrf.mxu0
      %v2193 = vadd.f32 %v1790, %v2192
      %2194 = vmatprep.mubr.f32.mxu0 %v1872
      %2195 = vmatmul.mubr.f32.gmra.mxu0 %v1736
      %v2196 = vpop.f32.mrf.mxu0
      %v2197 = vadd.f32 %v1786, %v2196
      %v2198 = vpop.f32.mrf.mxu0
      %v2199 = vadd.f32 %v1790, %v2198
      %2200 = vmatprep.mubr.f32.mxu0 %v1874
      %2201 = vmatmul.mubr.f32.gmra.mxu0 %v1737
      %v2202 = vpop.f32.mrf.mxu0
      %v2203 = vadd.f32 %v1786, %v2202
      %v2204 = vpop.f32.mrf.mxu0
      %v2205 = vadd.f32 %v1790, %v2204
      %2206 = vmatprep.mubr.f32.mxu0 %v1876
      %2207 = vmatmul.mubr.f32.gmra.mxu0 %v1738
      %v2208 = vpop.f32.mrf.mxu0
      %v2209 = vadd.f32 %v1786, %v2208
      %v2210 = vpop.f32.mrf.mxu0
      %v2211 = vadd.f32 %v1790, %v2210
      %2212 = vmatprep.mubr.f32.mxu0 %v1878
      %2213 = vmatmul.mubr.f32.gmra.mxu0 %v1739
      %v2214 = vpop.f32.mrf.mxu0
      %v2215 = vadd.f32 %v1786, %v2214
      %v2216 = vpop.f32.mrf.mxu0
      %v2217 = vadd.f32 %v1790, %v2216
      %2218 = vmatprep.mubr.f32.mxu0 %v1880
      %2219 = vmatmul.mubr.f32.gmra.mxu0 %v1740
      %v2220 = vpop.f32.mrf.mxu0
      %v2221 = vadd.f32 %v1786, %v2220
      %v2222 = vpop.f32.mrf.mxu0
      %v2223 = vadd.f32 %v1790, %v2222
      %2224 = vmatprep.mubr.f32.mxu0 %v1882
      %2225 = vmatmul.mubr.f32.gmra.mxu0 %v1741
      %v2226 = vpop.f32.mrf.mxu0
      %v2227 = vadd.f32 %v1786, %v2226
      %v2228 = vpop.f32.mrf.mxu0
      %v2229 = vadd.f32 %v1790, %v2228
      %2230 = vmatprep.mubr.f32.mxu0 %v1884
      %2231 = vmatmul.mubr.f32.gmra.mxu0 %v1742
      %v2232 = vpop.f32.mrf.mxu0
      %v2233 = vadd.f32 %v1786, %v2232
      %v2234 = vpop.f32.mrf.mxu0
      %v2235 = vadd.f32 %v1790, %v2234
      %2236 = vmatprep.mubr.f32.mxu0 %v1886
      %2237 = vmatmul.mubr.f32.gmra.mxu0 %v1743
      %v2238 = vpop.f32.mrf.mxu0
      %v2239 = vadd.f32 %v1786, %v2238
      %v2240 = vpop.f32.mrf.mxu0
      %v2241 = vadd.f32 %v1790, %v2240
      %2242 = vmatprep.mubr.f32.mxu0 %v1888
      %2243 = vmatmul.mubr.f32.gmra.mxu0 %v1744
      %v2244 = vpop.f32.mrf.mxu0
      %v2245 = vadd.f32 %v1786, %v2244
      %v2246 = vpop.f32.mrf.mxu0
      %v2247 = vadd.f32 %v1790, %v2246
      %2248 = vdwg.mxu0
      %v2249 = vsub.f32 0.0, %v1963
      %v2250 = vsub.f32 0.0, %v1965
      %v2251 = vsub.f32 0.0, %v1969
      %v2252 = vsub.f32 0.0, %v1971
      %v2253 = vsub.f32 0.0, %v1975
      %v2254 = vsub.f32 0.0, %v1977
      %v2255 = vsub.f32 0.0, %v1981
      %v2256 = vsub.f32 0.0, %v1983
      %v2257 = vsub.f32 0.0, %v1987
      %v2258 = vsub.f32 0.0, %v1989
      %v2259 = vsub.f32 0.0, %v1993
      %v2260 = vsub.f32 0.0, %v1995
      %v2261 = vsub.f32 0.0, %v1999
      %v2262 = vsub.f32 0.0, %v2001
      %v2263 = vsub.f32 0.0, %v2005
      %v2264 = vsub.f32 0.0, %v2007
      %v2265 = vsub.f32 0.0, %v2011
      %v2266 = vsub.f32 0.0, %v2013
      %v2267 = vsub.f32 0.0, %v2017
      %v2268 = vsub.f32 0.0, %v2019
      %v2269 = vsub.f32 0.0, %v2023
      %v2270 = vsub.f32 0.0, %v2025
      %v2271 = vsub.f32 0.0, %v2029
      %v2272 = vsub.f32 0.0, %v2031
      %v2273 = vsub.f32 0.0, %v2035
      %v2274 = vsub.f32 0.0, %v2037
      %v2275 = vsub.f32 0.0, %v2041
      %v2276 = vsub.f32 0.0, %v2043
      %v2277 = vsub.f32 0.0, %v2047
      %v2278 = vsub.f32 0.0, %v2049
      %v2279 = vsub.f32 0.0, %v2053
      %v2280 = vsub.f32 0.0, %v2055
      %v2281 = vsub.f32 0.0, %v2059
      %v2282 = vsub.f32 0.0, %v2061
      %v2283 = vsub.f32 0.0, %v2065
      %v2284 = vsub.f32 0.0, %v2067
      %v2285 = vsub.f32 0.0, %v2071
      %v2286 = vsub.f32 0.0, %v2073
      %v2287 = vsub.f32 0.0, %v2077
      %v2288 = vsub.f32 0.0, %v2079
      %v2289 = vsub.f32 0.0, %v2083
      %v2290 = vsub.f32 0.0, %v2085
      %v2291 = vsub.f32 0.0, %v2089
      %v2292 = vsub.f32 0.0, %v2091
      %v2293 = vsub.f32 0.0, %v2095
      %v2294 = vsub.f32 0.0, %v2097
      %v2295 = vsub.f32 0.0, %v2101
      %v2296 = vsub.f32 0.0, %v2103
      %v2297 = vsub.f32 0.0, %v2107
      %v2298 = vsub.f32 0.0, %v2109
      %v2299 = vsub.f32 0.0, %v2113
      %v2300 = vsub.f32 0.0, %v2115
      %v2301 = vsub.f32 0.0, %v2119
      %v2302 = vsub.f32 0.0, %v2121
      %v2303 = vsub.f32 0.0, %v2125
      %v2304 = vsub.f32 0.0, %v2127
      %v2305 = vsub.f32 0.0, %v2131
      %v2306 = vsub.f32 0.0, %v2133
      %v2307 = vsub.f32 0.0, %v2137
      %v2308 = vsub.f32 0.0, %v2139
      %v2309 = vsub.f32 0.0, %v2143
      %v2310 = vsub.f32 0.0, %v2145
      %v2311 = vsub.f32 0.0, %v2149
      %v2312 = vsub.f32 0.0, %v2151
      %v2313 = vsub.f32 0.0, %v2155
      %v2314 = vsub.f32 0.0, %v2157
      %v2315 = vsub.f32 0.0, %v2161
      %v2316 = vsub.f32 0.0, %v2163
      %v2317 = vsub.f32 0.0, %v2167
      %v2318 = vsub.f32 0.0, %v2169
      %v2319 = vsub.f32 0.0, %v2173
      %v2320 = vsub.f32 0.0, %v2175
      %v2321 = vsub.f32 0.0, %v2179
      %v2322 = vsub.f32 0.0, %v2181
      %v2323 = vsub.f32 0.0, %v2185
      %v2324 = vsub.f32 0.0, %v2187
      %v2325 = vsub.f32 0.0, %v2191
      %v2326 = vsub.f32 0.0, %v2193
      %v2327 = vsub.f32 0.0, %v2197
      %v2328 = vsub.f32 0.0, %v2199
      %v2329 = vsub.f32 0.0, %v2203
      %v2330 = vsub.f32 0.0, %v2205
      %v2331 = vsub.f32 0.0, %v2209
      %v2332 = vsub.f32 0.0, %v2211
      %v2333 = vsub.f32 0.0, %v2215
      %v2334 = vsub.f32 0.0, %v2217
      %v2335 = vsub.f32 0.0, %v2221
      %v2336 = vsub.f32 0.0, %v2223
      %v2337 = vsub.f32 0.0, %v2227
      %v2338 = vsub.f32 0.0, %v2229
      %v2339 = vsub.f32 0.0, %v2233
      %v2340 = vsub.f32 0.0, %v2235
      %v2341 = vsub.f32 0.0, %v2239
      %v2342 = vsub.f32 0.0, %v2241
      %v2343 = vsub.f32 0.0, %v2245
      %v2344 = vsub.f32 0.0, %v2247
      %v2345 = vmul.f32 %v2249, 1.442695
      %v2346 = vpow.pop %v2345
      %v2347 = vmul.f32 %v2250, 1.442695
      %v2348 = vpow.pop %v2347
      %v2349 = vmul.f32 %v2251, 1.442695
      %v2350 = vpow.pop %v2349
      %v2351 = vmul.f32 %v2252, 1.442695
      %v2352 = vpow.pop %v2351
      %v2353 = vmul.f32 %v2253, 1.442695
      %v2354 = vpow.pop %v2353
      %v2355 = vmul.f32 %v2254, 1.442695
      %v2356 = vpow.pop %v2355
      %v2357 = vmul.f32 %v2255, 1.442695
      %v2358 = vpow.pop %v2357
      %v2359 = vmul.f32 %v2256, 1.442695
      %v2360 = vpow.pop %v2359
      %v2361 = vmul.f32 %v2257, 1.442695
      %v2362 = vpow.pop %v2361
      %v2363 = vmul.f32 %v2258, 1.442695
      %v2364 = vpow.pop %v2363
      %v2365 = vmul.f32 %v2259, 1.442695
      %v2366 = vpow.pop %v2365
      %v2367 = vmul.f32 %v2260, 1.442695
      %v2368 = vpow.pop %v2367
      %v2369 = vmul.f32 %v2261, 1.442695
      %v2370 = vpow.pop %v2369
      %v2371 = vmul.f32 %v2262, 1.442695
      %v2372 = vpow.pop %v2371
      %v2373 = vmul.f32 %v2263, 1.442695
      %v2374 = vpow.pop %v2373
      %v2375 = vmul.f32 %v2264, 1.442695
      %v2376 = vpow.pop %v2375
      %v2377 = vmul.f32 %v2265, 1.442695
      %v2378 = vpow.pop %v2377
      %v2379 = vmul.f32 %v2266, 1.442695
      %v2380 = vpow.pop %v2379
      %v2381 = vmul.f32 %v2267, 1.442695
      %v2382 = vpow.pop %v2381
      %v2383 = vmul.f32 %v2268, 1.442695
      %v2384 = vpow.pop %v2383
      %v2385 = vmul.f32 %v2269, 1.442695
      %v2386 = vpow.pop %v2385
      %v2387 = vmul.f32 %v2270, 1.442695
      %v2388 = vpow.pop %v2387
      %v2389 = vmul.f32 %v2271, 1.442695
      %v2390 = vpow.pop %v2389
      %v2391 = vmul.f32 %v2272, 1.442695
      %v2392 = vpow.pop %v2391
      %v2393 = vmul.f32 %v2273, 1.442695
      %v2394 = vpow.pop %v2393
      %v2395 = vmul.f32 %v2274, 1.442695
      %v2396 = vpow.pop %v2395
      %v2397 = vmul.f32 %v2275, 1.442695
      %v2398 = vpow.pop %v2397
      %v2399 = vmul.f32 %v2276, 1.442695
      %v2400 = vpow.pop %v2399
      %v2401 = vmul.f32 %v2277, 1.442695
      %v2402 = vpow.pop %v2401
      %v2403 = vmul.f32 %v2278, 1.442695
      %v2404 = vpow.pop %v2403
      %v2405 = vmul.f32 %v2279, 1.442695
      %v2406 = vpow.pop %v2405
      %v2407 = vmul.f32 %v2280, 1.442695
      %v2408 = vpow.pop %v2407
      %v2409 = vmul.f32 %v2281, 1.442695
      %v2410 = vpow.pop %v2409
      %v2411 = vmul.f32 %v2282, 1.442695
      %v2412 = vpow.pop %v2411
      %v2413 = vmul.f32 %v2283, 1.442695
      %v2414 = vpow.pop %v2413
      %v2415 = vmul.f32 %v2284, 1.442695
      %v2416 = vpow.pop %v2415
      %v2417 = vmul.f32 %v2285, 1.442695
      %v2418 = vpow.pop %v2417
      %v2419 = vmul.f32 %v2286, 1.442695
      %v2420 = vpow.pop %v2419
      %v2421 = vmul.f32 %v2287, 1.442695
      %v2422 = vpow.pop %v2421
      %v2423 = vmul.f32 %v2288, 1.442695
      %v2424 = vpow.pop %v2423
      %v2425 = vmul.f32 %v2289, 1.442695
      %v2426 = vpow.pop %v2425
      %v2427 = vmul.f32 %v2290, 1.442695
      %v2428 = vpow.pop %v2427
      %v2429 = vmul.f32 %v2291, 1.442695
      %v2430 = vpow.pop %v2429
      %v2431 = vmul.f32 %v2292, 1.442695
      %v2432 = vpow.pop %v2431
      %v2433 = vmul.f32 %v2293, 1.442695
      %v2434 = vpow.pop %v2433
      %v2435 = vmul.f32 %v2294, 1.442695
      %v2436 = vpow.pop %v2435
      %v2437 = vmul.f32 %v2295, 1.442695
      %v2438 = vpow.pop %v2437
      %v2439 = vmul.f32 %v2296, 1.442695
      %v2440 = vpow.pop %v2439
      %v2441 = vmul.f32 %v2297, 1.442695
      %v2442 = vpow.pop %v2441
      %v2443 = vmul.f32 %v2298, 1.442695
      %v2444 = vpow.pop %v2443
      %v2445 = vmul.f32 %v2299, 1.442695
      %v2446 = vpow.pop %v2445
      %v2447 = vmul.f32 %v2300, 1.442695
      %v2448 = vpow.pop %v2447
      %v2449 = vmul.f32 %v2301, 1.442695
      %v2450 = vpow.pop %v2449
      %v2451 = vmul.f32 %v2302, 1.442695
      %v2452 = vpow.pop %v2451
      %v2453 = vmul.f32 %v2303, 1.442695
      %v2454 = vpow.pop %v2453
      %v2455 = vmul.f32 %v2304, 1.442695
      %v2456 = vpow.pop %v2455
      %v2457 = vmul.f32 %v2305, 1.442695
      %v2458 = vpow.pop %v2457
      %v2459 = vmul.f32 %v2306, 1.442695
      %v2460 = vpow.pop %v2459
      %v2461 = vmul.f32 %v2307, 1.442695
      %v2462 = vpow.pop %v2461
      %v2463 = vmul.f32 %v2308, 1.442695
      %v2464 = vpow.pop %v2463
      %v2465 = vmul.f32 %v2309, 1.442695
      %v2466 = vpow.pop %v2465
      %v2467 = vmul.f32 %v2310, 1.442695
      %v2468 = vpow.pop %v2467
      %v2469 = vmul.f32 %v2311, 1.442695
      %v2470 = vpow.pop %v2469
      %v2471 = vmul.f32 %v2312, 1.442695
      %v2472 = vpow.pop %v2471
      %v2473 = vmul.f32 %v2313, 1.442695
      %v2474 = vpow.pop %v2473
      %v2475 = vmul.f32 %v2314, 1.442695
      %v2476 = vpow.pop %v2475
      %v2477 = vmul.f32 %v2315, 1.442695
      %v2478 = vpow.pop %v2477
      %v2479 = vmul.f32 %v2316, 1.442695
      %v2480 = vpow.pop %v2479
      %v2481 = vmul.f32 %v2317, 1.442695
      %v2482 = vpow.pop %v2481
      %v2483 = vmul.f32 %v2318, 1.442695
      %v2484 = vpow.pop %v2483
      %v2485 = vmul.f32 %v2319, 1.442695
      %v2486 = vpow.pop %v2485
      %v2487 = vmul.f32 %v2320, 1.442695
      %v2488 = vpow.pop %v2487
      %v2489 = vmul.f32 %v2321, 1.442695
      %v2490 = vpow.pop %v2489
      %v2491 = vmul.f32 %v2322, 1.442695
      %v2492 = vpow.pop %v2491
      %v2493 = vmul.f32 %v2323, 1.442695
      %v2494 = vpow.pop %v2493
      %v2495 = vmul.f32 %v2324, 1.442695
      %v2496 = vpow.pop %v2495
      %v2497 = vmul.f32 %v2325, 1.442695
      %v2498 = vpow.pop %v2497
      %v2499 = vmul.f32 %v2326, 1.442695
      %v2500 = vpow.pop %v2499
      %v2501 = vmul.f32 %v2327, 1.442695
      %v2502 = vpow.pop %v2501
      %v2503 = vmul.f32 %v2328, 1.442695
      %v2504 = vpow.pop %v2503
      %v2505 = vmul.f32 %v2329, 1.442695
      %v2506 = vpow.pop %v2505
      %v2507 = vmul.f32 %v2330, 1.442695
      %v2508 = vpow.pop %v2507
      %v2509 = vmul.f32 %v2331, 1.442695
      %v2510 = vpow.pop %v2509
      %v2511 = vmul.f32 %v2332, 1.442695
      %v2512 = vpow.pop %v2511
      %v2513 = vmul.f32 %v2333, 1.442695
      %v2514 = vpow.pop %v2513
      %v2515 = vmul.f32 %v2334, 1.442695
      %v2516 = vpow.pop %v2515
      %v2517 = vmul.f32 %v2335, 1.442695
      %v2518 = vpow.pop %v2517
      %v2519 = vmul.f32 %v2336, 1.442695
      %v2520 = vpow.pop %v2519
      %v2521 = vmul.f32 %v2337, 1.442695
      %v2522 = vpow.pop %v2521
      %v2523 = vmul.f32 %v2338, 1.442695
      %v2524 = vpow.pop %v2523
      %v2525 = vmul.f32 %v2339, 1.442695
      %v2526 = vpow.pop %v2525
      %v2527 = vmul.f32 %v2340, 1.442695
      %v2528 = vpow.pop %v2527
      %v2529 = vmul.f32 %v2341, 1.442695
      %v2530 = vpow.pop %v2529
      %v2531 = vmul.f32 %v2342, 1.442695
      %v2532 = vpow.pop %v2531
      %v2533 = vmul.f32 %v2343, 1.442695
      %v2534 = vpow.pop %v2533
      %v2535 = vmul.f32 %v2344, 1.442695
      %v2536 = vpow.pop %v2535
      %v2537 = vadd.f32 %v2346, 1.0
      %v2538 = vadd.f32 %v2348, 1.0
      %v2539 = vadd.f32 %v2350, 1.0
      %v2540 = vadd.f32 %v2352, 1.0
      %v2541 = vadd.f32 %v2354, 1.0
      %v2542 = vadd.f32 %v2356, 1.0
      %v2543 = vadd.f32 %v2358, 1.0
      %v2544 = vadd.f32 %v2360, 1.0
      %v2545 = vadd.f32 %v2362, 1.0
      %v2546 = vadd.f32 %v2364, 1.0
      %v2547 = vadd.f32 %v2366, 1.0
      %v2548 = vadd.f32 %v2368, 1.0
      %v2549 = vadd.f32 %v2370, 1.0
      %v2550 = vadd.f32 %v2372, 1.0
      %v2551 = vadd.f32 %v2374, 1.0
      %v2552 = vadd.f32 %v2376, 1.0
      %v2553 = vadd.f32 %v2378, 1.0
      %v2554 = vadd.f32 %v2380, 1.0
      %v2555 = vadd.f32 %v2382, 1.0
      %v2556 = vadd.f32 %v2384, 1.0
      %v2557 = vadd.f32 %v2386, 1.0
      %v2558 = vadd.f32 %v2388, 1.0
      %v2559 = vadd.f32 %v2390, 1.0
      %v2560 = vadd.f32 %v2392, 1.0
      %v2561 = vadd.f32 %v2394, 1.0
      %v2562 = vadd.f32 %v2396, 1.0
      %v2563 = vadd.f32 %v2398, 1.0
      %v2564 = vadd.f32 %v2400, 1.0
      %v2565 = vadd.f32 %v2402, 1.0
      %v2566 = vadd.f32 %v2404, 1.0
      %v2567 = vadd.f32 %v2406, 1.0
      %v2568 = vadd.f32 %v2408, 1.0
      %v2569 = vadd.f32 %v2410, 1.0
      %v2570 = vadd.f32 %v2412, 1.0
      %v2571 = vadd.f32 %v2414, 1.0
      %v2572 = vadd.f32 %v2416, 1.0
      %v2573 = vadd.f32 %v2418, 1.0
      %v2574 = vadd.f32 %v2420, 1.0
      %v2575 = vadd.f32 %v2422, 1.0
      %v2576 = vadd.f32 %v2424, 1.0
      %v2577 = vadd.f32 %v2426, 1.0
      %v2578 = vadd.f32 %v2428, 1.0
      %v2579 = vadd.f32 %v2430, 1.0
      %v2580 = vadd.f32 %v2432, 1.0
      %v2581 = vadd.f32 %v2434, 1.0
      %v2582 = vadd.f32 %v2436, 1.0
      %v2583 = vadd.f32 %v2438, 1.0
      %v2584 = vadd.f32 %v2440, 1.0
      %v2585 = vadd.f32 %v2442, 1.0
      %v2586 = vadd.f32 %v2444, 1.0
      %v2587 = vadd.f32 %v2446, 1.0
      %v2588 = vadd.f32 %v2448, 1.0
      %v2589 = vadd.f32 %v2450, 1.0
      %v2590 = vadd.f32 %v2452, 1.0
      %v2591 = vadd.f32 %v2454, 1.0
      %v2592 = vadd.f32 %v2456, 1.0
      %v2593 = vadd.f32 %v2458, 1.0
      %v2594 = vadd.f32 %v2460, 1.0
      %v2595 = vadd.f32 %v2462, 1.0
      %v2596 = vadd.f32 %v2464, 1.0
      %v2597 = vadd.f32 %v2466, 1.0
      %v2598 = vadd.f32 %v2468, 1.0
      %v2599 = vadd.f32 %v2470, 1.0
      %v2600 = vadd.f32 %v2472, 1.0
      %v2601 = vadd.f32 %v2474, 1.0
      %v2602 = vadd.f32 %v2476, 1.0
      %v2603 = vadd.f32 %v2478, 1.0
      %v2604 = vadd.f32 %v2480, 1.0
      %v2605 = vadd.f32 %v2482, 1.0
      %v2606 = vadd.f32 %v2484, 1.0
      %v2607 = vadd.f32 %v2486, 1.0
      %v2608 = vadd.f32 %v2488, 1.0
      %v2609 = vadd.f32 %v2490, 1.0
      %v2610 = vadd.f32 %v2492, 1.0
      %v2611 = vadd.f32 %v2494, 1.0
      %v2612 = vadd.f32 %v2496, 1.0
      %v2613 = vadd.f32 %v2498, 1.0
      %v2614 = vadd.f32 %v2500, 1.0
      %v2615 = vadd.f32 %v2502, 1.0
      %v2616 = vadd.f32 %v2504, 1.0
      %v2617 = vadd.f32 %v2506, 1.0
      %v2618 = vadd.f32 %v2508, 1.0
      %v2619 = vadd.f32 %v2510, 1.0
      %v2620 = vadd.f32 %v2512, 1.0
      %v2621 = vadd.f32 %v2514, 1.0
      %v2622 = vadd.f32 %v2516, 1.0
      %v2623 = vadd.f32 %v2518, 1.0
      %v2624 = vadd.f32 %v2520, 1.0
      %v2625 = vadd.f32 %v2522, 1.0
      %v2626 = vadd.f32 %v2524, 1.0
      %v2627 = vadd.f32 %v2526, 1.0
      %v2628 = vadd.f32 %v2528, 1.0
      %v2629 = vadd.f32 %v2530, 1.0
      %v2630 = vadd.f32 %v2532, 1.0
      %v2631 = vadd.f32 %v2534, 1.0
      %v2632 = vadd.f32 %v2536, 1.0
      %v2633 = vrcp.pop %v2537
      %v2634 = vmul.f32 1.0, %v2633
      %v2635 = vrcp.pop %v2538
      %v2636 = vmul.f32 1.0, %v2635
      %v2637 = vrcp.pop %v2539
      %v2638 = vmul.f32 1.0, %v2637
      %v2639 = vrcp.pop %v2540
      %v2640 = vmul.f32 1.0, %v2639
      %v2641 = vrcp.pop %v2541
      %v2642 = vmul.f32 1.0, %v2641
      %v2643 = vrcp.pop %v2542
      %v2644 = vmul.f32 1.0, %v2643
      %v2645 = vrcp.pop %v2543
      %v2646 = vmul.f32 1.0, %v2645
      %v2647 = vrcp.pop %v2544
      %v2648 = vmul.f32 1.0, %v2647
      %v2649 = vrcp.pop %v2545
      %v2650 = vmul.f32 1.0, %v2649
      %v2651 = vrcp.pop %v2546
      %v2652 = vmul.f32 1.0, %v2651
      %v2653 = vrcp.pop %v2547
      %v2654 = vmul.f32 1.0, %v2653
      %v2655 = vrcp.pop %v2548
      %v2656 = vmul.f32 1.0, %v2655
      %v2657 = vrcp.pop %v2549
      %v2658 = vmul.f32 1.0, %v2657
      %v2659 = vrcp.pop %v2550
      %v2660 = vmul.f32 1.0, %v2659
      %v2661 = vrcp.pop %v2551
      %v2662 = vmul.f32 1.0, %v2661
      %v2663 = vrcp.pop %v2552
      %v2664 = vmul.f32 1.0, %v2663
      %v2665 = vrcp.pop %v2553
      %v2666 = vmul.f32 1.0, %v2665
      %v2667 = vrcp.pop %v2554
      %v2668 = vmul.f32 1.0, %v2667
      %v2669 = vrcp.pop %v2555
      %v2670 = vmul.f32 1.0, %v2669
      %v2671 = vrcp.pop %v2556
      %v2672 = vmul.f32 1.0, %v2671
      %v2673 = vrcp.pop %v2557
      %v2674 = vmul.f32 1.0, %v2673
      %v2675 = vrcp.pop %v2558
      %v2676 = vmul.f32 1.0, %v2675
      %v2677 = vrcp.pop %v2559
      %v2678 = vmul.f32 1.0, %v2677
      %v2679 = vrcp.pop %v2560
      %v2680 = vmul.f32 1.0, %v2679
      %v2681 = vrcp.pop %v2561
      %v2682 = vmul.f32 1.0, %v2681
      %v2683 = vrcp.pop %v2562
      %v2684 = vmul.f32 1.0, %v2683
      %v2685 = vrcp.pop %v2563
      %v2686 = vmul.f32 1.0, %v2685
      %v2687 = vrcp.pop %v2564
      %v2688 = vmul.f32 1.0, %v2687
      %v2689 = vrcp.pop %v2565
      %v2690 = vmul.f32 1.0, %v2689
      %v2691 = vrcp.pop %v2566
      %v2692 = vmul.f32 1.0, %v2691
      %v2693 = vrcp.pop %v2567
      %v2694 = vmul.f32 1.0, %v2693
      %v2695 = vrcp.pop %v2568
      %v2696 = vmul.f32 1.0, %v2695
      %v2697 = vrcp.pop %v2569
      %v2698 = vmul.f32 1.0, %v2697
      %v2699 = vrcp.pop %v2570
      %v2700 = vmul.f32 1.0, %v2699
      %v2701 = vrcp.pop %v2571
      %v2702 = vmul.f32 1.0, %v2701
      %v2703 = vrcp.pop %v2572
      %v2704 = vmul.f32 1.0, %v2703
      %v2705 = vrcp.pop %v2573
      %v2706 = vmul.f32 1.0, %v2705
      %v2707 = vrcp.pop %v2574
      %v2708 = vmul.f32 1.0, %v2707
      %v2709 = vrcp.pop %v2575
      %v2710 = vmul.f32 1.0, %v2709
      %v2711 = vrcp.pop %v2576
      %v2712 = vmul.f32 1.0, %v2711
      %v2713 = vrcp.pop %v2577
      %v2714 = vmul.f32 1.0, %v2713
      %v2715 = vrcp.pop %v2578
      %v2716 = vmul.f32 1.0, %v2715
      %v2717 = vrcp.pop %v2579
      %v2718 = vmul.f32 1.0, %v2717
      %v2719 = vrcp.pop %v2580
      %v2720 = vmul.f32 1.0, %v2719
      %v2721 = vrcp.pop %v2581
      %v2722 = vmul.f32 1.0, %v2721
      %v2723 = vrcp.pop %v2582
      %v2724 = vmul.f32 1.0, %v2723
      %v2725 = vrcp.pop %v2583
      %v2726 = vmul.f32 1.0, %v2725
      %v2727 = vrcp.pop %v2584
      %v2728 = vmul.f32 1.0, %v2727
      %v2729 = vrcp.pop %v2585
      %v2730 = vmul.f32 1.0, %v2729
      %v2731 = vrcp.pop %v2586
      %v2732 = vmul.f32 1.0, %v2731
      %v2733 = vrcp.pop %v2587
      %v2734 = vmul.f32 1.0, %v2733
      %v2735 = vrcp.pop %v2588
      %v2736 = vmul.f32 1.0, %v2735
      %v2737 = vrcp.pop %v2589
      %v2738 = vmul.f32 1.0, %v2737
      %v2739 = vrcp.pop %v2590
      %v2740 = vmul.f32 1.0, %v2739
      %v2741 = vrcp.pop %v2591
      %v2742 = vmul.f32 1.0, %v2741
      %v2743 = vrcp.pop %v2592
      %v2744 = vmul.f32 1.0, %v2743
      %v2745 = vrcp.pop %v2593
      %v2746 = vmul.f32 1.0, %v2745
      %v2747 = vrcp.pop %v2594
      %v2748 = vmul.f32 1.0, %v2747
      %v2749 = vrcp.pop %v2595
      %v2750 = vmul.f32 1.0, %v2749
      %v2751 = vrcp.pop %v2596
      %v2752 = vmul.f32 1.0, %v2751
      %v2753 = vrcp.pop %v2597
      %v2754 = vmul.f32 1.0, %v2753
      %v2755 = vrcp.pop %v2598
      %v2756 = vmul.f32 1.0, %v2755
      %v2757 = vrcp.pop %v2599
      %v2758 = vmul.f32 1.0, %v2757
      %v2759 = vrcp.pop %v2600
      %v2760 = vmul.f32 1.0, %v2759
      %v2761 = vrcp.pop %v2601
      %v2762 = vmul.f32 1.0, %v2761
      %v2763 = vrcp.pop %v2602
      %v2764 = vmul.f32 1.0, %v2763
      %v2765 = vrcp.pop %v2603
      %v2766 = vmul.f32 1.0, %v2765
      %v2767 = vrcp.pop %v2604
      %v2768 = vmul.f32 1.0, %v2767
      %v2769 = vrcp.pop %v2605
      %v2770 = vmul.f32 1.0, %v2769
      %v2771 = vrcp.pop %v2606
      %v2772 = vmul.f32 1.0, %v2771
      %v2773 = vrcp.pop %v2607
      %v2774 = vmul.f32 1.0, %v2773
      %v2775 = vrcp.pop %v2608
      %v2776 = vmul.f32 1.0, %v2775
      %v2777 = vrcp.pop %v2609
      %v2778 = vmul.f32 1.0, %v2777
      %v2779 = vrcp.pop %v2610
      %v2780 = vmul.f32 1.0, %v2779
      %v2781 = vrcp.pop %v2611
      %v2782 = vmul.f32 1.0, %v2781
      %v2783 = vrcp.pop %v2612
      %v2784 = vmul.f32 1.0, %v2783
      %v2785 = vrcp.pop %v2613
      %v2786 = vmul.f32 1.0, %v2785
      %v2787 = vrcp.pop %v2614
      %v2788 = vmul.f32 1.0, %v2787
      %v2789 = vrcp.pop %v2615
      %v2790 = vmul.f32 1.0, %v2789
      %v2791 = vrcp.pop %v2616
      %v2792 = vmul.f32 1.0, %v2791
      %v2793 = vrcp.pop %v2617
      %v2794 = vmul.f32 1.0, %v2793
      %v2795 = vrcp.pop %v2618
      %v2796 = vmul.f32 1.0, %v2795
      %v2797 = vrcp.pop %v2619
      %v2798 = vmul.f32 1.0, %v2797
      %v2799 = vrcp.pop %v2620
      %v2800 = vmul.f32 1.0, %v2799
      %v2801 = vrcp.pop %v2621
      %v2802 = vmul.f32 1.0, %v2801
      %v2803 = vrcp.pop %v2622
      %v2804 = vmul.f32 1.0, %v2803
      %v2805 = vrcp.pop %v2623
      %v2806 = vmul.f32 1.0, %v2805
      %v2807 = vrcp.pop %v2624
      %v2808 = vmul.f32 1.0, %v2807
      %v2809 = vrcp.pop %v2625
      %v2810 = vmul.f32 1.0, %v2809
      %v2811 = vrcp.pop %v2626
      %v2812 = vmul.f32 1.0, %v2811
      %v2813 = vrcp.pop %v2627
      %v2814 = vmul.f32 1.0, %v2813
      %v2815 = vrcp.pop %v2628
      %v2816 = vmul.f32 1.0, %v2815
      %v2817 = vrcp.pop %v2629
      %v2818 = vmul.f32 1.0, %v2817
      %v2819 = vrcp.pop %v2630
      %v2820 = vmul.f32 1.0, %v2819
      %v2821 = vrcp.pop %v2631
      %v2822 = vmul.f32 1.0, %v2821
      %v2823 = vrcp.pop %v2632
      %v2824 = vmul.f32 1.0, %v2823
      %v2921 = vrot.slane %v2634, 1
      %v2922 = vrot.slane %v2638, 1
      %v2923 = vsel %vm521, %v2921, %v2922
      %v2924 = vrot.slane %v2636, 1
      %v2925 = vrot.slane %v2640, 1
      %v2926 = vsel %vm521, %v2924, %v2925
      %v2927 = vrot.slane %v2642, 1
      %v2928 = vsel %vm521, %v2922, %v2927
      %v2929 = vrot.slane %v2644, 1
      %v2930 = vsel %vm521, %v2925, %v2929
      %v2931 = vrot.slane %v2646, 1
      %v2932 = vrot.slane %v2650, 1
      %v2933 = vsel %vm521, %v2931, %v2932
      %v2934 = vrot.slane %v2648, 1
      %v2935 = vrot.slane %v2652, 1
      %v2936 = vsel %vm521, %v2934, %v2935
      %v2937 = vrot.slane %v2654, 1
      %v2938 = vsel %vm521, %v2932, %v2937
      %v2939 = vrot.slane %v2656, 1
      %v2940 = vsel %vm521, %v2935, %v2939
      %v2941 = vrot.slane %v2658, 1
      %v2942 = vrot.slane %v2662, 1
      %v2943 = vsel %vm521, %v2941, %v2942
      %v2944 = vrot.slane %v2660, 1
      %v2945 = vrot.slane %v2664, 1
      %v2946 = vsel %vm521, %v2944, %v2945
      %v2947 = vrot.slane %v2666, 1
      %v2948 = vsel %vm521, %v2942, %v2947
      %v2949 = vrot.slane %v2668, 1
      %v2950 = vsel %vm521, %v2945, %v2949
      %v2951 = vrot.slane %v2670, 1
      %v2952 = vrot.slane %v2674, 1
      %v2953 = vsel %vm521, %v2951, %v2952
      %v2954 = vrot.slane %v2672, 1
      %v2955 = vrot.slane %v2676, 1
      %v2956 = vsel %vm521, %v2954, %v2955
      %v2957 = vrot.slane %v2678, 1
      %v2958 = vsel %vm521, %v2952, %v2957
      %v2959 = vrot.slane %v2680, 1
      %v2960 = vsel %vm521, %v2955, %v2959
      %v2961 = vrot.slane %v2682, 1
      %v2962 = vrot.slane %v2686, 1
      %v2963 = vsel %vm521, %v2961, %v2962
      %v2964 = vrot.slane %v2684, 1
      %v2965 = vrot.slane %v2688, 1
      %v2966 = vsel %vm521, %v2964, %v2965
      %v2967 = vrot.slane %v2690, 1
      %v2968 = vsel %vm521, %v2962, %v2967
      %v2969 = vrot.slane %v2692, 1
      %v2970 = vsel %vm521, %v2965, %v2969
      %v2971 = vrot.slane %v2694, 1
      %v2972 = vrot.slane %v2698, 1
      %v2973 = vsel %vm521, %v2971, %v2972
      %v2974 = vrot.slane %v2696, 1
      %v2975 = vrot.slane %v2700, 1
      %v2976 = vsel %vm521, %v2974, %v2975
      %v2977 = vrot.slane %v2702, 1
      %v2978 = vsel %vm521, %v2972, %v2977
      %v2979 = vrot.slane %v2704, 1
      %v2980 = vsel %vm521, %v2975, %v2979
      %v2981 = vrot.slane %v2706, 1
      %v2982 = vrot.slane %v2710, 1
      %v2983 = vsel %vm521, %v2981, %v2982
      %v2984 = vrot.slane %v2708, 1
      %v2985 = vrot.slane %v2712, 1
      %v2986 = vsel %vm521, %v2984, %v2985
      %v2987 = vrot.slane %v2714, 1
      %v2988 = vsel %vm521, %v2982, %v2987
      %v2989 = vrot.slane %v2716, 1
      %v2990 = vsel %vm521, %v2985, %v2989
      %v2991 = vrot.slane %v2718, 1
      %v2992 = vrot.slane %v2722, 1
      %v2993 = vsel %vm521, %v2991, %v2992
      %v2994 = vrot.slane %v2720, 1
      %v2995 = vrot.slane %v2724, 1
      %v2996 = vsel %vm521, %v2994, %v2995
      %v2997 = vrot.slane %v2726, 1
      %v2998 = vsel %vm521, %v2992, %v2997
      %v2999 = vrot.slane %v2728, 1
      %v3000 = vsel %vm521, %v2995, %v2999
      %v3001 = vrot.slane %v2730, 1
      %v3002 = vrot.slane %v2734, 1
      %v3003 = vsel %vm521, %v3001, %v3002
      %v3004 = vrot.slane %v2732, 1
      %v3005 = vrot.slane %v2736, 1
      %v3006 = vsel %vm521, %v3004, %v3005
      %v3007 = vrot.slane %v2738, 1
      %v3008 = vsel %vm521, %v3002, %v3007
      %v3009 = vrot.slane %v2740, 1
      %v3010 = vsel %vm521, %v3005, %v3009
      %v3011 = vrot.slane %v2742, 1
      %v3012 = vrot.slane %v2746, 1
      %v3013 = vsel %vm521, %v3011, %v3012
      %v3014 = vrot.slane %v2744, 1
      %v3015 = vrot.slane %v2748, 1
      %v3016 = vsel %vm521, %v3014, %v3015
      %v3017 = vrot.slane %v2750, 1
      %v3018 = vsel %vm521, %v3012, %v3017
      %v3019 = vrot.slane %v2752, 1
      %v3020 = vsel %vm521, %v3015, %v3019
      %v3021 = vrot.slane %v2754, 1
      %v3022 = vrot.slane %v2758, 1
      %v3023 = vsel %vm521, %v3021, %v3022
      %v3024 = vrot.slane %v2756, 1
      %v3025 = vrot.slane %v2760, 1
      %v3026 = vsel %vm521, %v3024, %v3025
      %v3027 = vrot.slane %v2762, 1
      %v3028 = vsel %vm521, %v3022, %v3027
      %v3029 = vrot.slane %v2764, 1
      %v3030 = vsel %vm521, %v3025, %v3029
      %v3031 = vrot.slane %v2766, 1
      %v3032 = vrot.slane %v2770, 1
      %v3033 = vsel %vm521, %v3031, %v3032
      %v3034 = vrot.slane %v2768, 1
      %v3035 = vrot.slane %v2772, 1
      %v3036 = vsel %vm521, %v3034, %v3035
      %v3037 = vrot.slane %v2774, 1
      %v3038 = vsel %vm521, %v3032, %v3037
      %v3039 = vrot.slane %v2776, 1
      %v3040 = vsel %vm521, %v3035, %v3039
      %v3041 = vrot.slane %v2778, 1
      %v3042 = vrot.slane %v2782, 1
      %v3043 = vsel %vm521, %v3041, %v3042
      %v3044 = vrot.slane %v2780, 1
      %v3045 = vrot.slane %v2784, 1
      %v3046 = vsel %vm521, %v3044, %v3045
      %v3047 = vrot.slane %v2786, 1
      %v3048 = vsel %vm521, %v3042, %v3047
      %v3049 = vrot.slane %v2788, 1
      %v3050 = vsel %vm521, %v3045, %v3049
      %v3051 = vrot.slane %v2790, 1
      %v3052 = vrot.slane %v2794, 1
      %v3053 = vsel %vm521, %v3051, %v3052
      %v3054 = vrot.slane %v2792, 1
      %v3055 = vrot.slane %v2796, 1
      %v3056 = vsel %vm521, %v3054, %v3055
      %v3057 = vrot.slane %v2798, 1
      %v3058 = vsel %vm521, %v3052, %v3057
      %v3059 = vrot.slane %v2800, 1
      %v3060 = vsel %vm521, %v3055, %v3059
      %v3061 = vrot.slane %v2802, 1
      %v3062 = vrot.slane %v2806, 1
      %v3063 = vsel %vm521, %v3061, %v3062
      %v3064 = vrot.slane %v2804, 1
      %v3065 = vrot.slane %v2808, 1
      %v3066 = vsel %vm521, %v3064, %v3065
      %v3067 = vrot.slane %v2810, 1
      %v3068 = vsel %vm521, %v3062, %v3067
      %v3069 = vrot.slane %v2812, 1
      %v3070 = vsel %vm521, %v3065, %v3069
      %v3071 = vrot.slane %v2814, 1
      %v3072 = vrot.slane %v2818, 1
      %v3073 = vsel %vm521, %v3071, %v3072
      %v3074 = vrot.slane %v2816, 1
      %v3075 = vrot.slane %v2820, 1
      %v3076 = vsel %vm521, %v3074, %v3075
      %v3077 = vrot.slane %v2822, 1
      %v3078 = vsel %vm521, %v3072, %v3077
      %v3079 = vrot.slane %v2824, 1
      %v3080 = vsel %vm521, %v3075, %v3079
      %v3177 = vmax.f32 %v2634, %v2923
      %v3178 = vmax.f32 %v2636, %v2926
      %v3179 = vmax.f32 %v2638, %v2928
      %v3180 = vmax.f32 %v2640, %v2930
      %v3181 = vmax.f32 %v2642, %v2927
      %v3182 = vmax.f32 %v2644, %v2929
      %v3183 = vmax.f32 %v2646, %v2933
      %v3184 = vmax.f32 %v2648, %v2936
      %v3185 = vmax.f32 %v2650, %v2938
      %v3186 = vmax.f32 %v2652, %v2940
      %v3187 = vmax.f32 %v2654, %v2937
      %v3188 = vmax.f32 %v2656, %v2939
      %v3189 = vmax.f32 %v2658, %v2943
      %v3190 = vmax.f32 %v2660, %v2946
      %v3191 = vmax.f32 %v2662, %v2948
      %v3192 = vmax.f32 %v2664, %v2950
      %v3193 = vmax.f32 %v2666, %v2947
      %v3194 = vmax.f32 %v2668, %v2949
      %v3195 = vmax.f32 %v2670, %v2953
      %v3196 = vmax.f32 %v2672, %v2956
      %v3197 = vmax.f32 %v2674, %v2958
      %v3198 = vmax.f32 %v2676, %v2960
      %v3199 = vmax.f32 %v2678, %v2957
      %v3200 = vmax.f32 %v2680, %v2959
      %v3201 = vmax.f32 %v2682, %v2963
      %v3202 = vmax.f32 %v2684, %v2966
      %v3203 = vmax.f32 %v2686, %v2968
      %v3204 = vmax.f32 %v2688, %v2970
      %v3205 = vmax.f32 %v2690, %v2967
      %v3206 = vmax.f32 %v2692, %v2969
      %v3207 = vmax.f32 %v2694, %v2973
      %v3208 = vmax.f32 %v2696, %v2976
      %v3209 = vmax.f32 %v2698, %v2978
      %v3210 = vmax.f32 %v2700, %v2980
      %v3211 = vmax.f32 %v2702, %v2977
      %v3212 = vmax.f32 %v2704, %v2979
      %v3213 = vmax.f32 %v2706, %v2983
      %v3214 = vmax.f32 %v2708, %v2986
      %v3215 = vmax.f32 %v2710, %v2988
      %v3216 = vmax.f32 %v2712, %v2990
      %v3217 = vmax.f32 %v2714, %v2987
      %v3218 = vmax.f32 %v2716, %v2989
      %v3219 = vmax.f32 %v2718, %v2993
      %v3220 = vmax.f32 %v2720, %v2996
      %v3221 = vmax.f32 %v2722, %v2998
      %v3222 = vmax.f32 %v2724, %v3000
      %v3223 = vmax.f32 %v2726, %v2997
      %v3224 = vmax.f32 %v2728, %v2999
      %v3225 = vmax.f32 %v2730, %v3003
      %v3226 = vmax.f32 %v2732, %v3006
      %v3227 = vmax.f32 %v2734, %v3008
      %v3228 = vmax.f32 %v2736, %v3010
      %v3229 = vmax.f32 %v2738, %v3007
      %v3230 = vmax.f32 %v2740, %v3009
      %v3231 = vmax.f32 %v2742, %v3013
      %v3232 = vmax.f32 %v2744, %v3016
      %v3233 = vmax.f32 %v2746, %v3018
      %v3234 = vmax.f32 %v2748, %v3020
      %v3235 = vmax.f32 %v2750, %v3017
      %v3236 = vmax.f32 %v2752, %v3019
      %v3237 = vmax.f32 %v2754, %v3023
      %v3238 = vmax.f32 %v2756, %v3026
      %v3239 = vmax.f32 %v2758, %v3028
      %v3240 = vmax.f32 %v2760, %v3030
      %v3241 = vmax.f32 %v2762, %v3027
      %v3242 = vmax.f32 %v2764, %v3029
      %v3243 = vmax.f32 %v2766, %v3033
      %v3244 = vmax.f32 %v2768, %v3036
      %v3245 = vmax.f32 %v2770, %v3038
      %v3246 = vmax.f32 %v2772, %v3040
      %v3247 = vmax.f32 %v2774, %v3037
      %v3248 = vmax.f32 %v2776, %v3039
      %v3249 = vmax.f32 %v2778, %v3043
      %v3250 = vmax.f32 %v2780, %v3046
      %v3251 = vmax.f32 %v2782, %v3048
      %v3252 = vmax.f32 %v2784, %v3050
      %v3253 = vmax.f32 %v2786, %v3047
      %v3254 = vmax.f32 %v2788, %v3049
      %v3255 = vmax.f32 %v2790, %v3053
      %v3256 = vmax.f32 %v2792, %v3056
      %v3257 = vmax.f32 %v2794, %v3058
      %v3258 = vmax.f32 %v2796, %v3060
      %v3259 = vmax.f32 %v2798, %v3057
      %v3260 = vmax.f32 %v2800, %v3059
      %v3261 = vmax.f32 %v2802, %v3063
      %v3262 = vmax.f32 %v2804, %v3066
      %v3263 = vmax.f32 %v2806, %v3068
      %v3264 = vmax.f32 %v2808, %v3070
      %v3265 = vmax.f32 %v2810, %v3067
      %v3266 = vmax.f32 %v2812, %v3069
      %v3267 = vmax.f32 %v2814, %v3073
      %v3268 = vmax.f32 %v2816, %v3076
      %v3269 = vmax.f32 %v2818, %v3078
      %v3270 = vmax.f32 %v2820, %v3080
      %v3271 = vmax.f32 %v2822, %v3077
      %v3272 = vmax.f32 %v2824, %v3079
      %v3273 = vsel %vm521, %v3181, %v2642
      %v3274 = vsel %vm521, %v3182, %v2644
      %v3275 = vsel %vm521, %v3187, %v2654
      %v3276 = vsel %vm521, %v3188, %v2656
      %v3277 = vsel %vm521, %v3193, %v2666
      %v3278 = vsel %vm521, %v3194, %v2668
      %v3279 = vsel %vm521, %v3199, %v2678
      %v3280 = vsel %vm521, %v3200, %v2680
      %v3281 = vsel %vm521, %v3205, %v2690
      %v3282 = vsel %vm521, %v3206, %v2692
      %v3283 = vsel %vm521, %v3211, %v2702
      %v3284 = vsel %vm521, %v3212, %v2704
      %v3285 = vsel %vm521, %v3217, %v2714
      %v3286 = vsel %vm521, %v3218, %v2716
      %v3287 = vsel %vm521, %v3223, %v2726
      %v3288 = vsel %vm521, %v3224, %v2728
      %v3289 = vsel %vm521, %v3229, %v2738
      %v3290 = vsel %vm521, %v3230, %v2740
      %v3291 = vsel %vm521, %v3235, %v2750
      %v3292 = vsel %vm521, %v3236, %v2752
      %v3293 = vsel %vm521, %v3241, %v2762
      %v3294 = vsel %vm521, %v3242, %v2764
      %v3295 = vsel %vm521, %v3247, %v2774
      %v3296 = vsel %vm521, %v3248, %v2776
      %v3297 = vsel %vm521, %v3253, %v2786
      %v3298 = vsel %vm521, %v3254, %v2788
      %v3299 = vsel %vm521, %v3259, %v2798
      %v3300 = vsel %vm521, %v3260, %v2800
      %v3301 = vsel %vm521, %v3265, %v2810
      %v3302 = vsel %vm521, %v3266, %v2812
      %v3303 = vsel %vm521, %v3271, %v2822
      %v3304 = vsel %vm521, %v3272, %v2824
      %3401 = vrot.lane.b32.xlu0 %v3177, 127
      %v3402 = vpop.permute.xlu0 %3401
      %3403 = vrot.lane.b32.xlu0 %v3178, 127
      %v3404 = vpop.permute.xlu0 %3403
      %3405 = vrot.lane.b32.xlu0 %v3179, 127
      %v3406 = vpop.permute.xlu0 %3405
      %3407 = vrot.lane.b32.xlu0 %v3180, 127
      %v3408 = vpop.permute.xlu0 %3407
      %3409 = vrot.lane.b32.xlu0 %v3273, 127
      %v3410 = vpop.permute.xlu0 %3409
      %3411 = vrot.lane.b32.xlu0 %v3274, 127
      %v3412 = vpop.permute.xlu0 %3411
      %3413 = vrot.lane.b32.xlu0 %v3183, 127
      %v3414 = vpop.permute.xlu0 %3413
      %3415 = vrot.lane.b32.xlu0 %v3184, 127
      %v3416 = vpop.permute.xlu0 %3415
      %3417 = vrot.lane.b32.xlu0 %v3185, 127
      %v3418 = vpop.permute.xlu0 %3417
      %3419 = vrot.lane.b32.xlu0 %v3186, 127
      %v3420 = vpop.permute.xlu0 %3419
      %3421 = vrot.lane.b32.xlu0 %v3275, 127
      %v3422 = vpop.permute.xlu0 %3421
      %3423 = vrot.lane.b32.xlu0 %v3276, 127
      %v3424 = vpop.permute.xlu0 %3423
      %3425 = vrot.lane.b32.xlu0 %v3189, 127
      %v3426 = vpop.permute.xlu0 %3425
      %3427 = vrot.lane.b32.xlu0 %v3190, 127
      %v3428 = vpop.permute.xlu0 %3427
      %3429 = vrot.lane.b32.xlu0 %v3191, 127
      %v3430 = vpop.permute.xlu0 %3429
      %3431 = vrot.lane.b32.xlu0 %v3192, 127
      %v3432 = vpop.permute.xlu0 %3431
      %3433 = vrot.lane.b32.xlu0 %v3277, 127
      %v3434 = vpop.permute.xlu0 %3433
      %3435 = vrot.lane.b32.xlu0 %v3278, 127
      %v3436 = vpop.permute.xlu0 %3435
      %3437 = vrot.lane.b32.xlu0 %v3195, 127
      %v3438 = vpop.permute.xlu0 %3437
      %3439 = vrot.lane.b32.xlu0 %v3196, 127
      %v3440 = vpop.permute.xlu0 %3439
      %3441 = vrot.lane.b32.xlu0 %v3197, 127
      %v3442 = vpop.permute.xlu0 %3441
      %3443 = vrot.lane.b32.xlu0 %v3198, 127
      %v3444 = vpop.permute.xlu0 %3443
      %3445 = vrot.lane.b32.xlu0 %v3279, 127
      %v3446 = vpop.permute.xlu0 %3445
      %3447 = vrot.lane.b32.xlu0 %v3280, 127
      %v3448 = vpop.permute.xlu0 %3447
      %3449 = vrot.lane.b32.xlu0 %v3201, 127
      %v3450 = vpop.permute.xlu0 %3449
      %3451 = vrot.lane.b32.xlu0 %v3202, 127
      %v3452 = vpop.permute.xlu0 %3451
      %3453 = vrot.lane.b32.xlu0 %v3203, 127
      %v3454 = vpop.permute.xlu0 %3453
      %3455 = vrot.lane.b32.xlu0 %v3204, 127
      %v3456 = vpop.permute.xlu0 %3455
      %3457 = vrot.lane.b32.xlu0 %v3281, 127
      %v3458 = vpop.permute.xlu0 %3457
      %3459 = vrot.lane.b32.xlu0 %v3282, 127
      %v3460 = vpop.permute.xlu0 %3459
      %3461 = vrot.lane.b32.xlu0 %v3207, 127
      %v3462 = vpop.permute.xlu0 %3461
      %3463 = vrot.lane.b32.xlu0 %v3208, 127
      %v3464 = vpop.permute.xlu0 %3463
      %3465 = vrot.lane.b32.xlu0 %v3209, 127
      %v3466 = vpop.permute.xlu0 %3465
      %3467 = vrot.lane.b32.xlu0 %v3210, 127
      %v3468 = vpop.permute.xlu0 %3467
      %3469 = vrot.lane.b32.xlu0 %v3283, 127
      %v3470 = vpop.permute.xlu0 %3469
      %3471 = vrot.lane.b32.xlu0 %v3284, 127
      %v3472 = vpop.permute.xlu0 %3471
      %3473 = vrot.lane.b32.xlu0 %v3213, 127
      %v3474 = vpop.permute.xlu0 %3473
      %3475 = vrot.lane.b32.xlu0 %v3214, 127
      %v3476 = vpop.permute.xlu0 %3475
      %3477 = vrot.lane.b32.xlu0 %v3215, 127
      %v3478 = vpop.permute.xlu0 %3477
      %3479 = vrot.lane.b32.xlu0 %v3216, 127
      %v3480 = vpop.permute.xlu0 %3479
      %3481 = vrot.lane.b32.xlu0 %v3285, 127
      %v3482 = vpop.permute.xlu0 %3481
      %3483 = vrot.lane.b32.xlu0 %v3286, 127
      %v3484 = vpop.permute.xlu0 %3483
      %3485 = vrot.lane.b32.xlu0 %v3219, 127
      %v3486 = vpop.permute.xlu0 %3485
      %3487 = vrot.lane.b32.xlu0 %v3220, 127
      %v3488 = vpop.permute.xlu0 %3487
      %3489 = vrot.lane.b32.xlu0 %v3221, 127
      %v3490 = vpop.permute.xlu0 %3489
      %3491 = vrot.lane.b32.xlu0 %v3222, 127
      %v3492 = vpop.permute.xlu0 %3491
      %3493 = vrot.lane.b32.xlu0 %v3287, 127
      %v3494 = vpop.permute.xlu0 %3493
      %3495 = vrot.lane.b32.xlu0 %v3288, 127
      %v3496 = vpop.permute.xlu0 %3495
      %3497 = vrot.lane.b32.xlu0 %v3225, 127
      %v3498 = vpop.permute.xlu0 %3497
      %3499 = vrot.lane.b32.xlu0 %v3226, 127
      %v3500 = vpop.permute.xlu0 %3499
      %3501 = vrot.lane.b32.xlu0 %v3227, 127
      %v3502 = vpop.permute.xlu0 %3501
      %3503 = vrot.lane.b32.xlu0 %v3228, 127
      %v3504 = vpop.permute.xlu0 %3503
      %3505 = vrot.lane.b32.xlu0 %v3289, 127
      %v3506 = vpop.permute.xlu0 %3505
      %3507 = vrot.lane.b32.xlu0 %v3290, 127
      %v3508 = vpop.permute.xlu0 %3507
      %3509 = vrot.lane.b32.xlu0 %v3231, 127
      %v3510 = vpop.permute.xlu0 %3509
      %3511 = vrot.lane.b32.xlu0 %v3232, 127
      %v3512 = vpop.permute.xlu0 %3511
      %3513 = vrot.lane.b32.xlu0 %v3233, 127
      %v3514 = vpop.permute.xlu0 %3513
      %3515 = vrot.lane.b32.xlu0 %v3234, 127
      %v3516 = vpop.permute.xlu0 %3515
      %3517 = vrot.lane.b32.xlu0 %v3291, 127
      %v3518 = vpop.permute.xlu0 %3517
      %3519 = vrot.lane.b32.xlu0 %v3292, 127
      %v3520 = vpop.permute.xlu0 %3519
      %3521 = vrot.lane.b32.xlu0 %v3237, 127
      %v3522 = vpop.permute.xlu0 %3521
      %3523 = vrot.lane.b32.xlu0 %v3238, 127
      %v3524 = vpop.permute.xlu0 %3523
      %3525 = vrot.lane.b32.xlu0 %v3239, 127
      %v3526 = vpop.permute.xlu0 %3525
      %3527 = vrot.lane.b32.xlu0 %v3240, 127
      %v3528 = vpop.permute.xlu0 %3527
      %3529 = vrot.lane.b32.xlu0 %v3293, 127
      %v3530 = vpop.permute.xlu0 %3529
      %3531 = vrot.lane.b32.xlu0 %v3294, 127
      %v3532 = vpop.permute.xlu0 %3531
      %3533 = vrot.lane.b32.xlu0 %v3243, 127
      %v3534 = vpop.permute.xlu0 %3533
      %3535 = vrot.lane.b32.xlu0 %v3244, 127
      %v3536 = vpop.permute.xlu0 %3535
      %3537 = vrot.lane.b32.xlu0 %v3245, 127
      %v3538 = vpop.permute.xlu0 %3537
      %3539 = vrot.lane.b32.xlu0 %v3246, 127
      %v3540 = vpop.permute.xlu0 %3539
      %3541 = vrot.lane.b32.xlu0 %v3295, 127
      %v3542 = vpop.permute.xlu0 %3541
      %3543 = vrot.lane.b32.xlu0 %v3296, 127
      %v3544 = vpop.permute.xlu0 %3543
      %3545 = vrot.lane.b32.xlu0 %v3249, 127
      %v3546 = vpop.permute.xlu0 %3545
      %3547 = vrot.lane.b32.xlu0 %v3250, 127
      %v3548 = vpop.permute.xlu0 %3547
      %3549 = vrot.lane.b32.xlu0 %v3251, 127
      %v3550 = vpop.permute.xlu0 %3549
      %3551 = vrot.lane.b32.xlu0 %v3252, 127
      %v3552 = vpop.permute.xlu0 %3551
      %3553 = vrot.lane.b32.xlu0 %v3297, 127
      %v3554 = vpop.permute.xlu0 %3553
      %3555 = vrot.lane.b32.xlu0 %v3298, 127
      %v3556 = vpop.permute.xlu0 %3555
      %3557 = vrot.lane.b32.xlu0 %v3255, 127
      %v3558 = vpop.permute.xlu0 %3557
      %3559 = vrot.lane.b32.xlu0 %v3256, 127
      %v3560 = vpop.permute.xlu0 %3559
      %3561 = vrot.lane.b32.xlu0 %v3257, 127
      %v3562 = vpop.permute.xlu0 %3561
      %3563 = vrot.lane.b32.xlu0 %v3258, 127
      %v3564 = vpop.permute.xlu0 %3563
      %3565 = vrot.lane.b32.xlu0 %v3299, 127
      %v3566 = vpop.permute.xlu0 %3565
      %3567 = vrot.lane.b32.xlu0 %v3300, 127
      %v3568 = vpop.permute.xlu0 %3567
      %3569 = vrot.lane.b32.xlu0 %v3261, 127
      %v3570 = vpop.permute.xlu0 %3569
      %3571 = vrot.lane.b32.xlu0 %v3262, 127
      %v3572 = vpop.permute.xlu0 %3571
      %3573 = vrot.lane.b32.xlu0 %v3263, 127
      %v3574 = vpop.permute.xlu0 %3573
      %3575 = vrot.lane.b32.xlu0 %v3264, 127
      %v3576 = vpop.permute.xlu0 %3575
      %3577 = vrot.lane.b32.xlu0 %v3301, 127
      %v3578 = vpop.permute.xlu0 %3577
      %3579 = vrot.lane.b32.xlu0 %v3302, 127
      %v3580 = vpop.permute.xlu0 %3579
      %3581 = vrot.lane.b32.xlu0 %v3267, 127
      %v3582 = vpop.permute.xlu0 %3581
      %3583 = vrot.lane.b32.xlu0 %v3268, 127
      %v3584 = vpop.permute.xlu0 %3583
      %3585 = vrot.lane.b32.xlu0 %v3269, 127
      %v3586 = vpop.permute.xlu0 %3585
      %3587 = vrot.lane.b32.xlu0 %v3270, 127
      %v3588 = vpop.permute.xlu0 %3587
      %3589 = vrot.lane.b32.xlu0 %v3303, 127
      %v3590 = vpop.permute.xlu0 %3589
      %3591 = vrot.lane.b32.xlu0 %v3304, 127
      %v3592 = vpop.permute.xlu0 %3591
      %vm3593 = vcmask 1039360
      %v3594 = vsel %vm3593, %v3402, %v3404
      %v3595 = vsel %vm3593, %v3406, %v3408
      %v3596 = vsel %vm3593, %v3410, %v3412
      %v3597 = vsel %vm3593, %v3414, %v3416
      %v3598 = vsel %vm3593, %v3418, %v3420
      %v3599 = vsel %vm3593, %v3422, %v3424
      %v3600 = vsel %vm3593, %v3426, %v3428
      %v3601 = vsel %vm3593, %v3430, %v3432
      %v3602 = vsel %vm3593, %v3434, %v3436
      %v3603 = vsel %vm3593, %v3438, %v3440
      %v3604 = vsel %vm3593, %v3442, %v3444
      %v3605 = vsel %vm3593, %v3446, %v3448
      %v3606 = vsel %vm3593, %v3450, %v3452
      %v3607 = vsel %vm3593, %v3454, %v3456
      %v3608 = vsel %vm3593, %v3458, %v3460
      %v3609 = vsel %vm3593, %v3462, %v3464
      %v3610 = vsel %vm3593, %v3466, %v3468
      %v3611 = vsel %vm3593, %v3470, %v3472
      %v3612 = vsel %vm3593, %v3474, %v3476
      %v3613 = vsel %vm3593, %v3478, %v3480
      %v3614 = vsel %vm3593, %v3482, %v3484
      %v3615 = vsel %vm3593, %v3486, %v3488
      %v3616 = vsel %vm3593, %v3490, %v3492
      %v3617 = vsel %vm3593, %v3494, %v3496
      %v3618 = vsel %vm3593, %v3498, %v3500
      %v3619 = vsel %vm3593, %v3502, %v3504
      %v3620 = vsel %vm3593, %v3506, %v3508
      %v3621 = vsel %vm3593, %v3510, %v3512
      %v3622 = vsel %vm3593, %v3514, %v3516
      %v3623 = vsel %vm3593, %v3518, %v3520
      %v3624 = vsel %vm3593, %v3522, %v3524
      %v3625 = vsel %vm3593, %v3526, %v3528
      %v3626 = vsel %vm3593, %v3530, %v3532
      %v3627 = vsel %vm3593, %v3534, %v3536
      %v3628 = vsel %vm3593, %v3538, %v3540
      %v3629 = vsel %vm3593, %v3542, %v3544
      %v3630 = vsel %vm3593, %v3546, %v3548
      %v3631 = vsel %vm3593, %v3550, %v3552
      %v3632 = vsel %vm3593, %v3554, %v3556
      %v3633 = vsel %vm3593, %v3558, %v3560
      %v3634 = vsel %vm3593, %v3562, %v3564
      %v3635 = vsel %vm3593, %v3566, %v3568
      %v3636 = vsel %vm3593, %v3570, %v3572
      %v3637 = vsel %vm3593, %v3574, %v3576
      %v3638 = vsel %vm3593, %v3578, %v3580
      %v3639 = vsel %vm3593, %v3582, %v3584
      %v3640 = vsel %vm3593, %v3586, %v3588
      %v3641 = vsel %vm3593, %v3590, %v3592
      %v3738 = vmax.f32 %v3177, %v3594
      %v3739 = vmax.f32 %v3178, %v3404
      %v3740 = vmax.f32 %v3179, %v3595
      %v3741 = vmax.f32 %v3180, %v3408
      %v3742 = vmax.f32 %v3273, %v3596
      %v3743 = vmax.f32 %v3274, %v3412
      %v3744 = vmax.f32 %v3183, %v3597
      %v3745 = vmax.f32 %v3184, %v3416
      %v3746 = vmax.f32 %v3185, %v3598
      %v3747 = vmax.f32 %v3186, %v3420
      %v3748 = vmax.f32 %v3275, %v3599
      %v3749 = vmax.f32 %v3276, %v3424
      %v3750 = vmax.f32 %v3189, %v3600
      %v3751 = vmax.f32 %v3190, %v3428
      %v3752 = vmax.f32 %v3191, %v3601
      %v3753 = vmax.f32 %v3192, %v3432
      %v3754 = vmax.f32 %v3277, %v3602
      %v3755 = vmax.f32 %v3278, %v3436
      %v3756 = vmax.f32 %v3195, %v3603
      %v3757 = vmax.f32 %v3196, %v3440
      %v3758 = vmax.f32 %v3197, %v3604
      %v3759 = vmax.f32 %v3198, %v3444
      %v3760 = vmax.f32 %v3279, %v3605
      %v3761 = vmax.f32 %v3280, %v3448
      %v3762 = vmax.f32 %v3201, %v3606
      %v3763 = vmax.f32 %v3202, %v3452
      %v3764 = vmax.f32 %v3203, %v3607
      %v3765 = vmax.f32 %v3204, %v3456
      %v3766 = vmax.f32 %v3281, %v3608
      %v3767 = vmax.f32 %v3282, %v3460
      %v3768 = vmax.f32 %v3207, %v3609
      %v3769 = vmax.f32 %v3208, %v3464
      %v3770 = vmax.f32 %v3209, %v3610
      %v3771 = vmax.f32 %v3210, %v3468
      %v3772 = vmax.f32 %v3283, %v3611
      %v3773 = vmax.f32 %v3284, %v3472
      %v3774 = vmax.f32 %v3213, %v3612
      %v3775 = vmax.f32 %v3214, %v3476
      %v3776 = vmax.f32 %v3215, %v3613
      %v3777 = vmax.f32 %v3216, %v3480
      %v3778 = vmax.f32 %v3285, %v3614
      %v3779 = vmax.f32 %v3286, %v3484
      %v3780 = vmax.f32 %v3219, %v3615
      %v3781 = vmax.f32 %v3220, %v3488
      %v3782 = vmax.f32 %v3221, %v3616
      %v3783 = vmax.f32 %v3222, %v3492
      %v3784 = vmax.f32 %v3287, %v3617
      %v3785 = vmax.f32 %v3288, %v3496
      %v3786 = vmax.f32 %v3225, %v3618
      %v3787 = vmax.f32 %v3226, %v3500
      %v3788 = vmax.f32 %v3227, %v3619
      %v3789 = vmax.f32 %v3228, %v3504
      %v3790 = vmax.f32 %v3289, %v3620
      %v3791 = vmax.f32 %v3290, %v3508
      %v3792 = vmax.f32 %v3231, %v3621
      %v3793 = vmax.f32 %v3232, %v3512
      %v3794 = vmax.f32 %v3233, %v3622
      %v3795 = vmax.f32 %v3234, %v3516
      %v3796 = vmax.f32 %v3291, %v3623
      %v3797 = vmax.f32 %v3292, %v3520
      %v3798 = vmax.f32 %v3237, %v3624
      %v3799 = vmax.f32 %v3238, %v3524
      %v3800 = vmax.f32 %v3239, %v3625
      %v3801 = vmax.f32 %v3240, %v3528
      %v3802 = vmax.f32 %v3293, %v3626
      %v3803 = vmax.f32 %v3294, %v3532
      %v3804 = vmax.f32 %v3243, %v3627
      %v3805 = vmax.f32 %v3244, %v3536
      %v3806 = vmax.f32 %v3245, %v3628
      %v3807 = vmax.f32 %v3246, %v3540
      %v3808 = vmax.f32 %v3295, %v3629
      %v3809 = vmax.f32 %v3296, %v3544
      %v3810 = vmax.f32 %v3249, %v3630
      %v3811 = vmax.f32 %v3250, %v3548
      %v3812 = vmax.f32 %v3251, %v3631
      %v3813 = vmax.f32 %v3252, %v3552
      %v3814 = vmax.f32 %v3297, %v3632
      %v3815 = vmax.f32 %v3298, %v3556
      %v3816 = vmax.f32 %v3255, %v3633
      %v3817 = vmax.f32 %v3256, %v3560
      %v3818 = vmax.f32 %v3257, %v3634
      %v3819 = vmax.f32 %v3258, %v3564
      %v3820 = vmax.f32 %v3299, %v3635
      %v3821 = vmax.f32 %v3300, %v3568
      %v3822 = vmax.f32 %v3261, %v3636
      %v3823 = vmax.f32 %v3262, %v3572
      %v3824 = vmax.f32 %v3263, %v3637
      %v3825 = vmax.f32 %v3264, %v3576
      %v3826 = vmax.f32 %v3301, %v3638
      %v3827 = vmax.f32 %v3302, %v3580
      %v3828 = vmax.f32 %v3267, %v3639
      %v3829 = vmax.f32 %v3268, %v3584
      %v3830 = vmax.f32 %v3269, %v3640
      %v3831 = vmax.f32 %v3270, %v3588
      %v3832 = vmax.f32 %v3303, %v3641
      %v3833 = vmax.f32 %v3304, %v3592
      %v3930 = vrot.slane %v3738, 2
      %v3931 = vrot.slane %v3740, 2
      %v3932 = vsel %vm778, %v3930, %v3931
      %v3933 = vrot.slane %v3739, 2
      %v3934 = vrot.slane %v3741, 2
      %v3935 = vsel %vm778, %v3933, %v3934
      %v3936 = vrot.slane %v3742, 2
      %v3937 = vsel %vm778, %v3931, %v3936
      %v3938 = vrot.slane %v3743, 2
      %v3939 = vsel %vm778, %v3934, %v3938
      %v3940 = vrot.slane %v3744, 2
      %v3941 = vrot.slane %v3746, 2
      %v3942 = vsel %vm778, %v3940, %v3941
      %v3943 = vrot.slane %v3745, 2
      %v3944 = vrot.slane %v3747, 2
      %v3945 = vsel %vm778, %v3943, %v3944
      %v3946 = vrot.slane %v3748, 2
      %v3947 = vsel %vm778, %v3941, %v3946
      %v3948 = vrot.slane %v3749, 2
      %v3949 = vsel %vm778, %v3944, %v3948
      %v3950 = vrot.slane %v3750, 2
      %v3951 = vrot.slane %v3752, 2
      %v3952 = vsel %vm778, %v3950, %v3951
      %v3953 = vrot.slane %v3751, 2
      %v3954 = vrot.slane %v3753, 2
      %v3955 = vsel %vm778, %v3953, %v3954
      %v3956 = vrot.slane %v3754, 2
      %v3957 = vsel %vm778, %v3951, %v3956
      %v3958 = vrot.slane %v3755, 2
      %v3959 = vsel %vm778, %v3954, %v3958
      %v3960 = vrot.slane %v3756, 2
      %v3961 = vrot.slane %v3758, 2
      %v3962 = vsel %vm778, %v3960, %v3961
      %v3963 = vrot.slane %v3757, 2
      %v3964 = vrot.slane %v3759, 2
      %v3965 = vsel %vm778, %v3963, %v3964
      %v3966 = vrot.slane %v3760, 2
      %v3967 = vsel %vm778, %v3961, %v3966
      %v3968 = vrot.slane %v3761, 2
      %v3969 = vsel %vm778, %v3964, %v3968
      %v3970 = vrot.slane %v3762, 2
      %v3971 = vrot.slane %v3764, 2
      %v3972 = vsel %vm778, %v3970, %v3971
      %v3973 = vrot.slane %v3763, 2
      %v3974 = vrot.slane %v3765, 2
      %v3975 = vsel %vm778, %v3973, %v3974
      %v3976 = vrot.slane %v3766, 2
      %v3977 = vsel %vm778, %v3971, %v3976
      %v3978 = vrot.slane %v3767, 2
      %v3979 = vsel %vm778, %v3974, %v3978
      %v3980 = vrot.slane %v3768, 2
      %v3981 = vrot.slane %v3770, 2
      %v3982 = vsel %vm778, %v3980, %v3981
      %v3983 = vrot.slane %v3769, 2
      %v3984 = vrot.slane %v3771, 2
      %v3985 = vsel %vm778, %v3983, %v3984
      %v3986 = vrot.slane %v3772, 2
      %v3987 = vsel %vm778, %v3981, %v3986
      %v3988 = vrot.slane %v3773, 2
      %v3989 = vsel %vm778, %v3984, %v3988
      %v3990 = vrot.slane %v3774, 2
      %v3991 = vrot.slane %v3776, 2
      %v3992 = vsel %vm778, %v3990, %v3991
      %v3993 = vrot.slane %v3775, 2
      %v3994 = vrot.slane %v3777, 2
      %v3995 = vsel %vm778, %v3993, %v3994
      %v3996 = vrot.slane %v3778, 2
      %v3997 = vsel %vm778, %v3991, %v3996
      %v3998 = vrot.slane %v3779, 2
      %v3999 = vsel %vm778, %v3994, %v3998
      %v4000 = vrot.slane %v3780, 2
      %v4001 = vrot.slane %v3782, 2
      %v4002 = vsel %vm778, %v4000, %v4001
      %v4003 = vrot.slane %v3781, 2
      %v4004 = vrot.slane %v3783, 2
      %v4005 = vsel %vm778, %v4003, %v4004
      %v4006 = vrot.slane %v3784, 2
      %v4007 = vsel %vm778, %v4001, %v4006
      %v4008 = vrot.slane %v3785, 2
      %v4009 = vsel %vm778, %v4004, %v4008
      %v4010 = vrot.slane %v3786, 2
      %v4011 = vrot.slane %v3788, 2
      %v4012 = vsel %vm778, %v4010, %v4011
      %v4013 = vrot.slane %v3787, 2
      %v4014 = vrot.slane %v3789, 2
      %v4015 = vsel %vm778, %v4013, %v4014
      %v4016 = vrot.slane %v3790, 2
      %v4017 = vsel %vm778, %v4011, %v4016
      %v4018 = vrot.slane %v3791, 2
      %v4019 = vsel %vm778, %v4014, %v4018
      %v4020 = vrot.slane %v3792, 2
      %v4021 = vrot.slane %v3794, 2
      %v4022 = vsel %vm778, %v4020, %v4021
      %v4023 = vrot.slane %v3793, 2
      %v4024 = vrot.slane %v3795, 2
      %v4025 = vsel %vm778, %v4023, %v4024
      %v4026 = vrot.slane %v3796, 2
      %v4027 = vsel %vm778, %v4021, %v4026
      %v4028 = vrot.slane %v3797, 2
      %v4029 = vsel %vm778, %v4024, %v4028
      %v4030 = vrot.slane %v3798, 2
      %v4031 = vrot.slane %v3800, 2
      %v4032 = vsel %vm778, %v4030, %v4031
      %v4033 = vrot.slane %v3799, 2
      %v4034 = vrot.slane %v3801, 2
      %v4035 = vsel %vm778, %v4033, %v4034
      %v4036 = vrot.slane %v3802, 2
      %v4037 = vsel %vm778, %v4031, %v4036
      %v4038 = vrot.slane %v3803, 2
      %v4039 = vsel %vm778, %v4034, %v4038
      %v4040 = vrot.slane %v3804, 2
      %v4041 = vrot.slane %v3806, 2
      %v4042 = vsel %vm778, %v4040, %v4041
      %v4043 = vrot.slane %v3805, 2
      %v4044 = vrot.slane %v3807, 2
      %v4045 = vsel %vm778, %v4043, %v4044
      %v4046 = vrot.slane %v3808, 2
      %v4047 = vsel %vm778, %v4041, %v4046
      %v4048 = vrot.slane %v3809, 2
      %v4049 = vsel %vm778, %v4044, %v4048
      %v4050 = vrot.slane %v3810, 2
      %v4051 = vrot.slane %v3812, 2
      %v4052 = vsel %vm778, %v4050, %v4051
      %v4053 = vrot.slane %v3811, 2
      %v4054 = vrot.slane %v3813, 2
      %v4055 = vsel %vm778, %v4053, %v4054
      %v4056 = vrot.slane %v3814, 2
      %v4057 = vsel %vm778, %v4051, %v4056
      %v4058 = vrot.slane %v3815, 2
      %v4059 = vsel %vm778, %v4054, %v4058
      %v4060 = vrot.slane %v3816, 2
      %v4061 = vrot.slane %v3818, 2
      %v4062 = vsel %vm778, %v4060, %v4061
      %v4063 = vrot.slane %v3817, 2
      %v4064 = vrot.slane %v3819, 2
      %v4065 = vsel %vm778, %v4063, %v4064
      %v4066 = vrot.slane %v3820, 2
      %v4067 = vsel %vm778, %v4061, %v4066
      %v4068 = vrot.slane %v3821, 2
      %v4069 = vsel %vm778, %v4064, %v4068
      %v4070 = vrot.slane %v3822, 2
      %v4071 = vrot.slane %v3824, 2
      %v4072 = vsel %vm778, %v4070, %v4071
      %v4073 = vrot.slane %v3823, 2
      %v4074 = vrot.slane %v3825, 2
      %v4075 = vsel %vm778, %v4073, %v4074
      %v4076 = vrot.slane %v3826, 2
      %v4077 = vsel %vm778, %v4071, %v4076
      %v4078 = vrot.slane %v3827, 2
      %v4079 = vsel %vm778, %v4074, %v4078
      %v4080 = vrot.slane %v3828, 2
      %v4081 = vrot.slane %v3830, 2
      %v4082 = vsel %vm778, %v4080, %v4081
      %v4083 = vrot.slane %v3829, 2
      %v4084 = vrot.slane %v3831, 2
      %v4085 = vsel %vm778, %v4083, %v4084
      %v4086 = vrot.slane %v3832, 2
      %v4087 = vsel %vm778, %v4081, %v4086
      %v4088 = vrot.slane %v3833, 2
      %v4089 = vsel %vm778, %v4084, %v4088
      %4090 = vrot.lane.b32.xlu0 %v3932, 15
      %v4091 = vpop.permute.xlu0 %4090
      %4092 = vrot.lane.b32.xlu0 %v3935, 15
      %v4093 = vpop.permute.xlu0 %4092
      %4094 = vrot.lane.b32.xlu0 %v3937, 15
      %v4095 = vpop.permute.xlu0 %4094
      %4096 = vrot.lane.b32.xlu0 %v3939, 15
      %v4097 = vpop.permute.xlu0 %4096
      %4098 = vrot.lane.b32.xlu0 %v3942, 15
      %v4099 = vpop.permute.xlu0 %4098
      %4100 = vrot.lane.b32.xlu0 %v3945, 15
      %v4101 = vpop.permute.xlu0 %4100
      %4102 = vrot.lane.b32.xlu0 %v3947, 15
      %v4103 = vpop.permute.xlu0 %4102
      %4104 = vrot.lane.b32.xlu0 %v3949, 15
      %v4105 = vpop.permute.xlu0 %4104
      %4106 = vrot.lane.b32.xlu0 %v3952, 15
      %v4107 = vpop.permute.xlu0 %4106
      %4108 = vrot.lane.b32.xlu0 %v3955, 15
      %v4109 = vpop.permute.xlu0 %4108
      %4110 = vrot.lane.b32.xlu0 %v3957, 15
      %v4111 = vpop.permute.xlu0 %4110
      %4112 = vrot.lane.b32.xlu0 %v3959, 15
      %v4113 = vpop.permute.xlu0 %4112
      %4114 = vrot.lane.b32.xlu0 %v3962, 15
      %v4115 = vpop.permute.xlu0 %4114
      %4116 = vrot.lane.b32.xlu0 %v3965, 15
      %v4117 = vpop.permute.xlu0 %4116
      %4118 = vrot.lane.b32.xlu0 %v3967, 15
      %v4119 = vpop.permute.xlu0 %4118
      %4120 = vrot.lane.b32.xlu0 %v3969, 15
      %v4121 = vpop.permute.xlu0 %4120
      %4122 = vrot.lane.b32.xlu0 %v3972, 15
      %v4123 = vpop.permute.xlu0 %4122
      %4124 = vrot.lane.b32.xlu0 %v3975, 15
      %v4125 = vpop.permute.xlu0 %4124
      %4126 = vrot.lane.b32.xlu0 %v3977, 15
      %v4127 = vpop.permute.xlu0 %4126
      %4128 = vrot.lane.b32.xlu0 %v3979, 15
      %v4129 = vpop.permute.xlu0 %4128
      %4130 = vrot.lane.b32.xlu0 %v3982, 15
      %v4131 = vpop.permute.xlu0 %4130
      %4132 = vrot.lane.b32.xlu0 %v3985, 15
      %v4133 = vpop.permute.xlu0 %4132
      %4134 = vrot.lane.b32.xlu0 %v3987, 15
      %v4135 = vpop.permute.xlu0 %4134
      %4136 = vrot.lane.b32.xlu0 %v3989, 15
      %v4137 = vpop.permute.xlu0 %4136
      %4138 = vrot.lane.b32.xlu0 %v3992, 15
      %v4139 = vpop.permute.xlu0 %4138
      %4140 = vrot.lane.b32.xlu0 %v3995, 15
      %v4141 = vpop.permute.xlu0 %4140
      %4142 = vrot.lane.b32.xlu0 %v3997, 15
      %v4143 = vpop.permute.xlu0 %4142
      %4144 = vrot.lane.b32.xlu0 %v3999, 15
      %v4145 = vpop.permute.xlu0 %4144
      %4146 = vrot.lane.b32.xlu0 %v4002, 15
      %v4147 = vpop.permute.xlu0 %4146
      %4148 = vrot.lane.b32.xlu0 %v4005, 15
      %v4149 = vpop.permute.xlu0 %4148
      %4150 = vrot.lane.b32.xlu0 %v4007, 15
      %v4151 = vpop.permute.xlu0 %4150
      %4152 = vrot.lane.b32.xlu0 %v4009, 15
      %v4153 = vpop.permute.xlu0 %4152
      %4154 = vrot.lane.b32.xlu0 %v4012, 15
      %v4155 = vpop.permute.xlu0 %4154
      %4156 = vrot.lane.b32.xlu0 %v4015, 15
      %v4157 = vpop.permute.xlu0 %4156
      %4158 = vrot.lane.b32.xlu0 %v4017, 15
      %v4159 = vpop.permute.xlu0 %4158
      %4160 = vrot.lane.b32.xlu0 %v4019, 15
      %v4161 = vpop.permute.xlu0 %4160
      %4162 = vrot.lane.b32.xlu0 %v4022, 15
      %v4163 = vpop.permute.xlu0 %4162
      %4164 = vrot.lane.b32.xlu0 %v4025, 15
      %v4165 = vpop.permute.xlu0 %4164
      %4166 = vrot.lane.b32.xlu0 %v4027, 15
      %v4167 = vpop.permute.xlu0 %4166
      %4168 = vrot.lane.b32.xlu0 %v4029, 15
      %v4169 = vpop.permute.xlu0 %4168
      %4170 = vrot.lane.b32.xlu0 %v4032, 15
      %v4171 = vpop.permute.xlu0 %4170
      %4172 = vrot.lane.b32.xlu0 %v4035, 15
      %v4173 = vpop.permute.xlu0 %4172
      %4174 = vrot.lane.b32.xlu0 %v4037, 15
      %v4175 = vpop.permute.xlu0 %4174
      %4176 = vrot.lane.b32.xlu0 %v4039, 15
      %v4177 = vpop.permute.xlu0 %4176
      %4178 = vrot.lane.b32.xlu0 %v4042, 15
      %v4179 = vpop.permute.xlu0 %4178
      %4180 = vrot.lane.b32.xlu0 %v4045, 15
      %v4181 = vpop.permute.xlu0 %4180
      %4182 = vrot.lane.b32.xlu0 %v4047, 15
      %v4183 = vpop.permute.xlu0 %4182
      %4184 = vrot.lane.b32.xlu0 %v4049, 15
      %v4185 = vpop.permute.xlu0 %4184
      %4186 = vrot.lane.b32.xlu0 %v4052, 15
      %v4187 = vpop.permute.xlu0 %4186
      %4188 = vrot.lane.b32.xlu0 %v4055, 15
      %v4189 = vpop.permute.xlu0 %4188
      %4190 = vrot.lane.b32.xlu0 %v4057, 15
      %v4191 = vpop.permute.xlu0 %4190
      %4192 = vrot.lane.b32.xlu0 %v4059, 15
      %v4193 = vpop.permute.xlu0 %4192
      %4194 = vrot.lane.b32.xlu0 %v4062, 15
      %v4195 = vpop.permute.xlu0 %4194
      %4196 = vrot.lane.b32.xlu0 %v4065, 15
      %v4197 = vpop.permute.xlu0 %4196
      %4198 = vrot.lane.b32.xlu0 %v4067, 15
      %v4199 = vpop.permute.xlu0 %4198
      %4200 = vrot.lane.b32.xlu0 %v4069, 15
      %v4201 = vpop.permute.xlu0 %4200
      %4202 = vrot.lane.b32.xlu0 %v4072, 15
      %v4203 = vpop.permute.xlu0 %4202
      %4204 = vrot.lane.b32.xlu0 %v4075, 15
      %v4205 = vpop.permute.xlu0 %4204
      %4206 = vrot.lane.b32.xlu0 %v4077, 15
      %v4207 = vpop.permute.xlu0 %4206
      %4208 = vrot.lane.b32.xlu0 %v4079, 15
      %v4209 = vpop.permute.xlu0 %4208
      %4210 = vrot.lane.b32.xlu0 %v4082, 15
      %v4211 = vpop.permute.xlu0 %4210
      %4212 = vrot.lane.b32.xlu0 %v4085, 15
      %v4213 = vpop.permute.xlu0 %4212
      %4214 = vrot.lane.b32.xlu0 %v4087, 15
      %v4215 = vpop.permute.xlu0 %4214
      %4216 = vrot.lane.b32.xlu0 %v4089, 15
      %v4217 = vpop.permute.xlu0 %4216
      %vm4218 = vcmask 121856
      %v4219 = vsel %vm4218, %v4091, %v4093
      %v4220 = vsel %vm4218, %v4095, %v4097
      %v4221 = vsel %vm4218, %v4099, %v4101
      %v4222 = vsel %vm4218, %v4103, %v4105
      %v4223 = vsel %vm4218, %v4107, %v4109
      %v4224 = vsel %vm4218, %v4111, %v4113
      %v4225 = vsel %vm4218, %v4115, %v4117
      %v4226 = vsel %vm4218, %v4119, %v4121
      %v4227 = vsel %vm4218, %v4123, %v4125
      %v4228 = vsel %vm4218, %v4127, %v4129
      %v4229 = vsel %vm4218, %v4131, %v4133
      %v4230 = vsel %vm4218, %v4135, %v4137
      %v4231 = vsel %vm4218, %v4139, %v4141
      %v4232 = vsel %vm4218, %v4143, %v4145
      %v4233 = vsel %vm4218, %v4147, %v4149
      %v4234 = vsel %vm4218, %v4151, %v4153
      %v4235 = vsel %vm4218, %v4155, %v4157
      %v4236 = vsel %vm4218, %v4159, %v4161
      %v4237 = vsel %vm4218, %v4163, %v4165
      %v4238 = vsel %vm4218, %v4167, %v4169
      %v4239 = vsel %vm4218, %v4171, %v4173
      %v4240 = vsel %vm4218, %v4175, %v4177
      %v4241 = vsel %vm4218, %v4179, %v4181
      %v4242 = vsel %vm4218, %v4183, %v4185
      %v4243 = vsel %vm4218, %v4187, %v4189
      %v4244 = vsel %vm4218, %v4191, %v4193
      %v4245 = vsel %vm4218, %v4195, %v4197
      %v4246 = vsel %vm4218, %v4199, %v4201
      %v4247 = vsel %vm4218, %v4203, %v4205
      %v4248 = vsel %vm4218, %v4207, %v4209
      %v4249 = vsel %vm4218, %v4211, %v4213
      %v4250 = vsel %vm4218, %v4215, %v4217
      %v4315 = vrot.slane %v3738, 4
      %v4316 = vrot.slane %v3740, 4
      %v4317 = vsel %vm1292, %v4315, %v4316
      %v4318 = vrot.slane %v3739, 4
      %v4319 = vrot.slane %v3741, 4
      %v4320 = vsel %vm1292, %v4318, %v4319
      %v4321 = vrot.slane %v3742, 4
      %v4322 = vsel %vm1292, %v4316, %v4321
      %v4323 = vrot.slane %v3743, 4
      %v4324 = vsel %vm1292, %v4319, %v4323
      %v4325 = vrot.slane %v3744, 4
      %v4326 = vrot.slane %v3746, 4
      %v4327 = vsel %vm1292, %v4325, %v4326
      %v4328 = vrot.slane %v3745, 4
      %v4329 = vrot.slane %v3747, 4
      %v4330 = vsel %vm1292, %v4328, %v4329
      %v4331 = vrot.slane %v3748, 4
      %v4332 = vsel %vm1292, %v4326, %v4331
      %v4333 = vrot.slane %v3749, 4
      %v4334 = vsel %vm1292, %v4329, %v4333
      %v4335 = vrot.slane %v3750, 4
      %v4336 = vrot.slane %v3752, 4
      %v4337 = vsel %vm1292, %v4335, %v4336
      %v4338 = vrot.slane %v3751, 4
      %v4339 = vrot.slane %v3753, 4
      %v4340 = vsel %vm1292, %v4338, %v4339
      %v4341 = vrot.slane %v3754, 4
      %v4342 = vsel %vm1292, %v4336, %v4341
      %v4343 = vrot.slane %v3755, 4
      %v4344 = vsel %vm1292, %v4339, %v4343
      %v4345 = vrot.slane %v3756, 4
      %v4346 = vrot.slane %v3758, 4
      %v4347 = vsel %vm1292, %v4345, %v4346
      %v4348 = vrot.slane %v3757, 4
      %v4349 = vrot.slane %v3759, 4
      %v4350 = vsel %vm1292, %v4348, %v4349
      %v4351 = vrot.slane %v3760, 4
      %v4352 = vsel %vm1292, %v4346, %v4351
      %v4353 = vrot.slane %v3761, 4
      %v4354 = vsel %vm1292, %v4349, %v4353
      %v4355 = vrot.slane %v3762, 4
      %v4356 = vrot.slane %v3764, 4
      %v4357 = vsel %vm1292, %v4355, %v4356
      %v4358 = vrot.slane %v3763, 4
      %v4359 = vrot.slane %v3765, 4
      %v4360 = vsel %vm1292, %v4358, %v4359
      %v4361 = vrot.slane %v3766, 4
      %v4362 = vsel %vm1292, %v4356, %v4361
      %v4363 = vrot.slane %v3767, 4
      %v4364 = vsel %vm1292, %v4359, %v4363
      %v4365 = vrot.slane %v3768, 4
      %v4366 = vrot.slane %v3770, 4
      %v4367 = vsel %vm1292, %v4365, %v4366
      %v4368 = vrot.slane %v3769, 4
      %v4369 = vrot.slane %v3771, 4
      %v4370 = vsel %vm1292, %v4368, %v4369
      %v4371 = vrot.slane %v3772, 4
      %v4372 = vsel %vm1292, %v4366, %v4371
      %v4373 = vrot.slane %v3773, 4
      %v4374 = vsel %vm1292, %v4369, %v4373
      %v4375 = vrot.slane %v3774, 4
      %v4376 = vrot.slane %v3776, 4
      %v4377 = vsel %vm1292, %v4375, %v4376
      %v4378 = vrot.slane %v3775, 4
      %v4379 = vrot.slane %v3777, 4
      %v4380 = vsel %vm1292, %v4378, %v4379
      %v4381 = vrot.slane %v3778, 4
      %v4382 = vsel %vm1292, %v4376, %v4381
      %v4383 = vrot.slane %v3779, 4
      %v4384 = vsel %vm1292, %v4379, %v4383
      %v4385 = vrot.slane %v3780, 4
      %v4386 = vrot.slane %v3782, 4
      %v4387 = vsel %vm1292, %v4385, %v4386
      %v4388 = vrot.slane %v3781, 4
      %v4389 = vrot.slane %v3783, 4
      %v4390 = vsel %vm1292, %v4388, %v4389
      %v4391 = vrot.slane %v3784, 4
      %v4392 = vsel %vm1292, %v4386, %v4391
      %v4393 = vrot.slane %v3785, 4
      %v4394 = vsel %vm1292, %v4389, %v4393
      %v4395 = vrot.slane %v3786, 4
      %v4396 = vrot.slane %v3788, 4
      %v4397 = vsel %vm1292, %v4395, %v4396
      %v4398 = vrot.slane %v3787, 4
      %v4399 = vrot.slane %v3789, 4
      %v4400 = vsel %vm1292, %v4398, %v4399
      %v4401 = vrot.slane %v3790, 4
      %v4402 = vsel %vm1292, %v4396, %v4401
      %v4403 = vrot.slane %v3791, 4
      %v4404 = vsel %vm1292, %v4399, %v4403
      %v4405 = vrot.slane %v3792, 4
      %v4406 = vrot.slane %v3794, 4
      %v4407 = vsel %vm1292, %v4405, %v4406
      %v4408 = vrot.slane %v3793, 4
      %v4409 = vrot.slane %v3795, 4
      %v4410 = vsel %vm1292, %v4408, %v4409
      %v4411 = vrot.slane %v3796, 4
      %v4412 = vsel %vm1292, %v4406, %v4411
      %v4413 = vrot.slane %v3797, 4
      %v4414 = vsel %vm1292, %v4409, %v4413
      %v4415 = vrot.slane %v3798, 4
      %v4416 = vrot.slane %v3800, 4
      %v4417 = vsel %vm1292, %v4415, %v4416
      %v4418 = vrot.slane %v3799, 4
      %v4419 = vrot.slane %v3801, 4
      %v4420 = vsel %vm1292, %v4418, %v4419
      %v4421 = vrot.slane %v3802, 4
      %v4422 = vsel %vm1292, %v4416, %v4421
      %v4423 = vrot.slane %v3803, 4
      %v4424 = vsel %vm1292, %v4419, %v4423
      %v4425 = vrot.slane %v3804, 4
      %v4426 = vrot.slane %v3806, 4
      %v4427 = vsel %vm1292, %v4425, %v4426
      %v4428 = vrot.slane %v3805, 4
      %v4429 = vrot.slane %v3807, 4
      %v4430 = vsel %vm1292, %v4428, %v4429
      %v4431 = vrot.slane %v3808, 4
      %v4432 = vsel %vm1292, %v4426, %v4431
      %v4433 = vrot.slane %v3809, 4
      %v4434 = vsel %vm1292, %v4429, %v4433
      %v4435 = vrot.slane %v3810, 4
      %v4436 = vrot.slane %v3812, 4
      %v4437 = vsel %vm1292, %v4435, %v4436
      %v4438 = vrot.slane %v3811, 4
      %v4439 = vrot.slane %v3813, 4
      %v4440 = vsel %vm1292, %v4438, %v4439
      %v4441 = vrot.slane %v3814, 4
      %v4442 = vsel %vm1292, %v4436, %v4441
      %v4443 = vrot.slane %v3815, 4
      %v4444 = vsel %vm1292, %v4439, %v4443
      %v4445 = vrot.slane %v3816, 4
      %v4446 = vrot.slane %v3818, 4
      %v4447 = vsel %vm1292, %v4445, %v4446
      %v4448 = vrot.slane %v3817, 4
      %v4449 = vrot.slane %v3819, 4
      %v4450 = vsel %vm1292, %v4448, %v4449
      %v4451 = vrot.slane %v3820, 4
      %v4452 = vsel %vm1292, %v4446, %v4451
      %v4453 = vrot.slane %v3821, 4
      %v4454 = vsel %vm1292, %v4449, %v4453
      %v4455 = vrot.slane %v3822, 4
      %v4456 = vrot.slane %v3824, 4
      %v4457 = vsel %vm1292, %v4455, %v4456
      %v4458 = vrot.slane %v3823, 4
      %v4459 = vrot.slane %v3825, 4
      %v4460 = vsel %vm1292, %v4458, %v4459
      %v4461 = vrot.slane %v3826, 4
      %v4462 = vsel %vm1292, %v4456, %v4461
      %v4463 = vrot.slane %v3827, 4
      %v4464 = vsel %vm1292, %v4459, %v4463
      %v4465 = vrot.slane %v3828, 4
      %v4466 = vrot.slane %v3830, 4
      %v4467 = vsel %vm1292, %v4465, %v4466
      %v4468 = vrot.slane %v3829, 4
      %v4469 = vrot.slane %v3831, 4
      %v4470 = vsel %vm1292, %v4468, %v4469
      %v4471 = vrot.slane %v3832, 4
      %v4472 = vsel %vm1292, %v4466, %v4471
      %v4473 = vrot.slane %v3833, 4
      %v4474 = vsel %vm1292, %v4469, %v4473
      %4475 = vrot.lane.b32.xlu0 %v4317, 30
      %v4476 = vpop.permute.xlu0 %4475
      %4477 = vrot.lane.b32.xlu0 %v4320, 30
      %v4478 = vpop.permute.xlu0 %4477
      %4479 = vrot.lane.b32.xlu0 %v4322, 30
      %v4480 = vpop.permute.xlu0 %4479
      %4481 = vrot.lane.b32.xlu0 %v4324, 30
      %v4482 = vpop.permute.xlu0 %4481
      %4483 = vrot.lane.b32.xlu0 %v4327, 30
      %v4484 = vpop.permute.xlu0 %4483
      %4485 = vrot.lane.b32.xlu0 %v4330, 30
      %v4486 = vpop.permute.xlu0 %4485
      %4487 = vrot.lane.b32.xlu0 %v4332, 30
      %v4488 = vpop.permute.xlu0 %4487
      %4489 = vrot.lane.b32.xlu0 %v4334, 30
      %v4490 = vpop.permute.xlu0 %4489
      %4491 = vrot.lane.b32.xlu0 %v4337, 30
      %v4492 = vpop.permute.xlu0 %4491
      %4493 = vrot.lane.b32.xlu0 %v4340, 30
      %v4494 = vpop.permute.xlu0 %4493
      %4495 = vrot.lane.b32.xlu0 %v4342, 30
      %v4496 = vpop.permute.xlu0 %4495
      %4497 = vrot.lane.b32.xlu0 %v4344, 30
      %v4498 = vpop.permute.xlu0 %4497
      %4499 = vrot.lane.b32.xlu0 %v4347, 30
      %v4500 = vpop.permute.xlu0 %4499
      %4501 = vrot.lane.b32.xlu0 %v4350, 30
      %v4502 = vpop.permute.xlu0 %4501
      %4503 = vrot.lane.b32.xlu0 %v4352, 30
      %v4504 = vpop.permute.xlu0 %4503
      %4505 = vrot.lane.b32.xlu0 %v4354, 30
      %v4506 = vpop.permute.xlu0 %4505
      %4507 = vrot.lane.b32.xlu0 %v4357, 30
      %v4508 = vpop.permute.xlu0 %4507
      %4509 = vrot.lane.b32.xlu0 %v4360, 30
      %v4510 = vpop.permute.xlu0 %4509
      %4511 = vrot.lane.b32.xlu0 %v4362, 30
      %v4512 = vpop.permute.xlu0 %4511
      %4513 = vrot.lane.b32.xlu0 %v4364, 30
      %v4514 = vpop.permute.xlu0 %4513
      %4515 = vrot.lane.b32.xlu0 %v4367, 30
      %v4516 = vpop.permute.xlu0 %4515
      %4517 = vrot.lane.b32.xlu0 %v4370, 30
      %v4518 = vpop.permute.xlu0 %4517
      %4519 = vrot.lane.b32.xlu0 %v4372, 30
      %v4520 = vpop.permute.xlu0 %4519
      %4521 = vrot.lane.b32.xlu0 %v4374, 30
      %v4522 = vpop.permute.xlu0 %4521
      %4523 = vrot.lane.b32.xlu0 %v4377, 30
      %v4524 = vpop.permute.xlu0 %4523
      %4525 = vrot.lane.b32.xlu0 %v4380, 30
      %v4526 = vpop.permute.xlu0 %4525
      %4527 = vrot.lane.b32.xlu0 %v4382, 30
      %v4528 = vpop.permute.xlu0 %4527
      %4529 = vrot.lane.b32.xlu0 %v4384, 30
      %v4530 = vpop.permute.xlu0 %4529
      %4531 = vrot.lane.b32.xlu0 %v4387, 30
      %v4532 = vpop.permute.xlu0 %4531
      %4533 = vrot.lane.b32.xlu0 %v4390, 30
      %v4534 = vpop.permute.xlu0 %4533
      %4535 = vrot.lane.b32.xlu0 %v4392, 30
      %v4536 = vpop.permute.xlu0 %4535
      %4537 = vrot.lane.b32.xlu0 %v4394, 30
      %v4538 = vpop.permute.xlu0 %4537
      %4539 = vrot.lane.b32.xlu0 %v4397, 30
      %v4540 = vpop.permute.xlu0 %4539
      %4541 = vrot.lane.b32.xlu0 %v4400, 30
      %v4542 = vpop.permute.xlu0 %4541
      %4543 = vrot.lane.b32.xlu0 %v4402, 30
      %v4544 = vpop.permute.xlu0 %4543
      %4545 = vrot.lane.b32.xlu0 %v4404, 30
      %v4546 = vpop.permute.xlu0 %4545
      %4547 = vrot.lane.b32.xlu0 %v4407, 30
      %v4548 = vpop.permute.xlu0 %4547
      %4549 = vrot.lane.b32.xlu0 %v4410, 30
      %v4550 = vpop.permute.xlu0 %4549
      %4551 = vrot.lane.b32.xlu0 %v4412, 30
      %v4552 = vpop.permute.xlu0 %4551
      %4553 = vrot.lane.b32.xlu0 %v4414, 30
      %v4554 = vpop.permute.xlu0 %4553
      %4555 = vrot.lane.b32.xlu0 %v4417, 30
      %v4556 = vpop.permute.xlu0 %4555
      %4557 = vrot.lane.b32.xlu0 %v4420, 30
      %v4558 = vpop.permute.xlu0 %4557
      %4559 = vrot.lane.b32.xlu0 %v4422, 30
      %v4560 = vpop.permute.xlu0 %4559
      %4561 = vrot.lane.b32.xlu0 %v4424, 30
      %v4562 = vpop.permute.xlu0 %4561
      %4563 = vrot.lane.b32.xlu0 %v4427, 30
      %v4564 = vpop.permute.xlu0 %4563
      %4565 = vrot.lane.b32.xlu0 %v4430, 30
      %v4566 = vpop.permute.xlu0 %4565
      %4567 = vrot.lane.b32.xlu0 %v4432, 30
      %v4568 = vpop.permute.xlu0 %4567
      %4569 = vrot.lane.b32.xlu0 %v4434, 30
      %v4570 = vpop.permute.xlu0 %4569
      %4571 = vrot.lane.b32.xlu0 %v4437, 30
      %v4572 = vpop.permute.xlu0 %4571
      %4573 = vrot.lane.b32.xlu0 %v4440, 30
      %v4574 = vpop.permute.xlu0 %4573
      %4575 = vrot.lane.b32.xlu0 %v4442, 30
      %v4576 = vpop.permute.xlu0 %4575
      %4577 = vrot.lane.b32.xlu0 %v4444, 30
      %v4578 = vpop.permute.xlu0 %4577
      %4579 = vrot.lane.b32.xlu0 %v4447, 30
      %v4580 = vpop.permute.xlu0 %4579
      %4581 = vrot.lane.b32.xlu0 %v4450, 30
      %v4582 = vpop.permute.xlu0 %4581
      %4583 = vrot.lane.b32.xlu0 %v4452, 30
      %v4584 = vpop.permute.xlu0 %4583
      %4585 = vrot.lane.b32.xlu0 %v4454, 30
      %v4586 = vpop.permute.xlu0 %4585
      %4587 = vrot.lane.b32.xlu0 %v4457, 30
      %v4588 = vpop.permute.xlu0 %4587
      %4589 = vrot.lane.b32.xlu0 %v4460, 30
      %v4590 = vpop.permute.xlu0 %4589
      %4591 = vrot.lane.b32.xlu0 %v4462, 30
      %v4592 = vpop.permute.xlu0 %4591
      %4593 = vrot.lane.b32.xlu0 %v4464, 30
      %v4594 = vpop.permute.xlu0 %4593
      %4595 = vrot.lane.b32.xlu0 %v4467, 30
      %v4596 = vpop.permute.xlu0 %4595
      %4597 = vrot.lane.b32.xlu0 %v4470, 30
      %v4598 = vpop.permute.xlu0 %4597
      %4599 = vrot.lane.b32.xlu0 %v4472, 30
      %v4600 = vpop.permute.xlu0 %4599
      %4601 = vrot.lane.b32.xlu0 %v4474, 30
      %v4602 = vpop.permute.xlu0 %4601
      %vm4603 = vcmask 244736
      %v4604 = vsel %vm4603, %v4476, %v4478
      %v4605 = vsel %vm4603, %v4480, %v4482
      %v4606 = vsel %vm4603, %v4484, %v4486
      %v4607 = vsel %vm4603, %v4488, %v4490
      %v4608 = vsel %vm4603, %v4492, %v4494
      %v4609 = vsel %vm4603, %v4496, %v4498
      %v4610 = vsel %vm4603, %v4500, %v4502
      %v4611 = vsel %vm4603, %v4504, %v4506
      %v4612 = vsel %vm4603, %v4508, %v4510
      %v4613 = vsel %vm4603, %v4512, %v4514
      %v4614 = vsel %vm4603, %v4516, %v4518
      %v4615 = vsel %vm4603, %v4520, %v4522
      %v4616 = vsel %vm4603, %v4524, %v4526
      %v4617 = vsel %vm4603, %v4528, %v4530
      %v4618 = vsel %vm4603, %v4532, %v4534
      %v4619 = vsel %vm4603, %v4536, %v4538
      %v4620 = vsel %vm4603, %v4540, %v4542
      %v4621 = vsel %vm4603, %v4544, %v4546
      %v4622 = vsel %vm4603, %v4548, %v4550
      %v4623 = vsel %vm4603, %v4552, %v4554
      %v4624 = vsel %vm4603, %v4556, %v4558
      %v4625 = vsel %vm4603, %v4560, %v4562
      %v4626 = vsel %vm4603, %v4564, %v4566
      %v4627 = vsel %vm4603, %v4568, %v4570
      %v4628 = vsel %vm4603, %v4572, %v4574
      %v4629 = vsel %vm4603, %v4576, %v4578
      %v4630 = vsel %vm4603, %v4580, %v4582
      %v4631 = vsel %vm4603, %v4584, %v4586
      %v4632 = vsel %vm4603, %v4588, %v4590
      %v4633 = vsel %vm4603, %v4592, %v4594
      %v4634 = vsel %vm4603, %v4596, %v4598
      %v4635 = vsel %vm4603, %v4600, %v4602
      %vm4700 = vcmask 1041408
      %v4701 = vrot.slane %v3738, 6
      %v4702 = vrot.slane %v3740, 6
      %v4703 = vsel %vm4700, %v4701, %v4702
      %v4704 = vrot.slane %v3739, 6
      %v4705 = vrot.slane %v3741, 6
      %v4706 = vsel %vm4700, %v4704, %v4705
      %v4707 = vrot.slane %v3742, 6
      %v4708 = vsel %vm4700, %v4702, %v4707
      %v4709 = vrot.slane %v3743, 6
      %v4710 = vsel %vm4700, %v4705, %v4709
      %v4711 = vrot.slane %v3744, 6
      %v4712 = vrot.slane %v3746, 6
      %v4713 = vsel %vm4700, %v4711, %v4712
      %v4714 = vrot.slane %v3745, 6
      %v4715 = vrot.slane %v3747, 6
      %v4716 = vsel %vm4700, %v4714, %v4715
      %v4717 = vrot.slane %v3748, 6
      %v4718 = vsel %vm4700, %v4712, %v4717
      %v4719 = vrot.slane %v3749, 6
      %v4720 = vsel %vm4700, %v4715, %v4719
      %v4721 = vrot.slane %v3750, 6
      %v4722 = vrot.slane %v3752, 6
      %v4723 = vsel %vm4700, %v4721, %v4722
      %v4724 = vrot.slane %v3751, 6
      %v4725 = vrot.slane %v3753, 6
      %v4726 = vsel %vm4700, %v4724, %v4725
      %v4727 = vrot.slane %v3754, 6
      %v4728 = vsel %vm4700, %v4722, %v4727
      %v4729 = vrot.slane %v3755, 6
      %v4730 = vsel %vm4700, %v4725, %v4729
      %v4731 = vrot.slane %v3756, 6
      %v4732 = vrot.slane %v3758, 6
      %v4733 = vsel %vm4700, %v4731, %v4732
      %v4734 = vrot.slane %v3757, 6
      %v4735 = vrot.slane %v3759, 6
      %v4736 = vsel %vm4700, %v4734, %v4735
      %v4737 = vrot.slane %v3760, 6
      %v4738 = vsel %vm4700, %v4732, %v4737
      %v4739 = vrot.slane %v3761, 6
      %v4740 = vsel %vm4700, %v4735, %v4739
      %v4741 = vrot.slane %v3762, 6
      %v4742 = vrot.slane %v3764, 6
      %v4743 = vsel %vm4700, %v4741, %v4742
      %v4744 = vrot.slane %v3763, 6
      %v4745 = vrot.slane %v3765, 6
      %v4746 = vsel %vm4700, %v4744, %v4745
      %v4747 = vrot.slane %v3766, 6
      %v4748 = vsel %vm4700, %v4742, %v4747
      %v4749 = vrot.slane %v3767, 6
      %v4750 = vsel %vm4700, %v4745, %v4749
      %v4751 = vrot.slane %v3768, 6
      %v4752 = vrot.slane %v3770, 6
      %v4753 = vsel %vm4700, %v4751, %v4752
      %v4754 = vrot.slane %v3769, 6
      %v4755 = vrot.slane %v3771, 6
      %v4756 = vsel %vm4700, %v4754, %v4755
      %v4757 = vrot.slane %v3772, 6
      %v4758 = vsel %vm4700, %v4752, %v4757
      %v4759 = vrot.slane %v3773, 6
      %v4760 = vsel %vm4700, %v4755, %v4759
      %v4761 = vrot.slane %v3774, 6
      %v4762 = vrot.slane %v3776, 6
      %v4763 = vsel %vm4700, %v4761, %v4762
      %v4764 = vrot.slane %v3775, 6
      %v4765 = vrot.slane %v3777, 6
      %v4766 = vsel %vm4700, %v4764, %v4765
      %v4767 = vrot.slane %v3778, 6
      %v4768 = vsel %vm4700, %v4762, %v4767
      %v4769 = vrot.slane %v3779, 6
      %v4770 = vsel %vm4700, %v4765, %v4769
      %v4771 = vrot.slane %v3780, 6
      %v4772 = vrot.slane %v3782, 6
      %v4773 = vsel %vm4700, %v4771, %v4772
      %v4774 = vrot.slane %v3781, 6
      %v4775 = vrot.slane %v3783, 6
      %v4776 = vsel %vm4700, %v4774, %v4775
      %v4777 = vrot.slane %v3784, 6
      %v4778 = vsel %vm4700, %v4772, %v4777
      %v4779 = vrot.slane %v3785, 6
      %v4780 = vsel %vm4700, %v4775, %v4779
      %v4781 = vrot.slane %v3786, 6
      %v4782 = vrot.slane %v3788, 6
      %v4783 = vsel %vm4700, %v4781, %v4782
      %v4784 = vrot.slane %v3787, 6
      %v4785 = vrot.slane %v3789, 6
      %v4786 = vsel %vm4700, %v4784, %v4785
      %v4787 = vrot.slane %v3790, 6
      %v4788 = vsel %vm4700, %v4782, %v4787
      %v4789 = vrot.slane %v3791, 6
      %v4790 = vsel %vm4700, %v4785, %v4789
      %v4791 = vrot.slane %v3792, 6
      %v4792 = vrot.slane %v3794, 6
      %v4793 = vsel %vm4700, %v4791, %v4792
      %v4794 = vrot.slane %v3793, 6
      %v4795 = vrot.slane %v3795, 6
      %v4796 = vsel %vm4700, %v4794, %v4795
      %v4797 = vrot.slane %v3796, 6
      %v4798 = vsel %vm4700, %v4792, %v4797
      %v4799 = vrot.slane %v3797, 6
      %v4800 = vsel %vm4700, %v4795, %v4799
      %v4801 = vrot.slane %v3798, 6
      %v4802 = vrot.slane %v3800, 6
      %v4803 = vsel %vm4700, %v4801, %v4802
      %v4804 = vrot.slane %v3799, 6
      %v4805 = vrot.slane %v3801, 6
      %v4806 = vsel %vm4700, %v4804, %v4805
      %v4807 = vrot.slane %v3802, 6
      %v4808 = vsel %vm4700, %v4802, %v4807
      %v4809 = vrot.slane %v3803, 6
      %v4810 = vsel %vm4700, %v4805, %v4809
      %v4811 = vrot.slane %v3804, 6
      %v4812 = vrot.slane %v3806, 6
      %v4813 = vsel %vm4700, %v4811, %v4812
      %v4814 = vrot.slane %v3805, 6
      %v4815 = vrot.slane %v3807, 6
      %v4816 = vsel %vm4700, %v4814, %v4815
      %v4817 = vrot.slane %v3808, 6
      %v4818 = vsel %vm4700, %v4812, %v4817
      %v4819 = vrot.slane %v3809, 6
      %v4820 = vsel %vm4700, %v4815, %v4819
      %v4821 = vrot.slane %v3810, 6
      %v4822 = vrot.slane %v3812, 6
      %v4823 = vsel %vm4700, %v4821, %v4822
      %v4824 = vrot.slane %v3811, 6
      %v4825 = vrot.slane %v3813, 6
      %v4826 = vsel %vm4700, %v4824, %v4825
      %v4827 = vrot.slane %v3814, 6
      %v4828 = vsel %vm4700, %v4822, %v4827
      %v4829 = vrot.slane %v3815, 6
      %v4830 = vsel %vm4700, %v4825, %v4829
      %v4831 = vrot.slane %v3816, 6
      %v4832 = vrot.slane %v3818, 6
      %v4833 = vsel %vm4700, %v4831, %v4832
      %v4834 = vrot.slane %v3817, 6
      %v4835 = vrot.slane %v3819, 6
      %v4836 = vsel %vm4700, %v4834, %v4835
      %v4837 = vrot.slane %v3820, 6
      %v4838 = vsel %vm4700, %v4832, %v4837
      %v4839 = vrot.slane %v3821, 6
      %v4840 = vsel %vm4700, %v4835, %v4839
      %v4841 = vrot.slane %v3822, 6
      %v4842 = vrot.slane %v3824, 6
      %v4843 = vsel %vm4700, %v4841, %v4842
      %v4844 = vrot.slane %v3823, 6
      %v4845 = vrot.slane %v3825, 6
      %v4846 = vsel %vm4700, %v4844, %v4845
      %v4847 = vrot.slane %v3826, 6
      %v4848 = vsel %vm4700, %v4842, %v4847
      %v4849 = vrot.slane %v3827, 6
      %v4850 = vsel %vm4700, %v4845, %v4849
      %v4851 = vrot.slane %v3828, 6
      %v4852 = vrot.slane %v3830, 6
      %v4853 = vsel %vm4700, %v4851, %v4852
      %v4854 = vrot.slane %v3829, 6
      %v4855 = vrot.slane %v3831, 6
      %v4856 = vsel %vm4700, %v4854, %v4855
      %v4857 = vrot.slane %v3832, 6
      %v4858 = vsel %vm4700, %v4852, %v4857
      %v4859 = vrot.slane %v3833, 6
      %v4860 = vsel %vm4700, %v4855, %v4859
      %4861 = vrot.lane.b32.xlu0 %v4703, 45
      %v4862 = vpop.permute.xlu0 %4861
      %4863 = vrot.lane.b32.xlu0 %v4706, 45
      %v4864 = vpop.permute.xlu0 %4863
      %4865 = vrot.lane.b32.xlu0 %v4708, 45
      %v4866 = vpop.permute.xlu0 %4865
      %4867 = vrot.lane.b32.xlu0 %v4710, 45
      %v4868 = vpop.permute.xlu0 %4867
      %4869 = vrot.lane.b32.xlu0 %v4713, 45
      %v4870 = vpop.permute.xlu0 %4869
      %4871 = vrot.lane.b32.xlu0 %v4716, 45
      %v4872 = vpop.permute.xlu0 %4871
      %4873 = vrot.lane.b32.xlu0 %v4718, 45
      %v4874 = vpop.permute.xlu0 %4873
      %4875 = vrot.lane.b32.xlu0 %v4720, 45
      %v4876 = vpop.permute.xlu0 %4875
      %4877 = vrot.lane.b32.xlu0 %v4723, 45
      %v4878 = vpop.permute.xlu0 %4877
      %4879 = vrot.lane.b32.xlu0 %v4726, 45
      %v4880 = vpop.permute.xlu0 %4879
      %4881 = vrot.lane.b32.xlu0 %v4728, 45
      %v4882 = vpop.permute.xlu0 %4881
      %4883 = vrot.lane.b32.xlu0 %v4730, 45
      %v4884 = vpop.permute.xlu0 %4883
      %4885 = vrot.lane.b32.xlu0 %v4733, 45
      %v4886 = vpop.permute.xlu0 %4885
      %4887 = vrot.lane.b32.xlu0 %v4736, 45
      %v4888 = vpop.permute.xlu0 %4887
      %4889 = vrot.lane.b32.xlu0 %v4738, 45
      %v4890 = vpop.permute.xlu0 %4889
      %4891 = vrot.lane.b32.xlu0 %v4740, 45
      %v4892 = vpop.permute.xlu0 %4891
      %4893 = vrot.lane.b32.xlu0 %v4743, 45
      %v4894 = vpop.permute.xlu0 %4893
      %4895 = vrot.lane.b32.xlu0 %v4746, 45
      %v4896 = vpop.permute.xlu0 %4895
      %4897 = vrot.lane.b32.xlu0 %v4748, 45
      %v4898 = vpop.permute.xlu0 %4897
      %4899 = vrot.lane.b32.xlu0 %v4750, 45
      %v4900 = vpop.permute.xlu0 %4899
      %4901 = vrot.lane.b32.xlu0 %v4753, 45
      %v4902 = vpop.permute.xlu0 %4901
      %4903 = vrot.lane.b32.xlu0 %v4756, 45
      %v4904 = vpop.permute.xlu0 %4903
      %4905 = vrot.lane.b32.xlu0 %v4758, 45
      %v4906 = vpop.permute.xlu0 %4905
      %4907 = vrot.lane.b32.xlu0 %v4760, 45
      %v4908 = vpop.permute.xlu0 %4907
      %4909 = vrot.lane.b32.xlu0 %v4763, 45
      %v4910 = vpop.permute.xlu0 %4909
      %4911 = vrot.lane.b32.xlu0 %v4766, 45
      %v4912 = vpop.permute.xlu0 %4911
      %4913 = vrot.lane.b32.xlu0 %v4768, 45
      %v4914 = vpop.permute.xlu0 %4913
      %4915 = vrot.lane.b32.xlu0 %v4770, 45
      %v4916 = vpop.permute.xlu0 %4915
      %4917 = vrot.lane.b32.xlu0 %v4773, 45
      %v4918 = vpop.permute.xlu0 %4917
      %4919 = vrot.lane.b32.xlu0 %v4776, 45
      %v4920 = vpop.permute.xlu0 %4919
      %4921 = vrot.lane.b32.xlu0 %v4778, 45
      %v4922 = vpop.permute.xlu0 %4921
      %4923 = vrot.lane.b32.xlu0 %v4780, 45
      %v4924 = vpop.permute.xlu0 %4923
      %4925 = vrot.lane.b32.xlu0 %v4783, 45
      %v4926 = vpop.permute.xlu0 %4925
      %4927 = vrot.lane.b32.xlu0 %v4786, 45
      %v4928 = vpop.permute.xlu0 %4927
      %4929 = vrot.lane.b32.xlu0 %v4788, 45
      %v4930 = vpop.permute.xlu0 %4929
      %4931 = vrot.lane.b32.xlu0 %v4790, 45
      %v4932 = vpop.permute.xlu0 %4931
      %4933 = vrot.lane.b32.xlu0 %v4793, 45
      %v4934 = vpop.permute.xlu0 %4933
      %4935 = vrot.lane.b32.xlu0 %v4796, 45
      %v4936 = vpop.permute.xlu0 %4935
      %4937 = vrot.lane.b32.xlu0 %v4798, 45
      %v4938 = vpop.permute.xlu0 %4937
      %4939 = vrot.lane.b32.xlu0 %v4800, 45
      %v4940 = vpop.permute.xlu0 %4939
      %4941 = vrot.lane.b32.xlu0 %v4803, 45
      %v4942 = vpop.permute.xlu0 %4941
      %4943 = vrot.lane.b32.xlu0 %v4806, 45
      %v4944 = vpop.permute.xlu0 %4943
      %4945 = vrot.lane.b32.xlu0 %v4808, 45
      %v4946 = vpop.permute.xlu0 %4945
      %4947 = vrot.lane.b32.xlu0 %v4810, 45
      %v4948 = vpop.permute.xlu0 %4947
      %4949 = vrot.lane.b32.xlu0 %v4813, 45
      %v4950 = vpop.permute.xlu0 %4949
      %4951 = vrot.lane.b32.xlu0 %v4816, 45
      %v4952 = vpop.permute.xlu0 %4951
      %4953 = vrot.lane.b32.xlu0 %v4818, 45
      %v4954 = vpop.permute.xlu0 %4953
      %4955 = vrot.lane.b32.xlu0 %v4820, 45
      %v4956 = vpop.permute.xlu0 %4955
      %4957 = vrot.lane.b32.xlu0 %v4823, 45
      %v4958 = vpop.permute.xlu0 %4957
      %4959 = vrot.lane.b32.xlu0 %v4826, 45
      %v4960 = vpop.permute.xlu0 %4959
      %4961 = vrot.lane.b32.xlu0 %v4828, 45
      %v4962 = vpop.permute.xlu0 %4961
      %4963 = vrot.lane.b32.xlu0 %v4830, 45
      %v4964 = vpop.permute.xlu0 %4963
      %4965 = vrot.lane.b32.xlu0 %v4833, 45
      %v4966 = vpop.permute.xlu0 %4965
      %4967 = vrot.lane.b32.xlu0 %v4836, 45
      %v4968 = vpop.permute.xlu0 %4967
      %4969 = vrot.lane.b32.xlu0 %v4838, 45
      %v4970 = vpop.permute.xlu0 %4969
      %4971 = vrot.lane.b32.xlu0 %v4840, 45
      %v4972 = vpop.permute.xlu0 %4971
      %4973 = vrot.lane.b32.xlu0 %v4843, 45
      %v4974 = vpop.permute.xlu0 %4973
      %4975 = vrot.lane.b32.xlu0 %v4846, 45
      %v4976 = vpop.permute.xlu0 %4975
      %4977 = vrot.lane.b32.xlu0 %v4848, 45
      %v4978 = vpop.permute.xlu0 %4977
      %4979 = vrot.lane.b32.xlu0 %v4850, 45
      %v4980 = vpop.permute.xlu0 %4979
      %4981 = vrot.lane.b32.xlu0 %v4853, 45
      %v4982 = vpop.permute.xlu0 %4981
      %4983 = vrot.lane.b32.xlu0 %v4856, 45
      %v4984 = vpop.permute.xlu0 %4983
      %4985 = vrot.lane.b32.xlu0 %v4858, 45
      %v4986 = vpop.permute.xlu0 %4985
      %4987 = vrot.lane.b32.xlu0 %v4860, 45
      %v4988 = vpop.permute.xlu0 %4987
      %vm4989 = vcmask 367616
      %v4990 = vsel %vm4989, %v4862, %v4864
      %v4991 = vsel %vm4989, %v4866, %v4868
      %v4992 = vsel %vm4989, %v4870, %v4872
      %v4993 = vsel %vm4989, %v4874, %v4876
      %v4994 = vsel %vm4989, %v4878, %v4880
      %v4995 = vsel %vm4989, %v4882, %v4884
      %v4996 = vsel %vm4989, %v4886, %v4888
      %v4997 = vsel %vm4989, %v4890, %v4892
      %v4998 = vsel %vm4989, %v4894, %v4896
      %v4999 = vsel %vm4989, %v4898, %v4900
      %v5000 = vsel %vm4989, %v4902, %v4904
      %v5001 = vsel %vm4989, %v4906, %v4908
      %v5002 = vsel %vm4989, %v4910, %v4912
      %v5003 = vsel %vm4989, %v4914, %v4916
      %v5004 = vsel %vm4989, %v4918, %v4920
      %v5005 = vsel %vm4989, %v4922, %v4924
      %v5006 = vsel %vm4989, %v4926, %v4928
      %v5007 = vsel %vm4989, %v4930, %v4932
      %v5008 = vsel %vm4989, %v4934, %v4936
      %v5009 = vsel %vm4989, %v4938, %v4940
      %v5010 = vsel %vm4989, %v4942, %v4944
      %v5011 = vsel %vm4989, %v4946, %v4948
      %v5012 = vsel %vm4989, %v4950, %v4952
      %v5013 = vsel %vm4989, %v4954, %v4956
      %v5014 = vsel %vm4989, %v4958, %v4960
      %v5015 = vsel %vm4989, %v4962, %v4964
      %v5016 = vsel %vm4989, %v4966, %v4968
      %v5017 = vsel %vm4989, %v4970, %v4972
      %v5018 = vsel %vm4989, %v4974, %v4976
      %v5019 = vsel %vm4989, %v4978, %v4980
      %v5020 = vsel %vm4989, %v4982, %v4984
      %v5021 = vsel %vm4989, %v4986, %v4988
      %5086 = vrot.lane.b32.xlu0 %v3740, 60
      %v5087 = vpop.permute.xlu0 %5086
      %5088 = vrot.lane.b32.xlu0 %v3741, 60
      %v5089 = vpop.permute.xlu0 %5088
      %5090 = vrot.lane.b32.xlu0 %v3742, 60
      %v5091 = vpop.permute.xlu0 %5090
      %5092 = vrot.lane.b32.xlu0 %v3743, 60
      %v5093 = vpop.permute.xlu0 %5092
      %5094 = vrot.lane.b32.xlu0 %v3746, 60
      %v5095 = vpop.permute.xlu0 %5094
      %5096 = vrot.lane.b32.xlu0 %v3747, 60
      %v5097 = vpop.permute.xlu0 %5096
      %5098 = vrot.lane.b32.xlu0 %v3748, 60
      %v5099 = vpop.permute.xlu0 %5098
      %5100 = vrot.lane.b32.xlu0 %v3749, 60
      %v5101 = vpop.permute.xlu0 %5100
      %5102 = vrot.lane.b32.xlu0 %v3752, 60
      %v5103 = vpop.permute.xlu0 %5102
      %5104 = vrot.lane.b32.xlu0 %v3753, 60
      %v5105 = vpop.permute.xlu0 %5104
      %5106 = vrot.lane.b32.xlu0 %v3754, 60
      %v5107 = vpop.permute.xlu0 %5106
      %5108 = vrot.lane.b32.xlu0 %v3755, 60
      %v5109 = vpop.permute.xlu0 %5108
      %5110 = vrot.lane.b32.xlu0 %v3758, 60
      %v5111 = vpop.permute.xlu0 %5110
      %5112 = vrot.lane.b32.xlu0 %v3759, 60
      %v5113 = vpop.permute.xlu0 %5112
      %5114 = vrot.lane.b32.xlu0 %v3760, 60
      %v5115 = vpop.permute.xlu0 %5114
      %5116 = vrot.lane.b32.xlu0 %v3761, 60
      %v5117 = vpop.permute.xlu0 %5116
      %5118 = vrot.lane.b32.xlu0 %v3764, 60
      %v5119 = vpop.permute.xlu0 %5118
      %5120 = vrot.lane.b32.xlu0 %v3765, 60
      %v5121 = vpop.permute.xlu0 %5120
      %5122 = vrot.lane.b32.xlu0 %v3766, 60
      %v5123 = vpop.permute.xlu0 %5122
      %5124 = vrot.lane.b32.xlu0 %v3767, 60
      %v5125 = vpop.permute.xlu0 %5124
      %5126 = vrot.lane.b32.xlu0 %v3770, 60
      %v5127 = vpop.permute.xlu0 %5126
      %5128 = vrot.lane.b32.xlu0 %v3771, 60
      %v5129 = vpop.permute.xlu0 %5128
      %5130 = vrot.lane.b32.xlu0 %v3772, 60
      %v5131 = vpop.permute.xlu0 %5130
      %5132 = vrot.lane.b32.xlu0 %v3773, 60
      %v5133 = vpop.permute.xlu0 %5132
      %5134 = vrot.lane.b32.xlu0 %v3776, 60
      %v5135 = vpop.permute.xlu0 %5134
      %5136 = vrot.lane.b32.xlu0 %v3777, 60
      %v5137 = vpop.permute.xlu0 %5136
      %5138 = vrot.lane.b32.xlu0 %v3778, 60
      %v5139 = vpop.permute.xlu0 %5138
      %5140 = vrot.lane.b32.xlu0 %v3779, 60
      %v5141 = vpop.permute.xlu0 %5140
      %5142 = vrot.lane.b32.xlu0 %v3782, 60
      %v5143 = vpop.permute.xlu0 %5142
      %5144 = vrot.lane.b32.xlu0 %v3783, 60
      %v5145 = vpop.permute.xlu0 %5144
      %5146 = vrot.lane.b32.xlu0 %v3784, 60
      %v5147 = vpop.permute.xlu0 %5146
      %5148 = vrot.lane.b32.xlu0 %v3785, 60
      %v5149 = vpop.permute.xlu0 %5148
      %5150 = vrot.lane.b32.xlu0 %v3788, 60
      %v5151 = vpop.permute.xlu0 %5150
      %5152 = vrot.lane.b32.xlu0 %v3789, 60
      %v5153 = vpop.permute.xlu0 %5152
      %5154 = vrot.lane.b32.xlu0 %v3790, 60
      %v5155 = vpop.permute.xlu0 %5154
      %5156 = vrot.lane.b32.xlu0 %v3791, 60
      %v5157 = vpop.permute.xlu0 %5156
      %5158 = vrot.lane.b32.xlu0 %v3794, 60
      %v5159 = vpop.permute.xlu0 %5158
      %5160 = vrot.lane.b32.xlu0 %v3795, 60
      %v5161 = vpop.permute.xlu0 %5160
      %5162 = vrot.lane.b32.xlu0 %v3796, 60
      %v5163 = vpop.permute.xlu0 %5162
      %5164 = vrot.lane.b32.xlu0 %v3797, 60
      %v5165 = vpop.permute.xlu0 %5164
      %5166 = vrot.lane.b32.xlu0 %v3800, 60
      %v5167 = vpop.permute.xlu0 %5166
      %5168 = vrot.lane.b32.xlu0 %v3801, 60
      %v5169 = vpop.permute.xlu0 %5168
      %5170 = vrot.lane.b32.xlu0 %v3802, 60
      %v5171 = vpop.permute.xlu0 %5170
      %5172 = vrot.lane.b32.xlu0 %v3803, 60
      %v5173 = vpop.permute.xlu0 %5172
      %5174 = vrot.lane.b32.xlu0 %v3806, 60
      %v5175 = vpop.permute.xlu0 %5174
      %5176 = vrot.lane.b32.xlu0 %v3807, 60
      %v5177 = vpop.permute.xlu0 %5176
      %5178 = vrot.lane.b32.xlu0 %v3808, 60
      %v5179 = vpop.permute.xlu0 %5178
      %5180 = vrot.lane.b32.xlu0 %v3809, 60
      %v5181 = vpop.permute.xlu0 %5180
      %5182 = vrot.lane.b32.xlu0 %v3812, 60
      %v5183 = vpop.permute.xlu0 %5182
      %5184 = vrot.lane.b32.xlu0 %v3813, 60
      %v5185 = vpop.permute.xlu0 %5184
      %5186 = vrot.lane.b32.xlu0 %v3814, 60
      %v5187 = vpop.permute.xlu0 %5186
      %5188 = vrot.lane.b32.xlu0 %v3815, 60
      %v5189 = vpop.permute.xlu0 %5188
      %5190 = vrot.lane.b32.xlu0 %v3818, 60
      %v5191 = vpop.permute.xlu0 %5190
      %5192 = vrot.lane.b32.xlu0 %v3819, 60
      %v5193 = vpop.permute.xlu0 %5192
      %5194 = vrot.lane.b32.xlu0 %v3820, 60
      %v5195 = vpop.permute.xlu0 %5194
      %5196 = vrot.lane.b32.xlu0 %v3821, 60
      %v5197 = vpop.permute.xlu0 %5196
      %5198 = vrot.lane.b32.xlu0 %v3824, 60
      %v5199 = vpop.permute.xlu0 %5198
      %5200 = vrot.lane.b32.xlu0 %v3825, 60
      %v5201 = vpop.permute.xlu0 %5200
      %5202 = vrot.lane.b32.xlu0 %v3826, 60
      %v5203 = vpop.permute.xlu0 %5202
      %5204 = vrot.lane.b32.xlu0 %v3827, 60
      %v5205 = vpop.permute.xlu0 %5204
      %5206 = vrot.lane.b32.xlu0 %v3830, 60
      %v5207 = vpop.permute.xlu0 %5206
      %5208 = vrot.lane.b32.xlu0 %v3831, 60
      %v5209 = vpop.permute.xlu0 %5208
      %5210 = vrot.lane.b32.xlu0 %v3832, 60
      %v5211 = vpop.permute.xlu0 %5210
      %5212 = vrot.lane.b32.xlu0 %v3833, 60
      %v5213 = vpop.permute.xlu0 %5212
      %vm5214 = vcmask 490496
      %v5215 = vsel %vm5214, %v5087, %v5089
      %v5216 = vsel %vm5214, %v5091, %v5093
      %v5217 = vsel %vm5214, %v5095, %v5097
      %v5218 = vsel %vm5214, %v5099, %v5101
      %v5219 = vsel %vm5214, %v5103, %v5105
      %v5220 = vsel %vm5214, %v5107, %v5109
      %v5221 = vsel %vm5214, %v5111, %v5113
      %v5222 = vsel %vm5214, %v5115, %v5117
      %v5223 = vsel %vm5214, %v5119, %v5121
      %v5224 = vsel %vm5214, %v5123, %v5125
      %v5225 = vsel %vm5214, %v5127, %v5129
      %v5226 = vsel %vm5214, %v5131, %v5133
      %v5227 = vsel %vm5214, %v5135, %v5137
      %v5228 = vsel %vm5214, %v5139, %v5141
      %v5229 = vsel %vm5214, %v5143, %v5145
      %v5230 = vsel %vm5214, %v5147, %v5149
      %v5231 = vsel %vm5214, %v5151, %v5153
      %v5232 = vsel %vm5214, %v5155, %v5157
      %v5233 = vsel %vm5214, %v5159, %v5161
      %v5234 = vsel %vm5214, %v5163, %v5165
      %v5235 = vsel %vm5214, %v5167, %v5169
      %v5236 = vsel %vm5214, %v5171, %v5173
      %v5237 = vsel %vm5214, %v5175, %v5177
      %v5238 = vsel %vm5214, %v5179, %v5181
      %v5239 = vsel %vm5214, %v5183, %v5185
      %v5240 = vsel %vm5214, %v5187, %v5189
      %v5241 = vsel %vm5214, %v5191, %v5193
      %v5242 = vsel %vm5214, %v5195, %v5197
      %v5243 = vsel %vm5214, %v5199, %v5201
      %v5244 = vsel %vm5214, %v5203, %v5205
      %v5245 = vsel %vm5214, %v5207, %v5209
      %v5246 = vsel %vm5214, %v5211, %v5213
      %v5279 = vsel %vm4218, %v3739, %v4091
      %v5280 = vsel %vm4218, %v3741, %v4095
      %v5281 = vsel %vm4218, %v3745, %v4099
      %v5282 = vsel %vm4218, %v3747, %v4103
      %v5283 = vsel %vm4218, %v3751, %v4107
      %v5284 = vsel %vm4218, %v3753, %v4111
      %v5285 = vsel %vm4218, %v3757, %v4115
      %v5286 = vsel %vm4218, %v3759, %v4119
      %v5287 = vsel %vm4218, %v3763, %v4123
      %v5288 = vsel %vm4218, %v3765, %v4127
      %v5289 = vsel %vm4218, %v3769, %v4131
      %v5290 = vsel %vm4218, %v3771, %v4135
      %v5291 = vsel %vm4218, %v3775, %v4139
      %v5292 = vsel %vm4218, %v3777, %v4143
      %v5293 = vsel %vm4218, %v3781, %v4147
      %v5294 = vsel %vm4218, %v3783, %v4151
      %v5295 = vsel %vm4218, %v3787, %v4155
      %v5296 = vsel %vm4218, %v3789, %v4159
      %v5297 = vsel %vm4218, %v3793, %v4163
      %v5298 = vsel %vm4218, %v3795, %v4167
      %v5299 = vsel %vm4218, %v3799, %v4171
      %v5300 = vsel %vm4218, %v3801, %v4175
      %v5301 = vsel %vm4218, %v3805, %v4179
      %v5302 = vsel %vm4218, %v3807, %v4183
      %v5303 = vsel %vm4218, %v3811, %v4187
      %v5304 = vsel %vm4218, %v3813, %v4191
      %v5305 = vsel %vm4218, %v3817, %v4195
      %v5306 = vsel %vm4218, %v3819, %v4199
      %v5307 = vsel %vm4218, %v3823, %v4203
      %v5308 = vsel %vm4218, %v3825, %v4207
      %v5309 = vsel %vm4218, %v3829, %v4211
      %v5310 = vsel %vm4218, %v3831, %v4215
      %v5311 = vsel %vm4603, %v4219, %v4476
      %v5312 = vsel %vm4603, %v4220, %v4480
      %v5313 = vsel %vm4603, %v4221, %v4484
      %v5314 = vsel %vm4603, %v4222, %v4488
      %v5315 = vsel %vm4603, %v4223, %v4492
      %v5316 = vsel %vm4603, %v4224, %v4496
      %v5317 = vsel %vm4603, %v4225, %v4500
      %v5318 = vsel %vm4603, %v4226, %v4504
      %v5319 = vsel %vm4603, %v4227, %v4508
      %v5320 = vsel %vm4603, %v4228, %v4512
      %v5321 = vsel %vm4603, %v4229, %v4516
      %v5322 = vsel %vm4603, %v4230, %v4520
      %v5323 = vsel %vm4603, %v4231, %v4524
      %v5324 = vsel %vm4603, %v4232, %v4528
      %v5325 = vsel %vm4603, %v4233, %v4532
      %v5326 = vsel %vm4603, %v4234, %v4536
      %v5327 = vsel %vm4603, %v4235, %v4540
      %v5328 = vsel %vm4603, %v4236, %v4544
      %v5329 = vsel %vm4603, %v4237, %v4548
      %v5330 = vsel %vm4603, %v4238, %v4552
      %v5331 = vsel %vm4603, %v4239, %v4556
      %v5332 = vsel %vm4603, %v4240, %v4560
      %v5333 = vsel %vm4603, %v4241, %v4564
      %v5334 = vsel %vm4603, %v4242, %v4568
      %v5335 = vsel %vm4603, %v4243, %v4572
      %v5336 = vsel %vm4603, %v4244, %v4576
      %v5337 = vsel %vm4603, %v4245, %v4580
      %v5338 = vsel %vm4603, %v4246, %v4584
      %v5339 = vsel %vm4603, %v4247, %v4588
      %v5340 = vsel %vm4603, %v4248, %v4592
      %v5341 = vsel %vm4603, %v4249, %v4596
      %v5342 = vsel %vm4603, %v4250, %v4600
      %v5343 = vsel %vm4989, %v4604, %v4862
      %v5344 = vsel %vm4989, %v4605, %v4866
      %v5345 = vsel %vm4989, %v4606, %v4870
      %v5346 = vsel %vm4989, %v4607, %v4874
      %v5347 = vsel %vm4989, %v4608, %v4878
      %v5348 = vsel %vm4989, %v4609, %v4882
      %v5349 = vsel %vm4989, %v4610, %v4886
      %v5350 = vsel %vm4989, %v4611, %v4890
      %v5351 = vsel %vm4989, %v4612, %v4894
      %v5352 = vsel %vm4989, %v4613, %v4898
      %v5353 = vsel %vm4989, %v4614, %v4902
      %v5354 = vsel %vm4989, %v4615, %v4906
      %v5355 = vsel %vm4989, %v4616, %v4910
      %v5356 = vsel %vm4989, %v4617, %v4914
      %v5357 = vsel %vm4989, %v4618, %v4918
      %v5358 = vsel %vm4989, %v4619, %v4922
      %v5359 = vsel %vm4989, %v4620, %v4926
      %v5360 = vsel %vm4989, %v4621, %v4930
      %v5361 = vsel %vm4989, %v4622, %v4934
      %v5362 = vsel %vm4989, %v4623, %v4938
      %v5363 = vsel %vm4989, %v4624, %v4942
      %v5364 = vsel %vm4989, %v4625, %v4946
      %v5365 = vsel %vm4989, %v4626, %v4950
      %v5366 = vsel %vm4989, %v4627, %v4954
      %v5367 = vsel %vm4989, %v4628, %v4958
      %v5368 = vsel %vm4989, %v4629, %v4962
      %v5369 = vsel %vm4989, %v4630, %v4966
      %v5370 = vsel %vm4989, %v4631, %v4970
      %v5371 = vsel %vm4989, %v4632, %v4974
      %v5372 = vsel %vm4989, %v4633, %v4978
      %v5373 = vsel %vm4989, %v4634, %v4982
      %v5374 = vsel %vm4989, %v4635, %v4986
      %v5375 = vsel %vm5214, %v4990, %v5087
      %v5376 = vsel %vm5214, %v4991, %v5091
      %v5377 = vsel %vm5214, %v4992, %v5095
      %v5378 = vsel %vm5214, %v4993, %v5099
      %v5379 = vsel %vm5214, %v4994, %v5103
      %v5380 = vsel %vm5214, %v4995, %v5107
      %v5381 = vsel %vm5214, %v4996, %v5111
      %v5382 = vsel %vm5214, %v4997, %v5115
      %v5383 = vsel %vm5214, %v4998, %v5119
      %v5384 = vsel %vm5214, %v4999, %v5123
      %v5385 = vsel %vm5214, %v5000, %v5127
      %v5386 = vsel %vm5214, %v5001, %v5131
      %v5387 = vsel %vm5214, %v5002, %v5135
      %v5388 = vsel %vm5214, %v5003, %v5139
      %v5389 = vsel %vm5214, %v5004, %v5143
      %v5390 = vsel %vm5214, %v5005, %v5147
      %v5391 = vsel %vm5214, %v5006, %v5151
      %v5392 = vsel %vm5214, %v5007, %v5155
      %v5393 = vsel %vm5214, %v5008, %v5159
      %v5394 = vsel %vm5214, %v5009, %v5163
      %v5395 = vsel %vm5214, %v5010, %v5167
      %v5396 = vsel %vm5214, %v5011, %v5171
      %v5397 = vsel %vm5214, %v5012, %v5175
      %v5398 = vsel %vm5214, %v5013, %v5179
      %v5399 = vsel %vm5214, %v5014, %v5183
      %v5400 = vsel %vm5214, %v5015, %v5187
      %v5401 = vsel %vm5214, %v5016, %v5191
      %v5402 = vsel %vm5214, %v5017, %v5195
      %v5403 = vsel %vm5214, %v5018, %v5199
      %v5404 = vsel %vm5214, %v5019, %v5203
      %v5405 = vsel %vm5214, %v5020, %v5207
      %v5406 = vsel %vm5214, %v5021, %v5211
      %v5407 = vld [vmem:[%s3] sm:$0xff]
      %v5408 = vld [vmem:[%s3 + $0x8] sm:$0xff]
      %v5409 = vld [vmem:[%s3 + $0x10] sm:$0xff]
      %v5410 = vld [vmem:[%s3 + $0x18] sm:$0xff]
      %v5411 = vld [vmem:[%s3 + $0x20] sm:$0xff]
      %v5412 = vld [vmem:[%s3 + $0x28] sm:$0xff]
      %v5413 = vld [vmem:[%s3 + $0x30] sm:$0xff]
      %v5414 = vld [vmem:[%s3 + $0x38] sm:$0xff]
      %v5415 = vld [vmem:[%s3 + $0x40] sm:$0xff]
      %v5416 = vld [vmem:[%s3 + $0x48] sm:$0xff]
      %v5417 = vld [vmem:[%s3 + $0x50] sm:$0xff]
      %v5418 = vld [vmem:[%s3 + $0x58] sm:$0xff]
      %v5419 = vld [vmem:[%s3 + $0x60] sm:$0xff]
      %v5420 = vld [vmem:[%s3 + $0x68] sm:$0xff]
      %v5421 = vld [vmem:[%s3 + $0x70] sm:$0xff]
      %v5422 = vld [vmem:[%s3 + $0x78] sm:$0xff]
      %v5423 = vld [vmem:[%s3 + $0x80] sm:$0xff]
      %v5424 = vld [vmem:[%s3 + $0x88] sm:$0xff]
      %v5425 = vld [vmem:[%s3 + $0x90] sm:$0xff]
      %v5426 = vld [vmem:[%s3 + $0x98] sm:$0xff]
      %v5427 = vld [vmem:[%s3 + $0xa0] sm:$0xff]
      %v5428 = vld [vmem:[%s3 + $0xa8] sm:$0xff]
      %v5429 = vld [vmem:[%s3 + $0xb0] sm:$0xff]
      %v5430 = vld [vmem:[%s3 + $0xb8] sm:$0xff]
      %v5431 = vld [vmem:[%s3 + $0xc0] sm:$0xff]
      %v5432 = vld [vmem:[%s3 + $0xc8] sm:$0xff]
      %v5433 = vld [vmem:[%s3 + $0xd0] sm:$0xff]
      %v5434 = vld [vmem:[%s3 + $0xd8] sm:$0xff]
      %v5435 = vld [vmem:[%s3 + $0xe0] sm:$0xff]
      %v5436 = vld [vmem:[%s3 + $0xe8] sm:$0xff]
      %v5437 = vld [vmem:[%s3 + $0xf0] sm:$0xff]
      %v5438 = vld [vmem:[%s3 + $0xf8] sm:$0xff]
      %v5439 = vld [vmem:[%s3 + $0x100] sm:$0xff]
      %v5440 = vld [vmem:[%s3 + $0x108] sm:$0xff]
      %v5441 = vld [vmem:[%s3 + $0x110] sm:$0xff]
      %v5442 = vld [vmem:[%s3 + $0x118] sm:$0xff]
      %v5443 = vld [vmem:[%s3 + $0x120] sm:$0xff]
      %v5444 = vld [vmem:[%s3 + $0x128] sm:$0xff]
      %v5445 = vld [vmem:[%s3 + $0x130] sm:$0xff]
      %v5446 = vld [vmem:[%s3 + $0x138] sm:$0xff]
      %v5447 = vld [vmem:[%s3 + $0x140] sm:$0xff]
      %v5448 = vld [vmem:[%s3 + $0x148] sm:$0xff]
      %v5449 = vld [vmem:[%s3 + $0x150] sm:$0xff]
      %v5450 = vld [vmem:[%s3 + $0x158] sm:$0xff]
      %v5451 = vld [vmem:[%s3 + $0x160] sm:$0xff]
      %v5452 = vld [vmem:[%s3 + $0x168] sm:$0xff]
      %v5453 = vld [vmem:[%s3 + $0x170] sm:$0xff]
      %v5454 = vld [vmem:[%s3 + $0x178] sm:$0xff]
      %v5455 = vld [vmem:[%s3 + $0x180] sm:$0xff]
      %v5456 = vld [vmem:[%s3 + $0x188] sm:$0xff]
      %v5457 = vld [vmem:[%s3 + $0x190] sm:$0xff]
      %v5458 = vld [vmem:[%s3 + $0x198] sm:$0xff]
      %v5459 = vld [vmem:[%s3 + $0x1a0] sm:$0xff]
      %v5460 = vld [vmem:[%s3 + $0x1a8] sm:$0xff]
      %v5461 = vld [vmem:[%s3 + $0x1b0] sm:$0xff]
      %v5462 = vld [vmem:[%s3 + $0x1b8] sm:$0xff]
      %v5463 = vld [vmem:[%s3 + $0x1c0] sm:$0xff]
      %v5464 = vld [vmem:[%s3 + $0x1c8] sm:$0xff]
      %v5465 = vld [vmem:[%s3 + $0x1d0] sm:$0xff]
      %v5466 = vld [vmem:[%s3 + $0x1d8] sm:$0xff]
      %v5467 = vld [vmem:[%s3 + $0x1e0] sm:$0xff]
      %v5468 = vld [vmem:[%s3 + $0x1e8] sm:$0xff]
      %v5469 = vld [vmem:[%s3 + $0x1f0] sm:$0xff]
      %v5470 = vld [vmem:[%s3 + $0x1f8] sm:$0xff]
      %v5471 = vld [vmem:[%s3 + $0x200] sm:$0xff]
      %v5472 = vld [vmem:[%s3 + $0x208] sm:$0xff]
      %v5473 = vld [vmem:[%s3 + $0x210] sm:$0xff]
      %v5474 = vld [vmem:[%s3 + $0x218] sm:$0xff]
      %v5475 = vld [vmem:[%s3 + $0x220] sm:$0xff]
      %v5476 = vld [vmem:[%s3 + $0x228] sm:$0xff]
      %v5477 = vld [vmem:[%s3 + $0x230] sm:$0xff]
      %v5478 = vld [vmem:[%s3 + $0x238] sm:$0xff]
      %v5479 = vld [vmem:[%s3 + $0x240] sm:$0xff]
      %v5480 = vld [vmem:[%s3 + $0x248] sm:$0xff]
      %v5481 = vld [vmem:[%s3 + $0x250] sm:$0xff]
      %v5482 = vld [vmem:[%s3 + $0x258] sm:$0xff]
      %v5483 = vld [vmem:[%s3 + $0x260] sm:$0xff]
      %v5484 = vld [vmem:[%s3 + $0x268] sm:$0xff]
      %v5485 = vld [vmem:[%s3 + $0x270] sm:$0xff]
      %v5486 = vld [vmem:[%s3 + $0x278] sm:$0xff]
      %v5487 = vld [vmem:[%s3 + $0x280] sm:$0xff]
      %v5488 = vld [vmem:[%s3 + $0x288] sm:$0xff]
      %v5489 = vld [vmem:[%s3 + $0x290] sm:$0xff]
      %v5490 = vld [vmem:[%s3 + $0x298] sm:$0xff]
      %v5491 = vld [vmem:[%s3 + $0x2a0] sm:$0xff]
      %v5492 = vld [vmem:[%s3 + $0x2a8] sm:$0xff]
      %v5493 = vld [vmem:[%s3 + $0x2b0] sm:$0xff]
      %v5494 = vld [vmem:[%s3 + $0x2b8] sm:$0xff]
      %v5495 = vld [vmem:[%s3 + $0x2c0] sm:$0xff]
      %v5496 = vld [vmem:[%s3 + $0x2c8] sm:$0x7]
      %v5497 = vld [vmem:[%s4] sm:$0x1]
      %v5499 = vlaneseq
      %v5500 = vshrl.u32 %v5499, 7
      %v5501 = vsub.s32 0, %v5500
      %v5502 = vrot.slane %v5497, %v5501
      %vm5504 = vcmask 613376
      %v5505 = vsel %vm5504, %v5215, 0
      %v5507 = vsel %vm5504, %v5216, 0
      %v5509 = vsel %vm5504, %v5217, 0
      %v5511 = vsel %vm5504, %v5218, 0
      %v5513 = vsel %vm5504, %v5219, 0
      %v5515 = vsel %vm5504, %v5220, 0
      %v5517 = vsel %vm5504, %v5221, 0
      %v5519 = vsel %vm5504, %v5222, 0
      %v5521 = vsel %vm5504, %v5223, 0
      %v5523 = vsel %vm5504, %v5224, 0
      %v5525 = vsel %vm5504, %v5225, 0
      %v5527 = vsel %vm5504, %v5226, 0
      %v5529 = vsel %vm5504, %v5227, 0
      %v5531 = vsel %vm5504, %v5228, 0
      %v5533 = vsel %vm5504, %v5229, 0
      %v5535 = vsel %vm5504, %v5230, 0
      %v5537 = vsel %vm5504, %v5231, 0
      %v5539 = vsel %vm5504, %v5232, 0
      %v5541 = vsel %vm5504, %v5233, 0
      %v5543 = vsel %vm5504, %v5234, 0
      %v5545 = vsel %vm5504, %v5235, 0
      %v5547 = vsel %vm5504, %v5236, 0
      %v5549 = vsel %vm5504, %v5237, 0
      %v5551 = vsel %vm5504, %v5238, 0
      %v5553 = vsel %vm5504, %v5239, 0
      %v5555 = vsel %vm5504, %v5240, 0
      %v5557 = vsel %vm5504, %v5241, 0
      %v5559 = vsel %vm5504, %v5242, 0
      %v5561 = vsel %vm5504, %v5243, 0
      %v5563 = vsel %vm5504, %v5244, 0
      %v5565 = vsel %vm5504, %v5245, 0
      %v5567 = vsel %vm5504, %v5246, 0
      %vm5569 = vcmask 1042432
      %v5571 = vsel %vm5569, %v5496, 0
      %5573 = vmatprep.subr.mxu0 0.0
      %5574 = vmatpush1.msra.mxu0 %v5422
      %5575 = vmatprep.subr.mxu0 0.0
      %5576 = vmatpush1.msra.mxu0 %v5421
      %5577 = vmatprep.subr.mxu0 0.0
      %5578 = vmatpush1.msra.mxu0 %v5420
      %5579 = vmatprep.subr.mxu0 0.0
      %5580 = vmatpush1.msra.mxu0 %v5419
      %5581 = vmatprep.subr.mxu0 0.0
      %5582 = vmatpush1.msra.mxu0 %v5418
      %5583 = vmatprep.subr.mxu0 0.0
      %5584 = vmatpush1.msra.mxu0 %v5417
      %5585 = vmatprep.subr.mxu0 0.0
      %5586 = vmatpush1.msra.mxu0 %v5416
      %5587 = vmatprep.subr.mxu0 0.0
      %5588 = vmatpush1.msra.mxu0 %v5415
      %5589 = vmatprep.subr.mxu0 0.0
      %5590 = vmatpush1.msra.mxu0 %v5414
      %5591 = vmatprep.subr.mxu0 0.0
      %5592 = vmatpush1.msra.mxu0 %v5413
      %5593 = vmatprep.subr.mxu0 0.0
      %5594 = vmatpush1.msra.mxu0 %v5412
      %5595 = vmatprep.subr.mxu0 0.0
      %5596 = vmatpush1.msra.mxu0 %v5411
      %5597 = vmatprep.subr.mxu0 0.0
      %5598 = vmatpush1.msra.mxu0 %v5410
      %5599 = vmatprep.subr.mxu0 0.0
      %5600 = vmatpush1.msra.mxu0 %v5409
      %5601 = vmatprep.subr.mxu0 0.0
      %5602 = vmatpush1.msra.mxu0 %v5408
      %5603 = vmatprep.subr.mxu0 0.0
      %5604 = vmatpush1.msra.mxu0 %v5407
      %5605 = vmatprep.subr.mxu0 0.0
      %5606 = vmatpush2.msra.mxu0 %v5438
      %5607 = vmatprep.subr.mxu0 0.0
      %5608 = vmatpush2.msra.mxu0 %v5437
      %5609 = vmatprep.subr.mxu0 0.0
      %5610 = vmatpush2.msra.mxu0 %v5436
      %5611 = vmatprep.subr.mxu0 0.0
      %5612 = vmatpush2.msra.mxu0 %v5435
      %5613 = vmatprep.subr.mxu0 0.0
      %5614 = vmatpush2.msra.mxu0 %v5434
      %5615 = vmatprep.subr.mxu0 0.0
      %5616 = vmatpush2.msra.mxu0 %v5433
      %5617 = vmatprep.subr.mxu0 0.0
      %5618 = vmatpush2.msra.mxu0 %v5432
      %5619 = vmatprep.subr.mxu0 0.0
      %5620 = vmatpush2.msra.mxu0 %v5431
      %5621 = vmatprep.subr.mxu0 0.0
      %5622 = vmatpush2.msra.mxu0 %v5430
      %5623 = vmatprep.subr.mxu0 0.0
      %5624 = vmatpush2.msra.mxu0 %v5429
      %5625 = vmatprep.subr.mxu0 0.0
      %5626 = vmatpush2.msra.mxu0 %v5428
      %5627 = vmatprep.subr.mxu0 0.0
      %5628 = vmatpush2.msra.mxu0 %v5427
      %5629 = vmatprep.subr.mxu0 0.0
      %5630 = vmatpush2.msra.mxu0 %v5426
      %5631 = vmatprep.subr.mxu0 0.0
      %5632 = vmatpush2.msra.mxu0 %v5425
      %5633 = vmatprep.subr.mxu0 0.0
      %5634 = vmatpush2.msra.mxu0 %v5424
      %5635 = vmatprep.subr.mxu0 0.0
      %5636 = vmatpush2.msra.mxu0 %v5423
      %5637 = vmatprep.mubr.f32.mxu0 %v5279
      %5638 = vmatmul.mubr.f32.gmra.mxu0 %v3738
      %v5639 = vpop.f32.mrf.mxu0
      %v5640 = vadd.f32 %v5502, %v5639
      %v5641 = vpop.f32.mrf.mxu0
      %5642 = vmatprep.mubr.f32.mxu0 %v5280
      %5643 = vmatmul.mubr.f32.gmra.mxu0 %v3740
      %v5644 = vpop.f32.mrf.mxu0
      %v5645 = vadd.f32 %v5502, %v5644
      %v5646 = vpop.f32.mrf.mxu0
      %5647 = vmatprep.mubr.f32.mxu0 %v5281
      %5648 = vmatmul.mubr.f32.gmra.mxu0 %v3744
      %v5649 = vpop.f32.mrf.mxu0
      %v5650 = vadd.f32 %v5502, %v5649
      %v5651 = vpop.f32.mrf.mxu0
      %5652 = vmatprep.mubr.f32.mxu0 %v5282
      %5653 = vmatmul.mubr.f32.gmra.mxu0 %v3746
      %v5654 = vpop.f32.mrf.mxu0
      %v5655 = vadd.f32 %v5502, %v5654
      %v5656 = vpop.f32.mrf.mxu0
      %5657 = vmatprep.mubr.f32.mxu0 %v5283
      %5658 = vmatmul.mubr.f32.gmra.mxu0 %v3750
      %v5659 = vpop.f32.mrf.mxu0
      %v5660 = vadd.f32 %v5502, %v5659
      %v5661 = vpop.f32.mrf.mxu0
      %5662 = vmatprep.mubr.f32.mxu0 %v5284
      %5663 = vmatmul.mubr.f32.gmra.mxu0 %v3752
      %v5664 = vpop.f32.mrf.mxu0
      %v5665 = vadd.f32 %v5502, %v5664
      %v5666 = vpop.f32.mrf.mxu0
      %5667 = vmatprep.mubr.f32.mxu0 %v5285
      %5668 = vmatmul.mubr.f32.gmra.mxu0 %v3756
      %v5669 = vpop.f32.mrf.mxu0
      %v5670 = vadd.f32 %v5502, %v5669
      %v5671 = vpop.f32.mrf.mxu0
      %5672 = vmatprep.mubr.f32.mxu0 %v5286
      %5673 = vmatmul.mubr.f32.gmra.mxu0 %v3758
      %v5674 = vpop.f32.mrf.mxu0
      %v5675 = vadd.f32 %v5502, %v5674
      %v5676 = vpop.f32.mrf.mxu0
      %5677 = vmatprep.mubr.f32.mxu0 %v5287
      %5678 = vmatmul.mubr.f32.gmra.mxu0 %v3762
      %v5679 = vpop.f32.mrf.mxu0
      %v5680 = vadd.f32 %v5502, %v5679
      %v5681 = vpop.f32.mrf.mxu0
      %5682 = vmatprep.mubr.f32.mxu0 %v5288
      %5683 = vmatmul.mubr.f32.gmra.mxu0 %v3764
      %v5684 = vpop.f32.mrf.mxu0
      %v5685 = vadd.f32 %v5502, %v5684
      %v5686 = vpop.f32.mrf.mxu0
      %5687 = vmatprep.mubr.f32.mxu0 %v5289
      %5688 = vmatmul.mubr.f32.gmra.mxu0 %v3768
      %v5689 = vpop.f32.mrf.mxu0
      %v5690 = vadd.f32 %v5502, %v5689
      %v5691 = vpop.f32.mrf.mxu0
      %5692 = vmatprep.mubr.f32.mxu0 %v5290
      %5693 = vmatmul.mubr.f32.gmra.mxu0 %v3770
      %v5694 = vpop.f32.mrf.mxu0
      %v5695 = vadd.f32 %v5502, %v5694
      %v5696 = vpop.f32.mrf.mxu0
      %5697 = vmatprep.mubr.f32.mxu0 %v5291
      %5698 = vmatmul.mubr.f32.gmra.mxu0 %v3774
      %v5699 = vpop.f32.mrf.mxu0
      %v5700 = vadd.f32 %v5502, %v5699
      %v5701 = vpop.f32.mrf.mxu0
      %5702 = vmatprep.mubr.f32.mxu0 %v5292
      %5703 = vmatmul.mubr.f32.gmra.mxu0 %v3776
      %v5704 = vpop.f32.mrf.mxu0
      %v5705 = vadd.f32 %v5502, %v5704
      %v5706 = vpop.f32.mrf.mxu0
      %5707 = vmatprep.mubr.f32.mxu0 %v5293
      %5708 = vmatmul.mubr.f32.gmra.mxu0 %v3780
      %v5709 = vpop.f32.mrf.mxu0
      %v5710 = vadd.f32 %v5502, %v5709
      %v5711 = vpop.f32.mrf.mxu0
      %5712 = vmatprep.mubr.f32.mxu0 %v5294
      %5713 = vmatmul.mubr.f32.gmra.mxu0 %v3782
      %v5714 = vpop.f32.mrf.mxu0
      %v5715 = vadd.f32 %v5502, %v5714
      %v5716 = vpop.f32.mrf.mxu0
      %5717 = vmatprep.mubr.f32.mxu0 %v5295
      %5718 = vmatmul.mubr.f32.gmra.mxu0 %v3786
      %v5719 = vpop.f32.mrf.mxu0
      %v5720 = vadd.f32 %v5502, %v5719
      %v5721 = vpop.f32.mrf.mxu0
      %5722 = vmatprep.mubr.f32.mxu0 %v5296
      %5723 = vmatmul.mubr.f32.gmra.mxu0 %v3788
      %v5724 = vpop.f32.mrf.mxu0
      %v5725 = vadd.f32 %v5502, %v5724
      %v5726 = vpop.f32.mrf.mxu0
      %5727 = vmatprep.mubr.f32.mxu0 %v5297
      %5728 = vmatmul.mubr.f32.gmra.mxu0 %v3792
      %v5729 = vpop.f32.mrf.mxu0
      %v5730 = vadd.f32 %v5502, %v5729
      %v5731 = vpop.f32.mrf.mxu0
      %5732 = vmatprep.mubr.f32.mxu0 %v5298
      %5733 = vmatmul.mubr.f32.gmra.mxu0 %v3794
      %v5734 = vpop.f32.mrf.mxu0
      %v5735 = vadd.f32 %v5502, %v5734
      %v5736 = vpop.f32.mrf.mxu0
      %5737 = vmatprep.mubr.f32.mxu0 %v5299
      %5738 = vmatmul.mubr.f32.gmra.mxu0 %v3798
      %v5739 = vpop.f32.mrf.mxu0
      %v5740 = vadd.f32 %v5502, %v5739
      %v5741 = vpop.f32.mrf.mxu0
      %5742 = vmatprep.mubr.f32.mxu0 %v5300
      %5743 = vmatmul.mubr.f32.gmra.mxu0 %v3800
      %v5744 = vpop.f32.mrf.mxu0
      %v5745 = vadd.f32 %v5502, %v5744
      %v5746 = vpop.f32.mrf.mxu0
      %5747 = vmatprep.mubr.f32.mxu0 %v5301
      %5748 = vmatmul.mubr.f32.gmra.mxu0 %v3804
      %v5749 = vpop.f32.mrf.mxu0
      %v5750 = vadd.f32 %v5502, %v5749
      %v5751 = vpop.f32.mrf.mxu0
      %5752 = vmatprep.mubr.f32.mxu0 %v5302
      %5753 = vmatmul.mubr.f32.gmra.mxu0 %v3806
      %v5754 = vpop.f32.mrf.mxu0
      %v5755 = vadd.f32 %v5502, %v5754
      %v5756 = vpop.f32.mrf.mxu0
      %5757 = vmatprep.mubr.f32.mxu0 %v5303
      %5758 = vmatmul.mubr.f32.gmra.mxu0 %v3810
      %v5759 = vpop.f32.mrf.mxu0
      %v5760 = vadd.f32 %v5502, %v5759
      %v5761 = vpop.f32.mrf.mxu0
      %5762 = vmatprep.mubr.f32.mxu0 %v5304
      %5763 = vmatmul.mubr.f32.gmra.mxu0 %v3812
      %v5764 = vpop.f32.mrf.mxu0
      %v5765 = vadd.f32 %v5502, %v5764
      %v5766 = vpop.f32.mrf.mxu0
      %5767 = vmatprep.mubr.f32.mxu0 %v5305
      %5768 = vmatmul.mubr.f32.gmra.mxu0 %v3816
      %v5769 = vpop.f32.mrf.mxu0
      %v5770 = vadd.f32 %v5502, %v5769
      %v5771 = vpop.f32.mrf.mxu0
      %5772 = vmatprep.mubr.f32.mxu0 %v5306
      %5773 = vmatmul.mubr.f32.gmra.mxu0 %v3818
      %v5774 = vpop.f32.mrf.mxu0
      %v5775 = vadd.f32 %v5502, %v5774
      %v5776 = vpop.f32.mrf.mxu0
      %5777 = vmatprep.mubr.f32.mxu0 %v5307
      %5778 = vmatmul.mubr.f32.gmra.mxu0 %v3822
      %v5779 = vpop.f32.mrf.mxu0
      %v5780 = vadd.f32 %v5502, %v5779
      %v5781 = vpop.f32.mrf.mxu0
      %5782 = vmatprep.mubr.f32.mxu0 %v5308
      %5783 = vmatmul.mubr.f32.gmra.mxu0 %v3824
      %v5784 = vpop.f32.mrf.mxu0
      %v5785 = vadd.f32 %v5502, %v5784
      %v5786 = vpop.f32.mrf.mxu0
      %5787 = vmatprep.mubr.f32.mxu0 %v5309
      %5788 = vmatmul.mubr.f32.gmra.mxu0 %v3828
      %v5789 = vpop.f32.mrf.mxu0
      %v5790 = vadd.f32 %v5502, %v5789
      %v5791 = vpop.f32.mrf.mxu0
      %5792 = vmatprep.mubr.f32.mxu0 %v5310
      %5793 = vmatmul.mubr.f32.gmra.mxu0 %v3830
      %v5794 = vpop.f32.mrf.mxu0
      %v5795 = vadd.f32 %v5502, %v5794
      %v5796 = vpop.f32.mrf.mxu0
      %5797 = vdwg.mxu0
      %5798 = vmatprep.subr.mxu0 0.0
      %5799 = vmatpush1.msra.mxu0 %v5454
      %5800 = vmatprep.subr.mxu0 0.0
      %5801 = vmatpush1.msra.mxu0 %v5453
      %5802 = vmatprep.subr.mxu0 0.0
      %5803 = vmatpush1.msra.mxu0 %v5452
      %5804 = vmatprep.subr.mxu0 0.0
      %5805 = vmatpush1.msra.mxu0 %v5451
      %5806 = vmatprep.subr.mxu0 0.0
      %5807 = vmatpush1.msra.mxu0 %v5450
      %5808 = vmatprep.subr.mxu0 0.0
      %5809 = vmatpush1.msra.mxu0 %v5449
      %5810 = vmatprep.subr.mxu0 0.0
      %5811 = vmatpush1.msra.mxu0 %v5448
      %5812 = vmatprep.subr.mxu0 0.0
      %5813 = vmatpush1.msra.mxu0 %v5447
      %5814 = vmatprep.subr.mxu0 0.0
      %5815 = vmatpush1.msra.mxu0 %v5446
      %5816 = vmatprep.subr.mxu0 0.0
      %5817 = vmatpush1.msra.mxu0 %v5445
      %5818 = vmatprep.subr.mxu0 0.0
      %5819 = vmatpush1.msra.mxu0 %v5444
      %5820 = vmatprep.subr.mxu0 0.0
      %5821 = vmatpush1.msra.mxu0 %v5443
      %5822 = vmatprep.subr.mxu0 0.0
      %5823 = vmatpush1.msra.mxu0 %v5442
      %5824 = vmatprep.subr.mxu0 0.0
      %5825 = vmatpush1.msra.mxu0 %v5441
      %5826 = vmatprep.subr.mxu0 0.0
      %5827 = vmatpush1.msra.mxu0 %v5440
      %5828 = vmatprep.subr.mxu0 0.0
      %5829 = vmatpush1.msra.mxu0 %v5439
      %5830 = vmatprep.subr.mxu0 0.0
      %5831 = vmatpush2.msra.mxu0 %v5470
      %5832 = vmatprep.subr.mxu0 0.0
      %5833 = vmatpush2.msra.mxu0 %v5469
      %5834 = vmatprep.subr.mxu0 0.0
      %5835 = vmatpush2.msra.mxu0 %v5468
      %5836 = vmatprep.subr.mxu0 0.0
      %5837 = vmatpush2.msra.mxu0 %v5467
      %5838 = vmatprep.subr.mxu0 0.0
      %5839 = vmatpush2.msra.mxu0 %v5466
      %5840 = vmatprep.subr.mxu0 0.0
      %5841 = vmatpush2.msra.mxu0 %v5465
      %5842 = vmatprep.subr.mxu0 0.0
      %5843 = vmatpush2.msra.mxu0 %v5464
      %5844 = vmatprep.subr.mxu0 0.0
      %5845 = vmatpush2.msra.mxu0 %v5463
      %5846 = vmatprep.subr.mxu0 0.0
      %5847 = vmatpush2.msra.mxu0 %v5462
      %5848 = vmatprep.subr.mxu0 0.0
      %5849 = vmatpush2.msra.mxu0 %v5461
      %5850 = vmatprep.subr.mxu0 0.0
      %5851 = vmatpush2.msra.mxu0 %v5460
      %5852 = vmatprep.subr.mxu0 0.0
      %5853 = vmatpush2.msra.mxu0 %v5459
      %5854 = vmatprep.subr.mxu0 0.0
      %5855 = vmatpush2.msra.mxu0 %v5458
      %5856 = vmatprep.subr.mxu0 0.0
      %5857 = vmatpush2.msra.mxu0 %v5457
      %5858 = vmatprep.subr.mxu0 0.0
      %5859 = vmatpush2.msra.mxu0 %v5456
      %5860 = vmatprep.subr.mxu0 0.0
      %5861 = vmatpush2.msra.mxu0 %v5455
      %5862 = vmatprep.mubr.f32.mxu0 %v5343
      %5863 = vmatmul.mubr.f32.gmra.mxu0 %v5311
      %v5864 = vpop.f32.mrf.mxu0
      %v5865 = vadd.f32 %v5640, %v5864
      %v5866 = vpop.f32.mrf.mxu0
      %5867 = vmatprep.mubr.f32.mxu0 %v5344
      %5868 = vmatmul.mubr.f32.gmra.mxu0 %v5312
      %v5869 = vpop.f32.mrf.mxu0
      %v5870 = vadd.f32 %v5645, %v5869
      %v5871 = vpop.f32.mrf.mxu0
      %5872 = vmatprep.mubr.f32.mxu0 %v5345
      %5873 = vmatmul.mubr.f32.gmra.mxu0 %v5313
      %v5874 = vpop.f32.mrf.mxu0
      %v5875 = vadd.f32 %v5650, %v5874
      %v5876 = vpop.f32.mrf.mxu0
      %5877 = vmatprep.mubr.f32.mxu0 %v5346
      %5878 = vmatmul.mubr.f32.gmra.mxu0 %v5314
      %v5879 = vpop.f32.mrf.mxu0
      %v5880 = vadd.f32 %v5655, %v5879
      %v5881 = vpop.f32.mrf.mxu0
      %5882 = vmatprep.mubr.f32.mxu0 %v5347
      %5883 = vmatmul.mubr.f32.gmra.mxu0 %v5315
      %v5884 = vpop.f32.mrf.mxu0
      %v5885 = vadd.f32 %v5660, %v5884
      %v5886 = vpop.f32.mrf.mxu0
      %5887 = vmatprep.mubr.f32.mxu0 %v5348
      %5888 = vmatmul.mubr.f32.gmra.mxu0 %v5316
      %v5889 = vpop.f32.mrf.mxu0
      %v5890 = vadd.f32 %v5665, %v5889
      %v5891 = vpop.f32.mrf.mxu0
      %5892 = vmatprep.mubr.f32.mxu0 %v5349
      %5893 = vmatmul.mubr.f32.gmra.mxu0 %v5317
      %v5894 = vpop.f32.mrf.mxu0
      %v5895 = vadd.f32 %v5670, %v5894
      %v5896 = vpop.f32.mrf.mxu0
      %5897 = vmatprep.mubr.f32.mxu0 %v5350
      %5898 = vmatmul.mubr.f32.gmra.mxu0 %v5318
      %v5899 = vpop.f32.mrf.mxu0
      %v5900 = vadd.f32 %v5675, %v5899
      %v5901 = vpop.f32.mrf.mxu0
      %5902 = vmatprep.mubr.f32.mxu0 %v5351
      %5903 = vmatmul.mubr.f32.gmra.mxu0 %v5319
      %v5904 = vpop.f32.mrf.mxu0
      %v5905 = vadd.f32 %v5680, %v5904
      %v5906 = vpop.f32.mrf.mxu0
      %5907 = vmatprep.mubr.f32.mxu0 %v5352
      %5908 = vmatmul.mubr.f32.gmra.mxu0 %v5320
      %v5909 = vpop.f32.mrf.mxu0
      %v5910 = vadd.f32 %v5685, %v5909
      %v5911 = vpop.f32.mrf.mxu0
      %5912 = vmatprep.mubr.f32.mxu0 %v5353
      %5913 = vmatmul.mubr.f32.gmra.mxu0 %v5321
      %v5914 = vpop.f32.mrf.mxu0
      %v5915 = vadd.f32 %v5690, %v5914
      %v5916 = vpop.f32.mrf.mxu0
      %5917 = vmatprep.mubr.f32.mxu0 %v5354
      %5918 = vmatmul.mubr.f32.gmra.mxu0 %v5322
      %v5919 = vpop.f32.mrf.mxu0
      %v5920 = vadd.f32 %v5695, %v5919
      %v5921 = vpop.f32.mrf.mxu0
      %5922 = vmatprep.mubr.f32.mxu0 %v5355
      %5923 = vmatmul.mubr.f32.gmra.mxu0 %v5323
      %v5924 = vpop.f32.mrf.mxu0
      %v5925 = vadd.f32 %v5700, %v5924
      %v5926 = vpop.f32.mrf.mxu0
      %5927 = vmatprep.mubr.f32.mxu0 %v5356
      %5928 = vmatmul.mubr.f32.gmra.mxu0 %v5324
      %v5929 = vpop.f32.mrf.mxu0
      %v5930 = vadd.f32 %v5705, %v5929
      %v5931 = vpop.f32.mrf.mxu0
      %5932 = vmatprep.mubr.f32.mxu0 %v5357
      %5933 = vmatmul.mubr.f32.gmra.mxu0 %v5325
      %v5934 = vpop.f32.mrf.mxu0
      %v5935 = vadd.f32 %v5710, %v5934
      %v5936 = vpop.f32.mrf.mxu0
      %5937 = vmatprep.mubr.f32.mxu0 %v5358
      %5938 = vmatmul.mubr.f32.gmra.mxu0 %v5326
      %v5939 = vpop.f32.mrf.mxu0
      %v5940 = vadd.f32 %v5715, %v5939
      %v5941 = vpop.f32.mrf.mxu0
      %5942 = vmatprep.mubr.f32.mxu0 %v5359
      %5943 = vmatmul.mubr.f32.gmra.mxu0 %v5327
      %v5944 = vpop.f32.mrf.mxu0
      %v5945 = vadd.f32 %v5720, %v5944
      %v5946 = vpop.f32.mrf.mxu0
      %5947 = vmatprep.mubr.f32.mxu0 %v5360
      %5948 = vmatmul.mubr.f32.gmra.mxu0 %v5328
      %v5949 = vpop.f32.mrf.mxu0
      %v5950 = vadd.f32 %v5725, %v5949
      %v5951 = vpop.f32.mrf.mxu0
      %5952 = vmatprep.mubr.f32.mxu0 %v5361
      %5953 = vmatmul.mubr.f32.gmra.mxu0 %v5329
      %v5954 = vpop.f32.mrf.mxu0
      %v5955 = vadd.f32 %v5730, %v5954
      %v5956 = vpop.f32.mrf.mxu0
      %5957 = vmatprep.mubr.f32.mxu0 %v5362
      %5958 = vmatmul.mubr.f32.gmra.mxu0 %v5330
      %v5959 = vpop.f32.mrf.mxu0
      %v5960 = vadd.f32 %v5735, %v5959
      %v5961 = vpop.f32.mrf.mxu0
      %5962 = vmatprep.mubr.f32.mxu0 %v5363
      %5963 = vmatmul.mubr.f32.gmra.mxu0 %v5331
      %v5964 = vpop.f32.mrf.mxu0
      %v5965 = vadd.f32 %v5740, %v5964
      %v5966 = vpop.f32.mrf.mxu0
      %5967 = vmatprep.mubr.f32.mxu0 %v5364
      %5968 = vmatmul.mubr.f32.gmra.mxu0 %v5332
      %v5969 = vpop.f32.mrf.mxu0
      %v5970 = vadd.f32 %v5745, %v5969
      %v5971 = vpop.f32.mrf.mxu0
      %5972 = vmatprep.mubr.f32.mxu0 %v5365
      %5973 = vmatmul.mubr.f32.gmra.mxu0 %v5333
      %v5974 = vpop.f32.mrf.mxu0
      %v5975 = vadd.f32 %v5750, %v5974
      %v5976 = vpop.f32.mrf.mxu0
      %5977 = vmatprep.mubr.f32.mxu0 %v5366
      %5978 = vmatmul.mubr.f32.gmra.mxu0 %v5334
      %v5979 = vpop.f32.mrf.mxu0
      %v5980 = vadd.f32 %v5755, %v5979
      %v5981 = vpop.f32.mrf.mxu0
      %5982 = vmatprep.mubr.f32.mxu0 %v5367
      %5983 = vmatmul.mubr.f32.gmra.mxu0 %v5335
      %v5984 = vpop.f32.mrf.mxu0
      %v5985 = vadd.f32 %v5760, %v5984
      %v5986 = vpop.f32.mrf.mxu0
      %5987 = vmatprep.mubr.f32.mxu0 %v5368
      %5988 = vmatmul.mubr.f32.gmra.mxu0 %v5336
      %v5989 = vpop.f32.mrf.mxu0
      %v5990 = vadd.f32 %v5765, %v5989
      %v5991 = vpop.f32.mrf.mxu0
      %5992 = vmatprep.mubr.f32.mxu0 %v5369
      %5993 = vmatmul.mubr.f32.gmra.mxu0 %v5337
      %v5994 = vpop.f32.mrf.mxu0
      %v5995 = vadd.f32 %v5770, %v5994
      %v5996 = vpop.f32.mrf.mxu0
      %5997 = vmatprep.mubr.f32.mxu0 %v5370
      %5998 = vmatmul.mubr.f32.gmra.mxu0 %v5338
      %v5999 = vpop.f32.mrf.mxu0
      %v6000 = vadd.f32 %v5775, %v5999
      %v6001 = vpop.f32.mrf.mxu0
      %6002 = vmatprep.mubr.f32.mxu0 %v5371
      %6003 = vmatmul.mubr.f32.gmra.mxu0 %v5339
      %v6004 = vpop.f32.mrf.mxu0
      %v6005 = vadd.f32 %v5780, %v6004
      %v6006 = vpop.f32.mrf.mxu0
      %6007 = vmatprep.mubr.f32.mxu0 %v5372
      %6008 = vmatmul.mubr.f32.gmra.mxu0 %v5340
      %v6009 = vpop.f32.mrf.mxu0
      %v6010 = vadd.f32 %v5785, %v6009
      %v6011 = vpop.f32.mrf.mxu0
      %6012 = vmatprep.mubr.f32.mxu0 %v5373
      %6013 = vmatmul.mubr.f32.gmra.mxu0 %v5341
      %v6014 = vpop.f32.mrf.mxu0
      %v6015 = vadd.f32 %v5790, %v6014
      %v6016 = vpop.f32.mrf.mxu0
      %6017 = vmatprep.mubr.f32.mxu0 %v5374
      %6018 = vmatmul.mubr.f32.gmra.mxu0 %v5342
      %v6019 = vpop.f32.mrf.mxu0
      %v6020 = vadd.f32 %v5795, %v6019
      %v6021 = vpop.f32.mrf.mxu0
      %6022 = vdwg.mxu0
      %6023 = vmatprep.subr.mxu0 0.0
      %6024 = vmatpush1.msra.mxu0 %v5486
      %6025 = vmatprep.subr.mxu0 0.0
      %6026 = vmatpush1.msra.mxu0 %v5485
      %6027 = vmatprep.subr.mxu0 0.0
      %6028 = vmatpush1.msra.mxu0 %v5484
      %6029 = vmatprep.subr.mxu0 0.0
      %6030 = vmatpush1.msra.mxu0 %v5483
      %6031 = vmatprep.subr.mxu0 0.0
      %6032 = vmatpush1.msra.mxu0 %v5482
      %6033 = vmatprep.subr.mxu0 0.0
      %6034 = vmatpush1.msra.mxu0 %v5481
      %6035 = vmatprep.subr.mxu0 0.0
      %6036 = vmatpush1.msra.mxu0 %v5480
      %6037 = vmatprep.subr.mxu0 0.0
      %6038 = vmatpush1.msra.mxu0 %v5479
      %6039 = vmatprep.subr.mxu0 0.0
      %6040 = vmatpush1.msra.mxu0 %v5478
      %6041 = vmatprep.subr.mxu0 0.0
      %6042 = vmatpush1.msra.mxu0 %v5477
      %6043 = vmatprep.subr.mxu0 0.0
      %6044 = vmatpush1.msra.mxu0 %v5476
      %6045 = vmatprep.subr.mxu0 0.0
      %6046 = vmatpush1.msra.mxu0 %v5475
      %6047 = vmatprep.subr.mxu0 0.0
      %6048 = vmatpush1.msra.mxu0 %v5474
      %6049 = vmatprep.subr.mxu0 0.0
      %6050 = vmatpush1.msra.mxu0 %v5473
      %6051 = vmatprep.subr.mxu0 0.0
      %6052 = vmatpush1.msra.mxu0 %v5472
      %6053 = vmatprep.subr.mxu0 0.0
      %6054 = vmatpush1.msra.mxu0 %v5471
      %6055 = vmatprep.subr.mxu0 0.0
      %6056 = vmatpush2.msra.mxu0 0.0
      %6057 = vmatprep.subr.mxu0 0.0
      %6058 = vmatpush2.msra.mxu0 0.0
      %6059 = vmatprep.subr.mxu0 0.0
      %6060 = vmatpush2.msra.mxu0 0.0
      %6061 = vmatprep.subr.mxu0 0.0
      %6062 = vmatpush2.msra.mxu0 0.0
      %6063 = vmatprep.subr.mxu0 0.0
      %6064 = vmatpush2.msra.mxu0 0.0
      %6065 = vmatprep.subr.mxu0 0.0
      %6066 = vmatpush2.msra.mxu0 0.0
      %6067 = vmatprep.subr.mxu0 0.0
      %6068 = vmatpush2.msra.mxu0 %v5571
      %6069 = vmatprep.subr.mxu0 0.0
      %6070 = vmatpush2.msra.mxu0 %v5495
      %6071 = vmatprep.subr.mxu0 0.0
      %6072 = vmatpush2.msra.mxu0 %v5494
      %6073 = vmatprep.subr.mxu0 0.0
      %6074 = vmatpush2.msra.mxu0 %v5493
      %6075 = vmatprep.subr.mxu0 0.0
      %6076 = vmatpush2.msra.mxu0 %v5492
      %6077 = vmatprep.subr.mxu0 0.0
      %6078 = vmatpush2.msra.mxu0 %v5491
      %6079 = vmatprep.subr.mxu0 0.0
      %6080 = vmatpush2.msra.mxu0 %v5490
      %6081 = vmatprep.subr.mxu0 0.0
      %6082 = vmatpush2.msra.mxu0 %v5489
      %6083 = vmatprep.subr.mxu0 0.0
      %6084 = vmatpush2.msra.mxu0 %v5488
      %6085 = vmatprep.subr.mxu0 0.0
      %6086 = vmatpush2.msra.mxu0 %v5487
      %6087 = vmatprep.mubr.f32.mxu0 %v5505
      %6088 = vmatmul.mubr.f32.gmra.mxu0 %v5375
      %v6089 = vpop.f32.mrf.mxu0
      %v6090 = vadd.f32 %v5865, %v6089
      %v6091 = vpop.f32.mrf.mxu0
      %6092 = vmatprep.mubr.f32.mxu0 %v5507
      %6093 = vmatmul.mubr.f32.gmra.mxu0 %v5376
      %v6094 = vpop.f32.mrf.mxu0
      %v6095 = vadd.f32 %v5870, %v6094
      %v6096 = vpop.f32.mrf.mxu0
      %6097 = vmatprep.mubr.f32.mxu0 %v5509
      %6098 = vmatmul.mubr.f32.gmra.mxu0 %v5377
      %v6099 = vpop.f32.mrf.mxu0
      %v6100 = vadd.f32 %v5875, %v6099
      %v6101 = vpop.f32.mrf.mxu0
      %6102 = vmatprep.mubr.f32.mxu0 %v5511
      %6103 = vmatmul.mubr.f32.gmra.mxu0 %v5378
      %v6104 = vpop.f32.mrf.mxu0
      %v6105 = vadd.f32 %v5880, %v6104
      %v6106 = vpop.f32.mrf.mxu0
      %6107 = vmatprep.mubr.f32.mxu0 %v5513
      %6108 = vmatmul.mubr.f32.gmra.mxu0 %v5379
      %v6109 = vpop.f32.mrf.mxu0
      %v6110 = vadd.f32 %v5885, %v6109
      %v6111 = vpop.f32.mrf.mxu0
      %6112 = vmatprep.mubr.f32.mxu0 %v5515
      %6113 = vmatmul.mubr.f32.gmra.mxu0 %v5380
      %v6114 = vpop.f32.mrf.mxu0
      %v6115 = vadd.f32 %v5890, %v6114
      %v6116 = vpop.f32.mrf.mxu0
      %6117 = vmatprep.mubr.f32.mxu0 %v5517
      %6118 = vmatmul.mubr.f32.gmra.mxu0 %v5381
      %v6119 = vpop.f32.mrf.mxu0
      %v6120 = vadd.f32 %v5895, %v6119
      %v6121 = vpop.f32.mrf.mxu0
      %6122 = vmatprep.mubr.f32.mxu0 %v5519
      %6123 = vmatmul.mubr.f32.gmra.mxu0 %v5382
      %v6124 = vpop.f32.mrf.mxu0
      %v6125 = vadd.f32 %v5900, %v6124
      %v6126 = vpop.f32.mrf.mxu0
      %6127 = vmatprep.mubr.f32.mxu0 %v5521
      %6128 = vmatmul.mubr.f32.gmra.mxu0 %v5383
      %v6129 = vpop.f32.mrf.mxu0
      %v6130 = vadd.f32 %v5905, %v6129
      %v6131 = vpop.f32.mrf.mxu0
      %6132 = vmatprep.mubr.f32.mxu0 %v5523
      %6133 = vmatmul.mubr.f32.gmra.mxu0 %v5384
      %v6134 = vpop.f32.mrf.mxu0
      %v6135 = vadd.f32 %v5910, %v6134
      %v6136 = vpop.f32.mrf.mxu0
      %6137 = vmatprep.mubr.f32.mxu0 %v5525
      %6138 = vmatmul.mubr.f32.gmra.mxu0 %v5385
      %v6139 = vpop.f32.mrf.mxu0
      %v6140 = vadd.f32 %v5915, %v6139
      %v6141 = vpop.f32.mrf.mxu0
      %6142 = vmatprep.mubr.f32.mxu0 %v5527
      %6143 = vmatmul.mubr.f32.gmra.mxu0 %v5386
      %v6144 = vpop.f32.mrf.mxu0
      %v6145 = vadd.f32 %v5920, %v6144
      %v6146 = vpop.f32.mrf.mxu0
      %6147 = vmatprep.mubr.f32.mxu0 %v5529
      %6148 = vmatmul.mubr.f32.gmra.mxu0 %v5387
      %v6149 = vpop.f32.mrf.mxu0
      %v6150 = vadd.f32 %v5925, %v6149
      %v6151 = vpop.f32.mrf.mxu0
      %6152 = vmatprep.mubr.f32.mxu0 %v5531
      %6153 = vmatmul.mubr.f32.gmra.mxu0 %v5388
      %v6154 = vpop.f32.mrf.mxu0
      %v6155 = vadd.f32 %v5930, %v6154
      %v6156 = vpop.f32.mrf.mxu0
      %6157 = vmatprep.mubr.f32.mxu0 %v5533
      %6158 = vmatmul.mubr.f32.gmra.mxu0 %v5389
      %v6159 = vpop.f32.mrf.mxu0
      %v6160 = vadd.f32 %v5935, %v6159
      %v6161 = vpop.f32.mrf.mxu0
      %6162 = vmatprep.mubr.f32.mxu0 %v5535
      %6163 = vmatmul.mubr.f32.gmra.mxu0 %v5390
      %v6164 = vpop.f32.mrf.mxu0
      %v6165 = vadd.f32 %v5940, %v6164
      %v6166 = vpop.f32.mrf.mxu0
      %6167 = vmatprep.mubr.f32.mxu0 %v5537
      %6168 = vmatmul.mubr.f32.gmra.mxu0 %v5391
      %v6169 = vpop.f32.mrf.mxu0
      %v6170 = vadd.f32 %v5945, %v6169
      %v6171 = vpop.f32.mrf.mxu0
      %6172 = vmatprep.mubr.f32.mxu0 %v5539
      %6173 = vmatmul.mubr.f32.gmra.mxu0 %v5392
      %v6174 = vpop.f32.mrf.mxu0
      %v6175 = vadd.f32 %v5950, %v6174
      %v6176 = vpop.f32.mrf.mxu0
      %6177 = vmatprep.mubr.f32.mxu0 %v5541
      %6178 = vmatmul.mubr.f32.gmra.mxu0 %v5393
      %v6179 = vpop.f32.mrf.mxu0
      %v6180 = vadd.f32 %v5955, %v6179
      %v6181 = vpop.f32.mrf.mxu0
      %6182 = vmatprep.mubr.f32.mxu0 %v5543
      %6183 = vmatmul.mubr.f32.gmra.mxu0 %v5394
      %v6184 = vpop.f32.mrf.mxu0
      %v6185 = vadd.f32 %v5960, %v6184
      %v6186 = vpop.f32.mrf.mxu0
      %6187 = vmatprep.mubr.f32.mxu0 %v5545
      %6188 = vmatmul.mubr.f32.gmra.mxu0 %v5395
      %v6189 = vpop.f32.mrf.mxu0
      %v6190 = vadd.f32 %v5965, %v6189
      %v6191 = vpop.f32.mrf.mxu0
      %6192 = vmatprep.mubr.f32.mxu0 %v5547
      %6193 = vmatmul.mubr.f32.gmra.mxu0 %v5396
      %v6194 = vpop.f32.mrf.mxu0
      %v6195 = vadd.f32 %v5970, %v6194
      %v6196 = vpop.f32.mrf.mxu0
      %6197 = vmatprep.mubr.f32.mxu0 %v5549
      %6198 = vmatmul.mubr.f32.gmra.mxu0 %v5397
      %v6199 = vpop.f32.mrf.mxu0
      %v6200 = vadd.f32 %v5975, %v6199
      %v6201 = vpop.f32.mrf.mxu0
      %6202 = vmatprep.mubr.f32.mxu0 %v5551
      %6203 = vmatmul.mubr.f32.gmra.mxu0 %v5398
      %v6204 = vpop.f32.mrf.mxu0
      %v6205 = vadd.f32 %v5980, %v6204
      %v6206 = vpop.f32.mrf.mxu0
      %6207 = vmatprep.mubr.f32.mxu0 %v5553
      %6208 = vmatmul.mubr.f32.gmra.mxu0 %v5399
      %v6209 = vpop.f32.mrf.mxu0
      %v6210 = vadd.f32 %v5985, %v6209
      %v6211 = vpop.f32.mrf.mxu0
      %6212 = vmatprep.mubr.f32.mxu0 %v5555
      %6213 = vmatmul.mubr.f32.gmra.mxu0 %v5400
      %v6214 = vpop.f32.mrf.mxu0
      %v6215 = vadd.f32 %v5990, %v6214
      %v6216 = vpop.f32.mrf.mxu0
      %6217 = vmatprep.mubr.f32.mxu0 %v5557
      %6218 = vmatmul.mubr.f32.gmra.mxu0 %v5401
      %v6219 = vpop.f32.mrf.mxu0
      %v6220 = vadd.f32 %v5995, %v6219
      %v6221 = vpop.f32.mrf.mxu0
      %6222 = vmatprep.mubr.f32.mxu0 %v5559
      %6223 = vmatmul.mubr.f32.gmra.mxu0 %v5402
      %v6224 = vpop.f32.mrf.mxu0
      %v6225 = vadd.f32 %v6000, %v6224
      %v6226 = vpop.f32.mrf.mxu0
      %6227 = vmatprep.mubr.f32.mxu0 %v5561
      %6228 = vmatmul.mubr.f32.gmra.mxu0 %v5403
      %v6229 = vpop.f32.mrf.mxu0
      %v6230 = vadd.f32 %v6005, %v6229
      %v6231 = vpop.f32.mrf.mxu0
      %6232 = vmatprep.mubr.f32.mxu0 %v5563
      %6233 = vmatmul.mubr.f32.gmra.mxu0 %v5404
      %v6234 = vpop.f32.mrf.mxu0
      %v6235 = vadd.f32 %v6010, %v6234
      %v6236 = vpop.f32.mrf.mxu0
      %6237 = vmatprep.mubr.f32.mxu0 %v5565
      %6238 = vmatmul.mubr.f32.gmra.mxu0 %v5405
      %v6239 = vpop.f32.mrf.mxu0
      %v6240 = vadd.f32 %v6015, %v6239
      %v6241 = vpop.f32.mrf.mxu0
      %6242 = vmatprep.mubr.f32.mxu0 %v5567
      %6243 = vmatmul.mubr.f32.gmra.mxu0 %v5406
      %v6244 = vpop.f32.mrf.mxu0
      %v6245 = vadd.f32 %v6020, %v6244
      %v6246 = vpop.f32.mrf.mxu0
      %6247 = vdwg.mxu0
      %v6248 = vsub.f32 0.0, %v6090
      %v6249 = vsub.f32 0.0, %v6095
      %v6250 = vsub.f32 0.0, %v6100
      %v6251 = vsub.f32 0.0, %v6105
      %v6252 = vsub.f32 0.0, %v6110
      %v6253 = vsub.f32 0.0, %v6115
      %v6254 = vsub.f32 0.0, %v6120
      %v6255 = vsub.f32 0.0, %v6125
      %v6256 = vsub.f32 0.0, %v6130
      %v6257 = vsub.f32 0.0, %v6135
      %v6258 = vsub.f32 0.0, %v6140
      %v6259 = vsub.f32 0.0, %v6145
      %v6260 = vsub.f32 0.0, %v6150
      %v6261 = vsub.f32 0.0, %v6155
      %v6262 = vsub.f32 0.0, %v6160
      %v6263 = vsub.f32 0.0, %v6165
      %v6264 = vsub.f32 0.0, %v6170
      %v6265 = vsub.f32 0.0, %v6175
      %v6266 = vsub.f32 0.0, %v6180
      %v6267 = vsub.f32 0.0, %v6185
      %v6268 = vsub.f32 0.0, %v6190
      %v6269 = vsub.f32 0.0, %v6195
      %v6270 = vsub.f32 0.0, %v6200
      %v6271 = vsub.f32 0.0, %v6205
      %v6272 = vsub.f32 0.0, %v6210
      %v6273 = vsub.f32 0.0, %v6215
      %v6274 = vsub.f32 0.0, %v6220
      %v6275 = vsub.f32 0.0, %v6225
      %v6276 = vsub.f32 0.0, %v6230
      %v6277 = vsub.f32 0.0, %v6235
      %v6278 = vsub.f32 0.0, %v6240
      %v6279 = vsub.f32 0.0, %v6245
      %v6280 = vmul.f32 %v6248, 1.442695
      %v6281 = vpow.pop %v6280
      %v6282 = vmul.f32 %v6249, 1.442695
      %v6283 = vpow.pop %v6282
      %v6284 = vmul.f32 %v6250, 1.442695
      %v6285 = vpow.pop %v6284
      %v6286 = vmul.f32 %v6251, 1.442695
      %v6287 = vpow.pop %v6286
      %v6288 = vmul.f32 %v6252, 1.442695
      %v6289 = vpow.pop %v6288
      %v6290 = vmul.f32 %v6253, 1.442695
      %v6291 = vpow.pop %v6290
      %v6292 = vmul.f32 %v6254, 1.442695
      %v6293 = vpow.pop %v6292
      %v6294 = vmul.f32 %v6255, 1.442695
      %v6295 = vpow.pop %v6294
      %v6296 = vmul.f32 %v6256, 1.442695
      %v6297 = vpow.pop %v6296
      %v6298 = vmul.f32 %v6257, 1.442695
      %v6299 = vpow.pop %v6298
      %v6300 = vmul.f32 %v6258, 1.442695
      %v6301 = vpow.pop %v6300
      %v6302 = vmul.f32 %v6259, 1.442695
      %v6303 = vpow.pop %v6302
      %v6304 = vmul.f32 %v6260, 1.442695
      %v6305 = vpow.pop %v6304
      %v6306 = vmul.f32 %v6261, 1.442695
      %v6307 = vpow.pop %v6306
      %v6308 = vmul.f32 %v6262, 1.442695
      %v6309 = vpow.pop %v6308
      %v6310 = vmul.f32 %v6263, 1.442695
      %v6311 = vpow.pop %v6310
      %v6312 = vmul.f32 %v6264, 1.442695
      %v6313 = vpow.pop %v6312
      %v6314 = vmul.f32 %v6265, 1.442695
      %v6315 = vpow.pop %v6314
      %v6316 = vmul.f32 %v6266, 1.442695
      %v6317 = vpow.pop %v6316
      %v6318 = vmul.f32 %v6267, 1.442695
      %v6319 = vpow.pop %v6318
      %v6320 = vmul.f32 %v6268, 1.442695
      %v6321 = vpow.pop %v6320
      %v6322 = vmul.f32 %v6269, 1.442695
      %v6323 = vpow.pop %v6322
      %v6324 = vmul.f32 %v6270, 1.442695
      %v6325 = vpow.pop %v6324
      %v6326 = vmul.f32 %v6271, 1.442695
      %v6327 = vpow.pop %v6326
      %v6328 = vmul.f32 %v6272, 1.442695
      %v6329 = vpow.pop %v6328
      %v6330 = vmul.f32 %v6273, 1.442695
      %v6331 = vpow.pop %v6330
      %v6332 = vmul.f32 %v6274, 1.442695
      %v6333 = vpow.pop %v6332
      %v6334 = vmul.f32 %v6275, 1.442695
      %v6335 = vpow.pop %v6334
      %v6336 = vmul.f32 %v6276, 1.442695
      %v6337 = vpow.pop %v6336
      %v6338 = vmul.f32 %v6277, 1.442695
      %v6339 = vpow.pop %v6338
      %v6340 = vmul.f32 %v6278, 1.442695
      %v6341 = vpow.pop %v6340
      %v6342 = vmul.f32 %v6279, 1.442695
      %v6343 = vpow.pop %v6342
      %v6344 = vadd.f32 %v6281, 1.0
      %v6345 = vadd.f32 %v6283, 1.0
      %v6346 = vadd.f32 %v6285, 1.0
      %v6347 = vadd.f32 %v6287, 1.0
      %v6348 = vadd.f32 %v6289, 1.0
      %v6349 = vadd.f32 %v6291, 1.0
      %v6350 = vadd.f32 %v6293, 1.0
      %v6351 = vadd.f32 %v6295, 1.0
      %v6352 = vadd.f32 %v6297, 1.0
      %v6353 = vadd.f32 %v6299, 1.0
      %v6354 = vadd.f32 %v6301, 1.0
      %v6355 = vadd.f32 %v6303, 1.0
      %v6356 = vadd.f32 %v6305, 1.0
      %v6357 = vadd.f32 %v6307, 1.0
      %v6358 = vadd.f32 %v6309, 1.0
      %v6359 = vadd.f32 %v6311, 1.0
      %v6360 = vadd.f32 %v6313, 1.0
      %v6361 = vadd.f32 %v6315, 1.0
      %v6362 = vadd.f32 %v6317, 1.0
      %v6363 = vadd.f32 %v6319, 1.0
      %v6364 = vadd.f32 %v6321, 1.0
      %v6365 = vadd.f32 %v6323, 1.0
      %v6366 = vadd.f32 %v6325, 1.0
      %v6367 = vadd.f32 %v6327, 1.0
      %v6368 = vadd.f32 %v6329, 1.0
      %v6369 = vadd.f32 %v6331, 1.0
      %v6370 = vadd.f32 %v6333, 1.0
      %v6371 = vadd.f32 %v6335, 1.0
      %v6372 = vadd.f32 %v6337, 1.0
      %v6373 = vadd.f32 %v6339, 1.0
      %v6374 = vadd.f32 %v6341, 1.0
      %v6375 = vadd.f32 %v6343, 1.0
      %v6376 = vrcp.pop %v6344
      %v6377 = vmul.f32 1.0, %v6376
      %v6378 = vrcp.pop %v6345
      %v6379 = vmul.f32 1.0, %v6378
      %v6380 = vrcp.pop %v6346
      %v6381 = vmul.f32 1.0, %v6380
      %v6382 = vrcp.pop %v6347
      %v6383 = vmul.f32 1.0, %v6382
      %v6384 = vrcp.pop %v6348
      %v6385 = vmul.f32 1.0, %v6384
      %v6386 = vrcp.pop %v6349
      %v6387 = vmul.f32 1.0, %v6386
      %v6388 = vrcp.pop %v6350
      %v6389 = vmul.f32 1.0, %v6388
      %v6390 = vrcp.pop %v6351
      %v6391 = vmul.f32 1.0, %v6390
      %v6392 = vrcp.pop %v6352
      %v6393 = vmul.f32 1.0, %v6392
      %v6394 = vrcp.pop %v6353
      %v6395 = vmul.f32 1.0, %v6394
      %v6396 = vrcp.pop %v6354
      %v6397 = vmul.f32 1.0, %v6396
      %v6398 = vrcp.pop %v6355
      %v6399 = vmul.f32 1.0, %v6398
      %v6400 = vrcp.pop %v6356
      %v6401 = vmul.f32 1.0, %v6400
      %v6402 = vrcp.pop %v6357
      %v6403 = vmul.f32 1.0, %v6402
      %v6404 = vrcp.pop %v6358
      %v6405 = vmul.f32 1.0, %v6404
      %v6406 = vrcp.pop %v6359
      %v6407 = vmul.f32 1.0, %v6406
      %v6408 = vrcp.pop %v6360
      %v6409 = vmul.f32 1.0, %v6408
      %v6410 = vrcp.pop %v6361
      %v6411 = vmul.f32 1.0, %v6410
      %v6412 = vrcp.pop %v6362
      %v6413 = vmul.f32 1.0, %v6412
      %v6414 = vrcp.pop %v6363
      %v6415 = vmul.f32 1.0, %v6414
      %v6416 = vrcp.pop %v6364
      %v6417 = vmul.f32 1.0, %v6416
      %v6418 = vrcp.pop %v6365
      %v6419 = vmul.f32 1.0, %v6418
      %v6420 = vrcp.pop %v6366
      %v6421 = vmul.f32 1.0, %v6420
      %v6422 = vrcp.pop %v6367
      %v6423 = vmul.f32 1.0, %v6422
      %v6424 = vrcp.pop %v6368
      %v6425 = vmul.f32 1.0, %v6424
      %v6426 = vrcp.pop %v6369
      %v6427 = vmul.f32 1.0, %v6426
      %v6428 = vrcp.pop %v6370
      %v6429 = vmul.f32 1.0, %v6428
      %v6430 = vrcp.pop %v6371
      %v6431 = vmul.f32 1.0, %v6430
      %v6432 = vrcp.pop %v6372
      %v6433 = vmul.f32 1.0, %v6432
      %v6434 = vrcp.pop %v6373
      %v6435 = vmul.f32 1.0, %v6434
      %v6436 = vrcp.pop %v6374
      %v6437 = vmul.f32 1.0, %v6436
      %v6438 = vrcp.pop %v6375
      %v6439 = vmul.f32 1.0, %v6438
      %v6472 = vrot.slane %v6377, 2
      %v6473 = vrot.slane %v6379, 2
      %v6474 = vsel %vm778, %v6472, %v6473
      %v6475 = vrot.slane %v6381, 2
      %v6476 = vrot.slane %v6383, 2
      %v6477 = vsel %vm778, %v6475, %v6476
      %v6478 = vrot.slane %v6385, 2
      %v6479 = vrot.slane %v6387, 2
      %v6480 = vsel %vm778, %v6478, %v6479
      %v6481 = vrot.slane %v6389, 2
      %v6482 = vrot.slane %v6391, 2
      %v6483 = vsel %vm778, %v6481, %v6482
      %v6484 = vrot.slane %v6393, 2
      %v6485 = vrot.slane %v6395, 2
      %v6486 = vsel %vm778, %v6484, %v6485
      %v6487 = vrot.slane %v6397, 2
      %v6488 = vrot.slane %v6399, 2
      %v6489 = vsel %vm778, %v6487, %v6488
      %v6490 = vrot.slane %v6401, 2
      %v6491 = vrot.slane %v6403, 2
      %v6492 = vsel %vm778, %v6490, %v6491
      %v6493 = vrot.slane %v6405, 2
      %v6494 = vrot.slane %v6407, 2
      %v6495 = vsel %vm778, %v6493, %v6494
      %v6496 = vrot.slane %v6409, 2
      %v6497 = vrot.slane %v6411, 2
      %v6498 = vsel %vm778, %v6496, %v6497
      %v6499 = vrot.slane %v6413, 2
      %v6500 = vrot.slane %v6415, 2
      %v6501 = vsel %vm778, %v6499, %v6500
      %v6502 = vrot.slane %v6417, 2
      %v6503 = vrot.slane %v6419, 2
      %v6504 = vsel %vm778, %v6502, %v6503
      %v6505 = vrot.slane %v6421, 2
      %v6506 = vrot.slane %v6423, 2
      %v6507 = vsel %vm778, %v6505, %v6506
      %v6508 = vrot.slane %v6425, 2
      %v6509 = vrot.slane %v6427, 2
      %v6510 = vsel %vm778, %v6508, %v6509
      %v6511 = vrot.slane %v6429, 2
      %v6512 = vrot.slane %v6431, 2
      %v6513 = vsel %vm778, %v6511, %v6512
      %v6514 = vrot.slane %v6433, 2
      %v6515 = vrot.slane %v6435, 2
      %v6516 = vsel %vm778, %v6514, %v6515
      %v6517 = vrot.slane %v6437, 2
      %v6518 = vrot.slane %v6439, 2
      %v6519 = vsel %vm778, %v6517, %v6518
      %v6552 = vmax.f32 %v6377, %v6474
      %v6553 = vmax.f32 %v6379, %v6473
      %v6554 = vmax.f32 %v6381, %v6477
      %v6555 = vmax.f32 %v6383, %v6476
      %v6556 = vmax.f32 %v6385, %v6480
      %v6557 = vmax.f32 %v6387, %v6479
      %v6558 = vmax.f32 %v6389, %v6483
      %v6559 = vmax.f32 %v6391, %v6482
      %v6560 = vmax.f32 %v6393, %v6486
      %v6561 = vmax.f32 %v6395, %v6485
      %v6562 = vmax.f32 %v6397, %v6489
      %v6563 = vmax.f32 %v6399, %v6488
      %v6564 = vmax.f32 %v6401, %v6492
      %v6565 = vmax.f32 %v6403, %v6491
      %v6566 = vmax.f32 %v6405, %v6495
      %v6567 = vmax.f32 %v6407, %v6494
      %v6568 = vmax.f32 %v6409, %v6498
      %v6569 = vmax.f32 %v6411, %v6497
      %v6570 = vmax.f32 %v6413, %v6501
      %v6571 = vmax.f32 %v6415, %v6500
      %v6572 = vmax.f32 %v6417, %v6504
      %v6573 = vmax.f32 %v6419, %v6503
      %v6574 = vmax.f32 %v6421, %v6507
      %v6575 = vmax.f32 %v6423, %v6506
      %v6576 = vmax.f32 %v6425, %v6510
      %v6577 = vmax.f32 %v6427, %v6509
      %v6578 = vmax.f32 %v6429, %v6513
      %v6579 = vmax.f32 %v6431, %v6512
      %v6580 = vmax.f32 %v6433, %v6516
      %v6581 = vmax.f32 %v6435, %v6515
      %v6582 = vmax.f32 %v6437, %v6519
      %v6583 = vmax.f32 %v6439, %v6518
      %6616 = vrot.lane.b32.xlu0 %v6552, 127
      %v6617 = vpop.permute.xlu0 %6616
      %6618 = vrot.lane.b32.xlu0 %v6553, 127
      %v6619 = vpop.permute.xlu0 %6618
      %6620 = vrot.lane.b32.xlu0 %v6554, 127
      %v6621 = vpop.permute.xlu0 %6620
      %6622 = vrot.lane.b32.xlu0 %v6555, 127
      %v6623 = vpop.permute.xlu0 %6622
      %6624 = vrot.lane.b32.xlu0 %v6556, 127
      %v6625 = vpop.permute.xlu0 %6624
      %6626 = vrot.lane.b32.xlu0 %v6557, 127
      %v6627 = vpop.permute.xlu0 %6626
      %6628 = vrot.lane.b32.xlu0 %v6558, 127
      %v6629 = vpop.permute.xlu0 %6628
      %6630 = vrot.lane.b32.xlu0 %v6559, 127
      %v6631 = vpop.permute.xlu0 %6630
      %6632 = vrot.lane.b32.xlu0 %v6560, 127
      %v6633 = vpop.permute.xlu0 %6632
      %6634 = vrot.lane.b32.xlu0 %v6561, 127
      %v6635 = vpop.permute.xlu0 %6634
      %6636 = vrot.lane.b32.xlu0 %v6562, 127
      %v6637 = vpop.permute.xlu0 %6636
      %6638 = vrot.lane.b32.xlu0 %v6563, 127
      %v6639 = vpop.permute.xlu0 %6638
      %6640 = vrot.lane.b32.xlu0 %v6564, 127
      %v6641 = vpop.permute.xlu0 %6640
      %6642 = vrot.lane.b32.xlu0 %v6565, 127
      %v6643 = vpop.permute.xlu0 %6642
      %6644 = vrot.lane.b32.xlu0 %v6566, 127
      %v6645 = vpop.permute.xlu0 %6644
      %6646 = vrot.lane.b32.xlu0 %v6567, 127
      %v6647 = vpop.permute.xlu0 %6646
      %6648 = vrot.lane.b32.xlu0 %v6568, 127
      %v6649 = vpop.permute.xlu0 %6648
      %6650 = vrot.lane.b32.xlu0 %v6569, 127
      %v6651 = vpop.permute.xlu0 %6650
      %6652 = vrot.lane.b32.xlu0 %v6570, 127
      %v6653 = vpop.permute.xlu0 %6652
      %6654 = vrot.lane.b32.xlu0 %v6571, 127
      %v6655 = vpop.permute.xlu0 %6654
      %6656 = vrot.lane.b32.xlu0 %v6572, 127
      %v6657 = vpop.permute.xlu0 %6656
      %6658 = vrot.lane.b32.xlu0 %v6573, 127
      %v6659 = vpop.permute.xlu0 %6658
      %6660 = vrot.lane.b32.xlu0 %v6574, 127
      %v6661 = vpop.permute.xlu0 %6660
      %6662 = vrot.lane.b32.xlu0 %v6575, 127
      %v6663 = vpop.permute.xlu0 %6662
      %6664 = vrot.lane.b32.xlu0 %v6576, 127
      %v6665 = vpop.permute.xlu0 %6664
      %6666 = vrot.lane.b32.xlu0 %v6577, 127
      %v6667 = vpop.permute.xlu0 %6666
      %6668 = vrot.lane.b32.xlu0 %v6578, 127
      %v6669 = vpop.permute.xlu0 %6668
      %6670 = vrot.lane.b32.xlu0 %v6579, 127
      %v6671 = vpop.permute.xlu0 %6670
      %6672 = vrot.lane.b32.xlu0 %v6580, 127
      %v6673 = vpop.permute.xlu0 %6672
      %6674 = vrot.lane.b32.xlu0 %v6581, 127
      %v6675 = vpop.permute.xlu0 %6674
      %6676 = vrot.lane.b32.xlu0 %v6582, 127
      %v6677 = vpop.permute.xlu0 %6676
      %6678 = vrot.lane.b32.xlu0 %v6583, 127
      %v6679 = vpop.permute.xlu0 %6678
      %v6712 = vmax.f32 %v6552, %v6617
      %v6713 = vmax.f32 %v6553, %v6619
      %v6714 = vmax.f32 %v6554, %v6621
      %v6715 = vmax.f32 %v6555, %v6623
      %v6716 = vmax.f32 %v6556, %v6625
      %v6717 = vmax.f32 %v6557, %v6627
      %v6718 = vmax.f32 %v6558, %v6629
      %v6719 = vmax.f32 %v6559, %v6631
      %v6720 = vmax.f32 %v6560, %v6633
      %v6721 = vmax.f32 %v6561, %v6635
      %v6722 = vmax.f32 %v6562, %v6637
      %v6723 = vmax.f32 %v6563, %v6639
      %v6724 = vmax.f32 %v6564, %v6641
      %v6725 = vmax.f32 %v6565, %v6643
      %v6726 = vmax.f32 %v6566, %v6645
      %v6727 = vmax.f32 %v6567, %v6647
      %v6728 = vmax.f32 %v6568, %v6649
      %v6729 = vmax.f32 %v6569, %v6651
      %v6730 = vmax.f32 %v6570, %v6653
      %v6731 = vmax.f32 %v6571, %v6655
      %v6732 = vmax.f32 %v6572, %v6657
      %v6733 = vmax.f32 %v6573, %v6659
      %v6734 = vmax.f32 %v6574, %v6661
      %v6735 = vmax.f32 %v6575, %v6663
      %v6736 = vmax.f32 %v6576, %v6665
      %v6737 = vmax.f32 %v6577, %v6667
      %v6738 = vmax.f32 %v6578, %v6669
      %v6739 = vmax.f32 %v6579, %v6671
      %v6740 = vmax.f32 %v6580, %v6673
      %v6741 = vmax.f32 %v6581, %v6675
      %v6742 = vmax.f32 %v6582, %v6677
      %v6743 = vmax.f32 %v6583, %v6679
      %v6760 = vrot.slane %v6713, 2
      %v6761 = vrot.slane %v6715, 2
      %v6762 = vrot.slane %v6717, 2
      %v6763 = vrot.slane %v6719, 2
      %v6764 = vrot.slane %v6721, 2
      %v6765 = vrot.slane %v6723, 2
      %v6766 = vrot.slane %v6725, 2
      %v6767 = vrot.slane %v6727, 2
      %v6768 = vrot.slane %v6729, 2
      %v6769 = vrot.slane %v6731, 2
      %v6770 = vrot.slane %v6733, 2
      %v6771 = vrot.slane %v6735, 2
      %v6772 = vrot.slane %v6737, 2
      %v6773 = vrot.slane %v6739, 2
      %v6774 = vrot.slane %v6741, 2
      %v6775 = vrot.slane %v6743, 2
      %v6792 = vsel %vm778, %v6713, %v6760
      %v6793 = vsel %vm778, %v6715, %v6761
      %v6794 = vsel %vm778, %v6717, %v6762
      %v6795 = vsel %vm778, %v6719, %v6763
      %v6796 = vsel %vm778, %v6721, %v6764
      %v6797 = vsel %vm778, %v6723, %v6765
      %v6798 = vsel %vm778, %v6725, %v6766
      %v6799 = vsel %vm778, %v6727, %v6767
      %v6800 = vsel %vm778, %v6729, %v6768
      %v6801 = vsel %vm778, %v6731, %v6769
      %v6802 = vsel %vm778, %v6733, %v6770
      %v6803 = vsel %vm778, %v6735, %v6771
      %v6804 = vsel %vm778, %v6737, %v6772
      %v6805 = vsel %vm778, %v6739, %v6773
      %v6806 = vsel %vm778, %v6741, %v6774
      %v6807 = vsel %vm778, %v6743, %v6775
      %v6840 = vrot.slane %v6712, 4
      %v6841 = vrot.slane %v6792, 4
      %v6842 = vsel %vm1292, %v6840, %v6841
      %v6843 = vrot.slane %v6714, 4
      %v6844 = vrot.slane %v6793, 4
      %v6845 = vsel %vm1292, %v6843, %v6844
      %v6846 = vrot.slane %v6716, 4
      %v6847 = vrot.slane %v6794, 4
      %v6848 = vsel %vm1292, %v6846, %v6847
      %v6849 = vrot.slane %v6718, 4
      %v6850 = vrot.slane %v6795, 4
      %v6851 = vsel %vm1292, %v6849, %v6850
      %v6852 = vrot.slane %v6720, 4
      %v6853 = vrot.slane %v6796, 4
      %v6854 = vsel %vm1292, %v6852, %v6853
      %v6855 = vrot.slane %v6722, 4
      %v6856 = vrot.slane %v6797, 4
      %v6857 = vsel %vm1292, %v6855, %v6856
      %v6858 = vrot.slane %v6724, 4
      %v6859 = vrot.slane %v6798, 4
      %v6860 = vsel %vm1292, %v6858, %v6859
      %v6861 = vrot.slane %v6726, 4
      %v6862 = vrot.slane %v6799, 4
      %v6863 = vsel %vm1292, %v6861, %v6862
      %v6864 = vrot.slane %v6728, 4
      %v6865 = vrot.slane %v6800, 4
      %v6866 = vsel %vm1292, %v6864, %v6865
      %v6867 = vrot.slane %v6730, 4
      %v6868 = vrot.slane %v6801, 4
      %v6869 = vsel %vm1292, %v6867, %v6868
      %v6870 = vrot.slane %v6732, 4
      %v6871 = vrot.slane %v6802, 4
      %v6872 = vsel %vm1292, %v6870, %v6871
      %v6873 = vrot.slane %v6734, 4
      %v6874 = vrot.slane %v6803, 4
      %v6875 = vsel %vm1292, %v6873, %v6874
      %v6876 = vrot.slane %v6736, 4
      %v6877 = vrot.slane %v6804, 4
      %v6878 = vsel %vm1292, %v6876, %v6877
      %v6879 = vrot.slane %v6738, 4
      %v6880 = vrot.slane %v6805, 4
      %v6881 = vsel %vm1292, %v6879, %v6880
      %v6882 = vrot.slane %v6740, 4
      %v6883 = vrot.slane %v6806, 4
      %v6884 = vsel %vm1292, %v6882, %v6883
      %v6885 = vrot.slane %v6742, 4
      %v6886 = vrot.slane %v6807, 4
      %v6887 = vsel %vm1292, %v6885, %v6886
      %6888 = vrot.lane.b32.xlu0 %v6842, 127
      %v6889 = vpop.permute.xlu0 %6888
      %6890 = vrot.lane.b32.xlu0 %v6845, 127
      %v6891 = vpop.permute.xlu0 %6890
      %6892 = vrot.lane.b32.xlu0 %v6848, 127
      %v6893 = vpop.permute.xlu0 %6892
      %6894 = vrot.lane.b32.xlu0 %v6851, 127
      %v6895 = vpop.permute.xlu0 %6894
      %6896 = vrot.lane.b32.xlu0 %v6854, 127
      %v6897 = vpop.permute.xlu0 %6896
      %6898 = vrot.lane.b32.xlu0 %v6857, 127
      %v6899 = vpop.permute.xlu0 %6898
      %6900 = vrot.lane.b32.xlu0 %v6860, 127
      %v6901 = vpop.permute.xlu0 %6900
      %6902 = vrot.lane.b32.xlu0 %v6863, 127
      %v6903 = vpop.permute.xlu0 %6902
      %6904 = vrot.lane.b32.xlu0 %v6866, 127
      %v6905 = vpop.permute.xlu0 %6904
      %6906 = vrot.lane.b32.xlu0 %v6869, 127
      %v6907 = vpop.permute.xlu0 %6906
      %6908 = vrot.lane.b32.xlu0 %v6872, 127
      %v6909 = vpop.permute.xlu0 %6908
      %6910 = vrot.lane.b32.xlu0 %v6875, 127
      %v6911 = vpop.permute.xlu0 %6910
      %6912 = vrot.lane.b32.xlu0 %v6878, 127
      %v6913 = vpop.permute.xlu0 %6912
      %6914 = vrot.lane.b32.xlu0 %v6881, 127
      %v6915 = vpop.permute.xlu0 %6914
      %6916 = vrot.lane.b32.xlu0 %v6884, 127
      %v6917 = vpop.permute.xlu0 %6916
      %6918 = vrot.lane.b32.xlu0 %v6887, 127
      %v6919 = vpop.permute.xlu0 %6918
      %6936 = vrot.lane.b32.xlu0 %v6792, 126
      %v6937 = vpop.permute.xlu0 %6936
      %6938 = vrot.lane.b32.xlu0 %v6793, 126
      %v6939 = vpop.permute.xlu0 %6938
      %6940 = vrot.lane.b32.xlu0 %v6794, 126
      %v6941 = vpop.permute.xlu0 %6940
      %6942 = vrot.lane.b32.xlu0 %v6795, 126
      %v6943 = vpop.permute.xlu0 %6942
      %6944 = vrot.lane.b32.xlu0 %v6796, 126
      %v6945 = vpop.permute.xlu0 %6944
      %6946 = vrot.lane.b32.xlu0 %v6797, 126
      %v6947 = vpop.permute.xlu0 %6946
      %6948 = vrot.lane.b32.xlu0 %v6798, 126
      %v6949 = vpop.permute.xlu0 %6948
      %6950 = vrot.lane.b32.xlu0 %v6799, 126
      %v6951 = vpop.permute.xlu0 %6950
      %6952 = vrot.lane.b32.xlu0 %v6800, 126
      %v6953 = vpop.permute.xlu0 %6952
      %6954 = vrot.lane.b32.xlu0 %v6801, 126
      %v6955 = vpop.permute.xlu0 %6954
      %6956 = vrot.lane.b32.xlu0 %v6802, 126
      %v6957 = vpop.permute.xlu0 %6956
      %6958 = vrot.lane.b32.xlu0 %v6803, 126
      %v6959 = vpop.permute.xlu0 %6958
      %6960 = vrot.lane.b32.xlu0 %v6804, 126
      %v6961 = vpop.permute.xlu0 %6960
      %6962 = vrot.lane.b32.xlu0 %v6805, 126
      %v6963 = vpop.permute.xlu0 %6962
      %6964 = vrot.lane.b32.xlu0 %v6806, 126
      %v6965 = vpop.permute.xlu0 %6964
      %6966 = vrot.lane.b32.xlu0 %v6807, 126
      %v6967 = vpop.permute.xlu0 %6966
      %v6984 = vrot.slane %v6760, 4
      %v6985 = vsel %vm1292, %v6841, %v6984
      %v6986 = vrot.slane %v6761, 4
      %v6987 = vsel %vm1292, %v6844, %v6986
      %v6988 = vrot.slane %v6762, 4
      %v6989 = vsel %vm1292, %v6847, %v6988
      %v6990 = vrot.slane %v6763, 4
      %v6991 = vsel %vm1292, %v6850, %v6990
      %v6992 = vrot.slane %v6764, 4
      %v6993 = vsel %vm1292, %v6853, %v6992
      %v6994 = vrot.slane %v6765, 4
      %v6995 = vsel %vm1292, %v6856, %v6994
      %v6996 = vrot.slane %v6766, 4
      %v6997 = vsel %vm1292, %v6859, %v6996
      %v6998 = vrot.slane %v6767, 4
      %v6999 = vsel %vm1292, %v6862, %v6998
      %v7000 = vrot.slane %v6768, 4
      %v7001 = vsel %vm1292, %v6865, %v7000
      %v7002 = vrot.slane %v6769, 4
      %v7003 = vsel %vm1292, %v6868, %v7002
      %v7004 = vrot.slane %v6770, 4
      %v7005 = vsel %vm1292, %v6871, %v7004
      %v7006 = vrot.slane %v6771, 4
      %v7007 = vsel %vm1292, %v6874, %v7006
      %v7008 = vrot.slane %v6772, 4
      %v7009 = vsel %vm1292, %v6877, %v7008
      %v7010 = vrot.slane %v6773, 4
      %v7011 = vsel %vm1292, %v6880, %v7010
      %v7012 = vrot.slane %v6774, 4
      %v7013 = vsel %vm1292, %v6883, %v7012
      %v7014 = vrot.slane %v6775, 4
      %v7015 = vsel %vm1292, %v6886, %v7014
      %7016 = vrot.lane.b32.xlu0 %v6985, 125
      %v7017 = vpop.permute.xlu0 %7016
      %7018 = vrot.lane.b32.xlu0 %v6987, 125
      %v7019 = vpop.permute.xlu0 %7018
      %7020 = vrot.lane.b32.xlu0 %v6989, 125
      %v7021 = vpop.permute.xlu0 %7020
      %7022 = vrot.lane.b32.xlu0 %v6991, 125
      %v7023 = vpop.permute.xlu0 %7022
      %7024 = vrot.lane.b32.xlu0 %v6993, 125
      %v7025 = vpop.permute.xlu0 %7024
      %7026 = vrot.lane.b32.xlu0 %v6995, 125
      %v7027 = vpop.permute.xlu0 %7026
      %7028 = vrot.lane.b32.xlu0 %v6997, 125
      %v7029 = vpop.permute.xlu0 %7028
      %7030 = vrot.lane.b32.xlu0 %v6999, 125
      %v7031 = vpop.permute.xlu0 %7030
      %7032 = vrot.lane.b32.xlu0 %v7001, 125
      %v7033 = vpop.permute.xlu0 %7032
      %7034 = vrot.lane.b32.xlu0 %v7003, 125
      %v7035 = vpop.permute.xlu0 %7034
      %7036 = vrot.lane.b32.xlu0 %v7005, 125
      %v7037 = vpop.permute.xlu0 %7036
      %7038 = vrot.lane.b32.xlu0 %v7007, 125
      %v7039 = vpop.permute.xlu0 %7038
      %7040 = vrot.lane.b32.xlu0 %v7009, 125
      %v7041 = vpop.permute.xlu0 %7040
      %7042 = vrot.lane.b32.xlu0 %v7011, 125
      %v7043 = vpop.permute.xlu0 %7042
      %7044 = vrot.lane.b32.xlu0 %v7013, 125
      %v7045 = vpop.permute.xlu0 %7044
      %7046 = vrot.lane.b32.xlu0 %v7015, 125
      %v7047 = vpop.permute.xlu0 %7046
      %v7064 = vsel %vm3593, %v6712, %v6889
      %v7065 = vsel %vm3593, %v6714, %v6891
      %v7066 = vsel %vm3593, %v6716, %v6893
      %v7067 = vsel %vm3593, %v6718, %v6895
      %v7068 = vsel %vm3593, %v6720, %v6897
      %v7069 = vsel %vm3593, %v6722, %v6899
      %v7070 = vsel %vm3593, %v6724, %v6901
      %v7071 = vsel %vm3593, %v6726, %v6903
      %v7072 = vsel %vm3593, %v6728, %v6905
      %v7073 = vsel %vm3593, %v6730, %v6907
      %v7074 = vsel %vm3593, %v6732, %v6909
      %v7075 = vsel %vm3593, %v6734, %v6911
      %v7076 = vsel %vm3593, %v6736, %v6913
      %v7077 = vsel %vm3593, %v6738, %v6915
      %v7078 = vsel %vm3593, %v6740, %v6917
      %v7079 = vsel %vm3593, %v6742, %v6919
      %vm7080 = vcmask 1031168
      %v7081 = vsel %vm7080, %v6889, %v6937
      %v7082 = vsel %vm7080, %v6891, %v6939
      %v7083 = vsel %vm7080, %v6893, %v6941
      %v7084 = vsel %vm7080, %v6895, %v6943
      %v7085 = vsel %vm7080, %v6897, %v6945
      %v7086 = vsel %vm7080, %v6899, %v6947
      %v7087 = vsel %vm7080, %v6901, %v6949
      %v7088 = vsel %vm7080, %v6903, %v6951
      %v7089 = vsel %vm7080, %v6905, %v6953
      %v7090 = vsel %vm7080, %v6907, %v6955
      %v7091 = vsel %vm7080, %v6909, %v6957
      %v7092 = vsel %vm7080, %v6911, %v6959
      %v7093 = vsel %vm7080, %v6913, %v6961
      %v7094 = vsel %vm7080, %v6915, %v6963
      %v7095 = vsel %vm7080, %v6917, %v6965
      %v7096 = vsel %vm7080, %v6919, %v6967
      %vm7097 = vcmask 1022976
      %v7098 = vsel %vm7097, %v6937, %v7017
      %v7099 = vsel %vm7097, %v6939, %v7019
      %v7100 = vsel %vm7097, %v6941, %v7021
      %v7101 = vsel %vm7097, %v6943, %v7023
      %v7102 = vsel %vm7097, %v6945, %v7025
      %v7103 = vsel %vm7097, %v6947, %v7027
      %v7104 = vsel %vm7097, %v6949, %v7029
      %v7105 = vsel %vm7097, %v6951, %v7031
      %v7106 = vsel %vm7097, %v6953, %v7033
      %v7107 = vsel %vm7097, %v6955, %v7035
      %v7108 = vsel %vm7097, %v6957, %v7037
      %v7109 = vsel %vm7097, %v6959, %v7039
      %v7110 = vsel %vm7097, %v6961, %v7041
      %v7111 = vsel %vm7097, %v6963, %v7043
      %v7112 = vsel %vm7097, %v6965, %v7045
      %v7113 = vsel %vm7097, %v6967, %v7047
      %v7114 = vld [vmem:[%s5] sm:$0xff]
      %v7115 = vld [vmem:[%s5 + $0x8] sm:$0xff]
      %v7116 = vld [vmem:[%s5 + $0x10] sm:$0xff]
      %v7117 = vld [vmem:[%s5 + $0x18] sm:$0xff]
      %v7118 = vld [vmem:[%s5 + $0x20] sm:$0xff]
      %v7119 = vld [vmem:[%s5 + $0x28] sm:$0xff]
      %v7120 = vld [vmem:[%s5 + $0x30] sm:$0xff]
      %v7121 = vld [vmem:[%s5 + $0x38] sm:$0xff]
      %v7122 = vld [vmem:[%s5 + $0x40] sm:$0xff]
      %v7123 = vld [vmem:[%s5 + $0x48] sm:$0xff]
      %v7124 = vld [vmem:[%s5 + $0x50] sm:$0xff]
      %v7125 = vld [vmem:[%s5 + $0x58] sm:$0xff]
      %v7126 = vld [vmem:[%s5 + $0x60] sm:$0xff]
      %v7127 = vld [vmem:[%s5 + $0x68] sm:$0xff]
      %v7128 = vld [vmem:[%s5 + $0x70] sm:$0xff]
      %v7129 = vld [vmem:[%s5 + $0x78] sm:$0xff]
      %v7130 = vld [vmem:[%s5 + $0x80] sm:$0xff]
      %v7131 = vld [vmem:[%s5 + $0x88] sm:$0xff]
      %v7132 = vld [vmem:[%s5 + $0x90] sm:$0xff]
      %v7133 = vld [vmem:[%s5 + $0x98] sm:$0xff]
      %v7134 = vld [vmem:[%s5 + $0xa0] sm:$0xff]
      %v7135 = vld [vmem:[%s5 + $0xa8] sm:$0xff]
      %v7136 = vld [vmem:[%s5 + $0xb0] sm:$0xff]
      %v7137 = vld [vmem:[%s5 + $0xb8] sm:$0xff]
      %v7138 = vld [vmem:[%s5 + $0xc0] sm:$0xff]
      %v7139 = vld [vmem:[%s5 + $0xc8] sm:$0xff]
      %v7140 = vld [vmem:[%s5 + $0xd0] sm:$0xff]
      %v7141 = vld [vmem:[%s5 + $0xd8] sm:$0xff]
      %v7142 = vld [vmem:[%s5 + $0xe0] sm:$0xff]
      %v7143 = vld [vmem:[%s5 + $0xe8] sm:$0xff]
      %v7144 = vld [vmem:[%s5 + $0xf0] sm:$0xff]
      %v7145 = vld [vmem:[%s5 + $0xf8] sm:$0xff]
      %v7146 = vld [vmem:[%s5 + $0x100] sm:$0xff]
      %v7147 = vld [vmem:[%s5 + $0x108] sm:$0xff]
      %v7148 = vld [vmem:[%s5 + $0x110] sm:$0xff]
      %v7149 = vld [vmem:[%s5 + $0x118] sm:$0xff]
      %v7150 = vld [vmem:[%s5 + $0x120] sm:$0xff]
      %v7151 = vld [vmem:[%s5 + $0x128] sm:$0xff]
      %v7152 = vld [vmem:[%s5 + $0x130] sm:$0xff]
      %v7153 = vld [vmem:[%s5 + $0x138] sm:$0xff]
      %v7154 = vld [vmem:[%s5 + $0x140] sm:$0xff]
      %v7155 = vld [vmem:[%s5 + $0x148] sm:$0xff]
      %v7156 = vld [vmem:[%s5 + $0x150] sm:$0xff]
      %v7157 = vld [vmem:[%s5 + $0x158] sm:$0xff]
      %v7158 = vld [vmem:[%s5 + $0x160] sm:$0xff]
      %v7159 = vld [vmem:[%s5 + $0x168] sm:$0xff]
      %v7160 = vld [vmem:[%s5 + $0x170] sm:$0xff]
      %v7161 = vld [vmem:[%s5 + $0x178] sm:$0xff]
      %v7162 = vld [vmem:[%s5 + $0x180] sm:$0xff]
      %v7163 = vld [vmem:[%s5 + $0x188] sm:$0xff]
      %v7164 = vld [vmem:[%s5 + $0x190] sm:$0xff]
      %v7165 = vld [vmem:[%s5 + $0x198] sm:$0xff]
      %v7166 = vld [vmem:[%s5 + $0x1a0] sm:$0xff]
      %v7167 = vld [vmem:[%s5 + $0x1a8] sm:$0xff]
      %v7168 = vld [vmem:[%s5 + $0x1b0] sm:$0xff]
      %v7169 = vld [vmem:[%s5 + $0x1b8] sm:$0xff]
      %v7170 = vld [vmem:[%s5 + $0x1c0] sm:$0xff]
      %v7171 = vld [vmem:[%s5 + $0x1c8] sm:$0xff]
      %v7172 = vld [vmem:[%s5 + $0x1d0] sm:$0xff]
      %v7173 = vld [vmem:[%s5 + $0x1d8] sm:$0xff]
      %v7174 = vld [vmem:[%s5 + $0x1e0] sm:$0xff]
      %v7175 = vld [vmem:[%s5 + $0x1e8] sm:$0xff]
      %v7176 = vld [vmem:[%s5 + $0x1f0] sm:$0xff]
      %v7177 = vld [vmem:[%s5 + $0x1f8] sm:$0xf]
      %v7178 = vld [vmem:[%s6] sm:$0x1]
      %v7180 = vlaneseq
      %v7181 = vshrl.u32 %v7180, 7
      %v7182 = vsub.s32 0, %v7181
      %v7183 = vrot.slane %v7178, %v7182
      %vm7185 = vcmask 1014784
      %v7186 = vsel %vm7185, %v7017, 0
      %v7188 = vsel %vm7185, %v7019, 0
      %v7190 = vsel %vm7185, %v7021, 0
      %v7192 = vsel %vm7185, %v7023, 0
      %v7194 = vsel %vm7185, %v7025, 0
      %v7196 = vsel %vm7185, %v7027, 0
      %v7198 = vsel %vm7185, %v7029, 0
      %v7200 = vsel %vm7185, %v7031, 0
      %v7202 = vsel %vm7185, %v7033, 0
      %v7204 = vsel %vm7185, %v7035, 0
      %v7206 = vsel %vm7185, %v7037, 0
      %v7208 = vsel %vm7185, %v7039, 0
      %v7210 = vsel %vm7185, %v7041, 0
      %v7212 = vsel %vm7185, %v7043, 0
      %v7214 = vsel %vm7185, %v7045, 0
      %v7216 = vsel %vm7185, %v7047, 0
      %v7219 = vsel %vm1292, %v7177, 0
      %7221 = vmatprep.subr.mxu0 0.0
      %7222 = vmatpush1.msra.mxu0 %v7129
      %7223 = vmatprep.subr.mxu0 0.0
      %7224 = vmatpush1.msra.mxu0 %v7128
      %7225 = vmatprep.subr.mxu0 0.0
      %7226 = vmatpush1.msra.mxu0 %v7127
      %7227 = vmatprep.subr.mxu0 0.0
      %7228 = vmatpush1.msra.mxu0 %v7126
      %7229 = vmatprep.subr.mxu0 0.0
      %7230 = vmatpush1.msra.mxu0 %v7125
      %7231 = vmatprep.subr.mxu0 0.0
      %7232 = vmatpush1.msra.mxu0 %v7124
      %7233 = vmatprep.subr.mxu0 0.0
      %7234 = vmatpush1.msra.mxu0 %v7123
      %7235 = vmatprep.subr.mxu0 0.0
      %7236 = vmatpush1.msra.mxu0 %v7122
      %7237 = vmatprep.subr.mxu0 0.0
      %7238 = vmatpush1.msra.mxu0 %v7121
      %7239 = vmatprep.subr.mxu0 0.0
      %7240 = vmatpush1.msra.mxu0 %v7120
      %7241 = vmatprep.subr.mxu0 0.0
      %7242 = vmatpush1.msra.mxu0 %v7119
      %7243 = vmatprep.subr.mxu0 0.0
      %7244 = vmatpush1.msra.mxu0 %v7118
      %7245 = vmatprep.subr.mxu0 0.0
      %7246 = vmatpush1.msra.mxu0 %v7117
      %7247 = vmatprep.subr.mxu0 0.0
      %7248 = vmatpush1.msra.mxu0 %v7116
      %7249 = vmatprep.subr.mxu0 0.0
      %7250 = vmatpush1.msra.mxu0 %v7115
      %7251 = vmatprep.subr.mxu0 0.0
      %7252 = vmatpush1.msra.mxu0 %v7114
      %7253 = vmatprep.subr.mxu0 0.0
      %7254 = vmatpush2.msra.mxu0 %v7145
      %7255 = vmatprep.subr.mxu0 0.0
      %7256 = vmatpush2.msra.mxu0 %v7144
      %7257 = vmatprep.subr.mxu0 0.0
      %7258 = vmatpush2.msra.mxu0 %v7143
      %7259 = vmatprep.subr.mxu0 0.0
      %7260 = vmatpush2.msra.mxu0 %v7142
      %7261 = vmatprep.subr.mxu0 0.0
      %7262 = vmatpush2.msra.mxu0 %v7141
      %7263 = vmatprep.subr.mxu0 0.0
      %7264 = vmatpush2.msra.mxu0 %v7140
      %7265 = vmatprep.subr.mxu0 0.0
      %7266 = vmatpush2.msra.mxu0 %v7139
      %7267 = vmatprep.subr.mxu0 0.0
      %7268 = vmatpush2.msra.mxu0 %v7138
      %7269 = vmatprep.subr.mxu0 0.0
      %7270 = vmatpush2.msra.mxu0 %v7137
      %7271 = vmatprep.subr.mxu0 0.0
      %7272 = vmatpush2.msra.mxu0 %v7136
      %7273 = vmatprep.subr.mxu0 0.0
      %7274 = vmatpush2.msra.mxu0 %v7135
      %7275 = vmatprep.subr.mxu0 0.0
      %7276 = vmatpush2.msra.mxu0 %v7134
      %7277 = vmatprep.subr.mxu0 0.0
      %7278 = vmatpush2.msra.mxu0 %v7133
      %7279 = vmatprep.subr.mxu0 0.0
      %7280 = vmatpush2.msra.mxu0 %v7132
      %7281 = vmatprep.subr.mxu0 0.0
      %7282 = vmatpush2.msra.mxu0 %v7131
      %7283 = vmatprep.subr.mxu0 0.0
      %7284 = vmatpush2.msra.mxu0 %v7130
      %7285 = vmatprep.mubr.f32.mxu0 %v7081
      %7286 = vmatmul.mubr.f32.gmra.mxu0 %v7064
      %v7287 = vpop.f32.mrf.mxu0
      %v7288 = vadd.f32 %v7183, %v7287
      %v7289 = vpop.f32.mrf.mxu0
      %7290 = vmatprep.mubr.f32.mxu0 %v7082
      %7291 = vmatmul.mubr.f32.gmra.mxu0 %v7065
      %v7292 = vpop.f32.mrf.mxu0
      %v7293 = vadd.f32 %v7183, %v7292
      %v7294 = vpop.f32.mrf.mxu0
      %7295 = vmatprep.mubr.f32.mxu0 %v7083
      %7296 = vmatmul.mubr.f32.gmra.mxu0 %v7066
      %v7297 = vpop.f32.mrf.mxu0
      %v7298 = vadd.f32 %v7183, %v7297
      %v7299 = vpop.f32.mrf.mxu0
      %7300 = vmatprep.mubr.f32.mxu0 %v7084
      %7301 = vmatmul.mubr.f32.gmra.mxu0 %v7067
      %v7302 = vpop.f32.mrf.mxu0
      %v7303 = vadd.f32 %v7183, %v7302
      %v7304 = vpop.f32.mrf.mxu0
      %7305 = vmatprep.mubr.f32.mxu0 %v7085
      %7306 = vmatmul.mubr.f32.gmra.mxu0 %v7068
      %v7307 = vpop.f32.mrf.mxu0
      %v7308 = vadd.f32 %v7183, %v7307
      %v7309 = vpop.f32.mrf.mxu0
      %7310 = vmatprep.mubr.f32.mxu0 %v7086
      %7311 = vmatmul.mubr.f32.gmra.mxu0 %v7069
      %v7312 = vpop.f32.mrf.mxu0
      %v7313 = vadd.f32 %v7183, %v7312
      %v7314 = vpop.f32.mrf.mxu0
      %7315 = vmatprep.mubr.f32.mxu0 %v7087
      %7316 = vmatmul.mubr.f32.gmra.mxu0 %v7070
      %v7317 = vpop.f32.mrf.mxu0
      %v7318 = vadd.f32 %v7183, %v7317
      %v7319 = vpop.f32.mrf.mxu0
      %7320 = vmatprep.mubr.f32.mxu0 %v7088
      %7321 = vmatmul.mubr.f32.gmra.mxu0 %v7071
      %v7322 = vpop.f32.mrf.mxu0
      %v7323 = vadd.f32 %v7183, %v7322
      %v7324 = vpop.f32.mrf.mxu0
      %7325 = vmatprep.mubr.f32.mxu0 %v7089
      %7326 = vmatmul.mubr.f32.gmra.mxu0 %v7072
      %v7327 = vpop.f32.mrf.mxu0
      %v7328 = vadd.f32 %v7183, %v7327
      %v7329 = vpop.f32.mrf.mxu0
      %7330 = vmatprep.mubr.f32.mxu0 %v7090
      %7331 = vmatmul.mubr.f32.gmra.mxu0 %v7073
      %v7332 = vpop.f32.mrf.mxu0
      %v7333 = vadd.f32 %v7183, %v7332
      %v7334 = vpop.f32.mrf.mxu0
      %7335 = vmatprep.mubr.f32.mxu0 %v7091
      %7336 = vmatmul.mubr.f32.gmra.mxu0 %v7074
      %v7337 = vpop.f32.mrf.mxu0
      %v7338 = vadd.f32 %v7183, %v7337
      %v7339 = vpop.f32.mrf.mxu0
      %7340 = vmatprep.mubr.f32.mxu0 %v7092
      %7341 = vmatmul.mubr.f32.gmra.mxu0 %v7075
      %v7342 = vpop.f32.mrf.mxu0
      %v7343 = vadd.f32 %v7183, %v7342
      %v7344 = vpop.f32.mrf.mxu0
      %7345 = vmatprep.mubr.f32.mxu0 %v7093
      %7346 = vmatmul.mubr.f32.gmra.mxu0 %v7076
      %v7347 = vpop.f32.mrf.mxu0
      %v7348 = vadd.f32 %v7183, %v7347
      %v7349 = vpop.f32.mrf.mxu0
      %7350 = vmatprep.mubr.f32.mxu0 %v7094
      %7351 = vmatmul.mubr.f32.gmra.mxu0 %v7077
      %v7352 = vpop.f32.mrf.mxu0
      %v7353 = vadd.f32 %v7183, %v7352
      %v7354 = vpop.f32.mrf.mxu0
      %7355 = vmatprep.mubr.f32.mxu0 %v7095
      %7356 = vmatmul.mubr.f32.gmra.mxu0 %v7078
      %v7357 = vpop.f32.mrf.mxu0
      %v7358 = vadd.f32 %v7183, %v7357
      %v7359 = vpop.f32.mrf.mxu0
      %7360 = vmatprep.mubr.f32.mxu0 %v7096
      %7361 = vmatmul.mubr.f32.gmra.mxu0 %v7079
      %v7362 = vpop.f32.mrf.mxu0
      %v7363 = vadd.f32 %v7183, %v7362
      %v7364 = vpop.f32.mrf.mxu0
      %7365 = vdwg.mxu0
      %7366 = vmatprep.subr.mxu0 0.0
      %7367 = vmatpush1.msra.mxu0 %v7161
      %7368 = vmatprep.subr.mxu0 0.0
      %7369 = vmatpush1.msra.mxu0 %v7160
      %7370 = vmatprep.subr.mxu0 0.0
      %7371 = vmatpush1.msra.mxu0 %v7159
      %7372 = vmatprep.subr.mxu0 0.0
      %7373 = vmatpush1.msra.mxu0 %v7158
      %7374 = vmatprep.subr.mxu0 0.0
      %7375 = vmatpush1.msra.mxu0 %v7157
      %7376 = vmatprep.subr.mxu0 0.0
      %7377 = vmatpush1.msra.mxu0 %v7156
      %7378 = vmatprep.subr.mxu0 0.0
      %7379 = vmatpush1.msra.mxu0 %v7155
      %7380 = vmatprep.subr.mxu0 0.0
      %7381 = vmatpush1.msra.mxu0 %v7154
      %7382 = vmatprep.subr.mxu0 0.0
      %7383 = vmatpush1.msra.mxu0 %v7153
      %7384 = vmatprep.subr.mxu0 0.0
      %7385 = vmatpush1.msra.mxu0 %v7152
      %7386 = vmatprep.subr.mxu0 0.0
      %7387 = vmatpush1.msra.mxu0 %v7151
      %7388 = vmatprep.subr.mxu0 0.0
      %7389 = vmatpush1.msra.mxu0 %v7150
      %7390 = vmatprep.subr.mxu0 0.0
      %7391 = vmatpush1.msra.mxu0 %v7149
      %7392 = vmatprep.subr.mxu0 0.0
      %7393 = vmatpush1.msra.mxu0 %v7148
      %7394 = vmatprep.subr.mxu0 0.0
      %7395 = vmatpush1.msra.mxu0 %v7147
      %7396 = vmatprep.subr.mxu0 0.0
      %7397 = vmatpush1.msra.mxu0 %v7146
      %7398 = vmatprep.subr.mxu0 0.0
      %7399 = vmatpush2.msra.mxu0 %v7219
      %7400 = vmatprep.subr.mxu0 0.0
      %7401 = vmatpush2.msra.mxu0 %v7176
      %7402 = vmatprep.subr.mxu0 0.0
      %7403 = vmatpush2.msra.mxu0 %v7175
      %7404 = vmatprep.subr.mxu0 0.0
      %7405 = vmatpush2.msra.mxu0 %v7174
      %7406 = vmatprep.subr.mxu0 0.0
      %7407 = vmatpush2.msra.mxu0 %v7173
      %7408 = vmatprep.subr.mxu0 0.0
      %7409 = vmatpush2.msra.mxu0 %v7172
      %7410 = vmatprep.subr.mxu0 0.0
      %7411 = vmatpush2.msra.mxu0 %v7171
      %7412 = vmatprep.subr.mxu0 0.0
      %7413 = vmatpush2.msra.mxu0 %v7170
      %7414 = vmatprep.subr.mxu0 0.0
      %7415 = vmatpush2.msra.mxu0 %v7169
      %7416 = vmatprep.subr.mxu0 0.0
      %7417 = vmatpush2.msra.mxu0 %v7168
      %7418 = vmatprep.subr.mxu0 0.0
      %7419 = vmatpush2.msra.mxu0 %v7167
      %7420 = vmatprep.subr.mxu0 0.0
      %7421 = vmatpush2.msra.mxu0 %v7166
      %7422 = vmatprep.subr.mxu0 0.0
      %7423 = vmatpush2.msra.mxu0 %v7165
      %7424 = vmatprep.subr.mxu0 0.0
      %7425 = vmatpush2.msra.mxu0 %v7164
      %7426 = vmatprep.subr.mxu0 0.0
      %7427 = vmatpush2.msra.mxu0 %v7163
      %7428 = vmatprep.subr.mxu0 0.0
      %7429 = vmatpush2.msra.mxu0 %v7162
      %7430 = vmatprep.mubr.f32.mxu0 %v7186
      %7431 = vmatmul.mubr.f32.gmra.mxu0 %v7098
      %v7432 = vpop.f32.mrf.mxu0
      %v7433 = vadd.f32 %v7288, %v7432
      %v7434 = vpop.f32.mrf.mxu0
      %7435 = vmatprep.mubr.f32.mxu0 %v7188
      %7436 = vmatmul.mubr.f32.gmra.mxu0 %v7099
      %v7437 = vpop.f32.mrf.mxu0
      %v7438 = vadd.f32 %v7293, %v7437
      %v7439 = vpop.f32.mrf.mxu0
      %7440 = vmatprep.mubr.f32.mxu0 %v7190
      %7441 = vmatmul.mubr.f32.gmra.mxu0 %v7100
      %v7442 = vpop.f32.mrf.mxu0
      %v7443 = vadd.f32 %v7298, %v7442
      %v7444 = vpop.f32.mrf.mxu0
      %7445 = vmatprep.mubr.f32.mxu0 %v7192
      %7446 = vmatmul.mubr.f32.gmra.mxu0 %v7101
      %v7447 = vpop.f32.mrf.mxu0
      %v7448 = vadd.f32 %v7303, %v7447
      %v7449 = vpop.f32.mrf.mxu0
      %7450 = vmatprep.mubr.f32.mxu0 %v7194
      %7451 = vmatmul.mubr.f32.gmra.mxu0 %v7102
      %v7452 = vpop.f32.mrf.mxu0
      %v7453 = vadd.f32 %v7308, %v7452
      %v7454 = vpop.f32.mrf.mxu0
      %7455 = vmatprep.mubr.f32.mxu0 %v7196
      %7456 = vmatmul.mubr.f32.gmra.mxu0 %v7103
      %v7457 = vpop.f32.mrf.mxu0
      %v7458 = vadd.f32 %v7313, %v7457
      %v7459 = vpop.f32.mrf.mxu0
      %7460 = vmatprep.mubr.f32.mxu0 %v7198
      %7461 = vmatmul.mubr.f32.gmra.mxu0 %v7104
      %v7462 = vpop.f32.mrf.mxu0
      %v7463 = vadd.f32 %v7318, %v7462
      %v7464 = vpop.f32.mrf.mxu0
      %7465 = vmatprep.mubr.f32.mxu0 %v7200
      %7466 = vmatmul.mubr.f32.gmra.mxu0 %v7105
      %v7467 = vpop.f32.mrf.mxu0
      %v7468 = vadd.f32 %v7323, %v7467
      %v7469 = vpop.f32.mrf.mxu0
      %7470 = vmatprep.mubr.f32.mxu0 %v7202
      %7471 = vmatmul.mubr.f32.gmra.mxu0 %v7106
      %v7472 = vpop.f32.mrf.mxu0
      %v7473 = vadd.f32 %v7328, %v7472
      %v7474 = vpop.f32.mrf.mxu0
      %7475 = vmatprep.mubr.f32.mxu0 %v7204
      %7476 = vmatmul.mubr.f32.gmra.mxu0 %v7107
      %v7477 = vpop.f32.mrf.mxu0
      %v7478 = vadd.f32 %v7333, %v7477
      %v7479 = vpop.f32.mrf.mxu0
      %7480 = vmatprep.mubr.f32.mxu0 %v7206
      %7481 = vmatmul.mubr.f32.gmra.mxu0 %v7108
      %v7482 = vpop.f32.mrf.mxu0
      %v7483 = vadd.f32 %v7338, %v7482
      %v7484 = vpop.f32.mrf.mxu0
      %7485 = vmatprep.mubr.f32.mxu0 %v7208
      %7486 = vmatmul.mubr.f32.gmra.mxu0 %v7109
      %v7487 = vpop.f32.mrf.mxu0
      %v7488 = vadd.f32 %v7343, %v7487
      %v7489 = vpop.f32.mrf.mxu0
      %7490 = vmatprep.mubr.f32.mxu0 %v7210
      %7491 = vmatmul.mubr.f32.gmra.mxu0 %v7110
      %v7492 = vpop.f32.mrf.mxu0
      %v7493 = vadd.f32 %v7348, %v7492
      %v7494 = vpop.f32.mrf.mxu0
      %7495 = vmatprep.mubr.f32.mxu0 %v7212
      %7496 = vmatmul.mubr.f32.gmra.mxu0 %v7111
      %v7497 = vpop.f32.mrf.mxu0
      %v7498 = vadd.f32 %v7353, %v7497
      %v7499 = vpop.f32.mrf.mxu0
      %7500 = vmatprep.mubr.f32.mxu0 %v7214
      %7501 = vmatmul.mubr.f32.gmra.mxu0 %v7112
      %v7502 = vpop.f32.mrf.mxu0
      %v7503 = vadd.f32 %v7358, %v7502
      %v7504 = vpop.f32.mrf.mxu0
      %7505 = vmatprep.mubr.f32.mxu0 %v7216
      %7506 = vmatmul.mubr.f32.gmra.mxu0 %v7113
      %v7507 = vpop.f32.mrf.mxu0
      %v7508 = vadd.f32 %v7363, %v7507
      %v7509 = vpop.f32.mrf.mxu0
      %7510 = vdwg.mxu0
      %v7511 = vsub.f32 0.0, %v7433
      %v7512 = vsub.f32 0.0, %v7438
      %v7513 = vsub.f32 0.0, %v7443
      %v7514 = vsub.f32 0.0, %v7448
      %v7515 = vsub.f32 0.0, %v7453
      %v7516 = vsub.f32 0.0, %v7458
      %v7517 = vsub.f32 0.0, %v7463
      %v7518 = vsub.f32 0.0, %v7468
      %v7519 = vsub.f32 0.0, %v7473
      %v7520 = vsub.f32 0.0, %v7478
      %v7521 = vsub.f32 0.0, %v7483
      %v7522 = vsub.f32 0.0, %v7488
      %v7523 = vsub.f32 0.0, %v7493
      %v7524 = vsub.f32 0.0, %v7498
      %v7525 = vsub.f32 0.0, %v7503
      %v7526 = vsub.f32 0.0, %v7508
      %v7527 = vmul.f32 %v7511, 1.442695
      %v7528 = vpow.pop %v7527
      %v7529 = vmul.f32 %v7512, 1.442695
      %v7530 = vpow.pop %v7529
      %v7531 = vmul.f32 %v7513, 1.442695
      %v7532 = vpow.pop %v7531
      %v7533 = vmul.f32 %v7514, 1.442695
      %v7534 = vpow.pop %v7533
      %v7535 = vmul.f32 %v7515, 1.442695
      %v7536 = vpow.pop %v7535
      %v7537 = vmul.f32 %v7516, 1.442695
      %v7538 = vpow.pop %v7537
      %v7539 = vmul.f32 %v7517, 1.442695
      %v7540 = vpow.pop %v7539
      %v7541 = vmul.f32 %v7518, 1.442695
      %v7542 = vpow.pop %v7541
      %v7543 = vmul.f32 %v7519, 1.442695
      %v7544 = vpow.pop %v7543
      %v7545 = vmul.f32 %v7520, 1.442695
      %v7546 = vpow.pop %v7545
      %v7547 = vmul.f32 %v7521, 1.442695
      %v7548 = vpow.pop %v7547
      %v7549 = vmul.f32 %v7522, 1.442695
      %v7550 = vpow.pop %v7549
      %v7551 = vmul.f32 %v7523, 1.442695
      %v7552 = vpow.pop %v7551
      %v7553 = vmul.f32 %v7524, 1.442695
      %v7554 = vpow.pop %v7553
      %v7555 = vmul.f32 %v7525, 1.442695
      %v7556 = vpow.pop %v7555
      %v7557 = vmul.f32 %v7526, 1.442695
      %v7558 = vpow.pop %v7557
      %v7559 = vadd.f32 %v7528, 1.0
      %v7560 = vadd.f32 %v7530, 1.0
      %v7561 = vadd.f32 %v7532, 1.0
      %v7562 = vadd.f32 %v7534, 1.0
      %v7563 = vadd.f32 %v7536, 1.0
      %v7564 = vadd.f32 %v7538, 1.0
      %v7565 = vadd.f32 %v7540, 1.0
      %v7566 = vadd.f32 %v7542, 1.0
      %v7567 = vadd.f32 %v7544, 1.0
      %v7568 = vadd.f32 %v7546, 1.0
      %v7569 = vadd.f32 %v7548, 1.0
      %v7570 = vadd.f32 %v7550, 1.0
      %v7571 = vadd.f32 %v7552, 1.0
      %v7572 = vadd.f32 %v7554, 1.0
      %v7573 = vadd.f32 %v7556, 1.0
      %v7574 = vadd.f32 %v7558, 1.0
      %v7575 = vrcp.pop %v7559
      %v7576 = vmul.f32 1.0, %v7575
      %v7577 = vrcp.pop %v7560
      %v7578 = vmul.f32 1.0, %v7577
      %v7579 = vrcp.pop %v7561
      %v7580 = vmul.f32 1.0, %v7579
      %v7581 = vrcp.pop %v7562
      %v7582 = vmul.f32 1.0, %v7581
      %v7583 = vrcp.pop %v7563
      %v7584 = vmul.f32 1.0, %v7583
      %v7585 = vrcp.pop %v7564
      %v7586 = vmul.f32 1.0, %v7585
      %v7587 = vrcp.pop %v7565
      %v7588 = vmul.f32 1.0, %v7587
      %v7589 = vrcp.pop %v7566
      %v7590 = vmul.f32 1.0, %v7589
      %v7591 = vrcp.pop %v7567
      %v7592 = vmul.f32 1.0, %v7591
      %v7593 = vrcp.pop %v7568
      %v7594 = vmul.f32 1.0, %v7593
      %v7595 = vrcp.pop %v7569
      %v7596 = vmul.f32 1.0, %v7595
      %v7597 = vrcp.pop %v7570
      %v7598 = vmul.f32 1.0, %v7597
      %v7599 = vrcp.pop %v7571
      %v7600 = vmul.f32 1.0, %v7599
      %v7601 = vrcp.pop %v7572
      %v7602 = vmul.f32 1.0, %v7601
      %v7603 = vrcp.pop %v7573
      %v7604 = vmul.f32 1.0, %v7603
      %v7605 = vrcp.pop %v7574
      %v7606 = vmul.f32 1.0, %v7605
      %v7607 = vld [vmem:[%s7] sm:$0xff]
      %v7608 = vld [vmem:[%s7 + $0x8] sm:$0xff]
      %v7609 = vld [vmem:[%s7 + $0x10] sm:$0xff]
      %v7610 = vld [vmem:[%s7 + $0x18] sm:$0xff]
      %v7611 = vld [vmem:[%s7 + $0x20] sm:$0xff]
      %v7612 = vld [vmem:[%s7 + $0x28] sm:$0xff]
      %v7613 = vld [vmem:[%s7 + $0x30] sm:$0xff]
      %v7614 = vld [vmem:[%s7 + $0x38] sm:$0xff]
      %v7615 = vld [vmem:[%s7 + $0x40] sm:$0xff]
      %v7616 = vld [vmem:[%s7 + $0x48] sm:$0xff]
      %v7617 = vld [vmem:[%s7 + $0x50] sm:$0xff]
      %v7618 = vld [vmem:[%s7 + $0x58] sm:$0xff]
      %v7619 = vld [vmem:[%s7 + $0x60] sm:$0xff]
      %v7620 = vld [vmem:[%s7 + $0x68] sm:$0xff]
      %v7621 = vld [vmem:[%s7 + $0x70] sm:$0xff]
      %v7622 = vld [vmem:[%s8] sm:$0x1]
      %v7624 = vlaneseq
      %v7625 = vshrl.u32 %v7624, 7
      %v7626 = vsub.s32 0, %v7625
      %v7627 = vrot.slane %v7622, %v7626
      %vm7629 = vcmask 982016
      %v7631 = vsel %vm7629, %v7576, 0
      %v7634 = vsel %vm7629, %v7578, 0
      %v7637 = vsel %vm7629, %v7580, 0
      %v7640 = vsel %vm7629, %v7582, 0
      %v7643 = vsel %vm7629, %v7584, 0
      %v7646 = vsel %vm7629, %v7586, 0
      %v7649 = vsel %vm7629, %v7588, 0
      %v7652 = vsel %vm7629, %v7590, 0
      %v7655 = vsel %vm7629, %v7592, 0
      %v7658 = vsel %vm7629, %v7594, 0
      %v7661 = vsel %vm7629, %v7596, 0
      %v7664 = vsel %vm7629, %v7598, 0
      %v7667 = vsel %vm7629, %v7600, 0
      %v7670 = vsel %vm7629, %v7602, 0
      %v7673 = vsel %vm7629, %v7604, 0
      %v7676 = vsel %vm7629, %v7606, 0
      %7678 = vmatprep.subr.mxu0 0.0
      %7679 = vmatpush1.msra.mxu0 0.0
      %7680 = vmatprep.subr.mxu0 0.0
      %7681 = vmatpush1.msra.mxu0 %v7621
      %7682 = vmatprep.subr.mxu0 0.0
      %7683 = vmatpush1.msra.mxu0 %v7620
      %7684 = vmatprep.subr.mxu0 0.0
      %7685 = vmatpush1.msra.mxu0 %v7619
      %7686 = vmatprep.subr.mxu0 0.0
      %7687 = vmatpush1.msra.mxu0 %v7618
      %7688 = vmatprep.subr.mxu0 0.0
      %7689 = vmatpush1.msra.mxu0 %v7617
      %7690 = vmatprep.subr.mxu0 0.0
      %7691 = vmatpush1.msra.mxu0 %v7616
      %7692 = vmatprep.subr.mxu0 0.0
      %7693 = vmatpush1.msra.mxu0 %v7615
      %7694 = vmatprep.subr.mxu0 0.0
      %7695 = vmatpush1.msra.mxu0 %v7614
      %7696 = vmatprep.subr.mxu0 0.0
      %7697 = vmatpush1.msra.mxu0 %v7613
      %7698 = vmatprep.subr.mxu0 0.0
      %7699 = vmatpush1.msra.mxu0 %v7612
      %7700 = vmatprep.subr.mxu0 0.0
      %7701 = vmatpush1.msra.mxu0 %v7611
      %7702 = vmatprep.subr.mxu0 0.0
      %7703 = vmatpush1.msra.mxu0 %v7610
      %7704 = vmatprep.subr.mxu0 0.0
      %7705 = vmatpush1.msra.mxu0 %v7609
      %7706 = vmatprep.subr.mxu0 0.0
      %7707 = vmatpush1.msra.mxu0 %v7608
      %7708 = vmatprep.subr.mxu0 0.0
      %7709 = vmatpush1.msra.mxu0 %v7607
      %7710 = vmatprep.subr.mxu0 0.0
      %7711 = vmatpush2.msra.mxu0 0.0
      %7712 = vmatprep.subr.mxu0 0.0
      %7713 = vmatpush2.msra.mxu0 0.0
      %7714 = vmatprep.subr.mxu0 0.0
      %7715 = vmatpush2.msra.mxu0 0.0
      %7716 = vmatprep.subr.mxu0 0.0
      %7717 = vmatpush2.msra.mxu0 0.0
      %7718 = vmatprep.subr.mxu0 0.0
      %7719 = vmatpush2.msra.mxu0 0.0
      %7720 = vmatprep.subr.mxu0 0.0
      %7721 = vmatpush2.msra.mxu0 0.0
      %7722 = vmatprep.subr.mxu0 0.0
      %7723 = vmatpush2.msra.mxu0 0.0
      %7724 = vmatprep.subr.mxu0 0.0
      %7725 = vmatpush2.msra.mxu0 0.0
      %7726 = vmatprep.subr.mxu0 0.0
      %7727 = vmatpush2.msra.mxu0 0.0
      %7728 = vmatprep.subr.mxu0 0.0
      %7729 = vmatpush2.msra.mxu0 0.0
      %7730 = vmatprep.subr.mxu0 0.0
      %7731 = vmatpush2.msra.mxu0 0.0
      %7732 = vmatprep.subr.mxu0 0.0
      %7733 = vmatpush2.msra.mxu0 0.0
      %7734 = vmatprep.subr.mxu0 0.0
      %7735 = vmatpush2.msra.mxu0 0.0
      %7736 = vmatprep.subr.mxu0 0.0
      %7737 = vmatpush2.msra.mxu0 0.0
      %7738 = vmatprep.subr.mxu0 0.0
      %7739 = vmatpush2.msra.mxu0 0.0
      %7740 = vmatprep.subr.mxu0 0.0
      %7741 = vmatpush2.msra.mxu0 0.0
      %7742 = vmatprep.mubr.f32.mxu0 0.0
      %7743 = vmatmul.mubr.f32.gmra.mxu0 %v7631
      %v7744 = vpop.f32.mrf.mxu0
      %v7745 = vadd.f32 %v7627, %v7744
      %v7746 = vpop.f32.mrf.mxu0
      %7747 = vmatprep.mubr.f32.mxu0 0.0
      %7748 = vmatmul.mubr.f32.gmra.mxu0 %v7634
      %v7749 = vpop.f32.mrf.mxu0
      %v7750 = vadd.f32 %v7627, %v7749
      %v7751 = vpop.f32.mrf.mxu0
      %7752 = vmatprep.mubr.f32.mxu0 0.0
      %7753 = vmatmul.mubr.f32.gmra.mxu0 %v7637
      %v7754 = vpop.f32.mrf.mxu0
      %v7755 = vadd.f32 %v7627, %v7754
      %v7756 = vpop.f32.mrf.mxu0
      %7757 = vmatprep.mubr.f32.mxu0 0.0
      %7758 = vmatmul.mubr.f32.gmra.mxu0 %v7640
      %v7759 = vpop.f32.mrf.mxu0
      %v7760 = vadd.f32 %v7627, %v7759
      %v7761 = vpop.f32.mrf.mxu0
      %7762 = vmatprep.mubr.f32.mxu0 0.0
      %7763 = vmatmul.mubr.f32.gmra.mxu0 %v7643
      %v7764 = vpop.f32.mrf.mxu0
      %v7765 = vadd.f32 %v7627, %v7764
      %v7766 = vpop.f32.mrf.mxu0
      %7767 = vmatprep.mubr.f32.mxu0 0.0
      %7768 = vmatmul.mubr.f32.gmra.mxu0 %v7646
      %v7769 = vpop.f32.mrf.mxu0
      %v7770 = vadd.f32 %v7627, %v7769
      %v7771 = vpop.f32.mrf.mxu0
      %7772 = vmatprep.mubr.f32.mxu0 0.0
      %7773 = vmatmul.mubr.f32.gmra.mxu0 %v7649
      %v7774 = vpop.f32.mrf.mxu0
      %v7775 = vadd.f32 %v7627, %v7774
      %v7776 = vpop.f32.mrf.mxu0
      %7777 = vmatprep.mubr.f32.mxu0 0.0
      %7778 = vmatmul.mubr.f32.gmra.mxu0 %v7652
      %v7779 = vpop.f32.mrf.mxu0
      %v7780 = vadd.f32 %v7627, %v7779
      %v7781 = vpop.f32.mrf.mxu0
      %7782 = vmatprep.mubr.f32.mxu0 0.0
      %7783 = vmatmul.mubr.f32.gmra.mxu0 %v7655
      %v7784 = vpop.f32.mrf.mxu0
      %v7785 = vadd.f32 %v7627, %v7784
      %v7786 = vpop.f32.mrf.mxu0
      %7787 = vmatprep.mubr.f32.mxu0 0.0
      %7788 = vmatmul.mubr.f32.gmra.mxu0 %v7658
      %v7789 = vpop.f32.mrf.mxu0
      %v7790 = vadd.f32 %v7627, %v7789
      %v7791 = vpop.f32.mrf.mxu0
      %7792 = vmatprep.mubr.f32.mxu0 0.0
      %7793 = vmatmul.mubr.f32.gmra.mxu0 %v7661
      %v7794 = vpop.f32.mrf.mxu0
      %v7795 = vadd.f32 %v7627, %v7794
      %v7796 = vpop.f32.mrf.mxu0
      %7797 = vmatprep.mubr.f32.mxu0 0.0
      %7798 = vmatmul.mubr.f32.gmra.mxu0 %v7664
      %v7799 = vpop.f32.mrf.mxu0
      %v7800 = vadd.f32 %v7627, %v7799
      %v7801 = vpop.f32.mrf.mxu0
      %7802 = vmatprep.mubr.f32.mxu0 0.0
      %7803 = vmatmul.mubr.f32.gmra.mxu0 %v7667
      %v7804 = vpop.f32.mrf.mxu0
      %v7805 = vadd.f32 %v7627, %v7804
      %v7806 = vpop.f32.mrf.mxu0
      %7807 = vmatprep.mubr.f32.mxu0 0.0
      %7808 = vmatmul.mubr.f32.gmra.mxu0 %v7670
      %v7809 = vpop.f32.mrf.mxu0
      %v7810 = vadd.f32 %v7627, %v7809
      %v7811 = vpop.f32.mrf.mxu0
      %7812 = vmatprep.mubr.f32.mxu0 0.0
      %7813 = vmatmul.mubr.f32.gmra.mxu0 %v7673
      %v7814 = vpop.f32.mrf.mxu0
      %v7815 = vadd.f32 %v7627, %v7814
      %v7816 = vpop.f32.mrf.mxu0
      %7817 = vmatprep.mubr.f32.mxu0 0.0
      %7818 = vmatmul.mubr.f32.gmra.mxu0 %v7676
      %v7819 = vpop.f32.mrf.mxu0
      %v7820 = vadd.f32 %v7627, %v7819
      %v7821 = vpop.f32.mrf.mxu0
      %7822 = vdwg.mxu0
      %v7823 = vsub.f32 0.0, %v7745
      %v7824 = vsub.f32 0.0, %v7750
      %v7825 = vsub.f32 0.0, %v7755
      %v7826 = vsub.f32 0.0, %v7760
      %v7827 = vsub.f32 0.0, %v7765
      %v7828 = vsub.f32 0.0, %v7770
      %v7829 = vsub.f32 0.0, %v7775
      %v7830 = vsub.f32 0.0, %v7780
      %v7831 = vsub.f32 0.0, %v7785
      %v7832 = vsub.f32 0.0, %v7790
      %v7833 = vsub.f32 0.0, %v7795
      %v7834 = vsub.f32 0.0, %v7800
      %v7835 = vsub.f32 0.0, %v7805
      %v7836 = vsub.f32 0.0, %v7810
      %v7837 = vsub.f32 0.0, %v7815
      %v7838 = vsub.f32 0.0, %v7820
      %v7839 = vmul.f32 %v7823, 1.442695
      %v7840 = vpow.pop %v7839
      %v7841 = vmul.f32 %v7824, 1.442695
      %v7842 = vpow.pop %v7841
      %v7843 = vmul.f32 %v7825, 1.442695
      %v7844 = vpow.pop %v7843
      %v7845 = vmul.f32 %v7826, 1.442695
      %v7846 = vpow.pop %v7845
      %v7847 = vmul.f32 %v7827, 1.442695
      %v7848 = vpow.pop %v7847
      %v7849 = vmul.f32 %v7828, 1.442695
      %v7850 = vpow.pop %v7849
      %v7851 = vmul.f32 %v7829, 1.442695
      %v7852 = vpow.pop %v7851
      %v7853 = vmul.f32 %v7830, 1.442695
      %v7854 = vpow.pop %v7853
      %v7855 = vmul.f32 %v7831, 1.442695
      %v7856 = vpow.pop %v7855
      %v7857 = vmul.f32 %v7832, 1.442695
      %v7858 = vpow.pop %v7857
      %v7859 = vmul.f32 %v7833, 1.442695
      %v7860 = vpow.pop %v7859
      %v7861 = vmul.f32 %v7834, 1.442695
      %v7862 = vpow.pop %v7861
      %v7863 = vmul.f32 %v7835, 1.442695
      %v7864 = vpow.pop %v7863
      %v7865 = vmul.f32 %v7836, 1.442695
      %v7866 = vpow.pop %v7865
      %v7867 = vmul.f32 %v7837, 1.442695
      %v7868 = vpow.pop %v7867
      %v7869 = vmul.f32 %v7838, 1.442695
      %v7870 = vpow.pop %v7869
      %v7871 = vadd.f32 %v7840, 1.0
      %v7872 = vadd.f32 %v7842, 1.0
      %v7873 = vadd.f32 %v7844, 1.0
      %v7874 = vadd.f32 %v7846, 1.0
      %v7875 = vadd.f32 %v7848, 1.0
      %v7876 = vadd.f32 %v7850, 1.0
      %v7877 = vadd.f32 %v7852, 1.0
      %v7878 = vadd.f32 %v7854, 1.0
      %v7879 = vadd.f32 %v7856, 1.0
      %v7880 = vadd.f32 %v7858, 1.0
      %v7881 = vadd.f32 %v7860, 1.0
      %v7882 = vadd.f32 %v7862, 1.0
      %v7883 = vadd.f32 %v7864, 1.0
      %v7884 = vadd.f32 %v7866, 1.0
      %v7885 = vadd.f32 %v7868, 1.0
      %v7886 = vadd.f32 %v7870, 1.0
      %v7887 = vrcp.pop %v7871
      %v7888 = vmul.f32 1.0, %v7887
      %v7889 = vrcp.pop %v7872
      %v7890 = vmul.f32 1.0, %v7889
      %v7891 = vrcp.pop %v7873
      %v7892 = vmul.f32 1.0, %v7891
      %v7893 = vrcp.pop %v7874
      %v7894 = vmul.f32 1.0, %v7893
      %v7895 = vrcp.pop %v7875
      %v7896 = vmul.f32 1.0, %v7895
      %v7897 = vrcp.pop %v7876
      %v7898 = vmul.f32 1.0, %v7897
      %v7899 = vrcp.pop %v7877
      %v7900 = vmul.f32 1.0, %v7899
      %v7901 = vrcp.pop %v7878
      %v7902 = vmul.f32 1.0, %v7901
      %v7903 = vrcp.pop %v7879
      %v7904 = vmul.f32 1.0, %v7903
      %v7905 = vrcp.pop %v7880
      %v7906 = vmul.f32 1.0, %v7905
      %v7907 = vrcp.pop %v7881
      %v7908 = vmul.f32 1.0, %v7907
      %v7909 = vrcp.pop %v7882
      %v7910 = vmul.f32 1.0, %v7909
      %v7911 = vrcp.pop %v7883
      %v7912 = vmul.f32 1.0, %v7911
      %v7913 = vrcp.pop %v7884
      %v7914 = vmul.f32 1.0, %v7913
      %v7915 = vrcp.pop %v7885
      %v7916 = vmul.f32 1.0, %v7915
      %v7917 = vrcp.pop %v7886
      %v7918 = vmul.f32 1.0, %v7917
      %v7919 = vld [vmem:[%s9] sm:$0xff]
      %v7920 = vld [vmem:[%s9 + $0x8] sm:$0xff]
      %v7921 = vld [vmem:[%s9 + $0x10] sm:$0xff]
      %v7922 = vld [vmem:[%s9 + $0x18] sm:$0xff]
      %v7923 = vld [vmem:[%s9 + $0x20] sm:$0xff]
      %v7924 = vld [vmem:[%s9 + $0x28] sm:$0xff]
      %v7925 = vld [vmem:[%s9 + $0x30] sm:$0xff]
      %v7926 = vld [vmem:[%s9 + $0x38] sm:$0xff]
      %v7927 = vld [vmem:[%s9 + $0x40] sm:$0xff]
      %v7928 = vld [vmem:[%s9 + $0x48] sm:$0xff]
      %v7929 = vld [vmem:[%s9 + $0x50] sm:$0xf]
      %v7930 = vld [vmem:[%s10] sm:$0x1]
      %v7932 = vlaneseq
      %v7933 = vshrl.u32 %v7932, 7
      %v7934 = vsub.s32 0, %v7933
      %v7935 = vrot.slane %v7930, %v7934
      %v7938 = vsel %vm1647, %v7888, 0
      %v7941 = vsel %vm1647, %v7890, 0
      %v7944 = vsel %vm1647, %v7892, 0
      %v7947 = vsel %vm1647, %v7894, 0
      %v7950 = vsel %vm1647, %v7896, 0
      %v7953 = vsel %vm1647, %v7898, 0
      %v7956 = vsel %vm1647, %v7900, 0
      %v7959 = vsel %vm1647, %v7902, 0
      %v7962 = vsel %vm1647, %v7904, 0
      %v7965 = vsel %vm1647, %v7906, 0
      %v7968 = vsel %vm1647, %v7908, 0
      %v7971 = vsel %vm1647, %v7910, 0
      %v7974 = vsel %vm1647, %v7912, 0
      %v7977 = vsel %vm1647, %v7914, 0
      %v7980 = vsel %vm1647, %v7916, 0
      %v7983 = vsel %vm1647, %v7918, 0
      %v7986 = vsel %vm1292, %v7929, 0
      %7988 = vmatprep.subr.mxu0 0.0
      %7989 = vmatpush1.msra.mxu0 0.0
      %7990 = vmatprep.subr.mxu0 0.0
      %7991 = vmatpush1.msra.mxu0 0.0
      %7992 = vmatprep.subr.mxu0 0.0
      %7993 = vmatpush1.msra.mxu0 0.0
      %7994 = vmatprep.subr.mxu0 0.0
      %7995 = vmatpush1.msra.mxu0 0.0
      %7996 = vmatprep.subr.mxu0 0.0
      %7997 = vmatpush1.msra.mxu0 0.0
      %7998 = vmatprep.subr.mxu0 0.0
      %7999 = vmatpush1.msra.mxu0 %v7986
      %8000 = vmatprep.subr.mxu0 0.0
      %8001 = vmatpush1.msra.mxu0 %v7928
      %8002 = vmatprep.subr.mxu0 0.0
      %8003 = vmatpush1.msra.mxu0 %v7927
      %8004 = vmatprep.subr.mxu0 0.0
      %8005 = vmatpush1.msra.mxu0 %v7926
      %8006 = vmatprep.subr.mxu0 0.0
      %8007 = vmatpush1.msra.mxu0 %v7925
      %8008 = vmatprep.subr.mxu0 0.0
      %8009 = vmatpush1.msra.mxu0 %v7924
      %8010 = vmatprep.subr.mxu0 0.0
      %8011 = vmatpush1.msra.mxu0 %v7923
      %8012 = vmatprep.subr.mxu0 0.0
      %8013 = vmatpush1.msra.mxu0 %v7922
      %8014 = vmatprep.subr.mxu0 0.0
      %8015 = vmatpush1.msra.mxu0 %v7921
      %8016 = vmatprep.subr.mxu0 0.0
      %8017 = vmatpush1.msra.mxu0 %v7920
      %8018 = vmatprep.subr.mxu0 0.0
      %8019 = vmatpush1.msra.mxu0 %v7919
      %8020 = vmatprep.subr.mxu0 0.0
      %8021 = vmatpush2.msra.mxu0 0.0
      %8022 = vmatprep.subr.mxu0 0.0
      %8023 = vmatpush2.msra.mxu0 0.0
      %8024 = vmatprep.subr.mxu0 0.0
      %8025 = vmatpush2.msra.mxu0 0.0
      %8026 = vmatprep.subr.mxu0 0.0
      %8027 = vmatpush2.msra.mxu0 0.0
      %8028 = vmatprep.subr.mxu0 0.0
      %8029 = vmatpush2.msra.mxu0 0.0
      %8030 = vmatprep.subr.mxu0 0.0
      %8031 = vmatpush2.msra.mxu0 0.0
      %8032 = vmatprep.subr.mxu0 0.0
      %8033 = vmatpush2.msra.mxu0 0.0
      %8034 = vmatprep.subr.mxu0 0.0
      %8035 = vmatpush2.msra.mxu0 0.0
      %8036 = vmatprep.subr.mxu0 0.0
      %8037 = vmatpush2.msra.mxu0 0.0
      %8038 = vmatprep.subr.mxu0 0.0
      %8039 = vmatpush2.msra.mxu0 0.0
      %8040 = vmatprep.subr.mxu0 0.0
      %8041 = vmatpush2.msra.mxu0 0.0
      %8042 = vmatprep.subr.mxu0 0.0
      %8043 = vmatpush2.msra.mxu0 0.0
      %8044 = vmatprep.subr.mxu0 0.0
      %8045 = vmatpush2.msra.mxu0 0.0
      %8046 = vmatprep.subr.mxu0 0.0
      %8047 = vmatpush2.msra.mxu0 0.0
      %8048 = vmatprep.subr.mxu0 0.0
      %8049 = vmatpush2.msra.mxu0 0.0
      %8050 = vmatprep.subr.mxu0 0.0
      %8051 = vmatpush2.msra.mxu0 0.0
      %8052 = vmatprep.mubr.f32.mxu0 0.0
      %8053 = vmatmul.mubr.f32.gmra.mxu0 %v7938
      %v8054 = vpop.f32.mrf.mxu0
      %v8055 = vadd.f32 %v7935, %v8054
      %v8056 = vpop.f32.mrf.mxu0
      %8057 = vmatprep.mubr.f32.mxu0 0.0
      %8058 = vmatmul.mubr.f32.gmra.mxu0 %v7941
      %v8059 = vpop.f32.mrf.mxu0
      %v8060 = vadd.f32 %v7935, %v8059
      %v8061 = vpop.f32.mrf.mxu0
      %8062 = vmatprep.mubr.f32.mxu0 0.0
      %8063 = vmatmul.mubr.f32.gmra.mxu0 %v7944
      %v8064 = vpop.f32.mrf.mxu0
      %v8065 = vadd.f32 %v7935, %v8064
      %v8066 = vpop.f32.mrf.mxu0
      %8067 = vmatprep.mubr.f32.mxu0 0.0
      %8068 = vmatmul.mubr.f32.gmra.mxu0 %v7947
      %v8069 = vpop.f32.mrf.mxu0
      %v8070 = vadd.f32 %v7935, %v8069
      %v8071 = vpop.f32.mrf.mxu0
      %8072 = vmatprep.mubr.f32.mxu0 0.0
      %8073 = vmatmul.mubr.f32.gmra.mxu0 %v7950
      %v8074 = vpop.f32.mrf.mxu0
      %v8075 = vadd.f32 %v7935, %v8074
      %v8076 = vpop.f32.mrf.mxu0
      %8077 = vmatprep.mubr.f32.mxu0 0.0
      %8078 = vmatmul.mubr.f32.gmra.mxu0 %v7953
      %v8079 = vpop.f32.mrf.mxu0
      %v8080 = vadd.f32 %v7935, %v8079
      %v8081 = vpop.f32.mrf.mxu0
      %8082 = vmatprep.mubr.f32.mxu0 0.0
      %8083 = vmatmul.mubr.f32.gmra.mxu0 %v7956
      %v8084 = vpop.f32.mrf.mxu0
      %v8085 = vadd.f32 %v7935, %v8084
      %v8086 = vpop.f32.mrf.mxu0
      %8087 = vmatprep.mubr.f32.mxu0 0.0
      %8088 = vmatmul.mubr.f32.gmra.mxu0 %v7959
      %v8089 = vpop.f32.mrf.mxu0
      %v8090 = vadd.f32 %v7935, %v8089
      %v8091 = vpop.f32.mrf.mxu0
      %8092 = vmatprep.mubr.f32.mxu0 0.0
      %8093 = vmatmul.mubr.f32.gmra.mxu0 %v7962
      %v8094 = vpop.f32.mrf.mxu0
      %v8095 = vadd.f32 %v7935, %v8094
      %v8096 = vpop.f32.mrf.mxu0
      %8097 = vmatprep.mubr.f32.mxu0 0.0
      %8098 = vmatmul.mubr.f32.gmra.mxu0 %v7965
      %v8099 = vpop.f32.mrf.mxu0
      %v8100 = vadd.f32 %v7935, %v8099
      %v8101 = vpop.f32.mrf.mxu0
      %8102 = vmatprep.mubr.f32.mxu0 0.0
      %8103 = vmatmul.mubr.f32.gmra.mxu0 %v7968
      %v8104 = vpop.f32.mrf.mxu0
      %v8105 = vadd.f32 %v7935, %v8104
      %v8106 = vpop.f32.mrf.mxu0
      %8107 = vmatprep.mubr.f32.mxu0 0.0
      %8108 = vmatmul.mubr.f32.gmra.mxu0 %v7971
      %v8109 = vpop.f32.mrf.mxu0
      %v8110 = vadd.f32 %v7935, %v8109
      %v8111 = vpop.f32.mrf.mxu0
      %8112 = vmatprep.mubr.f32.mxu0 0.0
      %8113 = vmatmul.mubr.f32.gmra.mxu0 %v7974
      %v8114 = vpop.f32.mrf.mxu0
      %v8115 = vadd.f32 %v7935, %v8114
      %v8116 = vpop.f32.mrf.mxu0
      %8117 = vmatprep.mubr.f32.mxu0 0.0
      %8118 = vmatmul.mubr.f32.gmra.mxu0 %v7977
      %v8119 = vpop.f32.mrf.mxu0
      %v8120 = vadd.f32 %v7935, %v8119
      %v8121 = vpop.f32.mrf.mxu0
      %8122 = vmatprep.mubr.f32.mxu0 0.0
      %8123 = vmatmul.mubr.f32.gmra.mxu0 %v7980
      %v8124 = vpop.f32.mrf.mxu0
      %v8125 = vadd.f32 %v7935, %v8124
      %v8126 = vpop.f32.mrf.mxu0
      %8127 = vmatprep.mubr.f32.mxu0 0.0
      %8128 = vmatmul.mubr.f32.gmra.mxu0 %v7983
      %v8129 = vpop.f32.mrf.mxu0
      %v8130 = vadd.f32 %v7935, %v8129
      %v8131 = vpop.f32.mrf.mxu0
      %8132 = vdwg.mxu0
      %8133 = vst [vmem:[%s391] sm:$0xff] %v8055
      %8134 = vst [vmem:[%s391 + $0x8] sm:$0xff] %v8060
      %8135 = vst [vmem:[%s391 + $0x10] sm:$0xff] %v8065
      %8136 = vst [vmem:[%s391 + $0x18] sm:$0xff] %v8070
      %8137 = vst [vmem:[%s391 + $0x20] sm:$0xff] %v8075
      %8138 = vst [vmem:[%s391 + $0x28] sm:$0xff] %v8080
      %8139 = vst [vmem:[%s391 + $0x30] sm:$0xff] %v8085
      %8140 = vst [vmem:[%s391 + $0x38] sm:$0xff] %v8090
      %8141 = vst [vmem:[%s391 + $0x40] sm:$0xff] %v8095
      %8142 = vst [vmem:[%s391 + $0x48] sm:$0xff] %v8100
      %8143 = vst [vmem:[%s391 + $0x50] sm:$0xff] %v8105
      %8144 = vst [vmem:[%s391 + $0x58] sm:$0xff] %v8110
      %8145 = vst [vmem:[%s391 + $0x60] sm:$0xff] %v8115
      %8146 = vst [vmem:[%s391 + $0x68] sm:$0xff] %v8120
      %8147 = vst [vmem:[%s391 + $0x70] sm:$0xff] %v8125
      %8148 = vst [vmem:[%s391 + $0x78] sm:$0xff] %v8130
      %s8149 = smul.u32 16, %s22
      %p8150 = scmp.lt.s32.totalorder %s8149, 31
      %s8151 = scalar_select %p8150, %s8149, 31
      %s8152 = smul.addr %s8151, 8
      %s8153 = scalar_lea.vmem %s11, %s8152
      // Predicated region
      $region65: #{lenet_forward.1} parent=63 // pred_check
        %p8154 = pneg %p276
      $region66: #{lenet_forward.1} parent=63 // pred_check_branch
        %8156 = sbr.rel (%p8154) target = $region68
      $region67: #{lenet_forward.1} parent=63 // pred_region
        %s8157 = smul.u32 16, %s22
      $region68: #{lenet_forward.1} parent=63 // pred_fallthru
        _
    $region64: #{lenet_forward.1} parent=5 // pred_fallthru
      _
    %p8158 = scmp.le.s32.totalorder 2, %s17
    // Predicated region
    $region69: #{lenet_forward.1} parent=5 // pred_check
      %p8159 = pneg %p8158
    $region70: #{lenet_forward.1} parent=5 // pred_check_branch
      %8161 = sbr.rel (%p8159) target = $region72
    $region71: #{lenet_forward.1} parent=5 // pred_region
      %s8162 = ssub.s32 %s17, 2
      // Predicated region
      $region73: #{lenet_forward.1} parent=71 // pred_check
        %p8163 = pneg %p282
      $region74: #{lenet_forward.1} parent=71 // pred_check_branch
        %8165 = sbr.rel (%p8163) target = $region76
      $region75: #{lenet_forward.1} parent=71 // pred_region
        %s8166 = smul.u32 16, %s23
        %p8167 = scmp.lt.s32.totalorder %s8166, 31
        %s8168 = scalar_select %p8167, %s8166, 31
        %s8169 = smul.addr %s8168, 8
        %s8170 = scalar_lea.vmem %s11, %s8169
      $region76: #{lenet_forward.1} parent=71 // pred_fallthru
        _
    $region72: #{lenet_forward.1} parent=5 // pred_fallthru
      _
  $region6: #{lenet_forward.1} parent=0 // loop_footer
    %s21 = sadd.s32 1, %s17
  $region7: #{lenet_forward.1} parent=0 // loop_footer_branch
    %16 = sbr.rel target = $region3
  $region8: #{lenet_forward.1} parent=0 // loop_exit
    _

</llo_original>
